<compile_context>
chip_gen: v6e
topology: v6e:2x2x1
jax: 0.10.0
libtpu: 0.0.40
codegen_flags: <defaults>
</compile_context>

<pallas_src>
import functools

import jax
import jax.numpy as jnp
import numpy as np
from jax import lax
from jax.experimental import pallas as pl
from jax.experimental.pallas import tpu as pltpu

GN_GROUPS = 32
GN_EPS = 1e-5  # torch.nn.GroupNorm default


# ----------------------------------------------------------------------------
# In-kernel math helpers
# ----------------------------------------------------------------------------
def _erf_approx(x):
  # Abramowitz & Stegun 7.1.26 rational approximation (max abs err ~1.5e-7),
  # i.e. nn.GELU(approximate='none') semantics to within f32 precision.
  a1, a2, a3, a4, a5 = (0.254829592, -0.284496736, 1.421413741,
                        -1.453152027, 1.061405429)
  p = 0.3275911
  sign = jnp.where(x >= 0.0, 1.0, -1.0)
  z = jnp.abs(x)
  t = 1.0 / (1.0 + p * z)
  poly = ((((a5 * t + a4) * t + a3) * t + a2) * t + a1) * t
  return sign * (1.0 - poly * jnp.exp(-z * z))


def _gelu_exact(x):
  return 0.5 * x * (1.0 + _erf_approx(x * 0.7071067811865476))


# ----------------------------------------------------------------------------
# Kernel building blocks (channels-first: tiles are (C, H*W), spatial on lanes)
# ----------------------------------------------------------------------------
def _fill_wrap_scratch(xs_ref, x_chw, hw, w):
  """Fill a (C, HW + 4W) scratch: image at cols [2W, 2W+HW), plus two wrapped
  image rows of circular padding on each side so every 3x3 tap below is a
  static lane-offset slice."""
  xs_ref[:, pl.ds(2 * w, hw)] = x_chw
  # leading pad = image rows H-2, H-1 ; trailing pad = image rows 0, 1
  xs_ref[:, pl.ds(0, 2 * w)] = xs_ref[:, pl.ds(hw, 2 * w)]
  xs_ref[:, pl.ds(2 * w + hw, 2 * w)] = xs_ref[:, pl.ds(2 * w, 2 * w)]


def _conv3x3_circular(xs_ref, w_ref, b_ref, h, w):
  """acc (Cout, HW) = sum_k w_ref[k] @ tap_k + b, taps gathered from the
  wrap-padded scratch.  Tap (dy, dx) reads X[(y+dy) mod H, (x+dx) mod W]."""
  hw = h * w
  cin = xs_ref.shape[0]
  col = lax.broadcasted_iota(jnp.int32, (cin, hw), 1) % w
  is_first = col == 0          # x == 0      -> left circular wrap
  is_last = col == (w - 1)     # x == W - 1  -> right circular wrap

  acc = None
  k = 0
  for dy in (-1, 0, 1):
    base = 2 * w + dy * w
    for dx in (-1, 0, 1):
      main = xs_ref[:, pl.ds(base + dx, hw)]
      if dx == 1:
        fix = xs_ref[:, pl.ds(base - (w - 1), hw)]
        tap = jnp.where(is_last, fix, main)
      elif dx == -1:
        fix = xs_ref[:, pl.ds(base + (w - 1), hw)]
        tap = jnp.where(is_first, fix, main)
      else:
        tap = main
      contrib = jnp.dot(w_ref[k], tap, preferred_element_type=jnp.float32)
      acc = contrib if acc is None else acc + contrib
      k += 1
  return acc + b_ref[...]


def _groupnorm_gelu(acc, gmat_ref, gamma_ref, beta_ref):
  """GroupNorm(32) + exact GELU on a channels-first (C, HW) tile.

  Single-pass stats: gmat carries the 1/(HW*group_size) normalization, so
  summing the group-averaging matmuls over lanes yields the per-channel
  group mean / E[x^2] already broadcast to every channel of the group.
  """
  gacc = jnp.dot(gmat_ref[...], acc, preferred_element_type=jnp.float32)
  gacc2 = jnp.dot(gmat_ref[...], acc * acc,
                  preferred_element_type=jnp.float32)
  mean = jnp.sum(gacc, axis=1, keepdims=True)       # (C, 1)
  ex2 = jnp.sum(gacc2, axis=1, keepdims=True)       # (C, 1)
  var = ex2 - mean * mean                           # biased, as in torch
  inv = lax.rsqrt(var + GN_EPS)
  y = (acc - mean) * (inv * gamma_ref[...]) + beta_ref[...]
  return _gelu_exact(y)


def _decoder_block_kernel(x_ref,
                          w1_ref, b1_ref, gmat1_ref, gamma1_ref, beta1_ref,
                          w2_ref, b2_ref, gmat2_ref, gamma2_ref, beta2_ref,
                          o_ref, xs1_ref, xs2_ref, *, h, w):
  hw = h * w
  # Stage 1: Conv3x3(circular) -> GroupNorm(32) -> GELU
  _fill_wrap_scratch(xs1_ref, x_ref[0], hw, w)
  acc1 = _conv3x3_circular(xs1_ref, w1_ref, b1_ref, h, w)
  h1 = _groupnorm_gelu(acc1, gmat1_ref, gamma1_ref, beta1_ref)
  # Stage 2 consumes the stage-1 activation straight out of VMEM.
  _fill_wrap_scratch(xs2_ref, h1, hw, w)
  acc2 = _conv3x3_circular(xs2_ref, w2_ref, b2_ref, h, w)
  o_ref[0] = _groupnorm_gelu(acc2, gmat2_ref, gamma2_ref, beta2_ref)


# ----------------------------------------------------------------------------
# Wrapper: one fused pallas_call, NCHW in, NCHW out
# ----------------------------------------------------------------------------
def _group_mat(c, groups, hw):
  gc = c // groups
  gid = np.arange(c) // gc
  mask = (gid[:, None] == gid[None, :]).astype(np.float32)
  return jnp.asarray(mask / float(hw * gc))      # compile-time constant


@jax.jit
def decoder_block(x_nchw, p1, p2):
  """Pallas implementation of _DecoderBlock.forward (NCHW in, NCHW out)."""
  n, cin, h, w = x_nchw.shape
  cmid = p1["w_k"].shape[1]
  cout = p2["w_k"].shape[1]
  hw = h * w

  x_flat = x_nchw.reshape(n, cin, hw)
  gmat1 = _group_mat(cmid, GN_GROUPS, hw)
  gmat2 = _group_mat(cout, GN_GROUPS, hw)

  def col(v):  # per-channel params as (C, 1) columns (broadcast over lanes)
    return v.reshape(-1, 1)

  kernel = functools.partial(_decoder_block_kernel, h=h, w=w)
  const2 = lambda i: (0, 0)
  const3 = lambda i: (0, 0, 0)

  out = pl.pallas_call(
      kernel,
      out_shape=jax.ShapeDtypeStruct((n, cout, hw), jnp.float32),
      grid=(n,),
      in_specs=[
          pl.BlockSpec((1, cin, hw), lambda i: (i, 0, 0)),   # x, NCHW flat
          pl.BlockSpec((9, cmid, cin), const3),              # w1 taps
          pl.BlockSpec((cmid, 1), const2),                   # b1
          pl.BlockSpec((cmid, cmid), const2),                # group matrix 1
          pl.BlockSpec((cmid, 1), const2),                   # gamma1
          pl.BlockSpec((cmid, 1), const2),                   # beta1
          pl.BlockSpec((9, cout, cmid), const3),             # w2 taps
          pl.BlockSpec((cout, 1), const2),                   # b2
          pl.BlockSpec((cout, cout), const2),                # group matrix 2
          pl.BlockSpec((cout, 1), const2),                   # gamma2
          pl.BlockSpec((cout, 1), const2),                   # beta2
      ],
      out_specs=pl.BlockSpec((1, cout, hw), lambda i: (i, 0, 0)),
      scratch_shapes=[
          pltpu.VMEM((cin, hw + 4 * w), jnp.float32),   # stage-1 wrap-padded in
          pltpu.VMEM((cmid, hw + 4 * w), jnp.float32),  # stage-2 wrap-padded in
      ],
      compiler_params=pltpu.CompilerParams(
          dimension_semantics=("parallel",)),
  )(x_flat,
    p1["w_k"], col(p1["b"]), gmat1, col(p1["gamma"]), col(p1["beta"]),
    p2["w_k"], col(p2["b"]), gmat2, col(p2["gamma"]), col(p2["beta"]))
  return out.reshape(n, cout, h, w)


# ----------------------------------------------------------------------------
# Pure-JAX reference (lax.conv + GroupNorm + exact GELU) for validation
# ----------------------------------------------------------------------------
def _groupnorm_ref(x_nhwc, gamma, beta):
  n, h, w, c = x_nhwc.shape
  xg = x_nhwc.reshape(n, h, w, GN_GROUPS, c // GN_GROUPS)
  mean = xg.mean(axis=(1, 2, 4), keepdims=True)
  var = ((xg - mean) ** 2).mean(axis=(1, 2, 4), keepdims=True)
  xn = ((xg - mean) / jnp.sqrt(var + GN_EPS)).reshape(n, h, w, c)
  return xn * gamma.reshape(1, 1, 1, c) + beta.reshape(1, 1, 1, c)


def _stage_ref(x_nhwc, w_hwio, b, gamma, beta):
  xp = jnp.pad(x_nhwc, ((0, 0), (1, 1), (1, 1), (0, 0)), mode="wrap")
  y = lax.conv_general_dilated(
      xp, w_hwio, window_strides=(1, 1), padding="VALID",
      dimension_numbers=("NHWC", "HWIO", "NHWC"))
  y = y + b.reshape(1, 1, 1, -1)
  y = _groupnorm_ref(y, gamma, beta)
  return jax.nn.gelu(y, approximate=False)


def decoder_block_ref(x_nchw, p1, p2):
  x = jnp.transpose(x_nchw, (0, 2, 3, 1))
  x = _stage_ref(x, p1["w_hwio"], p1["b"], p1["gamma"], p1["beta"])
  x = _stage_ref(x, p2["w_hwio"], p2["b"], p2["gamma"], p2["beta"])
  return jnp.transpose(x, (0, 3, 1, 2))


# ----------------------------------------------------------------------------
# Deterministic parameter init
# ----------------------------------------------------------------------------
def _init_stage(key, cin, cout):
  kw, kb, kg, kbe = jax.random.split(key, 4)
  w_hwio = 0.05 * jax.random.normal(kw, (3, 3, cin, cout), jnp.float32)
  b = 0.05 * jax.random.normal(kb, (cout,), jnp.float32)
  gamma = 1.0 + 0.1 * jax.random.normal(kg, (cout,), jnp.float32)
  beta = 0.1 * jax.random.normal(kbe, (cout,), jnp.float32)
  # Kernel layout: tap-major, channels-first.  Tap index k = ky*3 + kx matches
  # the (dy, dx) loop order inside _conv3x3_circular.
  w_k = jnp.transpose(w_hwio, (0, 1, 3, 2)).reshape(9, cout, cin)
  return {"w_hwio": w_hwio, "w_k": w_k, "b": b, "gamma": gamma, "beta": beta}


if __name__ == "__main__":
  # _DecoderBlock(in_channels=32, middle_channels=64, out_channels=64)
  # (middle/out channels must be divisible by 32 for GroupNorm(32, .)).
  N, CIN, CMID, COUT, H, W = 2, 32, 64, 64, 16, 16

  root = jax.random.PRNGKey(0)
  kx, k1, k2 = jax.random.split(root, 3)
  x = jax.random.normal(kx, (N, CIN, H, W), jnp.float32)   # NCHW like torch
  p1 = _init_stage(k1, CIN, CMID)
  p2 = _init_stage(k2, CMID, COUT)

  y = decoder_block(x, p1, p2)
  y = jax.block_until_ready(y)
  assert y.shape == (N, COUT, H, W), y.shape

  y_ref = decoder_block_ref(x, p1, p2)
  if not bool(jnp.allclose(y, y_ref, atol=2e-3, rtol=2e-3)):
    raise AssertionError("Pallas output does not match JAX reference")

  print("KERNEL_OK")
</pallas_src>

<mosaic_0001>
module attributes {stable_mosaic.version = 11 : i64} {
  func.func @_decoder_block_kernel(%arg0: i32, %arg1: memref<1x32x256xf32, #tpu.memory_space<vmem>>, %arg2: memref<9x64x32xf32, #tpu.memory_space<vmem>>, %arg3: memref<64x1xf32, #tpu.memory_space<vmem>>, %arg4: memref<64x64xf32, #tpu.memory_space<vmem>>, %arg5: memref<64x1xf32, #tpu.memory_space<vmem>>, %arg6: memref<64x1xf32, #tpu.memory_space<vmem>>, %arg7: memref<9x64x64xf32, #tpu.memory_space<vmem>>, %arg8: memref<64x1xf32, #tpu.memory_space<vmem>>, %arg9: memref<64x64xf32, #tpu.memory_space<vmem>>, %arg10: memref<64x1xf32, #tpu.memory_space<vmem>>, %arg11: memref<64x1xf32, #tpu.memory_space<vmem>>, %arg12: memref<1x64x256xf32, #tpu.memory_space<vmem>>, %arg13: memref<32x320xf32, #tpu.memory_space<vmem>>, %arg14: memref<64x320xf32, #tpu.memory_space<vmem>>) attributes {dimension_semantics = [#tpu.dimension_semantics<parallel>], iteration_bounds = array<i64: 2>, scalar_prefetch = 0 : i64, scratch_operands = 2 : i64, tpu.core_type = #tpu.core_type<tc>, window_params = [{transform_indices = @transform_0, window_bounds = array<i64: 1, 32, 256>}, {pipeline_mode = #tpu.pipeline_mode<synchronous>, transform_indices = @transform_1, window_bounds = array<i64: 9, 64, 32>}, {pipeline_mode = #tpu.pipeline_mode<synchronous>, transform_indices = @transform_2, window_bounds = array<i64: 64, 1>}, {pipeline_mode = #tpu.pipeline_mode<synchronous>, transform_indices = @transform_3, window_bounds = array<i64: 64, 64>}, {pipeline_mode = #tpu.pipeline_mode<synchronous>, transform_indices = @transform_4, window_bounds = array<i64: 64, 1>}, {pipeline_mode = #tpu.pipeline_mode<synchronous>, transform_indices = @transform_5, window_bounds = array<i64: 64, 1>}, {pipeline_mode = #tpu.pipeline_mode<synchronous>, transform_indices = @transform_6, window_bounds = array<i64: 9, 64, 64>}, {pipeline_mode = #tpu.pipeline_mode<synchronous>, transform_indices = @transform_7, window_bounds = array<i64: 64, 1>}, {pipeline_mode = #tpu.pipeline_mode<synchronous>, transform_indices = @transform_8, window_bounds = array<i64: 64, 64>}, {pipeline_mode = #tpu.pipeline_mode<synchronous>, transform_indices = @transform_9, window_bounds = array<i64: 64, 1>}, {pipeline_mode = #tpu.pipeline_mode<synchronous>, transform_indices = @transform_10, window_bounds = array<i64: 64, 1>}, {transform_indices = @transform_11, window_bounds = array<i64: 1, 64, 256>}]} {
    %c0 = arith.constant 0 : index
    %c0_0 = arith.constant 0 : index
    %c0_1 = arith.constant 0 : index
    %0 = vector.load %arg1[%c0, %c0_0, %c0_1] : memref<1x32x256xf32, #tpu.memory_space<vmem>>, vector<1x32x256xf32>
    %1 = vector.shape_cast %0 : vector<1x32x256xf32> to vector<32x256xf32>
    %c0_2 = arith.constant 0 : index
    %c32 = arith.constant 32 : index
    %2 = vector.load %arg13[%c0_2, %c32] : memref<32x320xf32, #tpu.memory_space<vmem>>, vector<32x256xf32>
    tpu.vector_store %arg13[%c0_2, %c32], %1 {strides = array<i32>} : memref<32x320xf32, #tpu.memory_space<vmem>>, vector<32x256xf32>,
    %c0_3 = arith.constant 0 : index
    %c256 = arith.constant 256 : index
    %3 = vector.load %arg13[%c0_3, %c256] : memref<32x320xf32, #tpu.memory_space<vmem>>, vector<32x32xf32>
    %c0_4 = arith.constant 0 : index
    %c0_5 = arith.constant 0 : index
    %4 = vector.load %arg13[%c0_4, %c0_5] : memref<32x320xf32, #tpu.memory_space<vmem>>, vector<32x32xf32>
    tpu.vector_store %arg13[%c0_4, %c0_5], %3 {strides = array<i32>} : memref<32x320xf32, #tpu.memory_space<vmem>>, vector<32x32xf32>,
    %c0_6 = arith.constant 0 : index
    %c32_7 = arith.constant 32 : index
    %5 = vector.load %arg13[%c0_6, %c32_7] : memref<32x320xf32, #tpu.memory_space<vmem>>, vector<32x32xf32>
    %c0_8 = arith.constant 0 : index
    %c288 = arith.constant 288 : index
    %6 = vector.load %arg13[%c0_8, %c288] : memref<32x320xf32, #tpu.memory_space<vmem>>, vector<32x32xf32>
    tpu.vector_store %arg13[%c0_8, %c288], %5 {strides = array<i32>} : memref<32x320xf32, #tpu.memory_space<vmem>>, vector<32x32xf32>,
    %7 = tpu.iota {dimensions = array<i32: 1>} : vector<32x256xi32>
    %c16_i32 = arith.constant 16 : i32
    %c0_i32 = arith.constant 0 : i32
    %8 = arith.cmpi eq, %c16_i32, %c0_i32 : i32
    %c1_i32 = arith.constant 1 : i32
    %9 = arith.select %8, %c1_i32, %c16_i32 : i32
    %10 = vector.broadcast %9 : i32 to vector<32x256xi32>
    %11 = arith.remsi %7, %10 : vector<32x256xi32>
    %c0_i32_9 = arith.constant 0 : i32
    %12 = vector.broadcast %c0_i32_9 : i32 to vector<32x256xi32>
    %13 = arith.cmpi ne, %11, %12 : vector<32x256xi32>
    %c0_i32_10 = arith.constant 0 : i32
    %14 = vector.broadcast %c0_i32_10 : i32 to vector<32x256xi32>
    %15 = arith.cmpi slt, %11, %14 : vector<32x256xi32>
    %c0_i32_11 = arith.constant 0 : i32
    %16 = arith.cmpi slt, %9, %c0_i32_11 : i32
    %17 = vector.broadcast %16 : i1 to vector<32x256xi1>
    %18 = vector.broadcast %17 : vector<32x256xi1> to vector<32x256xi1>
    %19 = arith.xori %15, %18 : vector<32x256xi1>
    %20 = arith.andi %19, %13 : vector<32x256xi1>
    %21 = vector.broadcast %9 : i32 to vector<32x256xi32>
    %22 = arith.addi %11, %21 : vector<32x256xi32>
    %23 = arith.select %20, %22, %11 : vector<32x256xi1>, vector<32x256xi32>
    %c0_i32_12 = arith.constant 0 : i32
    %24 = vector.broadcast %c0_i32_12 : i32 to vector<32x256xi32>
    %25 = arith.cmpi eq, %23, %24 : vector<32x256xi32>
    %c15_i32 = arith.constant 15 : i32
    %26 = vector.broadcast %c15_i32 : i32 to vector<32x256xi32>
    %27 = arith.cmpi eq, %23, %26 : vector<32x256xi32>
    %c0_13 = arith.constant 0 : index
    %c15 = arith.constant 15 : index
    %28 = vector.load %arg13[%c0_13, %c15] : memref<32x320xf32, #tpu.memory_space<vmem>>, vector<32x256xf32>
    %c0_14 = arith.constant 0 : index
    %c31 = arith.constant 31 : index
    %29 = vector.load %arg13[%c0_14, %c31] : memref<32x320xf32, #tpu.memory_space<vmem>>, vector<32x256xf32>
    %30 = arith.select %25, %29, %28 : vector<32x256xi1>, vector<32x256xf32>
    %c0_15 = arith.constant 0 : index
    %c0_16 = arith.constant 0 : index
    %c0_17 = arith.constant 0 : index
    %31 = vector.load %arg2[%c0_15, %c0_16, %c0_17] : memref<9x64x32xf32, #tpu.memory_space<vmem>>, vector<1x64x32xf32>
    %32 = vector.shape_cast %31 : vector<1x64x32xf32> to vector<64x32xf32>
    %cst = arith.constant dense<0.000000e+00> : vector<64x256xf32>
    %33 = tpu.matmul %32, %30, %cst {dimension_numbers = #tpu.dot_dimension_numbers<[1], [0], [0], [1], [0, 0, 1, 1], [], []>} : vector<64x32xf32>, vector<32x256xf32>, vector<64x256xf32> -> vector<64x256xf32>
    %c0_18 = arith.constant 0 : index
    %c16 = arith.constant 16 : index
    %34 = vector.load %arg13[%c0_18, %c16] : memref<32x320xf32, #tpu.memory_space<vmem>>, vector<32x256xf32>
    %c1 = arith.constant 1 : index
    %c0_19 = arith.constant 0 : index
    %c0_20 = arith.constant 0 : index
    %35 = vector.load %arg2[%c1, %c0_19, %c0_20] : memref<9x64x32xf32, #tpu.memory_space<vmem>>, vector<1x64x32xf32>
    %36 = vector.shape_cast %35 : vector<1x64x32xf32> to vector<64x32xf32>
    %cst_21 = arith.constant dense<0.000000e+00> : vector<64x256xf32>
    %37 = tpu.matmul %36, %34, %cst_21 {dimension_numbers = #tpu.dot_dimension_numbers<[1], [0], [0], [1], [0, 0, 1, 1], [], []>} : vector<64x32xf32>, vector<32x256xf32>, vector<64x256xf32> -> vector<64x256xf32>
    %38 = arith.addf %33, %37 : vector<64x256xf32>
    %c0_22 = arith.constant 0 : index
    %c17 = arith.constant 17 : index
    %39 = vector.load %arg13[%c0_22, %c17] : memref<32x320xf32, #tpu.memory_space<vmem>>, vector<32x256xf32>
    %c0_23 = arith.constant 0 : index
    %c1_24 = arith.constant 1 : index
    %40 = vector.load %arg13[%c0_23, %c1_24] : memref<32x320xf32, #tpu.memory_space<vmem>>, vector<32x256xf32>
    %41 = arith.select %27, %40, %39 : vector<32x256xi1>, vector<32x256xf32>
    %c2 = arith.constant 2 : index
    %c0_25 = arith.constant 0 : index
    %c0_26 = arith.constant 0 : index
    %42 = vector.load %arg2[%c2, %c0_25, %c0_26] : memref<9x64x32xf32, #tpu.memory_space<vmem>>, vector<1x64x32xf32>
    %43 = vector.shape_cast %42 : vector<1x64x32xf32> to vector<64x32xf32>
    %cst_27 = arith.constant dense<0.000000e+00> : vector<64x256xf32>
    %44 = tpu.matmul %43, %41, %cst_27 {dimension_numbers = #tpu.dot_dimension_numbers<[1], [0], [0], [1], [0, 0, 1, 1], [], []>} : vector<64x32xf32>, vector<32x256xf32>, vector<64x256xf32> -> vector<64x256xf32>
    %45 = arith.addf %38, %44 : vector<64x256xf32>
    %c0_28 = arith.constant 0 : index
    %c31_29 = arith.constant 31 : index
    %46 = vector.load %arg13[%c0_28, %c31_29] : memref<32x320xf32, #tpu.memory_space<vmem>>, vector<32x256xf32>
    %c0_30 = arith.constant 0 : index
    %c47 = arith.constant 47 : index
    %47 = vector.load %arg13[%c0_30, %c47] : memref<32x320xf32, #tpu.memory_space<vmem>>, vector<32x256xf32>
    %48 = arith.select %25, %47, %46 : vector<32x256xi1>, vector<32x256xf32>
    %c3 = arith.constant 3 : index
    %c0_31 = arith.constant 0 : index
    %c0_32 = arith.constant 0 : index
    %49 = vector.load %arg2[%c3, %c0_31, %c0_32] : memref<9x64x32xf32, #tpu.memory_space<vmem>>, vector<1x64x32xf32>
    %50 = vector.shape_cast %49 : vector<1x64x32xf32> to vector<64x32xf32>
    %cst_33 = arith.constant dense<0.000000e+00> : vector<64x256xf32>
    %51 = tpu.matmul %50, %48, %cst_33 {dimension_numbers = #tpu.dot_dimension_numbers<[1], [0], [0], [1], [0, 0, 1, 1], [], []>} : vector<64x32xf32>, vector<32x256xf32>, vector<64x256xf32> -> vector<64x256xf32>
    %52 = arith.addf %45, %51 : vector<64x256xf32>
    %c0_34 = arith.constant 0 : index
    %c32_35 = arith.constant 32 : index
    %53 = vector.load %arg13[%c0_34, %c32_35] : memref<32x320xf32, #tpu.memory_space<vmem>>, vector<32x256xf32>
    %c4 = arith.constant 4 : index
    %c0_36 = arith.constant 0 : index
    %c0_37 = arith.constant 0 : index
    %54 = vector.load %arg2[%c4, %c0_36, %c0_37] : memref<9x64x32xf32, #tpu.memory_space<vmem>>, vector<1x64x32xf32>
    %55 = vector.shape_cast %54 : vector<1x64x32xf32> to vector<64x32xf32>
    %cst_38 = arith.constant dense<0.000000e+00> : vector<64x256xf32>
    %56 = tpu.matmul %55, %53, %cst_38 {dimension_numbers = #tpu.dot_dimension_numbers<[1], [0], [0], [1], [0, 0, 1, 1], [], []>} : vector<64x32xf32>, vector<32x256xf32>, vector<64x256xf32> -> vector<64x256xf32>
    %57 = arith.addf %52, %56 : vector<64x256xf32>
    %c0_39 = arith.constant 0 : index
    %c33 = arith.constant 33 : index
    %58 = vector.load %arg13[%c0_39, %c33] : memref<32x320xf32, #tpu.memory_space<vmem>>, vector<32x256xf32>
    %c0_40 = arith.constant 0 : index
    %c17_41 = arith.constant 17 : index
    %59 = vector.load %arg13[%c0_40, %c17_41] : memref<32x320xf32, #tpu.memory_space<vmem>>, vector<32x256xf32>
    %60 = arith.select %27, %59, %58 : vector<32x256xi1>, vector<32x256xf32>
    %c5 = arith.constant 5 : index
    %c0_42 = arith.constant 0 : index
    %c0_43 = arith.constant 0 : index
    %61 = vector.load %arg2[%c5, %c0_42, %c0_43] : memref<9x64x32xf32, #tpu.memory_space<vmem>>, vector<1x64x32xf32>
    %62 = vector.shape_cast %61 : vector<1x64x32xf32> to vector<64x32xf32>
    %cst_44 = arith.constant dense<0.000000e+00> : vector<64x256xf32>
    %63 = tpu.matmul %62, %60, %cst_44 {dimension_numbers = #tpu.dot_dimension_numbers<[1], [0], [0], [1], [0, 0, 1, 1], [], []>} : vector<64x32xf32>, vector<32x256xf32>, vector<64x256xf32> -> vector<64x256xf32>
    %64 = arith.addf %57, %63 : vector<64x256xf32>
    %c0_45 = arith.constant 0 : index
    %c47_46 = arith.constant 47 : index
    %65 = vector.load %arg13[%c0_45, %c47_46] : memref<32x320xf32, #tpu.memory_space<vmem>>, vector<32x256xf32>
    %c0_47 = arith.constant 0 : index
    %c63 = arith.constant 63 : index
    %66 = vector.load %arg13[%c0_47, %c63] : memref<32x320xf32, #tpu.memory_space<vmem>>, vector<32x256xf32>
    %67 = arith.select %25, %66, %65 : vector<32x256xi1>, vector<32x256xf32>
    %c6 = arith.constant 6 : index
    %c0_48 = arith.constant 0 : index
    %c0_49 = arith.constant 0 : index
    %68 = vector.load %arg2[%c6, %c0_48, %c0_49] : memref<9x64x32xf32, #tpu.memory_space<vmem>>, vector<1x64x32xf32>
    %69 = vector.shape_cast %68 : vector<1x64x32xf32> to vector<64x32xf32>
    %cst_50 = arith.constant dense<0.000000e+00> : vector<64x256xf32>
    %70 = tpu.matmul %69, %67, %cst_50 {dimension_numbers = #tpu.dot_dimension_numbers<[1], [0], [0], [1], [0, 0, 1, 1], [], []>} : vector<64x32xf32>, vector<32x256xf32>, vector<64x256xf32> -> vector<64x256xf32>
    %71 = arith.addf %64, %70 : vector<64x256xf32>
    %c0_51 = arith.constant 0 : index
    %c48 = arith.constant 48 : index
    %72 = vector.load %arg13[%c0_51, %c48] : memref<32x320xf32, #tpu.memory_space<vmem>>, vector<32x256xf32>
    %c7 = arith.constant 7 : index
    %c0_52 = arith.constant 0 : index
    %c0_53 = arith.constant 0 : index
    %73 = vector.load %arg2[%c7, %c0_52, %c0_53] : memref<9x64x32xf32, #tpu.memory_space<vmem>>, vector<1x64x32xf32>
    %74 = vector.shape_cast %73 : vector<1x64x32xf32> to vector<64x32xf32>
    %cst_54 = arith.constant dense<0.000000e+00> : vector<64x256xf32>
    %75 = tpu.matmul %74, %72, %cst_54 {dimension_numbers = #tpu.dot_dimension_numbers<[1], [0], [0], [1], [0, 0, 1, 1], [], []>} : vector<64x32xf32>, vector<32x256xf32>, vector<64x256xf32> -> vector<64x256xf32>
    %76 = arith.addf %71, %75 : vector<64x256xf32>
    %c0_55 = arith.constant 0 : index
    %c49 = arith.constant 49 : index
    %77 = vector.load %arg13[%c0_55, %c49] : memref<32x320xf32, #tpu.memory_space<vmem>>, vector<32x256xf32>
    %c0_56 = arith.constant 0 : index
    %c33_57 = arith.constant 33 : index
    %78 = vector.load %arg13[%c0_56, %c33_57] : memref<32x320xf32, #tpu.memory_space<vmem>>, vector<32x256xf32>
    %79 = arith.select %27, %78, %77 : vector<32x256xi1>, vector<32x256xf32>
    %c8 = arith.constant 8 : index
    %c0_58 = arith.constant 0 : index
    %c0_59 = arith.constant 0 : index
    %80 = vector.load %arg2[%c8, %c0_58, %c0_59] : memref<9x64x32xf32, #tpu.memory_space<vmem>>, vector<1x64x32xf32>
    %81 = vector.shape_cast %80 : vector<1x64x32xf32> to vector<64x32xf32>
    %cst_60 = arith.constant dense<0.000000e+00> : vector<64x256xf32>
    %82 = tpu.matmul %81, %79, %cst_60 {dimension_numbers = #tpu.dot_dimension_numbers<[1], [0], [0], [1], [0, 0, 1, 1], [], []>} : vector<64x32xf32>, vector<32x256xf32>, vector<64x256xf32> -> vector<64x256xf32>
    %83 = arith.addf %76, %82 : vector<64x256xf32>
    %c0_61 = arith.constant 0 : index
    %c0_62 = arith.constant 0 : index
    %84 = vector.load %arg3[%c0_61, %c0_62] : memref<64x1xf32, #tpu.memory_space<vmem>>, vector<64x1xf32>
    %85 = vector.broadcast %84 : vector<64x1xf32> to vector<64x256xf32>
    %86 = arith.addf %83, %85 : vector<64x256xf32>
    %c0_63 = arith.constant 0 : index
    %c0_64 = arith.constant 0 : index
    %87 = vector.load %arg4[%c0_63, %c0_64] : memref<64x64xf32, #tpu.memory_space<vmem>>, vector<64x64xf32>
    %cst_65 = arith.constant dense<0.000000e+00> : vector<64x256xf32>
    %88 = tpu.matmul %87, %86, %cst_65 {dimension_numbers = #tpu.dot_dimension_numbers<[1], [0], [0], [1], [0, 0, 1, 1], [], []>} : vector<64x64xf32>, vector<64x256xf32>, vector<64x256xf32> -> vector<64x256xf32>
    %c0_66 = arith.constant 0 : index
    %c0_67 = arith.constant 0 : index
    %89 = vector.load %arg4[%c0_66, %c0_67] : memref<64x64xf32, #tpu.memory_space<vmem>>, vector<64x64xf32>
    %90 = arith.mulf %86, %86 : vector<64x256xf32>
    %cst_68 = arith.constant dense<0.000000e+00> : vector<64x256xf32>
    %91 = tpu.matmul %89, %90, %cst_68 {dimension_numbers = #tpu.dot_dimension_numbers<[1], [0], [0], [1], [0, 0, 1, 1], [], []>} : vector<64x64xf32>, vector<64x256xf32>, vector<64x256xf32> -> vector<64x256xf32>
    %cst_69 = arith.constant dense<0.000000e+00> : vector<64xf32>
    %92 = vector.multi_reduction <add>, %88, %cst_69 [1] : vector<64x256xf32> to vector<64xf32>
    %93 = vector.shape_cast %92 : vector<64xf32> to vector<64x1xf32>
    %cst_70 = arith.constant dense<0.000000e+00> : vector<64xf32>
    %94 = vector.multi_reduction <add>, %91, %cst_70 [1] : vector<64x256xf32> to vector<64xf32>
    %95 = vector.shape_cast %94 : vector<64xf32> to vector<64x1xf32>
    %96 = arith.mulf %93, %93 : vector<64x1xf32>
    %97 = arith.subf %95, %96 : vector<64x1xf32>
    %cst_71 = arith.constant 9.99999974E-6 : f32
    %98 = vector.broadcast %cst_71 : f32 to vector<64x1xf32>
    %99 = arith.addf %97, %98 : vector<64x1xf32>
    %100 = math.rsqrt %99 : vector<64x1xf32>
    %101 = vector.broadcast %93 : vector<64x1xf32> to vector<64x256xf32>
    %102 = arith.subf %86, %101 : vector<64x256xf32>
    %c0_72 = arith.constant 0 : index
    %c0_73 = arith.constant 0 : index
    %103 = vector.load %arg5[%c0_72, %c0_73] : memref<64x1xf32, #tpu.memory_space<vmem>>, vector<64x1xf32>
    %104 = arith.mulf %100, %103 : vector<64x1xf32>
    %105 = vector.broadcast %104 : vector<64x1xf32> to vector<64x256xf32>
    %106 = arith.mulf %102, %105 : vector<64x256xf32>
    %c0_74 = arith.constant 0 : index
    %c0_75 = arith.constant 0 : index
    %107 = vector.load %arg6[%c0_74, %c0_75] : memref<64x1xf32, #tpu.memory_space<vmem>>, vector<64x1xf32>
    %108 = vector.broadcast %107 : vector<64x1xf32> to vector<64x256xf32>
    %109 = arith.addf %106, %108 : vector<64x256xf32>
    %cst_76 = arith.constant 5.000000e-01 : f32
    %110 = vector.broadcast %cst_76 : f32 to vector<64x256xf32>
    %111 = arith.mulf %110, %109 : vector<64x256xf32>
    %cst_77 = arith.constant 0.707106769 : f32
    %112 = vector.broadcast %cst_77 : f32 to vector<64x256xf32>
    %113 = arith.mulf %109, %112 : vector<64x256xf32>
    %cst_78 = arith.constant 0.000000e+00 : f32
    %114 = vector.broadcast %cst_78 : f32 to vector<64x256xf32>
    %115 = arith.cmpf oge, %113, %114 : vector<64x256xf32>
    %cst_79 = arith.constant 1.000000e+00 : f32
    %cst_80 = arith.constant -1.000000e+00 : f32
    %116 = vector.broadcast %cst_79 : f32 to vector<64x256xf32>
    %117 = vector.broadcast %cst_80 : f32 to vector<64x256xf32>
    %118 = arith.select %115, %116, %117 : vector<64x256xi1>, vector<64x256xf32>
    %119 = math.absf %113 : vector<64x256xf32>
    %cst_81 = arith.constant 0.327591091 : f32
    %120 = vector.broadcast %cst_81 : f32 to vector<64x256xf32>
    %121 = arith.mulf %120, %119 : vector<64x256xf32>
    %cst_82 = arith.constant 1.000000e+00 : f32
    %122 = vector.broadcast %cst_82 : f32 to vector<64x256xf32>
    %123 = arith.addf %122, %121 : vector<64x256xf32>
    %cst_83 = arith.constant 1.000000e+00 : f32
    %124 = vector.broadcast %cst_83 : f32 to vector<64x256xf32>
    %125 = arith.divf %124, %123 : vector<64x256xf32>
    %cst_84 = arith.constant 1.06140542 : f32
    %126 = vector.broadcast %cst_84 : f32 to vector<64x256xf32>
    %127 = arith.mulf %126, %125 : vector<64x256xf32>
    %cst_85 = arith.constant -1.45315206 : f32
    %128 = vector.broadcast %cst_85 : f32 to vector<64x256xf32>
    %129 = arith.addf %127, %128 : vector<64x256xf32>
    %130 = arith.mulf %129, %125 : vector<64x256xf32>
    %cst_86 = arith.constant 1.42141378 : f32
    %131 = vector.broadcast %cst_86 : f32 to vector<64x256xf32>
    %132 = arith.addf %130, %131 : vector<64x256xf32>
    %133 = arith.mulf %132, %125 : vector<64x256xf32>
    %cst_87 = arith.constant -0.284496725 : f32
    %134 = vector.broadcast %cst_87 : f32 to vector<64x256xf32>
    %135 = arith.addf %133, %134 : vector<64x256xf32>
    %136 = arith.mulf %135, %125 : vector<64x256xf32>
    %cst_88 = arith.constant 0.254829586 : f32
    %137 = vector.broadcast %cst_88 : f32 to vector<64x256xf32>
    %138 = arith.addf %136, %137 : vector<64x256xf32>
    %139 = arith.mulf %138, %125 : vector<64x256xf32>
    %cst_89 = arith.constant 0.000000e+00 : f32
    %140 = vector.broadcast %cst_89 : f32 to vector<64x256xf32>
    %141 = arith.subf %140, %119 : vector<64x256xf32>
    %142 = arith.mulf %141, %119 : vector<64x256xf32>
    %143 = math.exp %142 : vector<64x256xf32>
    %144 = arith.mulf %139, %143 : vector<64x256xf32>
    %cst_90 = arith.constant 1.000000e+00 : f32
    %145 = vector.broadcast %cst_90 : f32 to vector<64x256xf32>
    %146 = arith.subf %145, %144 : vector<64x256xf32>
    %147 = arith.mulf %118, %146 : vector<64x256xf32>
    %cst_91 = arith.constant 1.000000e+00 : f32
    %148 = vector.broadcast %cst_91 : f32 to vector<64x256xf32>
    %149 = arith.addf %148, %147 : vector<64x256xf32>
    %150 = arith.mulf %111, %149 : vector<64x256xf32>
    %c0_92 = arith.constant 0 : index
    %c32_93 = arith.constant 32 : index
    %151 = vector.load %arg14[%c0_92, %c32_93] : memref<64x320xf32, #tpu.memory_space<vmem>>, vector<64x256xf32>
    tpu.vector_store %arg14[%c0_92, %c32_93], %150 {strides = array<i32>} : memref<64x320xf32, #tpu.memory_space<vmem>>, vector<64x256xf32>,
    %c0_94 = arith.constant 0 : index
    %c256_95 = arith.constant 256 : index
    %152 = vector.load %arg14[%c0_94, %c256_95] : memref<64x320xf32, #tpu.memory_space<vmem>>, vector<64x32xf32>
    %c0_96 = arith.constant 0 : index
    %c0_97 = arith.constant 0 : index
    %153 = vector.load %arg14[%c0_96, %c0_97] : memref<64x320xf32, #tpu.memory_space<vmem>>, vector<64x32xf32>
    tpu.vector_store %arg14[%c0_96, %c0_97], %152 {strides = array<i32>} : memref<64x320xf32, #tpu.memory_space<vmem>>, vector<64x32xf32>,
    %c0_98 = arith.constant 0 : index
    %c32_99 = arith.constant 32 : index
    %154 = vector.load %arg14[%c0_98, %c32_99] : memref<64x320xf32, #tpu.memory_space<vmem>>, vector<64x32xf32>
    %c0_100 = arith.constant 0 : index
    %c288_101 = arith.constant 288 : index
    %155 = vector.load %arg14[%c0_100, %c288_101] : memref<64x320xf32, #tpu.memory_space<vmem>>, vector<64x32xf32>
    tpu.vector_store %arg14[%c0_100, %c288_101], %154 {strides = array<i32>} : memref<64x320xf32, #tpu.memory_space<vmem>>, vector<64x32xf32>,
    %156 = tpu.iota {dimensions = array<i32: 1>} : vector<64x256xi32>
    %c16_i32_102 = arith.constant 16 : i32
    %c0_i32_103 = arith.constant 0 : i32
    %157 = arith.cmpi eq, %c16_i32_102, %c0_i32_103 : i32
    %c1_i32_104 = arith.constant 1 : i32
    %158 = arith.select %157, %c1_i32_104, %c16_i32_102 : i32
    %159 = vector.broadcast %158 : i32 to vector<64x256xi32>
    %160 = arith.remsi %156, %159 : vector<64x256xi32>
    %c0_i32_105 = arith.constant 0 : i32
    %161 = vector.broadcast %c0_i32_105 : i32 to vector<64x256xi32>
    %162 = arith.cmpi ne, %160, %161 : vector<64x256xi32>
    %c0_i32_106 = arith.constant 0 : i32
    %163 = vector.broadcast %c0_i32_106 : i32 to vector<64x256xi32>
    %164 = arith.cmpi slt, %160, %163 : vector<64x256xi32>
    %c0_i32_107 = arith.constant 0 : i32
    %165 = arith.cmpi slt, %158, %c0_i32_107 : i32
    %166 = vector.broadcast %165 : i1 to vector<64x256xi1>
    %167 = vector.broadcast %166 : vector<64x256xi1> to vector<64x256xi1>
    %168 = arith.xori %164, %167 : vector<64x256xi1>
    %169 = arith.andi %168, %162 : vector<64x256xi1>
    %170 = vector.broadcast %158 : i32 to vector<64x256xi32>
    %171 = arith.addi %160, %170 : vector<64x256xi32>
    %172 = arith.select %169, %171, %160 : vector<64x256xi1>, vector<64x256xi32>
    %c0_i32_108 = arith.constant 0 : i32
    %173 = vector.broadcast %c0_i32_108 : i32 to vector<64x256xi32>
    %174 = arith.cmpi eq, %172, %173 : vector<64x256xi32>
    %c15_i32_109 = arith.constant 15 : i32
    %175 = vector.broadcast %c15_i32_109 : i32 to vector<64x256xi32>
    %176 = arith.cmpi eq, %172, %175 : vector<64x256xi32>
    %c0_110 = arith.constant 0 : index
    %c15_111 = arith.constant 15 : index
    %177 = vector.load %arg14[%c0_110, %c15_111] : memref<64x320xf32, #tpu.memory_space<vmem>>, vector<64x256xf32>
    %c0_112 = arith.constant 0 : index
    %c31_113 = arith.constant 31 : index
    %178 = vector.load %arg14[%c0_112, %c31_113] : memref<64x320xf32, #tpu.memory_space<vmem>>, vector<64x256xf32>
    %179 = arith.select %174, %178, %177 : vector<64x256xi1>, vector<64x256xf32>
    %c0_114 = arith.constant 0 : index
    %c0_115 = arith.constant 0 : index
    %c0_116 = arith.constant 0 : index
    %180 = vector.load %arg7[%c0_114, %c0_115, %c0_116] : memref<9x64x64xf32, #tpu.memory_space<vmem>>, vector<1x64x64xf32>
    %181 = vector.shape_cast %180 : vector<1x64x64xf32> to vector<64x64xf32>
    %cst_117 = arith.constant dense<0.000000e+00> : vector<64x256xf32>
    %182 = tpu.matmul %181, %179, %cst_117 {dimension_numbers = #tpu.dot_dimension_numbers<[1], [0], [0], [1], [0, 0, 1, 1], [], []>} : vector<64x64xf32>, vector<64x256xf32>, vector<64x256xf32> -> vector<64x256xf32>
    %c0_118 = arith.constant 0 : index
    %c16_119 = arith.constant 16 : index
    %183 = vector.load %arg14[%c0_118, %c16_119] : memref<64x320xf32, #tpu.memory_space<vmem>>, vector<64x256xf32>
    %c1_120 = arith.constant 1 : index
    %c0_121 = arith.constant 0 : index
    %c0_122 = arith.constant 0 : index
    %184 = vector.load %arg7[%c1_120, %c0_121, %c0_122] : memref<9x64x64xf32, #tpu.memory_space<vmem>>, vector<1x64x64xf32>
    %185 = vector.shape_cast %184 : vector<1x64x64xf32> to vector<64x64xf32>
    %cst_123 = arith.constant dense<0.000000e+00> : vector<64x256xf32>
    %186 = tpu.matmul %185, %183, %cst_123 {dimension_numbers = #tpu.dot_dimension_numbers<[1], [0], [0], [1], [0, 0, 1, 1], [], []>} : vector<64x64xf32>, vector<64x256xf32>, vector<64x256xf32> -> vector<64x256xf32>
    %187 = arith.addf %182, %186 : vector<64x256xf32>
    %c0_124 = arith.constant 0 : index
    %c17_125 = arith.constant 17 : index
    %188 = vector.load %arg14[%c0_124, %c17_125] : memref<64x320xf32, #tpu.memory_space<vmem>>, vector<64x256xf32>
    %c0_126 = arith.constant 0 : index
    %c1_127 = arith.constant 1 : index
    %189 = vector.load %arg14[%c0_126, %c1_127] : memref<64x320xf32, #tpu.memory_space<vmem>>, vector<64x256xf32>
    %190 = arith.select %176, %189, %188 : vector<64x256xi1>, vector<64x256xf32>
    %c2_128 = arith.constant 2 : index
    %c0_129 = arith.constant 0 : index
    %c0_130 = arith.constant 0 : index
    %191 = vector.load %arg7[%c2_128, %c0_129, %c0_130] : memref<9x64x64xf32, #tpu.memory_space<vmem>>, vector<1x64x64xf32>
    %192 = vector.shape_cast %191 : vector<1x64x64xf32> to vector<64x64xf32>
    %cst_131 = arith.constant dense<0.000000e+00> : vector<64x256xf32>
    %193 = tpu.matmul %192, %190, %cst_131 {dimension_numbers = #tpu.dot_dimension_numbers<[1], [0], [0], [1], [0, 0, 1, 1], [], []>} : vector<64x64xf32>, vector<64x256xf32>, vector<64x256xf32> -> vector<64x256xf32>
    %194 = arith.addf %187, %193 : vector<64x256xf32>
    %c0_132 = arith.constant 0 : index
    %c31_133 = arith.constant 31 : index
    %195 = vector.load %arg14[%c0_132, %c31_133] : memref<64x320xf32, #tpu.memory_space<vmem>>, vector<64x256xf32>
    %c0_134 = arith.constant 0 : index
    %c47_135 = arith.constant 47 : index
    %196 = vector.load %arg14[%c0_134, %c47_135] : memref<64x320xf32, #tpu.memory_space<vmem>>, vector<64x256xf32>
    %197 = arith.select %174, %196, %195 : vector<64x256xi1>, vector<64x256xf32>
    %c3_136 = arith.constant 3 : index
    %c0_137 = arith.constant 0 : index
    %c0_138 = arith.constant 0 : index
    %198 = vector.load %arg7[%c3_136, %c0_137, %c0_138] : memref<9x64x64xf32, #tpu.memory_space<vmem>>, vector<1x64x64xf32>
    %199 = vector.shape_cast %198 : vector<1x64x64xf32> to vector<64x64xf32>
    %cst_139 = arith.constant dense<0.000000e+00> : vector<64x256xf32>
    %200 = tpu.matmul %199, %197, %cst_139 {dimension_numbers = #tpu.dot_dimension_numbers<[1], [0], [0], [1], [0, 0, 1, 1], [], []>} : vector<64x64xf32>, vector<64x256xf32>, vector<64x256xf32> -> vector<64x256xf32>
    %201 = arith.addf %194, %200 : vector<64x256xf32>
    %c0_140 = arith.constant 0 : index
    %c32_141 = arith.constant 32 : index
    %202 = vector.load %arg14[%c0_140, %c32_141] : memref<64x320xf32, #tpu.memory_space<vmem>>, vector<64x256xf32>
    %c4_142 = arith.constant 4 : index
    %c0_143 = arith.constant 0 : index
    %c0_144 = arith.constant 0 : index
    %203 = vector.load %arg7[%c4_142, %c0_143, %c0_144] : memref<9x64x64xf32, #tpu.memory_space<vmem>>, vector<1x64x64xf32>
    %204 = vector.shape_cast %203 : vector<1x64x64xf32> to vector<64x64xf32>
    %cst_145 = arith.constant dense<0.000000e+00> : vector<64x256xf32>
    %205 = tpu.matmul %204, %202, %cst_145 {dimension_numbers = #tpu.dot_dimension_numbers<[1], [0], [0], [1], [0, 0, 1, 1], [], []>} : vector<64x64xf32>, vector<64x256xf32>, vector<64x256xf32> -> vector<64x256xf32>
    %206 = arith.addf %201, %205 : vector<64x256xf32>
    %c0_146 = arith.constant 0 : index
    %c33_147 = arith.constant 33 : index
    %207 = vector.load %arg14[%c0_146, %c33_147] : memref<64x320xf32, #tpu.memory_space<vmem>>, vector<64x256xf32>
    %c0_148 = arith.constant 0 : index
    %c17_149 = arith.constant 17 : index
    %208 = vector.load %arg14[%c0_148, %c17_149] : memref<64x320xf32, #tpu.memory_space<vmem>>, vector<64x256xf32>
    %209 = arith.select %176, %208, %207 : vector<64x256xi1>, vector<64x256xf32>
    %c5_150 = arith.constant 5 : index
    %c0_151 = arith.constant 0 : index
    %c0_152 = arith.constant 0 : index
    %210 = vector.load %arg7[%c5_150, %c0_151, %c0_152] : memref<9x64x64xf32, #tpu.memory_space<vmem>>, vector<1x64x64xf32>
    %211 = vector.shape_cast %210 : vector<1x64x64xf32> to vector<64x64xf32>
    %cst_153 = arith.constant dense<0.000000e+00> : vector<64x256xf32>
    %212 = tpu.matmul %211, %209, %cst_153 {dimension_numbers = #tpu.dot_dimension_numbers<[1], [0], [0], [1], [0, 0, 1, 1], [], []>} : vector<64x64xf32>, vector<64x256xf32>, vector<64x256xf32> -> vector<64x256xf32>
    %213 = arith.addf %206, %212 : vector<64x256xf32>
    %c0_154 = arith.constant 0 : index
    %c47_155 = arith.constant 47 : index
    %214 = vector.load %arg14[%c0_154, %c47_155] : memref<64x320xf32, #tpu.memory_space<vmem>>, vector<64x256xf32>
    %c0_156 = arith.constant 0 : index
    %c63_157 = arith.constant 63 : index
    %215 = vector.load %arg14[%c0_156, %c63_157] : memref<64x320xf32, #tpu.memory_space<vmem>>, vector<64x256xf32>
    %216 = arith.select %174, %215, %214 : vector<64x256xi1>, vector<64x256xf32>
    %c6_158 = arith.constant 6 : index
    %c0_159 = arith.constant 0 : index
    %c0_160 = arith.constant 0 : index
    %217 = vector.load %arg7[%c6_158, %c0_159, %c0_160] : memref<9x64x64xf32, #tpu.memory_space<vmem>>, vector<1x64x64xf32>
    %218 = vector.shape_cast %217 : vector<1x64x64xf32> to vector<64x64xf32>
    %cst_161 = arith.constant dense<0.000000e+00> : vector<64x256xf32>
    %219 = tpu.matmul %218, %216, %cst_161 {dimension_numbers = #tpu.dot_dimension_numbers<[1], [0], [0], [1], [0, 0, 1, 1], [], []>} : vector<64x64xf32>, vector<64x256xf32>, vector<64x256xf32> -> vector<64x256xf32>
    %220 = arith.addf %213, %219 : vector<64x256xf32>
    %c0_162 = arith.constant 0 : index
    %c48_163 = arith.constant 48 : index
    %221 = vector.load %arg14[%c0_162, %c48_163] : memref<64x320xf32, #tpu.memory_space<vmem>>, vector<64x256xf32>
    %c7_164 = arith.constant 7 : index
    %c0_165 = arith.constant 0 : index
    %c0_166 = arith.constant 0 : index
    %222 = vector.load %arg7[%c7_164, %c0_165, %c0_166] : memref<9x64x64xf32, #tpu.memory_space<vmem>>, vector<1x64x64xf32>
    %223 = vector.shape_cast %222 : vector<1x64x64xf32> to vector<64x64xf32>
    %cst_167 = arith.constant dense<0.000000e+00> : vector<64x256xf32>
    %224 = tpu.matmul %223, %221, %cst_167 {dimension_numbers = #tpu.dot_dimension_numbers<[1], [0], [0], [1], [0, 0, 1, 1], [], []>} : vector<64x64xf32>, vector<64x256xf32>, vector<64x256xf32> -> vector<64x256xf32>
    %225 = arith.addf %220, %224 : vector<64x256xf32>
    %c0_168 = arith.constant 0 : index
    %c49_169 = arith.constant 49 : index
    %226 = vector.load %arg14[%c0_168, %c49_169] : memref<64x320xf32, #tpu.memory_space<vmem>>, vector<64x256xf32>
    %c0_170 = arith.constant 0 : index
    %c33_171 = arith.constant 33 : index
    %227 = vector.load %arg14[%c0_170, %c33_171] : memref<64x320xf32, #tpu.memory_space<vmem>>, vector<64x256xf32>
    %228 = arith.select %176, %227, %226 : vector<64x256xi1>, vector<64x256xf32>
    %c8_172 = arith.constant 8 : index
    %c0_173 = arith.constant 0 : index
    %c0_174 = arith.constant 0 : index
    %229 = vector.load %arg7[%c8_172, %c0_173, %c0_174] : memref<9x64x64xf32, #tpu.memory_space<vmem>>, vector<1x64x64xf32>
    %230 = vector.shape_cast %229 : vector<1x64x64xf32> to vector<64x64xf32>
    %cst_175 = arith.constant dense<0.000000e+00> : vector<64x256xf32>
    %231 = tpu.matmul %230, %228, %cst_175 {dimension_numbers = #tpu.dot_dimension_numbers<[1], [0], [0], [1], [0, 0, 1, 1], [], []>} : vector<64x64xf32>, vector<64x256xf32>, vector<64x256xf32> -> vector<64x256xf32>
    %232 = arith.addf %225, %231 : vector<64x256xf32>
    %c0_176 = arith.constant 0 : index
    %c0_177 = arith.constant 0 : index
    %233 = vector.load %arg8[%c0_176, %c0_177] : memref<64x1xf32, #tpu.memory_space<vmem>>, vector<64x1xf32>
    %234 = vector.broadcast %233 : vector<64x1xf32> to vector<64x256xf32>
    %235 = arith.addf %232, %234 : vector<64x256xf32>
    %c0_178 = arith.constant 0 : index
    %c0_179 = arith.constant 0 : index
    %236 = vector.load %arg9[%c0_178, %c0_179] : memref<64x64xf32, #tpu.memory_space<vmem>>, vector<64x64xf32>
    %cst_180 = arith.constant dense<0.000000e+00> : vector<64x256xf32>
    %237 = tpu.matmul %236, %235, %cst_180 {dimension_numbers = #tpu.dot_dimension_numbers<[1], [0], [0], [1], [0, 0, 1, 1], [], []>} : vector<64x64xf32>, vector<64x256xf32>, vector<64x256xf32> -> vector<64x256xf32>
    %c0_181 = arith.constant 0 : index
    %c0_182 = arith.constant 0 : index
    %238 = vector.load %arg9[%c0_181, %c0_182] : memref<64x64xf32, #tpu.memory_space<vmem>>, vector<64x64xf32>
    %239 = arith.mulf %235, %235 : vector<64x256xf32>
    %cst_183 = arith.constant dense<0.000000e+00> : vector<64x256xf32>
    %240 = tpu.matmul %238, %239, %cst_183 {dimension_numbers = #tpu.dot_dimension_numbers<[1], [0], [0], [1], [0, 0, 1, 1], [], []>} : vector<64x64xf32>, vector<64x256xf32>, vector<64x256xf32> -> vector<64x256xf32>
    %cst_184 = arith.constant dense<0.000000e+00> : vector<64xf32>
    %241 = vector.multi_reduction <add>, %237, %cst_184 [1] : vector<64x256xf32> to vector<64xf32>
    %242 = vector.shape_cast %241 : vector<64xf32> to vector<64x1xf32>
    %cst_185 = arith.constant dense<0.000000e+00> : vector<64xf32>
    %243 = vector.multi_reduction <add>, %240, %cst_185 [1] : vector<64x256xf32> to vector<64xf32>
    %244 = vector.shape_cast %243 : vector<64xf32> to vector<64x1xf32>
    %245 = arith.mulf %242, %242 : vector<64x1xf32>
    %246 = arith.subf %244, %245 : vector<64x1xf32>
    %cst_186 = arith.constant 9.99999974E-6 : f32
    %247 = vector.broadcast %cst_186 : f32 to vector<64x1xf32>
    %248 = arith.addf %246, %247 : vector<64x1xf32>
    %249 = math.rsqrt %248 : vector<64x1xf32>
    %250 = vector.broadcast %242 : vector<64x1xf32> to vector<64x256xf32>
    %251 = arith.subf %235, %250 : vector<64x256xf32>
    %c0_187 = arith.constant 0 : index
    %c0_188 = arith.constant 0 : index
    %252 = vector.load %arg10[%c0_187, %c0_188] : memref<64x1xf32, #tpu.memory_space<vmem>>, vector<64x1xf32>
    %253 = arith.mulf %249, %252 : vector<64x1xf32>
    %254 = vector.broadcast %253 : vector<64x1xf32> to vector<64x256xf32>
    %255 = arith.mulf %251, %254 : vector<64x256xf32>
    %c0_189 = arith.constant 0 : index
    %c0_190 = arith.constant 0 : index
    %256 = vector.load %arg11[%c0_189, %c0_190] : memref<64x1xf32, #tpu.memory_space<vmem>>, vector<64x1xf32>
    %257 = vector.broadcast %256 : vector<64x1xf32> to vector<64x256xf32>
    %258 = arith.addf %255, %257 : vector<64x256xf32>
    %cst_191 = arith.constant 5.000000e-01 : f32
    %259 = vector.broadcast %cst_191 : f32 to vector<64x256xf32>
    %260 = arith.mulf %259, %258 : vector<64x256xf32>
    %cst_192 = arith.constant 0.707106769 : f32
    %261 = vector.broadcast %cst_192 : f32 to vector<64x256xf32>
    %262 = arith.mulf %258, %261 : vector<64x256xf32>
    %cst_193 = arith.constant 0.000000e+00 : f32
    %263 = vector.broadcast %cst_193 : f32 to vector<64x256xf32>
    %264 = arith.cmpf oge, %262, %263 : vector<64x256xf32>
    %cst_194 = arith.constant 1.000000e+00 : f32
    %cst_195 = arith.constant -1.000000e+00 : f32
    %265 = vector.broadcast %cst_194 : f32 to vector<64x256xf32>
    %266 = vector.broadcast %cst_195 : f32 to vector<64x256xf32>
    %267 = arith.select %264, %265, %266 : vector<64x256xi1>, vector<64x256xf32>
    %268 = math.absf %262 : vector<64x256xf32>
    %cst_196 = arith.constant 0.327591091 : f32
    %269 = vector.broadcast %cst_196 : f32 to vector<64x256xf32>
    %270 = arith.mulf %269, %268 : vector<64x256xf32>
    %cst_197 = arith.constant 1.000000e+00 : f32
    %271 = vector.broadcast %cst_197 : f32 to vector<64x256xf32>
    %272 = arith.addf %271, %270 : vector<64x256xf32>
    %cst_198 = arith.constant 1.000000e+00 : f32
    %273 = vector.broadcast %cst_198 : f32 to vector<64x256xf32>
    %274 = arith.divf %273, %272 : vector<64x256xf32>
    %cst_199 = arith.constant 1.06140542 : f32
    %275 = vector.broadcast %cst_199 : f32 to vector<64x256xf32>
    %276 = arith.mulf %275, %274 : vector<64x256xf32>
    %cst_200 = arith.constant -1.45315206 : f32
    %277 = vector.broadcast %cst_200 : f32 to vector<64x256xf32>
    %278 = arith.addf %276, %277 : vector<64x256xf32>
    %279 = arith.mulf %278, %274 : vector<64x256xf32>
    %cst_201 = arith.constant 1.42141378 : f32
    %280 = vector.broadcast %cst_201 : f32 to vector<64x256xf32>
    %281 = arith.addf %279, %280 : vector<64x256xf32>
    %282 = arith.mulf %281, %274 : vector<64x256xf32>
    %cst_202 = arith.constant -0.284496725 : f32
    %283 = vector.broadcast %cst_202 : f32 to vector<64x256xf32>
    %284 = arith.addf %282, %283 : vector<64x256xf32>
    %285 = arith.mulf %284, %274 : vector<64x256xf32>
    %cst_203 = arith.constant 0.254829586 : f32
    %286 = vector.broadcast %cst_203 : f32 to vector<64x256xf32>
    %287 = arith.addf %285, %286 : vector<64x256xf32>
    %288 = arith.mulf %287, %274 : vector<64x256xf32>
    %cst_204 = arith.constant 0.000000e+00 : f32
    %289 = vector.broadcast %cst_204 : f32 to vector<64x256xf32>
    %290 = arith.subf %289, %268 : vector<64x256xf32>
    %291 = arith.mulf %290, %268 : vector<64x256xf32>
    %292 = math.exp %291 : vector<64x256xf32>
    %293 = arith.mulf %288, %292 : vector<64x256xf32>
    %cst_205 = arith.constant 1.000000e+00 : f32
    %294 = vector.broadcast %cst_205 : f32 to vector<64x256xf32>
    %295 = arith.subf %294, %293 : vector<64x256xf32>
    %296 = arith.mulf %267, %295 : vector<64x256xf32>
    %cst_206 = arith.constant 1.000000e+00 : f32
    %297 = vector.broadcast %cst_206 : f32 to vector<64x256xf32>
    %298 = arith.addf %297, %296 : vector<64x256xf32>
    %299 = arith.mulf %260, %298 : vector<64x256xf32>
    %c0_207 = arith.constant 0 : index
    %c0_208 = arith.constant 0 : index
    %c0_209 = arith.constant 0 : index
    %300 = vector.load %arg12[%c0_207, %c0_208, %c0_209] : memref<1x64x256xf32, #tpu.memory_space<vmem>>, vector<1x64x256xf32>
    %301 = vector.shape_cast %300 : vector<1x64x256xf32> to vector<64x256xf32>
    %302 = vector.shape_cast %299 : vector<64x256xf32> to vector<1x64x256xf32>
    tpu.vector_store %arg12[%c0_207, %c0_208, %c0_209], %302 {strides = array<i32>} : memref<1x64x256xf32, #tpu.memory_space<vmem>>, vector<1x64x256xf32>,
    return
  }
  func.func @transform_0(%arg0: i32) -> (i32, i32, i32) {
    %c0_i32 = arith.constant 0 : i32
    %c0_i32_0 = arith.constant 0 : i32
    %c0_i32_1 = arith.constant 0 : i32
    return %arg0, %c0_i32, %c0_i32_0 : i32, i32, i32
  }
  func.func @transform_1(%arg0: i32) -> (i32, i32, i32) {
    %c0_i32 = arith.constant 0 : i32
    %c0_i32_0 = arith.constant 0 : i32
    %c0_i32_1 = arith.constant 0 : i32
    %c0_i32_2 = arith.constant 0 : i32
    return %c0_i32, %c0_i32_0, %c0_i32_1 : i32, i32, i32
  }
  func.func @transform_2(%arg0: i32) -> (i32, i32) {
    %c0_i32 = arith.constant 0 : i32
    %c0_i32_0 = arith.constant 0 : i32
    %c0_i32_1 = arith.constant 0 : i32
    return %c0_i32, %c0_i32_0 : i32, i32
  }
  func.func @transform_3(%arg0: i32) -> (i32, i32) {
    %c0_i32 = arith.constant 0 : i32
    %c0_i32_0 = arith.constant 0 : i32
    %c0_i32_1 = arith.constant 0 : i32
    return %c0_i32, %c0_i32_0 : i32, i32
  }
  func.func @transform_4(%arg0: i32) -> (i32, i32) {
    %c0_i32 = arith.constant 0 : i32
    %c0_i32_0 = arith.constant 0 : i32
    %c0_i32_1 = arith.constant 0 : i32
    return %c0_i32, %c0_i32_0 : i32, i32
  }
  func.func @transform_5(%arg0: i32) -> (i32, i32) {
    %c0_i32 = arith.constant 0 : i32
    %c0_i32_0 = arith.constant 0 : i32
    %c0_i32_1 = arith.constant 0 : i32
    return %c0_i32, %c0_i32_0 : i32, i32
  }
  func.func @transform_6(%arg0: i32) -> (i32, i32, i32) {
    %c0_i32 = arith.constant 0 : i32
    %c0_i32_0 = arith.constant 0 : i32
    %c0_i32_1 = arith.constant 0 : i32
    %c0_i32_2 = arith.constant 0 : i32
    return %c0_i32, %c0_i32_0, %c0_i32_1 : i32, i32, i32
  }
  func.func @transform_7(%arg0: i32) -> (i32, i32) {
    %c0_i32 = arith.constant 0 : i32
    %c0_i32_0 = arith.constant 0 : i32
    %c0_i32_1 = arith.constant 0 : i32
    return %c0_i32, %c0_i32_0 : i32, i32
  }
  func.func @transform_8(%arg0: i32) -> (i32, i32) {
    %c0_i32 = arith.constant 0 : i32
    %c0_i32_0 = arith.constant 0 : i32
    %c0_i32_1 = arith.constant 0 : i32
    return %c0_i32, %c0_i32_0 : i32, i32
  }
  func.func @transform_9(%arg0: i32) -> (i32, i32) {
    %c0_i32 = arith.constant 0 : i32
    %c0_i32_0 = arith.constant 0 : i32
    %c0_i32_1 = arith.constant 0 : i32
    return %c0_i32, %c0_i32_0 : i32, i32
  }
  func.func @transform_10(%arg0: i32) -> (i32, i32) {
    %c0_i32 = arith.constant 0 : i32
    %c0_i32_0 = arith.constant 0 : i32
    %c0_i32_1 = arith.constant 0 : i32
    return %c0_i32, %c0_i32_0 : i32, i32
  }
  func.func @transform_11(%arg0: i32) -> (i32, i32, i32) {
    %c0_i32 = arith.constant 0 : i32
    %c0_i32_0 = arith.constant 0 : i32
    %c0_i32_1 = arith.constant 0 : i32
    return %arg0, %c0_i32, %c0_i32_0 : i32, i32, i32
  }
}

</mosaic_0001>

<llo_original>
// kernel: decoder_block.1
$region0: #{decoder_block.1}
  #allocation0 [shape = 'u32[]', space=smem, size = 0x4, offset = 0x4, fixed_abs, tag = 'smem constant byte address 0x4 - core index']
  #allocation1 [shape = 'u32[144,128]{1,0:T(1,128)}', space=vmem, size = 0x12000, scoped, tag = 'internal scratch']
  #allocation2 [shape = 'f32[32,320]{1,0:T(8,128)}', space=vmem, size = 0xc000, scoped, tag = 'scratch operand']
  #allocation3 [shape = 'f32[64,320]{1,0:T(8,128)}', space=vmem, size = 0x18000, scoped, tag = 'scratch operand']
  %s0 = inlined_call_operand.vmem [shape: f32[2,32,256], index: 0, kind: input, shape index: {}]
  %s1 = inlined_call_operand.vmem [shape: f32[9,64,32], index: 1, kind: input, shape index: {}]
  %s2 = inlined_call_operand.vmem [shape: f32[64,1], index: 2, kind: input, shape index: {}]
  %s3 = inlined_call_operand.vmem [shape: f32[64,64], index: 3, kind: input, shape index: {}, may-alias: {3,8}]
  %s4 = inlined_call_operand.vmem [shape: f32[64,1], index: 4, kind: input, shape index: {}]
  %s5 = inlined_call_operand.vmem [shape: f32[64,1], index: 5, kind: input, shape index: {}]
  %s6 = inlined_call_operand.vmem [shape: f32[9,64,64], index: 6, kind: input, shape index: {}]
  %s7 = inlined_call_operand.vmem [shape: f32[64,1], index: 7, kind: input, shape index: {}]
  %s8 = inlined_call_operand.vmem [shape: f32[64,64], index: 8, kind: input, shape index: {}, may-alias: {3,8}]
  %s9 = inlined_call_operand.vmem [shape: f32[64,1], index: 9, kind: input, shape index: {}]
  %s10 = inlined_call_operand.vmem [shape: f32[64,1], index: 10, kind: input, shape index: {}]
  %s11 = inlined_call_operand.vmem [shape: f32[2,64,256], index: 11, kind: output, shape index: {}]
  %s12 = sld [smem:[#allocation0]]
  $region77: #{decoder_block.1} parent=0
    _
  %s14 = ssub.s32 1, %s12
  %s15 = scalar_select 0, %s14, %s12
  loop: start=0, step=1, limit=4
  $region2: #{decoder_block.1} parent=0 // loop_pre_header
    _
  $region3: #{decoder_block.1} parent=0 // loop_header
    %s17 = sphi 0, %s21
    %p18 = scmp.ge.s32.totalorder %s17, 4
    %s27 = sphi 0, %s29
    %s30 = sphi 0, %s27
    %s31 = sphi 0, %s30
    %s47 = sphi 0, %s31
    %s51 = sphi 0, %s51
    %s53 = sphi 0, %s51
    %s54 = sphi 0, %s53
    %s68 = sphi 0, %s54
    %s72 = sphi 0, %s72
    %s74 = sphi 0, %s72
    %s75 = sphi 0, %s74
    %s89 = sphi 0, %s75
    %s93 = sphi 0, %s93
    %s95 = sphi 0, %s93
    %s96 = sphi 0, %s95
    %s110 = sphi 0, %s96
    %s114 = sphi 0, %s114
    %s116 = sphi 0, %s114
    %s117 = sphi 0, %s116
    %s131 = sphi 0, %s117
    %s135 = sphi 0, %s135
    %s137 = sphi 0, %s135
    %s138 = sphi 0, %s137
    %s152 = sphi 0, %s138
    %s156 = sphi 0, %s156
    %s158 = sphi 0, %s156
    %s159 = sphi 0, %s158
    %s173 = sphi 0, %s159
    %s177 = sphi 0, %s177
    %s179 = sphi 0, %s177
    %s180 = sphi 0, %s179
    %s194 = sphi 0, %s180
    %s198 = sphi 0, %s198
    %s200 = sphi 0, %s198
    %s201 = sphi 0, %s200
    %s215 = sphi 0, %s201
    %s219 = sphi 0, %s219
    %s221 = sphi 0, %s219
    %s222 = sphi 0, %s221
    %s236 = sphi 0, %s222
    %s240 = sphi 0, %s240
    %s242 = sphi 0, %s240
    %s243 = sphi 0, %s242
    %s257 = sphi 0, %s243
    %s263 = sphi 0, %s265
    %s266 = sphi 0, %s263
    %s267 = sphi 0, %s266
    %s283 = sphi 0, %s267
  $region4: #{decoder_block.1} parent=0 // loop_header_branch
    %20 = sbr.rel (%p18) target = $region8
  $region5: #{decoder_block.1} parent=0 // loop_body
    %s22 = ssub.s32 %s17, 1
    %s23 = ssub.s32 %s17, 2
    %s24 = sadd.s32 %s17, 1
    %s25 = ssub.s32 %s17, %s24
    %p26 = scmp.eq.s32.totalorder %s25, 0
    %s28 = sadd.s32 %s27, 1
    %s29 = scalar_select %p26, %s27, %s28
    %p32 = pneg %p26
    %p33 = scmp.eq.s32.totalorder %s17, 1
    %p34 = por %p32, %p33
    %p35 = scmp.ne.s32.totalorder %s27, %s30
    %p36 = scmp.eq.s32.totalorder %s17, 0
    %p37 = por %p35, %p36
    %p38 = scmp.ne.s32.totalorder %s27, %s30
    %p39 = scmp.eq.s32.totalorder %s22, 1
    %p40 = por %p38, %p39
    %p41 = scmp.ne.s32.totalorder %s30, %s31
    %p42 = scmp.eq.s32.totalorder %s22, 0
    %p43 = por %p41, %p42
    %p44 = scmp.ne.s32.totalorder %s30, %s31
    %p45 = scmp.eq.s32.totalorder %s23, 1
    %p46 = por %p44, %p45
    %p48 = scmp.ne.s32.totalorder %s31, %s47
    %p49 = scmp.eq.s32.totalorder %s23, 0
    %p50 = por %p48, %p49
    %s52 = sadd.s32 %s51, 1
    %p55 = scmp.eq.s32.totalorder %s17, 1
    %p56 = scmp.ne.s32.totalorder %s51, %s53
    %p57 = scmp.eq.s32.totalorder %s17, 0
    %p58 = por %p56, %p57
    %p59 = scmp.ne.s32.totalorder %s51, %s53
    %p60 = scmp.eq.s32.totalorder %s22, 1
    %p61 = por %p59, %p60
    %p62 = scmp.ne.s32.totalorder %s53, %s54
    %p63 = scmp.eq.s32.totalorder %s22, 0
    %p64 = por %p62, %p63
    %p65 = scmp.ne.s32.totalorder %s53, %s54
    %p66 = scmp.eq.s32.totalorder %s23, 1
    %p67 = por %p65, %p66
    %p69 = scmp.ne.s32.totalorder %s54, %s68
    %p70 = scmp.eq.s32.totalorder %s23, 0
    %p71 = por %p69, %p70
    %s73 = sadd.s32 %s72, 1
    %p76 = scmp.eq.s32.totalorder %s17, 1
    %p77 = scmp.ne.s32.totalorder %s72, %s74
    %p78 = scmp.eq.s32.totalorder %s17, 0
    %p79 = por %p77, %p78
    %p80 = scmp.ne.s32.totalorder %s72, %s74
    %p81 = scmp.eq.s32.totalorder %s22, 1
    %p82 = por %p80, %p81
    %p83 = scmp.ne.s32.totalorder %s74, %s75
    %p84 = scmp.eq.s32.totalorder %s22, 0
    %p85 = por %p83, %p84
    %p86 = scmp.ne.s32.totalorder %s74, %s75
    %p87 = scmp.eq.s32.totalorder %s23, 1
    %p88 = por %p86, %p87
    %p90 = scmp.ne.s32.totalorder %s75, %s89
    %p91 = scmp.eq.s32.totalorder %s23, 0
    %p92 = por %p90, %p91
    %s94 = sadd.s32 %s93, 1
    %p97 = scmp.eq.s32.totalorder %s17, 1
    %p98 = scmp.ne.s32.totalorder %s93, %s95
    %p99 = scmp.eq.s32.totalorder %s17, 0
    %p100 = por %p98, %p99
    %p101 = scmp.ne.s32.totalorder %s93, %s95
    %p102 = scmp.eq.s32.totalorder %s22, 1
    %p103 = por %p101, %p102
    %p104 = scmp.ne.s32.totalorder %s95, %s96
    %p105 = scmp.eq.s32.totalorder %s22, 0
    %p106 = por %p104, %p105
    %p107 = scmp.ne.s32.totalorder %s95, %s96
    %p108 = scmp.eq.s32.totalorder %s23, 1
    %p109 = por %p107, %p108
    %p111 = scmp.ne.s32.totalorder %s96, %s110
    %p112 = scmp.eq.s32.totalorder %s23, 0
    %p113 = por %p111, %p112
    %s115 = sadd.s32 %s114, 1
    %p118 = scmp.eq.s32.totalorder %s17, 1
    %p119 = scmp.ne.s32.totalorder %s114, %s116
    %p120 = scmp.eq.s32.totalorder %s17, 0
    %p121 = por %p119, %p120
    %p122 = scmp.ne.s32.totalorder %s114, %s116
    %p123 = scmp.eq.s32.totalorder %s22, 1
    %p124 = por %p122, %p123
    %p125 = scmp.ne.s32.totalorder %s116, %s117
    %p126 = scmp.eq.s32.totalorder %s22, 0
    %p127 = por %p125, %p126
    %p128 = scmp.ne.s32.totalorder %s116, %s117
    %p129 = scmp.eq.s32.totalorder %s23, 1
    %p130 = por %p128, %p129
    %p132 = scmp.ne.s32.totalorder %s117, %s131
    %p133 = scmp.eq.s32.totalorder %s23, 0
    %p134 = por %p132, %p133
    %s136 = sadd.s32 %s135, 1
    %p139 = scmp.eq.s32.totalorder %s17, 1
    %p140 = scmp.ne.s32.totalorder %s135, %s137
    %p141 = scmp.eq.s32.totalorder %s17, 0
    %p142 = por %p140, %p141
    %p143 = scmp.ne.s32.totalorder %s135, %s137
    %p144 = scmp.eq.s32.totalorder %s22, 1
    %p145 = por %p143, %p144
    %p146 = scmp.ne.s32.totalorder %s137, %s138
    %p147 = scmp.eq.s32.totalorder %s22, 0
    %p148 = por %p146, %p147
    %p149 = scmp.ne.s32.totalorder %s137, %s138
    %p150 = scmp.eq.s32.totalorder %s23, 1
    %p151 = por %p149, %p150
    %p153 = scmp.ne.s32.totalorder %s138, %s152
    %p154 = scmp.eq.s32.totalorder %s23, 0
    %p155 = por %p153, %p154
    %s157 = sadd.s32 %s156, 1
    %p160 = scmp.eq.s32.totalorder %s17, 1
    %p161 = scmp.ne.s32.totalorder %s156, %s158
    %p162 = scmp.eq.s32.totalorder %s17, 0
    %p163 = por %p161, %p162
    %p164 = scmp.ne.s32.totalorder %s156, %s158
    %p165 = scmp.eq.s32.totalorder %s22, 1
    %p166 = por %p164, %p165
    %p167 = scmp.ne.s32.totalorder %s158, %s159
    %p168 = scmp.eq.s32.totalorder %s22, 0
    %p169 = por %p167, %p168
    %p170 = scmp.ne.s32.totalorder %s158, %s159
    %p171 = scmp.eq.s32.totalorder %s23, 1
    %p172 = por %p170, %p171
    %p174 = scmp.ne.s32.totalorder %s159, %s173
    %p175 = scmp.eq.s32.totalorder %s23, 0
    %p176 = por %p174, %p175
    %s178 = sadd.s32 %s177, 1
    %p181 = scmp.eq.s32.totalorder %s17, 1
    %p182 = scmp.ne.s32.totalorder %s177, %s179
    %p183 = scmp.eq.s32.totalorder %s17, 0
    %p184 = por %p182, %p183
    %p185 = scmp.ne.s32.totalorder %s177, %s179
    %p186 = scmp.eq.s32.totalorder %s22, 1
    %p187 = por %p185, %p186
    %p188 = scmp.ne.s32.totalorder %s179, %s180
    %p189 = scmp.eq.s32.totalorder %s22, 0
    %p190 = por %p188, %p189
    %p191 = scmp.ne.s32.totalorder %s179, %s180
    %p192 = scmp.eq.s32.totalorder %s23, 1
    %p193 = por %p191, %p192
    %p195 = scmp.ne.s32.totalorder %s180, %s194
    %p196 = scmp.eq.s32.totalorder %s23, 0
    %p197 = por %p195, %p196
    %s199 = sadd.s32 %s198, 1
    %p202 = scmp.eq.s32.totalorder %s17, 1
    %p203 = scmp.ne.s32.totalorder %s198, %s200
    %p204 = scmp.eq.s32.totalorder %s17, 0
    %p205 = por %p203, %p204
    %p206 = scmp.ne.s32.totalorder %s198, %s200
    %p207 = scmp.eq.s32.totalorder %s22, 1
    %p208 = por %p206, %p207
    %p209 = scmp.ne.s32.totalorder %s200, %s201
    %p210 = scmp.eq.s32.totalorder %s22, 0
    %p211 = por %p209, %p210
    %p212 = scmp.ne.s32.totalorder %s200, %s201
    %p213 = scmp.eq.s32.totalorder %s23, 1
    %p214 = por %p212, %p213
    %p216 = scmp.ne.s32.totalorder %s201, %s215
    %p217 = scmp.eq.s32.totalorder %s23, 0
    %p218 = por %p216, %p217
    %s220 = sadd.s32 %s219, 1
    %p223 = scmp.eq.s32.totalorder %s17, 1
    %p224 = scmp.ne.s32.totalorder %s219, %s221
    %p225 = scmp.eq.s32.totalorder %s17, 0
    %p226 = por %p224, %p225
    %p227 = scmp.ne.s32.totalorder %s219, %s221
    %p228 = scmp.eq.s32.totalorder %s22, 1
    %p229 = por %p227, %p228
    %p230 = scmp.ne.s32.totalorder %s221, %s222
    %p231 = scmp.eq.s32.totalorder %s22, 0
    %p232 = por %p230, %p231
    %p233 = scmp.ne.s32.totalorder %s221, %s222
    %p234 = scmp.eq.s32.totalorder %s23, 1
    %p235 = por %p233, %p234
    %p237 = scmp.ne.s32.totalorder %s222, %s236
    %p238 = scmp.eq.s32.totalorder %s23, 0
    %p239 = por %p237, %p238
    %s241 = sadd.s32 %s240, 1
    %p244 = scmp.eq.s32.totalorder %s17, 1
    %p245 = scmp.ne.s32.totalorder %s240, %s242
    %p246 = scmp.eq.s32.totalorder %s17, 0
    %p247 = por %p245, %p246
    %p248 = scmp.ne.s32.totalorder %s240, %s242
    %p249 = scmp.eq.s32.totalorder %s22, 1
    %p250 = por %p248, %p249
    %p251 = scmp.ne.s32.totalorder %s242, %s243
    %p252 = scmp.eq.s32.totalorder %s22, 0
    %p253 = por %p251, %p252
    %p254 = scmp.ne.s32.totalorder %s242, %s243
    %p255 = scmp.eq.s32.totalorder %s23, 1
    %p256 = por %p254, %p255
    %p258 = scmp.ne.s32.totalorder %s243, %s257
    %p259 = scmp.eq.s32.totalorder %s23, 0
    %p260 = por %p258, %p259
    %s261 = ssub.s32 %s17, %s24
    %p262 = scmp.eq.s32.totalorder %s261, 0
    %s264 = sadd.s32 %s263, 1
    %s265 = scalar_select %p262, %s263, %s264
    %p268 = pneg %p262
    %p269 = scmp.eq.s32.totalorder %s17, 1
    %p270 = por %p268, %p269
    %p271 = scmp.ne.s32.totalorder %s263, %s266
    %p272 = scmp.eq.s32.totalorder %s17, 0
    %p273 = por %p271, %p272
    %p274 = scmp.ne.s32.totalorder %s263, %s266
    %p275 = scmp.eq.s32.totalorder %s22, 1
    %p276 = por %p274, %p275
    %p277 = scmp.ne.s32.totalorder %s266, %s267
    %p278 = scmp.eq.s32.totalorder %s22, 0
    %p279 = por %p277, %p278
    %p280 = scmp.ne.s32.totalorder %s266, %s267
    %p281 = scmp.eq.s32.totalorder %s23, 1
    %p282 = por %p280, %p281
    %p284 = scmp.ne.s32.totalorder %s267, %s283
    %p285 = scmp.eq.s32.totalorder %s23, 0
    %p286 = por %p284, %p285
    %p287 = scmp.le.s32.totalorder 1, %s17
    %p288 = scmp.lt.s32.totalorder %s17, 3
    %p289 = pnand %p287, %p288
    %p290 = pneg %p289
    // Predicated region
    $region9: #{decoder_block.1} parent=5 // pred_check
      _
    $region10: #{decoder_block.1} parent=5 // pred_check_branch
      %292 = sbr.rel (%p289) target = $region12
    $region11: #{decoder_block.1} parent=5 // pred_region
      %s293 = ssub.s32 %s17, 1
      // Predicated region
      $region13: #{decoder_block.1} parent=11 // pred_check
        %p294 = pneg %p64
      $region14: #{decoder_block.1} parent=11 // pred_check_branch
        %296 = sbr.rel (%p294) target = $region16
      $region15: #{decoder_block.1} parent=11 // pred_region
        _
      $region16: #{decoder_block.1} parent=11 // pred_fallthru
        _
      // Predicated region
      $region17: #{decoder_block.1} parent=11 // pred_check
        %p297 = pneg %p85
      $region18: #{decoder_block.1} parent=11 // pred_check_branch
        %299 = sbr.rel (%p297) target = $region20
      $region19: #{decoder_block.1} parent=11 // pred_region
        _
      $region20: #{decoder_block.1} parent=11 // pred_fallthru
        _
      // Predicated region
      $region21: #{decoder_block.1} parent=11 // pred_check
        %p300 = pneg %p106
      $region22: #{decoder_block.1} parent=11 // pred_check_branch
        %302 = sbr.rel (%p300) target = $region24
      $region23: #{decoder_block.1} parent=11 // pred_region
        _
      $region24: #{decoder_block.1} parent=11 // pred_fallthru
        _
      // Predicated region
      $region25: #{decoder_block.1} parent=11 // pred_check
        %p303 = pneg %p127
      $region26: #{decoder_block.1} parent=11 // pred_check_branch
        %305 = sbr.rel (%p303) target = $region28
      $region27: #{decoder_block.1} parent=11 // pred_region
        _
      $region28: #{decoder_block.1} parent=11 // pred_fallthru
        _
      // Predicated region
      $region29: #{decoder_block.1} parent=11 // pred_check
        %p306 = pneg %p148
      $region30: #{decoder_block.1} parent=11 // pred_check_branch
        %308 = sbr.rel (%p306) target = $region32
      $region31: #{decoder_block.1} parent=11 // pred_region
        _
      $region32: #{decoder_block.1} parent=11 // pred_fallthru
        _
      // Predicated region
      $region33: #{decoder_block.1} parent=11 // pred_check
        %p309 = pneg %p169
      $region34: #{decoder_block.1} parent=11 // pred_check_branch
        %311 = sbr.rel (%p309) target = $region36
      $region35: #{decoder_block.1} parent=11 // pred_region
        _
      $region36: #{decoder_block.1} parent=11 // pred_fallthru
        _
      // Predicated region
      $region37: #{decoder_block.1} parent=11 // pred_check
        %p312 = pneg %p190
      $region38: #{decoder_block.1} parent=11 // pred_check_branch
        %314 = sbr.rel (%p312) target = $region40
      $region39: #{decoder_block.1} parent=11 // pred_region
        _
      $region40: #{decoder_block.1} parent=11 // pred_fallthru
        _
      // Predicated region
      $region41: #{decoder_block.1} parent=11 // pred_check
        %p315 = pneg %p211
      $region42: #{decoder_block.1} parent=11 // pred_check_branch
        %317 = sbr.rel (%p315) target = $region44
      $region43: #{decoder_block.1} parent=11 // pred_region
        _
      $region44: #{decoder_block.1} parent=11 // pred_fallthru
        _
      // Predicated region
      $region45: #{decoder_block.1} parent=11 // pred_check
        %p318 = pneg %p232
      $region46: #{decoder_block.1} parent=11 // pred_check_branch
        %320 = sbr.rel (%p318) target = $region48
      $region47: #{decoder_block.1} parent=11 // pred_region
        _
      $region48: #{decoder_block.1} parent=11 // pred_fallthru
        _
      // Predicated region
      $region49: #{decoder_block.1} parent=11 // pred_check
        %p321 = pneg %p253
      $region50: #{decoder_block.1} parent=11 // pred_check_branch
        %323 = sbr.rel (%p321) target = $region52
      $region51: #{decoder_block.1} parent=11 // pred_region
        _
      $region52: #{decoder_block.1} parent=11 // pred_fallthru
        _
    $region12: #{decoder_block.1} parent=5 // pred_fallthru
      _
    %p324 = scmp.lt.s32.totalorder %s17, 2
    // Predicated region
    $region53: #{decoder_block.1} parent=5 // pred_check
      %p325 = pneg %p324
    $region54: #{decoder_block.1} parent=5 // pred_check_branch
      %327 = sbr.rel (%p325) target = $region56
    $region55: #{decoder_block.1} parent=5 // pred_region
      // Predicated region
      $region57: #{decoder_block.1} parent=55 // pred_check
        %p328 = pneg %p37
      $region58: #{decoder_block.1} parent=55 // pred_check_branch
        %330 = sbr.rel (%p328) target = $region60
      $region59: #{decoder_block.1} parent=55 // pred_region
        %p331 = scmp.lt.s32.totalorder %s17, 1
        %s332 = scalar_select %p331, %s17, 1
        %s333 = smul.addr %s332, 8
        %s334 = smul.addr %s333, 8
        %s335 = scalar_lea.vmem %s0, %s334
      $region60: #{decoder_block.1} parent=55 // pred_fallthru
        _
    $region56: #{decoder_block.1} parent=5 // pred_fallthru
      _
    %p336 = scmp.le.s32.totalorder 1, %s17
    %p337 = scmp.lt.s32.totalorder %s17, 3
    %p338 = pnand %p336, %p337
    %p339 = pneg %p338
    // Predicated region
    $region61: #{decoder_block.1} parent=5 // pred_check
      _
    $region62: #{decoder_block.1} parent=5 // pred_check_branch
      %341 = sbr.rel (%p338) target = $region64
    $region63: #{decoder_block.1} parent=5 // pred_region
      %s342 = ssub.s32 %s17, 1
      %p343 = scmp.lt.s32.totalorder %s22, 1
      %s344 = scalar_select %p343, %s22, 1
      %s345 = smul.addr %s344, 8
      %s346 = smul.addr %s345, 8
      %s347 = scalar_lea.vmem %s0, %s346
      %p348 = pneg %p43
      %p349 = pneg %p40
      %p350 = pneg %p64
      %p351 = pneg %p61
      %p352 = pneg %p85
      %p353 = pneg %p82
      %p354 = pneg %p106
      %p355 = pneg %p103
      %p356 = pneg %p127
      %p357 = pneg %p124
      %p358 = pneg %p148
      %p359 = pneg %p145
      %p360 = pneg %p169
      %p361 = pneg %p166
      %p362 = pneg %p190
      %p363 = pneg %p187
      %p364 = pneg %p211
      %p365 = pneg %p208
      %p366 = pneg %p232
      %p367 = pneg %p229
      %p368 = pneg %p253
      %p369 = pneg %p250
      %p370 = pneg %p279
      %p371 = pneg %p276
      %p372 = scmp.lt.s32.totalorder %s22, 1
      %s373 = scalar_select %p372, %s22, 1
      %s374 = smul.addr %s373, 16
      %s375 = smul.addr %s374, 8
      %s376 = scalar_lea.vmem %s11, %s375
      %p377 = scmp.lt.s32.totalorder %s22, 1
      %s378 = scalar_select %p377, %s22, 1
      %s379 = smul.addr %s378, 8
      %s380 = smul.addr %s379, 8
      %s381 = scalar_lea.vmem %s0, %s380
      %p382 = scmp.lt.s32.totalorder %s22, 1
      %s383 = scalar_select %p382, %s22, 1
      %s384 = smul.addr %s383, 16
      %s385 = smul.addr %s384, 8
      %s386 = scalar_lea.vmem %s11, %s385
      %v387 = vld [vmem:[%s381] sm:$0xff]
      %v388 = vld [vmem:[%s381 + $0x8] sm:$0xff]
      %v389 = vld [vmem:[%s381 + $0x10] sm:$0xff]
      %v390 = vld [vmem:[%s381 + $0x18] sm:$0xff]
      %v391 = vld [vmem:[%s381 + $0x20] sm:$0xff]
      %v392 = vld [vmem:[%s381 + $0x28] sm:$0xff]
      %v393 = vld [vmem:[%s381 + $0x30] sm:$0xff]
      %v394 = vld [vmem:[%s381 + $0x38] sm:$0xff]
      %403 = vrot.lane.b32.xlu0 %v387, 32
      %v404 = vpop.permute.xlu0 %403
      %405 = vrot.lane.b32.xlu0 %v388, 32
      %v406 = vpop.permute.xlu0 %405
      %407 = vrot.lane.b32.xlu0 %v389, 32
      %v408 = vpop.permute.xlu0 %407
      %409 = vrot.lane.b32.xlu0 %v390, 32
      %v410 = vpop.permute.xlu0 %409
      %411 = vrot.lane.b32.xlu0 %v391, 32
      %v412 = vpop.permute.xlu0 %411
      %413 = vrot.lane.b32.xlu0 %v392, 32
      %v414 = vpop.permute.xlu0 %413
      %415 = vrot.lane.b32.xlu0 %v393, 32
      %v416 = vpop.permute.xlu0 %415
      %417 = vrot.lane.b32.xlu0 %v394, 32
      %v418 = vpop.permute.xlu0 %417
      %vm419 = vcmask 261120
      %v420 = vsel %vm419, %v404, %v406
      %v421 = vsel %vm419, %v408, %v410
      %v422 = vsel %vm419, %v412, %v414
      %v423 = vsel %vm419, %v416, %v418
      %vm436 = vcmask 1047808
      %437 = vst.msk [vmem:[#allocation2] sm:$0xff] %vm436, %v404
      %438 = vst [vmem:[#allocation2 + $0x8] sm:$0xff] %v420
      %439 = vst.msk [vmem:[#allocation2 + $0x10] sm:$0xff] %vm419, %v406
      %440 = vst.msk [vmem:[#allocation2 + $0x18] sm:$0xff] %vm436, %v408
      %441 = vst [vmem:[#allocation2 + $0x20] sm:$0xff] %v421
      %442 = vst.msk [vmem:[#allocation2 + $0x28] sm:$0xff] %vm419, %v410
      %443 = vst.msk [vmem:[#allocation2 + $0x30] sm:$0xff] %vm436, %v412
      %444 = vst [vmem:[#allocation2 + $0x38] sm:$0xff] %v422
      %445 = vst.msk [vmem:[#allocation2 + $0x40] sm:$0xff] %vm419, %v414
      %446 = vst.msk [vmem:[#allocation2 + $0x48] sm:$0xff] %vm436, %v416
      %447 = vst [vmem:[#allocation2 + $0x50] sm:$0xff] %v423
      %448 = vst.msk [vmem:[#allocation2 + $0x58] sm:$0xff] %vm419, %v418
      %v449 = vld [vmem:[#allocation2 + $0x10] sm:$0xff]
      %v450 = vld [vmem:[#allocation2 + $0x28] sm:$0xff]
      %v451 = vld [vmem:[#allocation2 + $0x40] sm:$0xff]
      %v452 = vld [vmem:[#allocation2 + $0x58] sm:$0xff]
      %453 = vst.msk [vmem:[#allocation2] sm:$0xff] %vm419, %v449
      %454 = vst.msk [vmem:[#allocation2 + $0x18] sm:$0xff] %vm419, %v450
      %455 = vst.msk [vmem:[#allocation2 + $0x30] sm:$0xff] %vm419, %v451
      %456 = vst.msk [vmem:[#allocation2 + $0x48] sm:$0xff] %vm419, %v452
      %v457 = vld [vmem:[#allocation2] sm:$0xff]
      %v458 = vld [vmem:[#allocation2 + $0x18] sm:$0xff]
      %v459 = vld [vmem:[#allocation2 + $0x30] sm:$0xff]
      %v460 = vld [vmem:[#allocation2 + $0x48] sm:$0xff]
      %vm461 = vcmask 523520
      %462 = vst.msk [vmem:[#allocation2 + $0x10] sm:$0xff] %vm461, %v457
      %463 = vst.msk [vmem:[#allocation2 + $0x28] sm:$0xff] %vm461, %v458
      %464 = vst.msk [vmem:[#allocation2 + $0x40] sm:$0xff] %vm461, %v459
      %465 = vst.msk [vmem:[#allocation2 + $0x58] sm:$0xff] %vm461, %v460
      %v466 = vlaneseq
      %v467 = vand.u32 %v466, 127
      %v468 = vadd.s32 %v467, 128
      %vm469 = vcmp.lt.s32.totalorder %v467, 0
      %v470 = vsub.s32 0, %v467
      %v471 = vsel %vm469, %v470, %v467
      %v472 = vshrl.u32 %v471, 4
      %v473 = vand.u32 %v471, 15
      %v474 = vsub.s32 0, %v473
      %v475 = vsel %vm469, %v474, %v473
      %vm476 = vcmp.lt.s32.totalorder %v468, 0
      %v477 = vsub.s32 0, %v468
      %v478 = vsel %vm476, %v477, %v468
      %v479 = vshrl.u32 %v478, 4
      %v480 = vand.u32 %v478, 15
      %v481 = vsub.s32 0, %v480
      %v482 = vsel %vm476, %v481, %v480
      %vm483 = vcmp.ne.s32.totalorder %v475, 0
      %vm484 = vcmp.ne.s32.totalorder %v482, 0
      %vm485 = vcmp.lt.s32.totalorder %v475, 0
      %vm486 = vcmp.lt.s32.totalorder %v482, 0
      %vm487 = vmand %vm485, %vm483
      %vm488 = vmand %vm486, %vm484
      %v489 = vadd.s32 %v475, 16
      %v490 = vadd.s32 %v482, 16
      %v491 = vsel %vm487, %v489, %v475
      %v492 = vsel %vm488, %v490, %v482
      %vm493 = vcmp.eq.s32.totalorder %v491, 0
      %vm494 = vcmp.eq.s32.totalorder %v492, 0
      %vm495 = vcmp.eq.s32.totalorder %v491, 15
      %vm496 = vcmp.eq.s32.totalorder %v492, 15
      %v497 = vld [vmem:[#allocation2] sm:$0xff]
      %v498 = vld [vmem:[#allocation2 + $0x8] sm:$0xff]
      %v499 = vld [vmem:[#allocation2 + $0x10] sm:$0xff]
      %v500 = vld [vmem:[#allocation2 + $0x18] sm:$0xff]
      %v501 = vld [vmem:[#allocation2 + $0x20] sm:$0xff]
      %v502 = vld [vmem:[#allocation2 + $0x28] sm:$0xff]
      %v503 = vld [vmem:[#allocation2 + $0x30] sm:$0xff]
      %v504 = vld [vmem:[#allocation2 + $0x38] sm:$0xff]
      %v505 = vld [vmem:[#allocation2 + $0x40] sm:$0xff]
      %v506 = vld [vmem:[#allocation2 + $0x48] sm:$0xff]
      %v507 = vld [vmem:[#allocation2 + $0x50] sm:$0xff]
      %v508 = vld [vmem:[#allocation2 + $0x58] sm:$0xff]
      %521 = vrot.lane.b32.xlu0 %v497, 97
      %v522 = vpop.permute.xlu0 %521
      %523 = vrot.lane.b32.xlu0 %v498, 97
      %v524 = vpop.permute.xlu0 %523
      %525 = vrot.lane.b32.xlu0 %v499, 97
      %v526 = vpop.permute.xlu0 %525
      %527 = vrot.lane.b32.xlu0 %v500, 97
      %v528 = vpop.permute.xlu0 %527
      %529 = vrot.lane.b32.xlu0 %v501, 97
      %v530 = vpop.permute.xlu0 %529
      %531 = vrot.lane.b32.xlu0 %v502, 97
      %v532 = vpop.permute.xlu0 %531
      %533 = vrot.lane.b32.xlu0 %v503, 97
      %v534 = vpop.permute.xlu0 %533
      %535 = vrot.lane.b32.xlu0 %v504, 97
      %v536 = vpop.permute.xlu0 %535
      %537 = vrot.lane.b32.xlu0 %v505, 97
      %v538 = vpop.permute.xlu0 %537
      %539 = vrot.lane.b32.xlu0 %v506, 97
      %v540 = vpop.permute.xlu0 %539
      %541 = vrot.lane.b32.xlu0 %v507, 97
      %v542 = vpop.permute.xlu0 %541
      %543 = vrot.lane.b32.xlu0 %v508, 97
      %v544 = vpop.permute.xlu0 %543
      %vm545 = vcmask 793600
      %v546 = vsel %vm545, %v522, %v524
      %v547 = vsel %vm545, %v524, %v526
      %v548 = vsel %vm545, %v528, %v530
      %v549 = vsel %vm545, %v530, %v532
      %v550 = vsel %vm545, %v534, %v536
      %v551 = vsel %vm545, %v536, %v538
      %v552 = vsel %vm545, %v540, %v542
      %v553 = vsel %vm545, %v542, %v544
      %562 = vrot.lane.b32.xlu0 %v497, 113
      %v563 = vpop.permute.xlu0 %562
      %564 = vrot.lane.b32.xlu0 %v498, 113
      %v565 = vpop.permute.xlu0 %564
      %566 = vrot.lane.b32.xlu0 %v499, 113
      %v567 = vpop.permute.xlu0 %566
      %568 = vrot.lane.b32.xlu0 %v500, 113
      %v569 = vpop.permute.xlu0 %568
      %570 = vrot.lane.b32.xlu0 %v501, 113
      %v571 = vpop.permute.xlu0 %570
      %572 = vrot.lane.b32.xlu0 %v502, 113
      %v573 = vpop.permute.xlu0 %572
      %574 = vrot.lane.b32.xlu0 %v503, 113
      %v575 = vpop.permute.xlu0 %574
      %576 = vrot.lane.b32.xlu0 %v504, 113
      %v577 = vpop.permute.xlu0 %576
      %578 = vrot.lane.b32.xlu0 %v505, 113
      %v579 = vpop.permute.xlu0 %578
      %580 = vrot.lane.b32.xlu0 %v506, 113
      %v581 = vpop.permute.xlu0 %580
      %582 = vrot.lane.b32.xlu0 %v507, 113
      %v583 = vpop.permute.xlu0 %582
      %584 = vrot.lane.b32.xlu0 %v508, 113
      %v585 = vpop.permute.xlu0 %584
      %vm586 = vcmask 924672
      %v587 = vsel %vm586, %v563, %v565
      %v588 = vsel %vm586, %v565, %v567
      %v589 = vsel %vm586, %v569, %v571
      %v590 = vsel %vm586, %v571, %v573
      %v591 = vsel %vm586, %v575, %v577
      %v592 = vsel %vm586, %v577, %v579
      %v593 = vsel %vm586, %v581, %v583
      %v594 = vsel %vm586, %v583, %v585
      %v603 = vsel %vm493, %v546, %v587
      %v604 = vsel %vm494, %v547, %v588
      %v605 = vsel %vm493, %v548, %v589
      %v606 = vsel %vm494, %v549, %v590
      %v607 = vsel %vm493, %v550, %v591
      %v608 = vsel %vm494, %v551, %v592
      %v609 = vsel %vm493, %v552, %v593
      %v610 = vsel %vm494, %v553, %v594
      %v611 = vld [vmem:[%s1] sm:$0xff]
      %v612 = vld [vmem:[%s1 + $0x8] sm:$0xff]
      %v613 = vld [vmem:[%s1 + $0x10] sm:$0xff]
      %v614 = vld [vmem:[%s1 + $0x18] sm:$0xff]
      %v615 = vld [vmem:[%s1 + $0x20] sm:$0xff]
      %v616 = vld [vmem:[%s1 + $0x28] sm:$0xff]
      %v617 = vld [vmem:[%s1 + $0x30] sm:$0xff]
      %v618 = vld [vmem:[%s1 + $0x38] sm:$0xff]
      %s619 = scalar_lea.vmem %s1, 64
      %v620 = vld [vmem:[%s619] sm:$0xff]
      %v621 = vld [vmem:[%s619 + $0x8] sm:$0xff]
      %v622 = vld [vmem:[%s619 + $0x10] sm:$0xff]
      %v623 = vld [vmem:[%s619 + $0x18] sm:$0xff]
      %v624 = vld [vmem:[%s619 + $0x20] sm:$0xff]
      %v625 = vld [vmem:[%s619 + $0x28] sm:$0xff]
      %v626 = vld [vmem:[%s619 + $0x30] sm:$0xff]
      %v627 = vld [vmem:[%s619 + $0x38] sm:$0xff]
      %628 = vrot.lane.b32.xlu0 %v497, 112
      %v629 = vpop.permute.xlu0 %628
      %630 = vrot.lane.b32.xlu0 %v498, 112
      %v631 = vpop.permute.xlu0 %630
      %632 = vrot.lane.b32.xlu0 %v499, 112
      %v633 = vpop.permute.xlu0 %632
      %634 = vrot.lane.b32.xlu0 %v500, 112
      %v635 = vpop.permute.xlu0 %634
      %636 = vrot.lane.b32.xlu0 %v501, 112
      %v637 = vpop.permute.xlu0 %636
      %638 = vrot.lane.b32.xlu0 %v502, 112
      %v639 = vpop.permute.xlu0 %638
      %640 = vrot.lane.b32.xlu0 %v503, 112
      %v641 = vpop.permute.xlu0 %640
      %642 = vrot.lane.b32.xlu0 %v504, 112
      %v643 = vpop.permute.xlu0 %642
      %644 = vrot.lane.b32.xlu0 %v505, 112
      %v645 = vpop.permute.xlu0 %644
      %646 = vrot.lane.b32.xlu0 %v506, 112
      %v647 = vpop.permute.xlu0 %646
      %648 = vrot.lane.b32.xlu0 %v507, 112
      %v649 = vpop.permute.xlu0 %648
      %650 = vrot.lane.b32.xlu0 %v508, 112
      %v651 = vpop.permute.xlu0 %650
      %vm652 = vcmask 916480
      %v653 = vsel %vm652, %v629, %v631
      %v654 = vsel %vm652, %v631, %v633
      %v655 = vsel %vm652, %v635, %v637
      %v656 = vsel %vm652, %v637, %v639
      %v657 = vsel %vm652, %v641, %v643
      %v658 = vsel %vm652, %v643, %v645
      %v659 = vsel %vm652, %v647, %v649
      %v660 = vsel %vm652, %v649, %v651
      %v670 = vsel %vm419, %v620, 0
      %v673 = vsel %vm419, %v621, 0
      %v676 = vsel %vm419, %v622, 0
      %v679 = vsel %vm419, %v623, 0
      %v682 = vsel %vm419, %v624, 0
      %v685 = vsel %vm419, %v625, 0
      %v688 = vsel %vm419, %v626, 0
      %v691 = vsel %vm419, %v627, 0
      %693 = vmatprep.subr.mxu0 0.0
      %694 = vmatpush1.msra.mxu0 0.0
      %695 = vmatprep.subr.mxu0 0.0
      %696 = vmatpush1.msra.mxu0 0.0
      %697 = vmatprep.subr.mxu0 0.0
      %698 = vmatpush1.msra.mxu0 0.0
      %699 = vmatprep.subr.mxu0 0.0
      %700 = vmatpush1.msra.mxu0 0.0
      %701 = vmatprep.subr.mxu0 0.0
      %702 = vmatpush1.msra.mxu0 0.0
      %703 = vmatprep.subr.mxu0 0.0
      %704 = vmatpush1.msra.mxu0 0.0
      %705 = vmatprep.subr.mxu0 0.0
      %706 = vmatpush1.msra.mxu0 0.0
      %707 = vmatprep.subr.mxu0 0.0
      %708 = vmatpush1.msra.mxu0 0.0
      %709 = vmatprep.subr.mxu0 0.0
      %710 = vmatpush1.msra.mxu0 0.0
      %711 = vmatprep.subr.mxu0 0.0
      %712 = vmatpush1.msra.mxu0 0.0
      %713 = vmatprep.subr.mxu0 0.0
      %714 = vmatpush1.msra.mxu0 0.0
      %715 = vmatprep.subr.mxu0 0.0
      %716 = vmatpush1.msra.mxu0 0.0
      %717 = vmatprep.subr.mxu0 %v660
      %718 = vmatpush1.msra.mxu0 %v659
      %719 = vmatprep.subr.mxu0 %v658
      %720 = vmatpush1.msra.mxu0 %v657
      %721 = vmatprep.subr.mxu0 %v656
      %722 = vmatpush1.msra.mxu0 %v655
      %723 = vmatprep.subr.mxu0 %v654
      %724 = vmatpush1.msra.mxu0 %v653
      %725 = vmatprep.subr.mxu0 0.0
      %726 = vmatpush2.msra.mxu0 0.0
      %727 = vmatprep.subr.mxu0 0.0
      %728 = vmatpush2.msra.mxu0 0.0
      %729 = vmatprep.subr.mxu0 0.0
      %730 = vmatpush2.msra.mxu0 0.0
      %731 = vmatprep.subr.mxu0 0.0
      %732 = vmatpush2.msra.mxu0 0.0
      %733 = vmatprep.subr.mxu0 0.0
      %734 = vmatpush2.msra.mxu0 0.0
      %735 = vmatprep.subr.mxu0 0.0
      %736 = vmatpush2.msra.mxu0 0.0
      %737 = vmatprep.subr.mxu0 0.0
      %738 = vmatpush2.msra.mxu0 0.0
      %739 = vmatprep.subr.mxu0 0.0
      %740 = vmatpush2.msra.mxu0 0.0
      %741 = vmatprep.subr.mxu0 0.0
      %742 = vmatpush2.msra.mxu0 0.0
      %743 = vmatprep.subr.mxu0 0.0
      %744 = vmatpush2.msra.mxu0 0.0
      %745 = vmatprep.subr.mxu0 0.0
      %746 = vmatpush2.msra.mxu0 0.0
      %747 = vmatprep.subr.mxu0 0.0
      %748 = vmatpush2.msra.mxu0 0.0
      %749 = vmatprep.subr.mxu0 0.0
      %750 = vmatpush2.msra.mxu0 0.0
      %751 = vmatprep.subr.mxu0 0.0
      %752 = vmatpush2.msra.mxu0 0.0
      %753 = vmatprep.subr.mxu0 0.0
      %754 = vmatpush2.msra.mxu0 0.0
      %755 = vmatprep.subr.mxu0 0.0
      %756 = vmatpush2.msra.mxu0 0.0
      %757 = vmatprep.mubr.f32.mxu0 0.0
      %758 = vmatmul.mubr.f32.gmra.mxu0 %v670
      %v759 = vpop.f32.mrf.mxu0
      %v760 = vadd.f32 0.0, %v759
      %v761 = vpop.f32.mrf.mxu0
      %v762 = vadd.f32 0.0, %v761
      %763 = vmatprep.mubr.f32.mxu0 0.0
      %764 = vmatmul.mubr.f32.gmra.mxu0 %v673
      %v765 = vpop.f32.mrf.mxu0
      %v766 = vadd.f32 0.0, %v765
      %v767 = vpop.f32.mrf.mxu0
      %v768 = vadd.f32 0.0, %v767
      %769 = vmatprep.mubr.f32.mxu0 0.0
      %770 = vmatmul.mubr.f32.gmra.mxu0 %v676
      %v771 = vpop.f32.mrf.mxu0
      %v772 = vadd.f32 0.0, %v771
      %v773 = vpop.f32.mrf.mxu0
      %v774 = vadd.f32 0.0, %v773
      %775 = vmatprep.mubr.f32.mxu0 0.0
      %776 = vmatmul.mubr.f32.gmra.mxu0 %v679
      %v777 = vpop.f32.mrf.mxu0
      %v778 = vadd.f32 0.0, %v777
      %v779 = vpop.f32.mrf.mxu0
      %v780 = vadd.f32 0.0, %v779
      %781 = vmatprep.mubr.f32.mxu0 0.0
      %782 = vmatmul.mubr.f32.gmra.mxu0 %v682
      %v783 = vpop.f32.mrf.mxu0
      %v784 = vadd.f32 0.0, %v783
      %v785 = vpop.f32.mrf.mxu0
      %v786 = vadd.f32 0.0, %v785
      %787 = vmatprep.mubr.f32.mxu0 0.0
      %788 = vmatmul.mubr.f32.gmra.mxu0 %v685
      %v789 = vpop.f32.mrf.mxu0
      %v790 = vadd.f32 0.0, %v789
      %v791 = vpop.f32.mrf.mxu0
      %v792 = vadd.f32 0.0, %v791
      %793 = vmatprep.mubr.f32.mxu0 0.0
      %794 = vmatmul.mubr.f32.gmra.mxu0 %v688
      %v795 = vpop.f32.mrf.mxu0
      %v796 = vadd.f32 0.0, %v795
      %v797 = vpop.f32.mrf.mxu0
      %v798 = vadd.f32 0.0, %v797
      %799 = vmatprep.mubr.f32.mxu0 0.0
      %800 = vmatmul.mubr.f32.gmra.mxu0 %v691
      %v801 = vpop.f32.mrf.mxu0
      %v802 = vadd.f32 0.0, %v801
      %v803 = vpop.f32.mrf.mxu0
      %v804 = vadd.f32 0.0, %v803
      %805 = vdwg.mxu0
      %v807 = vsel %vm419, %v611, 0
      %v810 = vsel %vm419, %v612, 0
      %v813 = vsel %vm419, %v613, 0
      %v816 = vsel %vm419, %v614, 0
      %v819 = vsel %vm419, %v615, 0
      %v822 = vsel %vm419, %v616, 0
      %v825 = vsel %vm419, %v617, 0
      %v828 = vsel %vm419, %v618, 0
      %830 = vmatprep.subr.mxu0 0.0
      %831 = vmatpush1.msra.mxu0 0.0
      %832 = vmatprep.subr.mxu0 0.0
      %833 = vmatpush1.msra.mxu0 0.0
      %834 = vmatprep.subr.mxu0 0.0
      %835 = vmatpush1.msra.mxu0 0.0
      %836 = vmatprep.subr.mxu0 0.0
      %837 = vmatpush1.msra.mxu0 0.0
      %838 = vmatprep.subr.mxu0 0.0
      %839 = vmatpush1.msra.mxu0 0.0
      %840 = vmatprep.subr.mxu0 0.0
      %841 = vmatpush1.msra.mxu0 0.0
      %842 = vmatprep.subr.mxu0 0.0
      %843 = vmatpush1.msra.mxu0 0.0
      %844 = vmatprep.subr.mxu0 0.0
      %845 = vmatpush1.msra.mxu0 0.0
      %846 = vmatprep.subr.mxu0 0.0
      %847 = vmatpush1.msra.mxu0 0.0
      %848 = vmatprep.subr.mxu0 0.0
      %849 = vmatpush1.msra.mxu0 0.0
      %850 = vmatprep.subr.mxu0 0.0
      %851 = vmatpush1.msra.mxu0 0.0
      %852 = vmatprep.subr.mxu0 0.0
      %853 = vmatpush1.msra.mxu0 0.0
      %854 = vmatprep.subr.mxu0 %v610
      %855 = vmatpush1.msra.mxu0 %v609
      %856 = vmatprep.subr.mxu0 %v608
      %857 = vmatpush1.msra.mxu0 %v607
      %858 = vmatprep.subr.mxu0 %v606
      %859 = vmatpush1.msra.mxu0 %v605
      %860 = vmatprep.subr.mxu0 %v604
      %861 = vmatpush1.msra.mxu0 %v603
      %862 = vmatprep.subr.mxu0 0.0
      %863 = vmatpush2.msra.mxu0 0.0
      %864 = vmatprep.subr.mxu0 0.0
      %865 = vmatpush2.msra.mxu0 0.0
      %866 = vmatprep.subr.mxu0 0.0
      %867 = vmatpush2.msra.mxu0 0.0
      %868 = vmatprep.subr.mxu0 0.0
      %869 = vmatpush2.msra.mxu0 0.0
      %870 = vmatprep.subr.mxu0 0.0
      %871 = vmatpush2.msra.mxu0 0.0
      %872 = vmatprep.subr.mxu0 0.0
      %873 = vmatpush2.msra.mxu0 0.0
      %874 = vmatprep.subr.mxu0 0.0
      %875 = vmatpush2.msra.mxu0 0.0
      %876 = vmatprep.subr.mxu0 0.0
      %877 = vmatpush2.msra.mxu0 0.0
      %878 = vmatprep.subr.mxu0 0.0
      %879 = vmatpush2.msra.mxu0 0.0
      %880 = vmatprep.subr.mxu0 0.0
      %881 = vmatpush2.msra.mxu0 0.0
      %882 = vmatprep.subr.mxu0 0.0
      %883 = vmatpush2.msra.mxu0 0.0
      %884 = vmatprep.subr.mxu0 0.0
      %885 = vmatpush2.msra.mxu0 0.0
      %886 = vmatprep.subr.mxu0 0.0
      %887 = vmatpush2.msra.mxu0 0.0
      %888 = vmatprep.subr.mxu0 0.0
      %889 = vmatpush2.msra.mxu0 0.0
      %890 = vmatprep.subr.mxu0 0.0
      %891 = vmatpush2.msra.mxu0 0.0
      %892 = vmatprep.subr.mxu0 0.0
      %893 = vmatpush2.msra.mxu0 0.0
      %894 = vmatprep.mubr.f32.mxu0 0.0
      %895 = vmatmul.mubr.f32.gmra.mxu0 %v807
      %v896 = vpop.f32.mrf.mxu0
      %v897 = vadd.f32 %v760, %v896
      %v898 = vpop.f32.mrf.mxu0
      %v899 = vadd.f32 %v762, %v898
      %900 = vmatprep.mubr.f32.mxu0 0.0
      %901 = vmatmul.mubr.f32.gmra.mxu0 %v810
      %v902 = vpop.f32.mrf.mxu0
      %v903 = vadd.f32 %v766, %v902
      %v904 = vpop.f32.mrf.mxu0
      %v905 = vadd.f32 %v768, %v904
      %906 = vmatprep.mubr.f32.mxu0 0.0
      %907 = vmatmul.mubr.f32.gmra.mxu0 %v813
      %v908 = vpop.f32.mrf.mxu0
      %v909 = vadd.f32 %v772, %v908
      %v910 = vpop.f32.mrf.mxu0
      %v911 = vadd.f32 %v774, %v910
      %912 = vmatprep.mubr.f32.mxu0 0.0
      %913 = vmatmul.mubr.f32.gmra.mxu0 %v816
      %v914 = vpop.f32.mrf.mxu0
      %v915 = vadd.f32 %v778, %v914
      %v916 = vpop.f32.mrf.mxu0
      %v917 = vadd.f32 %v780, %v916
      %918 = vmatprep.mubr.f32.mxu0 0.0
      %919 = vmatmul.mubr.f32.gmra.mxu0 %v819
      %v920 = vpop.f32.mrf.mxu0
      %v921 = vadd.f32 %v784, %v920
      %v922 = vpop.f32.mrf.mxu0
      %v923 = vadd.f32 %v786, %v922
      %924 = vmatprep.mubr.f32.mxu0 0.0
      %925 = vmatmul.mubr.f32.gmra.mxu0 %v822
      %v926 = vpop.f32.mrf.mxu0
      %v927 = vadd.f32 %v790, %v926
      %v928 = vpop.f32.mrf.mxu0
      %v929 = vadd.f32 %v792, %v928
      %930 = vmatprep.mubr.f32.mxu0 0.0
      %931 = vmatmul.mubr.f32.gmra.mxu0 %v825
      %v932 = vpop.f32.mrf.mxu0
      %v933 = vadd.f32 %v796, %v932
      %v934 = vpop.f32.mrf.mxu0
      %v935 = vadd.f32 %v798, %v934
      %936 = vmatprep.mubr.f32.mxu0 0.0
      %937 = vmatmul.mubr.f32.gmra.mxu0 %v828
      %v938 = vpop.f32.mrf.mxu0
      %v939 = vadd.f32 %v802, %v938
      %v940 = vpop.f32.mrf.mxu0
      %v941 = vadd.f32 %v804, %v940
      %942 = vdwg.mxu0
      %943 = vrot.lane.b32.xlu0 %v497, 127
      %v944 = vpop.permute.xlu0 %943
      %945 = vrot.lane.b32.xlu0 %v498, 127
      %v946 = vpop.permute.xlu0 %945
      %947 = vrot.lane.b32.xlu0 %v499, 127
      %v948 = vpop.permute.xlu0 %947
      %949 = vrot.lane.b32.xlu0 %v500, 127
      %v950 = vpop.permute.xlu0 %949
      %951 = vrot.lane.b32.xlu0 %v501, 127
      %v952 = vpop.permute.xlu0 %951
      %953 = vrot.lane.b32.xlu0 %v502, 127
      %v954 = vpop.permute.xlu0 %953
      %955 = vrot.lane.b32.xlu0 %v503, 127
      %v956 = vpop.permute.xlu0 %955
      %957 = vrot.lane.b32.xlu0 %v504, 127
      %v958 = vpop.permute.xlu0 %957
      %959 = vrot.lane.b32.xlu0 %v505, 127
      %v960 = vpop.permute.xlu0 %959
      %961 = vrot.lane.b32.xlu0 %v506, 127
      %v962 = vpop.permute.xlu0 %961
      %963 = vrot.lane.b32.xlu0 %v507, 127
      %v964 = vpop.permute.xlu0 %963
      %965 = vrot.lane.b32.xlu0 %v508, 127
      %v966 = vpop.permute.xlu0 %965
      %vm967 = vcmask 1039360
      %v968 = vsel %vm967, %v944, %v946
      %v969 = vsel %vm967, %v946, %v948
      %v970 = vsel %vm967, %v950, %v952
      %v971 = vsel %vm967, %v952, %v954
      %v972 = vsel %vm967, %v956, %v958
      %v973 = vsel %vm967, %v958, %v960
      %v974 = vsel %vm967, %v962, %v964
      %v975 = vsel %vm967, %v964, %v966
      %984 = vrot.lane.b32.xlu0 %v497, 111
      %v985 = vpop.permute.xlu0 %984
      %986 = vrot.lane.b32.xlu0 %v498, 111
      %v987 = vpop.permute.xlu0 %986
      %988 = vrot.lane.b32.xlu0 %v499, 111
      %v989 = vpop.permute.xlu0 %988
      %990 = vrot.lane.b32.xlu0 %v500, 111
      %v991 = vpop.permute.xlu0 %990
      %992 = vrot.lane.b32.xlu0 %v501, 111
      %v993 = vpop.permute.xlu0 %992
      %994 = vrot.lane.b32.xlu0 %v502, 111
      %v995 = vpop.permute.xlu0 %994
      %996 = vrot.lane.b32.xlu0 %v503, 111
      %v997 = vpop.permute.xlu0 %996
      %998 = vrot.lane.b32.xlu0 %v504, 111
      %v999 = vpop.permute.xlu0 %998
      %1000 = vrot.lane.b32.xlu0 %v505, 111
      %v1001 = vpop.permute.xlu0 %1000
      %1002 = vrot.lane.b32.xlu0 %v506, 111
      %v1003 = vpop.permute.xlu0 %1002
      %1004 = vrot.lane.b32.xlu0 %v507, 111
      %v1005 = vpop.permute.xlu0 %1004
      %1006 = vrot.lane.b32.xlu0 %v508, 111
      %v1007 = vpop.permute.xlu0 %1006
      %vm1008 = vcmask 908288
      %v1009 = vsel %vm1008, %v985, %v987
      %v1010 = vsel %vm1008, %v987, %v989
      %v1011 = vsel %vm1008, %v991, %v993
      %v1012 = vsel %vm1008, %v993, %v995
      %v1013 = vsel %vm1008, %v997, %v999
      %v1014 = vsel %vm1008, %v999, %v1001
      %v1015 = vsel %vm1008, %v1003, %v1005
      %v1016 = vsel %vm1008, %v1005, %v1007
      %v1025 = vsel %vm495, %v968, %v1009
      %v1026 = vsel %vm496, %v969, %v1010
      %v1027 = vsel %vm495, %v970, %v1011
      %v1028 = vsel %vm496, %v971, %v1012
      %v1029 = vsel %vm495, %v972, %v1013
      %v1030 = vsel %vm496, %v973, %v1014
      %v1031 = vsel %vm495, %v974, %v1015
      %v1032 = vsel %vm496, %v975, %v1016
      %s1033 = scalar_lea.vmem %s1, 128
      %v1034 = vld [vmem:[%s1033] sm:$0xff]
      %v1035 = vld [vmem:[%s1033 + $0x8] sm:$0xff]
      %v1036 = vld [vmem:[%s1033 + $0x10] sm:$0xff]
      %v1037 = vld [vmem:[%s1033 + $0x18] sm:$0xff]
      %v1038 = vld [vmem:[%s1033 + $0x20] sm:$0xff]
      %v1039 = vld [vmem:[%s1033 + $0x28] sm:$0xff]
      %v1040 = vld [vmem:[%s1033 + $0x30] sm:$0xff]
      %v1041 = vld [vmem:[%s1033 + $0x38] sm:$0xff]
      %v1043 = vsel %vm419, %v1034, 0
      %v1046 = vsel %vm419, %v1035, 0
      %v1049 = vsel %vm419, %v1036, 0
      %v1052 = vsel %vm419, %v1037, 0
      %v1055 = vsel %vm419, %v1038, 0
      %v1058 = vsel %vm419, %v1039, 0
      %v1061 = vsel %vm419, %v1040, 0
      %v1064 = vsel %vm419, %v1041, 0
      %1066 = vmatprep.subr.mxu0 0.0
      %1067 = vmatpush1.msra.mxu0 0.0
      %1068 = vmatprep.subr.mxu0 0.0
      %1069 = vmatpush1.msra.mxu0 0.0
      %1070 = vmatprep.subr.mxu0 0.0
      %1071 = vmatpush1.msra.mxu0 0.0
      %1072 = vmatprep.subr.mxu0 0.0
      %1073 = vmatpush1.msra.mxu0 0.0
      %1074 = vmatprep.subr.mxu0 0.0
      %1075 = vmatpush1.msra.mxu0 0.0
      %1076 = vmatprep.subr.mxu0 0.0
      %1077 = vmatpush1.msra.mxu0 0.0
      %1078 = vmatprep.subr.mxu0 0.0
      %1079 = vmatpush1.msra.mxu0 0.0
      %1080 = vmatprep.subr.mxu0 0.0
      %1081 = vmatpush1.msra.mxu0 0.0
      %1082 = vmatprep.subr.mxu0 0.0
      %1083 = vmatpush1.msra.mxu0 0.0
      %1084 = vmatprep.subr.mxu0 0.0
      %1085 = vmatpush1.msra.mxu0 0.0
      %1086 = vmatprep.subr.mxu0 0.0
      %1087 = vmatpush1.msra.mxu0 0.0
      %1088 = vmatprep.subr.mxu0 0.0
      %1089 = vmatpush1.msra.mxu0 0.0
      %1090 = vmatprep.subr.mxu0 %v1032
      %1091 = vmatpush1.msra.mxu0 %v1031
      %1092 = vmatprep.subr.mxu0 %v1030
      %1093 = vmatpush1.msra.mxu0 %v1029
      %1094 = vmatprep.subr.mxu0 %v1028
      %1095 = vmatpush1.msra.mxu0 %v1027
      %1096 = vmatprep.subr.mxu0 %v1026
      %1097 = vmatpush1.msra.mxu0 %v1025
      %1098 = vmatprep.subr.mxu0 0.0
      %1099 = vmatpush2.msra.mxu0 0.0
      %1100 = vmatprep.subr.mxu0 0.0
      %1101 = vmatpush2.msra.mxu0 0.0
      %1102 = vmatprep.subr.mxu0 0.0
      %1103 = vmatpush2.msra.mxu0 0.0
      %1104 = vmatprep.subr.mxu0 0.0
      %1105 = vmatpush2.msra.mxu0 0.0
      %1106 = vmatprep.subr.mxu0 0.0
      %1107 = vmatpush2.msra.mxu0 0.0
      %1108 = vmatprep.subr.mxu0 0.0
      %1109 = vmatpush2.msra.mxu0 0.0
      %1110 = vmatprep.subr.mxu0 0.0
      %1111 = vmatpush2.msra.mxu0 0.0
      %1112 = vmatprep.subr.mxu0 0.0
      %1113 = vmatpush2.msra.mxu0 0.0
      %1114 = vmatprep.subr.mxu0 0.0
      %1115 = vmatpush2.msra.mxu0 0.0
      %1116 = vmatprep.subr.mxu0 0.0
      %1117 = vmatpush2.msra.mxu0 0.0
      %1118 = vmatprep.subr.mxu0 0.0
      %1119 = vmatpush2.msra.mxu0 0.0
      %1120 = vmatprep.subr.mxu0 0.0
      %1121 = vmatpush2.msra.mxu0 0.0
      %1122 = vmatprep.subr.mxu0 0.0
      %1123 = vmatpush2.msra.mxu0 0.0
      %1124 = vmatprep.subr.mxu0 0.0
      %1125 = vmatpush2.msra.mxu0 0.0
      %1126 = vmatprep.subr.mxu0 0.0
      %1127 = vmatpush2.msra.mxu0 0.0
      %1128 = vmatprep.subr.mxu0 0.0
      %1129 = vmatpush2.msra.mxu0 0.0
      %1130 = vmatprep.mubr.f32.mxu0 0.0
      %1131 = vmatmul.mubr.f32.gmra.mxu0 %v1043
      %v1132 = vpop.f32.mrf.mxu0
      %v1133 = vadd.f32 0.0, %v1132
      %v1134 = vpop.f32.mrf.mxu0
      %v1135 = vadd.f32 0.0, %v1134
      %1136 = vmatprep.mubr.f32.mxu0 0.0
      %1137 = vmatmul.mubr.f32.gmra.mxu0 %v1046
      %v1138 = vpop.f32.mrf.mxu0
      %v1139 = vadd.f32 0.0, %v1138
      %v1140 = vpop.f32.mrf.mxu0
      %v1141 = vadd.f32 0.0, %v1140
      %1142 = vmatprep.mubr.f32.mxu0 0.0
      %1143 = vmatmul.mubr.f32.gmra.mxu0 %v1049
      %v1144 = vpop.f32.mrf.mxu0
      %v1145 = vadd.f32 0.0, %v1144
      %v1146 = vpop.f32.mrf.mxu0
      %v1147 = vadd.f32 0.0, %v1146
      %1148 = vmatprep.mubr.f32.mxu0 0.0
      %1149 = vmatmul.mubr.f32.gmra.mxu0 %v1052
      %v1150 = vpop.f32.mrf.mxu0
      %v1151 = vadd.f32 0.0, %v1150
      %v1152 = vpop.f32.mrf.mxu0
      %v1153 = vadd.f32 0.0, %v1152
      %1154 = vmatprep.mubr.f32.mxu0 0.0
      %1155 = vmatmul.mubr.f32.gmra.mxu0 %v1055
      %v1156 = vpop.f32.mrf.mxu0
      %v1157 = vadd.f32 0.0, %v1156
      %v1158 = vpop.f32.mrf.mxu0
      %v1159 = vadd.f32 0.0, %v1158
      %1160 = vmatprep.mubr.f32.mxu0 0.0
      %1161 = vmatmul.mubr.f32.gmra.mxu0 %v1058
      %v1162 = vpop.f32.mrf.mxu0
      %v1163 = vadd.f32 0.0, %v1162
      %v1164 = vpop.f32.mrf.mxu0
      %v1165 = vadd.f32 0.0, %v1164
      %1166 = vmatprep.mubr.f32.mxu0 0.0
      %1167 = vmatmul.mubr.f32.gmra.mxu0 %v1061
      %v1168 = vpop.f32.mrf.mxu0
      %v1169 = vadd.f32 0.0, %v1168
      %v1170 = vpop.f32.mrf.mxu0
      %v1171 = vadd.f32 0.0, %v1170
      %1172 = vmatprep.mubr.f32.mxu0 0.0
      %1173 = vmatmul.mubr.f32.gmra.mxu0 %v1064
      %v1174 = vpop.f32.mrf.mxu0
      %v1175 = vadd.f32 0.0, %v1174
      %v1176 = vpop.f32.mrf.mxu0
      %v1177 = vadd.f32 0.0, %v1176
      %1178 = vdwg.mxu0
      %v1179 = vadd.f32 %v897, %v1133
      %v1180 = vadd.f32 %v899, %v1135
      %v1181 = vadd.f32 %v903, %v1139
      %v1182 = vadd.f32 %v905, %v1141
      %v1183 = vadd.f32 %v909, %v1145
      %v1184 = vadd.f32 %v911, %v1147
      %v1185 = vadd.f32 %v915, %v1151
      %v1186 = vadd.f32 %v917, %v1153
      %v1187 = vadd.f32 %v921, %v1157
      %v1188 = vadd.f32 %v923, %v1159
      %v1189 = vadd.f32 %v927, %v1163
      %v1190 = vadd.f32 %v929, %v1165
      %v1191 = vadd.f32 %v933, %v1169
      %v1192 = vadd.f32 %v935, %v1171
      %v1193 = vadd.f32 %v939, %v1175
      %v1194 = vadd.f32 %v941, %v1177
      %1195 = vrot.lane.b32.xlu0 %v497, 81
      %v1196 = vpop.permute.xlu0 %1195
      %1197 = vrot.lane.b32.xlu0 %v498, 81
      %v1198 = vpop.permute.xlu0 %1197
      %1199 = vrot.lane.b32.xlu0 %v499, 81
      %v1200 = vpop.permute.xlu0 %1199
      %1201 = vrot.lane.b32.xlu0 %v500, 81
      %v1202 = vpop.permute.xlu0 %1201
      %1203 = vrot.lane.b32.xlu0 %v501, 81
      %v1204 = vpop.permute.xlu0 %1203
      %1205 = vrot.lane.b32.xlu0 %v502, 81
      %v1206 = vpop.permute.xlu0 %1205
      %1207 = vrot.lane.b32.xlu0 %v503, 81
      %v1208 = vpop.permute.xlu0 %1207
      %1209 = vrot.lane.b32.xlu0 %v504, 81
      %v1210 = vpop.permute.xlu0 %1209
      %1211 = vrot.lane.b32.xlu0 %v505, 81
      %v1212 = vpop.permute.xlu0 %1211
      %1213 = vrot.lane.b32.xlu0 %v506, 81
      %v1214 = vpop.permute.xlu0 %1213
      %1215 = vrot.lane.b32.xlu0 %v507, 81
      %v1216 = vpop.permute.xlu0 %1215
      %1217 = vrot.lane.b32.xlu0 %v508, 81
      %v1218 = vpop.permute.xlu0 %1217
      %vm1219 = vcmask 662528
      %v1220 = vsel %vm1219, %v1196, %v1198
      %v1221 = vsel %vm1219, %v1198, %v1200
      %v1222 = vsel %vm1219, %v1202, %v1204
      %v1223 = vsel %vm1219, %v1204, %v1206
      %v1224 = vsel %vm1219, %v1208, %v1210
      %v1225 = vsel %vm1219, %v1210, %v1212
      %v1226 = vsel %vm1219, %v1214, %v1216
      %v1227 = vsel %vm1219, %v1216, %v1218
      %v1236 = vsel %vm493, %v1220, %v546
      %v1237 = vsel %vm494, %v1221, %v547
      %v1238 = vsel %vm493, %v1222, %v548
      %v1239 = vsel %vm494, %v1223, %v549
      %v1240 = vsel %vm493, %v1224, %v550
      %v1241 = vsel %vm494, %v1225, %v551
      %v1242 = vsel %vm493, %v1226, %v552
      %v1243 = vsel %vm494, %v1227, %v553
      %s1244 = scalar_lea.vmem %s1, 192
      %v1245 = vld [vmem:[%s1244] sm:$0xff]
      %v1246 = vld [vmem:[%s1244 + $0x8] sm:$0xff]
      %v1247 = vld [vmem:[%s1244 + $0x10] sm:$0xff]
      %v1248 = vld [vmem:[%s1244 + $0x18] sm:$0xff]
      %v1249 = vld [vmem:[%s1244 + $0x20] sm:$0xff]
      %v1250 = vld [vmem:[%s1244 + $0x28] sm:$0xff]
      %v1251 = vld [vmem:[%s1244 + $0x30] sm:$0xff]
      %v1252 = vld [vmem:[%s1244 + $0x38] sm:$0xff]
      %v1254 = vsel %vm419, %v1245, 0
      %v1257 = vsel %vm419, %v1246, 0
      %v1260 = vsel %vm419, %v1247, 0
      %v1263 = vsel %vm419, %v1248, 0
      %v1266 = vsel %vm419, %v1249, 0
      %v1269 = vsel %vm419, %v1250, 0
      %v1272 = vsel %vm419, %v1251, 0
      %v1275 = vsel %vm419, %v1252, 0
      %1277 = vmatprep.subr.mxu0 0.0
      %1278 = vmatpush1.msra.mxu0 0.0
      %1279 = vmatprep.subr.mxu0 0.0
      %1280 = vmatpush1.msra.mxu0 0.0
      %1281 = vmatprep.subr.mxu0 0.0
      %1282 = vmatpush1.msra.mxu0 0.0
      %1283 = vmatprep.subr.mxu0 0.0
      %1284 = vmatpush1.msra.mxu0 0.0
      %1285 = vmatprep.subr.mxu0 0.0
      %1286 = vmatpush1.msra.mxu0 0.0
      %1287 = vmatprep.subr.mxu0 0.0
      %1288 = vmatpush1.msra.mxu0 0.0
      %1289 = vmatprep.subr.mxu0 0.0
      %1290 = vmatpush1.msra.mxu0 0.0
      %1291 = vmatprep.subr.mxu0 0.0
      %1292 = vmatpush1.msra.mxu0 0.0
      %1293 = vmatprep.subr.mxu0 0.0
      %1294 = vmatpush1.msra.mxu0 0.0
      %1295 = vmatprep.subr.mxu0 0.0
      %1296 = vmatpush1.msra.mxu0 0.0
      %1297 = vmatprep.subr.mxu0 0.0
      %1298 = vmatpush1.msra.mxu0 0.0
      %1299 = vmatprep.subr.mxu0 0.0
      %1300 = vmatpush1.msra.mxu0 0.0
      %1301 = vmatprep.subr.mxu0 %v1243
      %1302 = vmatpush1.msra.mxu0 %v1242
      %1303 = vmatprep.subr.mxu0 %v1241
      %1304 = vmatpush1.msra.mxu0 %v1240
      %1305 = vmatprep.subr.mxu0 %v1239
      %1306 = vmatpush1.msra.mxu0 %v1238
      %1307 = vmatprep.subr.mxu0 %v1237
      %1308 = vmatpush1.msra.mxu0 %v1236
      %1309 = vmatprep.subr.mxu0 0.0
      %1310 = vmatpush2.msra.mxu0 0.0
      %1311 = vmatprep.subr.mxu0 0.0
      %1312 = vmatpush2.msra.mxu0 0.0
      %1313 = vmatprep.subr.mxu0 0.0
      %1314 = vmatpush2.msra.mxu0 0.0
      %1315 = vmatprep.subr.mxu0 0.0
      %1316 = vmatpush2.msra.mxu0 0.0
      %1317 = vmatprep.subr.mxu0 0.0
      %1318 = vmatpush2.msra.mxu0 0.0
      %1319 = vmatprep.subr.mxu0 0.0
      %1320 = vmatpush2.msra.mxu0 0.0
      %1321 = vmatprep.subr.mxu0 0.0
      %1322 = vmatpush2.msra.mxu0 0.0
      %1323 = vmatprep.subr.mxu0 0.0
      %1324 = vmatpush2.msra.mxu0 0.0
      %1325 = vmatprep.subr.mxu0 0.0
      %1326 = vmatpush2.msra.mxu0 0.0
      %1327 = vmatprep.subr.mxu0 0.0
      %1328 = vmatpush2.msra.mxu0 0.0
      %1329 = vmatprep.subr.mxu0 0.0
      %1330 = vmatpush2.msra.mxu0 0.0
      %1331 = vmatprep.subr.mxu0 0.0
      %1332 = vmatpush2.msra.mxu0 0.0
      %1333 = vmatprep.subr.mxu0 0.0
      %1334 = vmatpush2.msra.mxu0 0.0
      %1335 = vmatprep.subr.mxu0 0.0
      %1336 = vmatpush2.msra.mxu0 0.0
      %1337 = vmatprep.subr.mxu0 0.0
      %1338 = vmatpush2.msra.mxu0 0.0
      %1339 = vmatprep.subr.mxu0 0.0
      %1340 = vmatpush2.msra.mxu0 0.0
      %1341 = vmatprep.mubr.f32.mxu0 0.0
      %1342 = vmatmul.mubr.f32.gmra.mxu0 %v1254
      %v1343 = vpop.f32.mrf.mxu0
      %v1344 = vadd.f32 0.0, %v1343
      %v1345 = vpop.f32.mrf.mxu0
      %v1346 = vadd.f32 0.0, %v1345
      %1347 = vmatprep.mubr.f32.mxu0 0.0
      %1348 = vmatmul.mubr.f32.gmra.mxu0 %v1257
      %v1349 = vpop.f32.mrf.mxu0
      %v1350 = vadd.f32 0.0, %v1349
      %v1351 = vpop.f32.mrf.mxu0
      %v1352 = vadd.f32 0.0, %v1351
      %1353 = vmatprep.mubr.f32.mxu0 0.0
      %1354 = vmatmul.mubr.f32.gmra.mxu0 %v1260
      %v1355 = vpop.f32.mrf.mxu0
      %v1356 = vadd.f32 0.0, %v1355
      %v1357 = vpop.f32.mrf.mxu0
      %v1358 = vadd.f32 0.0, %v1357
      %1359 = vmatprep.mubr.f32.mxu0 0.0
      %1360 = vmatmul.mubr.f32.gmra.mxu0 %v1263
      %v1361 = vpop.f32.mrf.mxu0
      %v1362 = vadd.f32 0.0, %v1361
      %v1363 = vpop.f32.mrf.mxu0
      %v1364 = vadd.f32 0.0, %v1363
      %1365 = vmatprep.mubr.f32.mxu0 0.0
      %1366 = vmatmul.mubr.f32.gmra.mxu0 %v1266
      %v1367 = vpop.f32.mrf.mxu0
      %v1368 = vadd.f32 0.0, %v1367
      %v1369 = vpop.f32.mrf.mxu0
      %v1370 = vadd.f32 0.0, %v1369
      %1371 = vmatprep.mubr.f32.mxu0 0.0
      %1372 = vmatmul.mubr.f32.gmra.mxu0 %v1269
      %v1373 = vpop.f32.mrf.mxu0
      %v1374 = vadd.f32 0.0, %v1373
      %v1375 = vpop.f32.mrf.mxu0
      %v1376 = vadd.f32 0.0, %v1375
      %1377 = vmatprep.mubr.f32.mxu0 0.0
      %1378 = vmatmul.mubr.f32.gmra.mxu0 %v1272
      %v1379 = vpop.f32.mrf.mxu0
      %v1380 = vadd.f32 0.0, %v1379
      %v1381 = vpop.f32.mrf.mxu0
      %v1382 = vadd.f32 0.0, %v1381
      %1383 = vmatprep.mubr.f32.mxu0 0.0
      %1384 = vmatmul.mubr.f32.gmra.mxu0 %v1275
      %v1385 = vpop.f32.mrf.mxu0
      %v1386 = vadd.f32 0.0, %v1385
      %v1387 = vpop.f32.mrf.mxu0
      %v1388 = vadd.f32 0.0, %v1387
      %1389 = vdwg.mxu0
      %v1390 = vadd.f32 %v1179, %v1344
      %v1391 = vadd.f32 %v1180, %v1346
      %v1392 = vadd.f32 %v1181, %v1350
      %v1393 = vadd.f32 %v1182, %v1352
      %v1394 = vadd.f32 %v1183, %v1356
      %v1395 = vadd.f32 %v1184, %v1358
      %v1396 = vadd.f32 %v1185, %v1362
      %v1397 = vadd.f32 %v1186, %v1364
      %v1398 = vadd.f32 %v1187, %v1368
      %v1399 = vadd.f32 %v1188, %v1370
      %v1400 = vadd.f32 %v1189, %v1374
      %v1401 = vadd.f32 %v1190, %v1376
      %v1402 = vadd.f32 %v1191, %v1380
      %v1403 = vadd.f32 %v1192, %v1382
      %v1404 = vadd.f32 %v1193, %v1386
      %v1405 = vadd.f32 %v1194, %v1388
      %s1406 = scalar_lea.vmem %s1, 256
      %v1407 = vld [vmem:[%s1406] sm:$0xff]
      %v1408 = vld [vmem:[%s1406 + $0x8] sm:$0xff]
      %v1409 = vld [vmem:[%s1406 + $0x10] sm:$0xff]
      %v1410 = vld [vmem:[%s1406 + $0x18] sm:$0xff]
      %v1411 = vld [vmem:[%s1406 + $0x20] sm:$0xff]
      %v1412 = vld [vmem:[%s1406 + $0x28] sm:$0xff]
      %v1413 = vld [vmem:[%s1406 + $0x30] sm:$0xff]
      %v1414 = vld [vmem:[%s1406 + $0x38] sm:$0xff]
      %1415 = vrot.lane.b32.xlu0 %v497, 96
      %v1416 = vpop.permute.xlu0 %1415
      %1417 = vrot.lane.b32.xlu0 %v498, 96
      %v1418 = vpop.permute.xlu0 %1417
      %1419 = vrot.lane.b32.xlu0 %v499, 96
      %v1420 = vpop.permute.xlu0 %1419
      %1421 = vrot.lane.b32.xlu0 %v500, 96
      %v1422 = vpop.permute.xlu0 %1421
      %1423 = vrot.lane.b32.xlu0 %v501, 96
      %v1424 = vpop.permute.xlu0 %1423
      %1425 = vrot.lane.b32.xlu0 %v502, 96
      %v1426 = vpop.permute.xlu0 %1425
      %1427 = vrot.lane.b32.xlu0 %v503, 96
      %v1428 = vpop.permute.xlu0 %1427
      %1429 = vrot.lane.b32.xlu0 %v504, 96
      %v1430 = vpop.permute.xlu0 %1429
      %1431 = vrot.lane.b32.xlu0 %v505, 96
      %v1432 = vpop.permute.xlu0 %1431
      %1433 = vrot.lane.b32.xlu0 %v506, 96
      %v1434 = vpop.permute.xlu0 %1433
      %1435 = vrot.lane.b32.xlu0 %v507, 96
      %v1436 = vpop.permute.xlu0 %1435
      %1437 = vrot.lane.b32.xlu0 %v508, 96
      %v1438 = vpop.permute.xlu0 %1437
      %vm1439 = vcmask 785408
      %v1440 = vsel %vm1439, %v1416, %v1418
      %v1441 = vsel %vm1439, %v1418, %v1420
      %v1442 = vsel %vm1439, %v1422, %v1424
      %v1443 = vsel %vm1439, %v1424, %v1426
      %v1444 = vsel %vm1439, %v1428, %v1430
      %v1445 = vsel %vm1439, %v1430, %v1432
      %v1446 = vsel %vm1439, %v1434, %v1436
      %v1447 = vsel %vm1439, %v1436, %v1438
      %v1457 = vsel %vm419, %v1407, 0
      %v1460 = vsel %vm419, %v1408, 0
      %v1463 = vsel %vm419, %v1409, 0
      %v1466 = vsel %vm419, %v1410, 0
      %v1469 = vsel %vm419, %v1411, 0
      %v1472 = vsel %vm419, %v1412, 0
      %v1475 = vsel %vm419, %v1413, 0
      %v1478 = vsel %vm419, %v1414, 0
      %1480 = vmatprep.subr.mxu0 0.0
      %1481 = vmatpush1.msra.mxu0 0.0
      %1482 = vmatprep.subr.mxu0 0.0
      %1483 = vmatpush1.msra.mxu0 0.0
      %1484 = vmatprep.subr.mxu0 0.0
      %1485 = vmatpush1.msra.mxu0 0.0
      %1486 = vmatprep.subr.mxu0 0.0
      %1487 = vmatpush1.msra.mxu0 0.0
      %1488 = vmatprep.subr.mxu0 0.0
      %1489 = vmatpush1.msra.mxu0 0.0
      %1490 = vmatprep.subr.mxu0 0.0
      %1491 = vmatpush1.msra.mxu0 0.0
      %1492 = vmatprep.subr.mxu0 0.0
      %1493 = vmatpush1.msra.mxu0 0.0
      %1494 = vmatprep.subr.mxu0 0.0
      %1495 = vmatpush1.msra.mxu0 0.0
      %1496 = vmatprep.subr.mxu0 0.0
      %1497 = vmatpush1.msra.mxu0 0.0
      %1498 = vmatprep.subr.mxu0 0.0
      %1499 = vmatpush1.msra.mxu0 0.0
      %1500 = vmatprep.subr.mxu0 0.0
      %1501 = vmatpush1.msra.mxu0 0.0
      %1502 = vmatprep.subr.mxu0 0.0
      %1503 = vmatpush1.msra.mxu0 0.0
      %1504 = vmatprep.subr.mxu0 %v1447
      %1505 = vmatpush1.msra.mxu0 %v1446
      %1506 = vmatprep.subr.mxu0 %v1445
      %1507 = vmatpush1.msra.mxu0 %v1444
      %1508 = vmatprep.subr.mxu0 %v1443
      %1509 = vmatpush1.msra.mxu0 %v1442
      %1510 = vmatprep.subr.mxu0 %v1441
      %1511 = vmatpush1.msra.mxu0 %v1440
      %1512 = vmatprep.subr.mxu0 0.0
      %1513 = vmatpush2.msra.mxu0 0.0
      %1514 = vmatprep.subr.mxu0 0.0
      %1515 = vmatpush2.msra.mxu0 0.0
      %1516 = vmatprep.subr.mxu0 0.0
      %1517 = vmatpush2.msra.mxu0 0.0
      %1518 = vmatprep.subr.mxu0 0.0
      %1519 = vmatpush2.msra.mxu0 0.0
      %1520 = vmatprep.subr.mxu0 0.0
      %1521 = vmatpush2.msra.mxu0 0.0
      %1522 = vmatprep.subr.mxu0 0.0
      %1523 = vmatpush2.msra.mxu0 0.0
      %1524 = vmatprep.subr.mxu0 0.0
      %1525 = vmatpush2.msra.mxu0 0.0
      %1526 = vmatprep.subr.mxu0 0.0
      %1527 = vmatpush2.msra.mxu0 0.0
      %1528 = vmatprep.subr.mxu0 0.0
      %1529 = vmatpush2.msra.mxu0 0.0
      %1530 = vmatprep.subr.mxu0 0.0
      %1531 = vmatpush2.msra.mxu0 0.0
      %1532 = vmatprep.subr.mxu0 0.0
      %1533 = vmatpush2.msra.mxu0 0.0
      %1534 = vmatprep.subr.mxu0 0.0
      %1535 = vmatpush2.msra.mxu0 0.0
      %1536 = vmatprep.subr.mxu0 0.0
      %1537 = vmatpush2.msra.mxu0 0.0
      %1538 = vmatprep.subr.mxu0 0.0
      %1539 = vmatpush2.msra.mxu0 0.0
      %1540 = vmatprep.subr.mxu0 0.0
      %1541 = vmatpush2.msra.mxu0 0.0
      %1542 = vmatprep.subr.mxu0 0.0
      %1543 = vmatpush2.msra.mxu0 0.0
      %1544 = vmatprep.mubr.f32.mxu0 0.0
      %1545 = vmatmul.mubr.f32.gmra.mxu0 %v1457
      %v1546 = vpop.f32.mrf.mxu0
      %v1547 = vadd.f32 0.0, %v1546
      %v1548 = vpop.f32.mrf.mxu0
      %v1549 = vadd.f32 0.0, %v1548
      %1550 = vmatprep.mubr.f32.mxu0 0.0
      %1551 = vmatmul.mubr.f32.gmra.mxu0 %v1460
      %v1552 = vpop.f32.mrf.mxu0
      %v1553 = vadd.f32 0.0, %v1552
      %v1554 = vpop.f32.mrf.mxu0
      %v1555 = vadd.f32 0.0, %v1554
      %1556 = vmatprep.mubr.f32.mxu0 0.0
      %1557 = vmatmul.mubr.f32.gmra.mxu0 %v1463
      %v1558 = vpop.f32.mrf.mxu0
      %v1559 = vadd.f32 0.0, %v1558
      %v1560 = vpop.f32.mrf.mxu0
      %v1561 = vadd.f32 0.0, %v1560
      %1562 = vmatprep.mubr.f32.mxu0 0.0
      %1563 = vmatmul.mubr.f32.gmra.mxu0 %v1466
      %v1564 = vpop.f32.mrf.mxu0
      %v1565 = vadd.f32 0.0, %v1564
      %v1566 = vpop.f32.mrf.mxu0
      %v1567 = vadd.f32 0.0, %v1566
      %1568 = vmatprep.mubr.f32.mxu0 0.0
      %1569 = vmatmul.mubr.f32.gmra.mxu0 %v1469
      %v1570 = vpop.f32.mrf.mxu0
      %v1571 = vadd.f32 0.0, %v1570
      %v1572 = vpop.f32.mrf.mxu0
      %v1573 = vadd.f32 0.0, %v1572
      %1574 = vmatprep.mubr.f32.mxu0 0.0
      %1575 = vmatmul.mubr.f32.gmra.mxu0 %v1472
      %v1576 = vpop.f32.mrf.mxu0
      %v1577 = vadd.f32 0.0, %v1576
      %v1578 = vpop.f32.mrf.mxu0
      %v1579 = vadd.f32 0.0, %v1578
      %1580 = vmatprep.mubr.f32.mxu0 0.0
      %1581 = vmatmul.mubr.f32.gmra.mxu0 %v1475
      %v1582 = vpop.f32.mrf.mxu0
      %v1583 = vadd.f32 0.0, %v1582
      %v1584 = vpop.f32.mrf.mxu0
      %v1585 = vadd.f32 0.0, %v1584
      %1586 = vmatprep.mubr.f32.mxu0 0.0
      %1587 = vmatmul.mubr.f32.gmra.mxu0 %v1478
      %v1588 = vpop.f32.mrf.mxu0
      %v1589 = vadd.f32 0.0, %v1588
      %v1590 = vpop.f32.mrf.mxu0
      %v1591 = vadd.f32 0.0, %v1590
      %1592 = vdwg.mxu0
      %v1593 = vadd.f32 %v1390, %v1547
      %v1594 = vadd.f32 %v1391, %v1549
      %v1595 = vadd.f32 %v1392, %v1553
      %v1596 = vadd.f32 %v1393, %v1555
      %v1597 = vadd.f32 %v1394, %v1559
      %v1598 = vadd.f32 %v1395, %v1561
      %v1599 = vadd.f32 %v1396, %v1565
      %v1600 = vadd.f32 %v1397, %v1567
      %v1601 = vadd.f32 %v1398, %v1571
      %v1602 = vadd.f32 %v1399, %v1573
      %v1603 = vadd.f32 %v1400, %v1577
      %v1604 = vadd.f32 %v1401, %v1579
      %v1605 = vadd.f32 %v1402, %v1583
      %v1606 = vadd.f32 %v1403, %v1585
      %v1607 = vadd.f32 %v1404, %v1589
      %v1608 = vadd.f32 %v1405, %v1591
      %1609 = vrot.lane.b32.xlu0 %v497, 95
      %v1610 = vpop.permute.xlu0 %1609
      %1611 = vrot.lane.b32.xlu0 %v498, 95
      %v1612 = vpop.permute.xlu0 %1611
      %1613 = vrot.lane.b32.xlu0 %v499, 95
      %v1614 = vpop.permute.xlu0 %1613
      %1615 = vrot.lane.b32.xlu0 %v500, 95
      %v1616 = vpop.permute.xlu0 %1615
      %1617 = vrot.lane.b32.xlu0 %v501, 95
      %v1618 = vpop.permute.xlu0 %1617
      %1619 = vrot.lane.b32.xlu0 %v502, 95
      %v1620 = vpop.permute.xlu0 %1619
      %1621 = vrot.lane.b32.xlu0 %v503, 95
      %v1622 = vpop.permute.xlu0 %1621
      %1623 = vrot.lane.b32.xlu0 %v504, 95
      %v1624 = vpop.permute.xlu0 %1623
      %1625 = vrot.lane.b32.xlu0 %v505, 95
      %v1626 = vpop.permute.xlu0 %1625
      %1627 = vrot.lane.b32.xlu0 %v506, 95
      %v1628 = vpop.permute.xlu0 %1627
      %1629 = vrot.lane.b32.xlu0 %v507, 95
      %v1630 = vpop.permute.xlu0 %1629
      %1631 = vrot.lane.b32.xlu0 %v508, 95
      %v1632 = vpop.permute.xlu0 %1631
      %vm1633 = vcmask 777216
      %v1634 = vsel %vm1633, %v1610, %v1612
      %v1635 = vsel %vm1633, %v1612, %v1614
      %v1636 = vsel %vm1633, %v1616, %v1618
      %v1637 = vsel %vm1633, %v1618, %v1620
      %v1638 = vsel %vm1633, %v1622, %v1624
      %v1639 = vsel %vm1633, %v1624, %v1626
      %v1640 = vsel %vm1633, %v1628, %v1630
      %v1641 = vsel %vm1633, %v1630, %v1632
      %v1650 = vsel %vm495, %v1009, %v1634
      %v1651 = vsel %vm496, %v1010, %v1635
      %v1652 = vsel %vm495, %v1011, %v1636
      %v1653 = vsel %vm496, %v1012, %v1637
      %v1654 = vsel %vm495, %v1013, %v1638
      %v1655 = vsel %vm496, %v1014, %v1639
      %v1656 = vsel %vm495, %v1015, %v1640
      %v1657 = vsel %vm496, %v1016, %v1641
      %s1658 = scalar_lea.vmem %s1, 320
      %v1659 = vld [vmem:[%s1658] sm:$0xff]
      %v1660 = vld [vmem:[%s1658 + $0x8] sm:$0xff]
      %v1661 = vld [vmem:[%s1658 + $0x10] sm:$0xff]
      %v1662 = vld [vmem:[%s1658 + $0x18] sm:$0xff]
      %v1663 = vld [vmem:[%s1658 + $0x20] sm:$0xff]
      %v1664 = vld [vmem:[%s1658 + $0x28] sm:$0xff]
      %v1665 = vld [vmem:[%s1658 + $0x30] sm:$0xff]
      %v1666 = vld [vmem:[%s1658 + $0x38] sm:$0xff]
      %v1668 = vsel %vm419, %v1659, 0
      %v1671 = vsel %vm419, %v1660, 0
      %v1674 = vsel %vm419, %v1661, 0
      %v1677 = vsel %vm419, %v1662, 0
      %v1680 = vsel %vm419, %v1663, 0
      %v1683 = vsel %vm419, %v1664, 0
      %v1686 = vsel %vm419, %v1665, 0
      %v1689 = vsel %vm419, %v1666, 0
      %1691 = vmatprep.subr.mxu0 0.0
      %1692 = vmatpush1.msra.mxu0 0.0
      %1693 = vmatprep.subr.mxu0 0.0
      %1694 = vmatpush1.msra.mxu0 0.0
      %1695 = vmatprep.subr.mxu0 0.0
      %1696 = vmatpush1.msra.mxu0 0.0
      %1697 = vmatprep.subr.mxu0 0.0
      %1698 = vmatpush1.msra.mxu0 0.0
      %1699 = vmatprep.subr.mxu0 0.0
      %1700 = vmatpush1.msra.mxu0 0.0
      %1701 = vmatprep.subr.mxu0 0.0
      %1702 = vmatpush1.msra.mxu0 0.0
      %1703 = vmatprep.subr.mxu0 0.0
      %1704 = vmatpush1.msra.mxu0 0.0
      %1705 = vmatprep.subr.mxu0 0.0
      %1706 = vmatpush1.msra.mxu0 0.0
      %1707 = vmatprep.subr.mxu0 0.0
      %1708 = vmatpush1.msra.mxu0 0.0
      %1709 = vmatprep.subr.mxu0 0.0
      %1710 = vmatpush1.msra.mxu0 0.0
      %1711 = vmatprep.subr.mxu0 0.0
      %1712 = vmatpush1.msra.mxu0 0.0
      %1713 = vmatprep.subr.mxu0 0.0
      %1714 = vmatpush1.msra.mxu0 0.0
      %1715 = vmatprep.subr.mxu0 %v1657
      %1716 = vmatpush1.msra.mxu0 %v1656
      %1717 = vmatprep.subr.mxu0 %v1655
      %1718 = vmatpush1.msra.mxu0 %v1654
      %1719 = vmatprep.subr.mxu0 %v1653
      %1720 = vmatpush1.msra.mxu0 %v1652
      %1721 = vmatprep.subr.mxu0 %v1651
      %1722 = vmatpush1.msra.mxu0 %v1650
      %1723 = vmatprep.subr.mxu0 0.0
      %1724 = vmatpush2.msra.mxu0 0.0
      %1725 = vmatprep.subr.mxu0 0.0
      %1726 = vmatpush2.msra.mxu0 0.0
      %1727 = vmatprep.subr.mxu0 0.0
      %1728 = vmatpush2.msra.mxu0 0.0
      %1729 = vmatprep.subr.mxu0 0.0
      %1730 = vmatpush2.msra.mxu0 0.0
      %1731 = vmatprep.subr.mxu0 0.0
      %1732 = vmatpush2.msra.mxu0 0.0
      %1733 = vmatprep.subr.mxu0 0.0
      %1734 = vmatpush2.msra.mxu0 0.0
      %1735 = vmatprep.subr.mxu0 0.0
      %1736 = vmatpush2.msra.mxu0 0.0
      %1737 = vmatprep.subr.mxu0 0.0
      %1738 = vmatpush2.msra.mxu0 0.0
      %1739 = vmatprep.subr.mxu0 0.0
      %1740 = vmatpush2.msra.mxu0 0.0
      %1741 = vmatprep.subr.mxu0 0.0
      %1742 = vmatpush2.msra.mxu0 0.0
      %1743 = vmatprep.subr.mxu0 0.0
      %1744 = vmatpush2.msra.mxu0 0.0
      %1745 = vmatprep.subr.mxu0 0.0
      %1746 = vmatpush2.msra.mxu0 0.0
      %1747 = vmatprep.subr.mxu0 0.0
      %1748 = vmatpush2.msra.mxu0 0.0
      %1749 = vmatprep.subr.mxu0 0.0
      %1750 = vmatpush2.msra.mxu0 0.0
      %1751 = vmatprep.subr.mxu0 0.0
      %1752 = vmatpush2.msra.mxu0 0.0
      %1753 = vmatprep.subr.mxu0 0.0
      %1754 = vmatpush2.msra.mxu0 0.0
      %1755 = vmatprep.mubr.f32.mxu0 0.0
      %1756 = vmatmul.mubr.f32.gmra.mxu0 %v1668
      %v1757 = vpop.f32.mrf.mxu0
      %v1758 = vadd.f32 0.0, %v1757
      %v1759 = vpop.f32.mrf.mxu0
      %v1760 = vadd.f32 0.0, %v1759
      %1761 = vmatprep.mubr.f32.mxu0 0.0
      %1762 = vmatmul.mubr.f32.gmra.mxu0 %v1671
      %v1763 = vpop.f32.mrf.mxu0
      %v1764 = vadd.f32 0.0, %v1763
      %v1765 = vpop.f32.mrf.mxu0
      %v1766 = vadd.f32 0.0, %v1765
      %1767 = vmatprep.mubr.f32.mxu0 0.0
      %1768 = vmatmul.mubr.f32.gmra.mxu0 %v1674
      %v1769 = vpop.f32.mrf.mxu0
      %v1770 = vadd.f32 0.0, %v1769
      %v1771 = vpop.f32.mrf.mxu0
      %v1772 = vadd.f32 0.0, %v1771
      %1773 = vmatprep.mubr.f32.mxu0 0.0
      %1774 = vmatmul.mubr.f32.gmra.mxu0 %v1677
      %v1775 = vpop.f32.mrf.mxu0
      %v1776 = vadd.f32 0.0, %v1775
      %v1777 = vpop.f32.mrf.mxu0
      %v1778 = vadd.f32 0.0, %v1777
      %1779 = vmatprep.mubr.f32.mxu0 0.0
      %1780 = vmatmul.mubr.f32.gmra.mxu0 %v1680
      %v1781 = vpop.f32.mrf.mxu0
      %v1782 = vadd.f32 0.0, %v1781
      %v1783 = vpop.f32.mrf.mxu0
      %v1784 = vadd.f32 0.0, %v1783
      %1785 = vmatprep.mubr.f32.mxu0 0.0
      %1786 = vmatmul.mubr.f32.gmra.mxu0 %v1683
      %v1787 = vpop.f32.mrf.mxu0
      %v1788 = vadd.f32 0.0, %v1787
      %v1789 = vpop.f32.mrf.mxu0
      %v1790 = vadd.f32 0.0, %v1789
      %1791 = vmatprep.mubr.f32.mxu0 0.0
      %1792 = vmatmul.mubr.f32.gmra.mxu0 %v1686
      %v1793 = vpop.f32.mrf.mxu0
      %v1794 = vadd.f32 0.0, %v1793
      %v1795 = vpop.f32.mrf.mxu0
      %v1796 = vadd.f32 0.0, %v1795
      %1797 = vmatprep.mubr.f32.mxu0 0.0
      %1798 = vmatmul.mubr.f32.gmra.mxu0 %v1689
      %v1799 = vpop.f32.mrf.mxu0
      %v1800 = vadd.f32 0.0, %v1799
      %v1801 = vpop.f32.mrf.mxu0
      %v1802 = vadd.f32 0.0, %v1801
      %1803 = vdwg.mxu0
      %v1804 = vadd.f32 %v1593, %v1758
      %v1805 = vadd.f32 %v1594, %v1760
      %v1806 = vadd.f32 %v1595, %v1764
      %v1807 = vadd.f32 %v1596, %v1766
      %v1808 = vadd.f32 %v1597, %v1770
      %v1809 = vadd.f32 %v1598, %v1772
      %v1810 = vadd.f32 %v1599, %v1776
      %v1811 = vadd.f32 %v1600, %v1778
      %v1812 = vadd.f32 %v1601, %v1782
      %v1813 = vadd.f32 %v1602, %v1784
      %v1814 = vadd.f32 %v1603, %v1788
      %v1815 = vadd.f32 %v1604, %v1790
      %v1816 = vadd.f32 %v1605, %v1794
      %v1817 = vadd.f32 %v1606, %v1796
      %v1818 = vadd.f32 %v1607, %v1800
      %v1819 = vadd.f32 %v1608, %v1802
      %1820 = vrot.lane.b32.xlu0 %v497, 65
      %v1821 = vpop.permute.xlu0 %1820
      %1822 = vrot.lane.b32.xlu0 %v498, 65
      %v1823 = vpop.permute.xlu0 %1822
      %1824 = vrot.lane.b32.xlu0 %v499, 65
      %v1825 = vpop.permute.xlu0 %1824
      %1826 = vrot.lane.b32.xlu0 %v500, 65
      %v1827 = vpop.permute.xlu0 %1826
      %1828 = vrot.lane.b32.xlu0 %v501, 65
      %v1829 = vpop.permute.xlu0 %1828
      %1830 = vrot.lane.b32.xlu0 %v502, 65
      %v1831 = vpop.permute.xlu0 %1830
      %1832 = vrot.lane.b32.xlu0 %v503, 65
      %v1833 = vpop.permute.xlu0 %1832
      %1834 = vrot.lane.b32.xlu0 %v504, 65
      %v1835 = vpop.permute.xlu0 %1834
      %1836 = vrot.lane.b32.xlu0 %v505, 65
      %v1837 = vpop.permute.xlu0 %1836
      %1838 = vrot.lane.b32.xlu0 %v506, 65
      %v1839 = vpop.permute.xlu0 %1838
      %1840 = vrot.lane.b32.xlu0 %v507, 65
      %v1841 = vpop.permute.xlu0 %1840
      %1842 = vrot.lane.b32.xlu0 %v508, 65
      %v1843 = vpop.permute.xlu0 %1842
      %vm1844 = vcmask 531456
      %v1845 = vsel %vm1844, %v1821, %v1823
      %v1846 = vsel %vm1844, %v1823, %v1825
      %v1847 = vsel %vm1844, %v1827, %v1829
      %v1848 = vsel %vm1844, %v1829, %v1831
      %v1849 = vsel %vm1844, %v1833, %v1835
      %v1850 = vsel %vm1844, %v1835, %v1837
      %v1851 = vsel %vm1844, %v1839, %v1841
      %v1852 = vsel %vm1844, %v1841, %v1843
      %v1861 = vsel %vm493, %v1845, %v1220
      %v1862 = vsel %vm494, %v1846, %v1221
      %v1863 = vsel %vm493, %v1847, %v1222
      %v1864 = vsel %vm494, %v1848, %v1223
      %v1865 = vsel %vm493, %v1849, %v1224
      %v1866 = vsel %vm494, %v1850, %v1225
      %v1867 = vsel %vm493, %v1851, %v1226
      %v1868 = vsel %vm494, %v1852, %v1227
      %s1869 = scalar_lea.vmem %s1, 384
      %v1870 = vld [vmem:[%s1869] sm:$0xff]
      %v1871 = vld [vmem:[%s1869 + $0x8] sm:$0xff]
      %v1872 = vld [vmem:[%s1869 + $0x10] sm:$0xff]
      %v1873 = vld [vmem:[%s1869 + $0x18] sm:$0xff]
      %v1874 = vld [vmem:[%s1869 + $0x20] sm:$0xff]
      %v1875 = vld [vmem:[%s1869 + $0x28] sm:$0xff]
      %v1876 = vld [vmem:[%s1869 + $0x30] sm:$0xff]
      %v1877 = vld [vmem:[%s1869 + $0x38] sm:$0xff]
      %v1879 = vsel %vm419, %v1870, 0
      %v1882 = vsel %vm419, %v1871, 0
      %v1885 = vsel %vm419, %v1872, 0
      %v1888 = vsel %vm419, %v1873, 0
      %v1891 = vsel %vm419, %v1874, 0
      %v1894 = vsel %vm419, %v1875, 0
      %v1897 = vsel %vm419, %v1876, 0
      %v1900 = vsel %vm419, %v1877, 0
      %1902 = vmatprep.subr.mxu0 0.0
      %1903 = vmatpush1.msra.mxu0 0.0
      %1904 = vmatprep.subr.mxu0 0.0
      %1905 = vmatpush1.msra.mxu0 0.0
      %1906 = vmatprep.subr.mxu0 0.0
      %1907 = vmatpush1.msra.mxu0 0.0
      %1908 = vmatprep.subr.mxu0 0.0
      %1909 = vmatpush1.msra.mxu0 0.0
      %1910 = vmatprep.subr.mxu0 0.0
      %1911 = vmatpush1.msra.mxu0 0.0
      %1912 = vmatprep.subr.mxu0 0.0
      %1913 = vmatpush1.msra.mxu0 0.0
      %1914 = vmatprep.subr.mxu0 0.0
      %1915 = vmatpush1.msra.mxu0 0.0
      %1916 = vmatprep.subr.mxu0 0.0
      %1917 = vmatpush1.msra.mxu0 0.0
      %1918 = vmatprep.subr.mxu0 0.0
      %1919 = vmatpush1.msra.mxu0 0.0
      %1920 = vmatprep.subr.mxu0 0.0
      %1921 = vmatpush1.msra.mxu0 0.0
      %1922 = vmatprep.subr.mxu0 0.0
      %1923 = vmatpush1.msra.mxu0 0.0
      %1924 = vmatprep.subr.mxu0 0.0
      %1925 = vmatpush1.msra.mxu0 0.0
      %1926 = vmatprep.subr.mxu0 %v1868
      %1927 = vmatpush1.msra.mxu0 %v1867
      %1928 = vmatprep.subr.mxu0 %v1866
      %1929 = vmatpush1.msra.mxu0 %v1865
      %1930 = vmatprep.subr.mxu0 %v1864
      %1931 = vmatpush1.msra.mxu0 %v1863
      %1932 = vmatprep.subr.mxu0 %v1862
      %1933 = vmatpush1.msra.mxu0 %v1861
      %1934 = vmatprep.subr.mxu0 0.0
      %1935 = vmatpush2.msra.mxu0 0.0
      %1936 = vmatprep.subr.mxu0 0.0
      %1937 = vmatpush2.msra.mxu0 0.0
      %1938 = vmatprep.subr.mxu0 0.0
      %1939 = vmatpush2.msra.mxu0 0.0
      %1940 = vmatprep.subr.mxu0 0.0
      %1941 = vmatpush2.msra.mxu0 0.0
      %1942 = vmatprep.subr.mxu0 0.0
      %1943 = vmatpush2.msra.mxu0 0.0
      %1944 = vmatprep.subr.mxu0 0.0
      %1945 = vmatpush2.msra.mxu0 0.0
      %1946 = vmatprep.subr.mxu0 0.0
      %1947 = vmatpush2.msra.mxu0 0.0
      %1948 = vmatprep.subr.mxu0 0.0
      %1949 = vmatpush2.msra.mxu0 0.0
      %1950 = vmatprep.subr.mxu0 0.0
      %1951 = vmatpush2.msra.mxu0 0.0
      %1952 = vmatprep.subr.mxu0 0.0
      %1953 = vmatpush2.msra.mxu0 0.0
      %1954 = vmatprep.subr.mxu0 0.0
      %1955 = vmatpush2.msra.mxu0 0.0
      %1956 = vmatprep.subr.mxu0 0.0
      %1957 = vmatpush2.msra.mxu0 0.0
      %1958 = vmatprep.subr.mxu0 0.0
      %1959 = vmatpush2.msra.mxu0 0.0
      %1960 = vmatprep.subr.mxu0 0.0
      %1961 = vmatpush2.msra.mxu0 0.0
      %1962 = vmatprep.subr.mxu0 0.0
      %1963 = vmatpush2.msra.mxu0 0.0
      %1964 = vmatprep.subr.mxu0 0.0
      %1965 = vmatpush2.msra.mxu0 0.0
      %1966 = vmatprep.mubr.f32.mxu0 0.0
      %1967 = vmatmul.mubr.f32.gmra.mxu0 %v1879
      %v1968 = vpop.f32.mrf.mxu0
      %v1969 = vadd.f32 0.0, %v1968
      %v1970 = vpop.f32.mrf.mxu0
      %v1971 = vadd.f32 0.0, %v1970
      %1972 = vmatprep.mubr.f32.mxu0 0.0
      %1973 = vmatmul.mubr.f32.gmra.mxu0 %v1882
      %v1974 = vpop.f32.mrf.mxu0
      %v1975 = vadd.f32 0.0, %v1974
      %v1976 = vpop.f32.mrf.mxu0
      %v1977 = vadd.f32 0.0, %v1976
      %1978 = vmatprep.mubr.f32.mxu0 0.0
      %1979 = vmatmul.mubr.f32.gmra.mxu0 %v1885
      %v1980 = vpop.f32.mrf.mxu0
      %v1981 = vadd.f32 0.0, %v1980
      %v1982 = vpop.f32.mrf.mxu0
      %v1983 = vadd.f32 0.0, %v1982
      %1984 = vmatprep.mubr.f32.mxu0 0.0
      %1985 = vmatmul.mubr.f32.gmra.mxu0 %v1888
      %v1986 = vpop.f32.mrf.mxu0
      %v1987 = vadd.f32 0.0, %v1986
      %v1988 = vpop.f32.mrf.mxu0
      %v1989 = vadd.f32 0.0, %v1988
      %1990 = vmatprep.mubr.f32.mxu0 0.0
      %1991 = vmatmul.mubr.f32.gmra.mxu0 %v1891
      %v1992 = vpop.f32.mrf.mxu0
      %v1993 = vadd.f32 0.0, %v1992
      %v1994 = vpop.f32.mrf.mxu0
      %v1995 = vadd.f32 0.0, %v1994
      %1996 = vmatprep.mubr.f32.mxu0 0.0
      %1997 = vmatmul.mubr.f32.gmra.mxu0 %v1894
      %v1998 = vpop.f32.mrf.mxu0
      %v1999 = vadd.f32 0.0, %v1998
      %v2000 = vpop.f32.mrf.mxu0
      %v2001 = vadd.f32 0.0, %v2000
      %2002 = vmatprep.mubr.f32.mxu0 0.0
      %2003 = vmatmul.mubr.f32.gmra.mxu0 %v1897
      %v2004 = vpop.f32.mrf.mxu0
      %v2005 = vadd.f32 0.0, %v2004
      %v2006 = vpop.f32.mrf.mxu0
      %v2007 = vadd.f32 0.0, %v2006
      %2008 = vmatprep.mubr.f32.mxu0 0.0
      %2009 = vmatmul.mubr.f32.gmra.mxu0 %v1900
      %v2010 = vpop.f32.mrf.mxu0
      %v2011 = vadd.f32 0.0, %v2010
      %v2012 = vpop.f32.mrf.mxu0
      %v2013 = vadd.f32 0.0, %v2012
      %2014 = vdwg.mxu0
      %v2015 = vadd.f32 %v1804, %v1969
      %v2016 = vadd.f32 %v1805, %v1971
      %v2017 = vadd.f32 %v1806, %v1975
      %v2018 = vadd.f32 %v1807, %v1977
      %v2019 = vadd.f32 %v1808, %v1981
      %v2020 = vadd.f32 %v1809, %v1983
      %v2021 = vadd.f32 %v1810, %v1987
      %v2022 = vadd.f32 %v1811, %v1989
      %v2023 = vadd.f32 %v1812, %v1993
      %v2024 = vadd.f32 %v1813, %v1995
      %v2025 = vadd.f32 %v1814, %v1999
      %v2026 = vadd.f32 %v1815, %v2001
      %v2027 = vadd.f32 %v1816, %v2005
      %v2028 = vadd.f32 %v1817, %v2007
      %v2029 = vadd.f32 %v1818, %v2011
      %v2030 = vadd.f32 %v1819, %v2013
      %s2031 = scalar_lea.vmem %s1, 448
      %v2032 = vld [vmem:[%s2031] sm:$0xff]
      %v2033 = vld [vmem:[%s2031 + $0x8] sm:$0xff]
      %v2034 = vld [vmem:[%s2031 + $0x10] sm:$0xff]
      %v2035 = vld [vmem:[%s2031 + $0x18] sm:$0xff]
      %v2036 = vld [vmem:[%s2031 + $0x20] sm:$0xff]
      %v2037 = vld [vmem:[%s2031 + $0x28] sm:$0xff]
      %v2038 = vld [vmem:[%s2031 + $0x30] sm:$0xff]
      %v2039 = vld [vmem:[%s2031 + $0x38] sm:$0xff]
      %2040 = vrot.lane.b32.xlu0 %v497, 80
      %v2041 = vpop.permute.xlu0 %2040
      %2042 = vrot.lane.b32.xlu0 %v498, 80
      %v2043 = vpop.permute.xlu0 %2042
      %2044 = vrot.lane.b32.xlu0 %v499, 80
      %v2045 = vpop.permute.xlu0 %2044
      %2046 = vrot.lane.b32.xlu0 %v500, 80
      %v2047 = vpop.permute.xlu0 %2046
      %2048 = vrot.lane.b32.xlu0 %v501, 80
      %v2049 = vpop.permute.xlu0 %2048
      %2050 = vrot.lane.b32.xlu0 %v502, 80
      %v2051 = vpop.permute.xlu0 %2050
      %2052 = vrot.lane.b32.xlu0 %v503, 80
      %v2053 = vpop.permute.xlu0 %2052
      %2054 = vrot.lane.b32.xlu0 %v504, 80
      %v2055 = vpop.permute.xlu0 %2054
      %2056 = vrot.lane.b32.xlu0 %v505, 80
      %v2057 = vpop.permute.xlu0 %2056
      %2058 = vrot.lane.b32.xlu0 %v506, 80
      %v2059 = vpop.permute.xlu0 %2058
      %2060 = vrot.lane.b32.xlu0 %v507, 80
      %v2061 = vpop.permute.xlu0 %2060
      %2062 = vrot.lane.b32.xlu0 %v508, 80
      %v2063 = vpop.permute.xlu0 %2062
      %vm2064 = vcmask 654336
      %v2065 = vsel %vm2064, %v2041, %v2043
      %v2066 = vsel %vm2064, %v2043, %v2045
      %v2067 = vsel %vm2064, %v2047, %v2049
      %v2068 = vsel %vm2064, %v2049, %v2051
      %v2069 = vsel %vm2064, %v2053, %v2055
      %v2070 = vsel %vm2064, %v2055, %v2057
      %v2071 = vsel %vm2064, %v2059, %v2061
      %v2072 = vsel %vm2064, %v2061, %v2063
      %v2082 = vsel %vm419, %v2032, 0
      %v2085 = vsel %vm419, %v2033, 0
      %v2088 = vsel %vm419, %v2034, 0
      %v2091 = vsel %vm419, %v2035, 0
      %v2094 = vsel %vm419, %v2036, 0
      %v2097 = vsel %vm419, %v2037, 0
      %v2100 = vsel %vm419, %v2038, 0
      %v2103 = vsel %vm419, %v2039, 0
      %2105 = vmatprep.subr.mxu0 0.0
      %2106 = vmatpush1.msra.mxu0 0.0
      %2107 = vmatprep.subr.mxu0 0.0
      %2108 = vmatpush1.msra.mxu0 0.0
      %2109 = vmatprep.subr.mxu0 0.0
      %2110 = vmatpush1.msra.mxu0 0.0
      %2111 = vmatprep.subr.mxu0 0.0
      %2112 = vmatpush1.msra.mxu0 0.0
      %2113 = vmatprep.subr.mxu0 0.0
      %2114 = vmatpush1.msra.mxu0 0.0
      %2115 = vmatprep.subr.mxu0 0.0
      %2116 = vmatpush1.msra.mxu0 0.0
      %2117 = vmatprep.subr.mxu0 0.0
      %2118 = vmatpush1.msra.mxu0 0.0
      %2119 = vmatprep.subr.mxu0 0.0
      %2120 = vmatpush1.msra.mxu0 0.0
      %2121 = vmatprep.subr.mxu0 0.0
      %2122 = vmatpush1.msra.mxu0 0.0
      %2123 = vmatprep.subr.mxu0 0.0
      %2124 = vmatpush1.msra.mxu0 0.0
      %2125 = vmatprep.subr.mxu0 0.0
      %2126 = vmatpush1.msra.mxu0 0.0
      %2127 = vmatprep.subr.mxu0 0.0
      %2128 = vmatpush1.msra.mxu0 0.0
      %2129 = vmatprep.subr.mxu0 %v2072
      %2130 = vmatpush1.msra.mxu0 %v2071
      %2131 = vmatprep.subr.mxu0 %v2070
      %2132 = vmatpush1.msra.mxu0 %v2069
      %2133 = vmatprep.subr.mxu0 %v2068
      %2134 = vmatpush1.msra.mxu0 %v2067
      %2135 = vmatprep.subr.mxu0 %v2066
      %2136 = vmatpush1.msra.mxu0 %v2065
      %2137 = vmatprep.subr.mxu0 0.0
      %2138 = vmatpush2.msra.mxu0 0.0
      %2139 = vmatprep.subr.mxu0 0.0
      %2140 = vmatpush2.msra.mxu0 0.0
      %2141 = vmatprep.subr.mxu0 0.0
      %2142 = vmatpush2.msra.mxu0 0.0
      %2143 = vmatprep.subr.mxu0 0.0
      %2144 = vmatpush2.msra.mxu0 0.0
      %2145 = vmatprep.subr.mxu0 0.0
      %2146 = vmatpush2.msra.mxu0 0.0
      %2147 = vmatprep.subr.mxu0 0.0
      %2148 = vmatpush2.msra.mxu0 0.0
      %2149 = vmatprep.subr.mxu0 0.0
      %2150 = vmatpush2.msra.mxu0 0.0
      %2151 = vmatprep.subr.mxu0 0.0
      %2152 = vmatpush2.msra.mxu0 0.0
      %2153 = vmatprep.subr.mxu0 0.0
      %2154 = vmatpush2.msra.mxu0 0.0
      %2155 = vmatprep.subr.mxu0 0.0
      %2156 = vmatpush2.msra.mxu0 0.0
      %2157 = vmatprep.subr.mxu0 0.0
      %2158 = vmatpush2.msra.mxu0 0.0
      %2159 = vmatprep.subr.mxu0 0.0
      %2160 = vmatpush2.msra.mxu0 0.0
      %2161 = vmatprep.subr.mxu0 0.0
      %2162 = vmatpush2.msra.mxu0 0.0
      %2163 = vmatprep.subr.mxu0 0.0
      %2164 = vmatpush2.msra.mxu0 0.0
      %2165 = vmatprep.subr.mxu0 0.0
      %2166 = vmatpush2.msra.mxu0 0.0
      %2167 = vmatprep.subr.mxu0 0.0
      %2168 = vmatpush2.msra.mxu0 0.0
      %2169 = vmatprep.mubr.f32.mxu0 0.0
      %2170 = vmatmul.mubr.f32.gmra.mxu0 %v2082
      %v2171 = vpop.f32.mrf.mxu0
      %v2172 = vadd.f32 0.0, %v2171
      %v2173 = vpop.f32.mrf.mxu0
      %v2174 = vadd.f32 0.0, %v2173
      %2175 = vmatprep.mubr.f32.mxu0 0.0
      %2176 = vmatmul.mubr.f32.gmra.mxu0 %v2085
      %v2177 = vpop.f32.mrf.mxu0
      %v2178 = vadd.f32 0.0, %v2177
      %v2179 = vpop.f32.mrf.mxu0
      %v2180 = vadd.f32 0.0, %v2179
      %2181 = vmatprep.mubr.f32.mxu0 0.0
      %2182 = vmatmul.mubr.f32.gmra.mxu0 %v2088
      %v2183 = vpop.f32.mrf.mxu0
      %v2184 = vadd.f32 0.0, %v2183
      %v2185 = vpop.f32.mrf.mxu0
      %v2186 = vadd.f32 0.0, %v2185
      %2187 = vmatprep.mubr.f32.mxu0 0.0
      %2188 = vmatmul.mubr.f32.gmra.mxu0 %v2091
      %v2189 = vpop.f32.mrf.mxu0
      %v2190 = vadd.f32 0.0, %v2189
      %v2191 = vpop.f32.mrf.mxu0
      %v2192 = vadd.f32 0.0, %v2191
      %2193 = vmatprep.mubr.f32.mxu0 0.0
      %2194 = vmatmul.mubr.f32.gmra.mxu0 %v2094
      %v2195 = vpop.f32.mrf.mxu0
      %v2196 = vadd.f32 0.0, %v2195
      %v2197 = vpop.f32.mrf.mxu0
      %v2198 = vadd.f32 0.0, %v2197
      %2199 = vmatprep.mubr.f32.mxu0 0.0
      %2200 = vmatmul.mubr.f32.gmra.mxu0 %v2097
      %v2201 = vpop.f32.mrf.mxu0
      %v2202 = vadd.f32 0.0, %v2201
      %v2203 = vpop.f32.mrf.mxu0
      %v2204 = vadd.f32 0.0, %v2203
      %2205 = vmatprep.mubr.f32.mxu0 0.0
      %2206 = vmatmul.mubr.f32.gmra.mxu0 %v2100
      %v2207 = vpop.f32.mrf.mxu0
      %v2208 = vadd.f32 0.0, %v2207
      %v2209 = vpop.f32.mrf.mxu0
      %v2210 = vadd.f32 0.0, %v2209
      %2211 = vmatprep.mubr.f32.mxu0 0.0
      %2212 = vmatmul.mubr.f32.gmra.mxu0 %v2103
      %v2213 = vpop.f32.mrf.mxu0
      %v2214 = vadd.f32 0.0, %v2213
      %v2215 = vpop.f32.mrf.mxu0
      %v2216 = vadd.f32 0.0, %v2215
      %2217 = vdwg.mxu0
      %v2218 = vadd.f32 %v2015, %v2172
      %v2219 = vadd.f32 %v2016, %v2174
      %v2220 = vadd.f32 %v2017, %v2178
      %v2221 = vadd.f32 %v2018, %v2180
      %v2222 = vadd.f32 %v2019, %v2184
      %v2223 = vadd.f32 %v2020, %v2186
      %v2224 = vadd.f32 %v2021, %v2190
      %v2225 = vadd.f32 %v2022, %v2192
      %v2226 = vadd.f32 %v2023, %v2196
      %v2227 = vadd.f32 %v2024, %v2198
      %v2228 = vadd.f32 %v2025, %v2202
      %v2229 = vadd.f32 %v2026, %v2204
      %v2230 = vadd.f32 %v2027, %v2208
      %v2231 = vadd.f32 %v2028, %v2210
      %v2232 = vadd.f32 %v2029, %v2214
      %v2233 = vadd.f32 %v2030, %v2216
      %2234 = vrot.lane.b32.xlu0 %v497, 79
      %v2235 = vpop.permute.xlu0 %2234
      %2236 = vrot.lane.b32.xlu0 %v498, 79
      %v2237 = vpop.permute.xlu0 %2236
      %2238 = vrot.lane.b32.xlu0 %v499, 79
      %v2239 = vpop.permute.xlu0 %2238
      %2240 = vrot.lane.b32.xlu0 %v500, 79
      %v2241 = vpop.permute.xlu0 %2240
      %2242 = vrot.lane.b32.xlu0 %v501, 79
      %v2243 = vpop.permute.xlu0 %2242
      %2244 = vrot.lane.b32.xlu0 %v502, 79
      %v2245 = vpop.permute.xlu0 %2244
      %2246 = vrot.lane.b32.xlu0 %v503, 79
      %v2247 = vpop.permute.xlu0 %2246
      %2248 = vrot.lane.b32.xlu0 %v504, 79
      %v2249 = vpop.permute.xlu0 %2248
      %2250 = vrot.lane.b32.xlu0 %v505, 79
      %v2251 = vpop.permute.xlu0 %2250
      %2252 = vrot.lane.b32.xlu0 %v506, 79
      %v2253 = vpop.permute.xlu0 %2252
      %2254 = vrot.lane.b32.xlu0 %v507, 79
      %v2255 = vpop.permute.xlu0 %2254
      %2256 = vrot.lane.b32.xlu0 %v508, 79
      %v2257 = vpop.permute.xlu0 %2256
      %vm2258 = vcmask 646144
      %v2259 = vsel %vm2258, %v2235, %v2237
      %v2260 = vsel %vm2258, %v2237, %v2239
      %v2261 = vsel %vm2258, %v2241, %v2243
      %v2262 = vsel %vm2258, %v2243, %v2245
      %v2263 = vsel %vm2258, %v2247, %v2249
      %v2264 = vsel %vm2258, %v2249, %v2251
      %v2265 = vsel %vm2258, %v2253, %v2255
      %v2266 = vsel %vm2258, %v2255, %v2257
      %v2275 = vsel %vm495, %v1634, %v2259
      %v2276 = vsel %vm496, %v1635, %v2260
      %v2277 = vsel %vm495, %v1636, %v2261
      %v2278 = vsel %vm496, %v1637, %v2262
      %v2279 = vsel %vm495, %v1638, %v2263
      %v2280 = vsel %vm496, %v1639, %v2264
      %v2281 = vsel %vm495, %v1640, %v2265
      %v2282 = vsel %vm496, %v1641, %v2266
      %s2283 = scalar_lea.vmem %s1, 512
      %v2284 = vld [vmem:[%s2283] sm:$0xff]
      %v2285 = vld [vmem:[%s2283 + $0x8] sm:$0xff]
      %v2286 = vld [vmem:[%s2283 + $0x10] sm:$0xff]
      %v2287 = vld [vmem:[%s2283 + $0x18] sm:$0xff]
      %v2288 = vld [vmem:[%s2283 + $0x20] sm:$0xff]
      %v2289 = vld [vmem:[%s2283 + $0x28] sm:$0xff]
      %v2290 = vld [vmem:[%s2283 + $0x30] sm:$0xff]
      %v2291 = vld [vmem:[%s2283 + $0x38] sm:$0xff]
      %v2293 = vsel %vm419, %v2284, 0
      %v2296 = vsel %vm419, %v2285, 0
      %v2299 = vsel %vm419, %v2286, 0
      %v2302 = vsel %vm419, %v2287, 0
      %v2305 = vsel %vm419, %v2288, 0
      %v2308 = vsel %vm419, %v2289, 0
      %v2311 = vsel %vm419, %v2290, 0
      %v2314 = vsel %vm419, %v2291, 0
      %2316 = vmatprep.subr.mxu0 0.0
      %2317 = vmatpush1.msra.mxu0 0.0
      %2318 = vmatprep.subr.mxu0 0.0
      %2319 = vmatpush1.msra.mxu0 0.0
      %2320 = vmatprep.subr.mxu0 0.0
      %2321 = vmatpush1.msra.mxu0 0.0
      %2322 = vmatprep.subr.mxu0 0.0
      %2323 = vmatpush1.msra.mxu0 0.0
      %2324 = vmatprep.subr.mxu0 0.0
      %2325 = vmatpush1.msra.mxu0 0.0
      %2326 = vmatprep.subr.mxu0 0.0
      %2327 = vmatpush1.msra.mxu0 0.0
      %2328 = vmatprep.subr.mxu0 0.0
      %2329 = vmatpush1.msra.mxu0 0.0
      %2330 = vmatprep.subr.mxu0 0.0
      %2331 = vmatpush1.msra.mxu0 0.0
      %2332 = vmatprep.subr.mxu0 0.0
      %2333 = vmatpush1.msra.mxu0 0.0
      %2334 = vmatprep.subr.mxu0 0.0
      %2335 = vmatpush1.msra.mxu0 0.0
      %2336 = vmatprep.subr.mxu0 0.0
      %2337 = vmatpush1.msra.mxu0 0.0
      %2338 = vmatprep.subr.mxu0 0.0
      %2339 = vmatpush1.msra.mxu0 0.0
      %2340 = vmatprep.subr.mxu0 %v2282
      %2341 = vmatpush1.msra.mxu0 %v2281
      %2342 = vmatprep.subr.mxu0 %v2280
      %2343 = vmatpush1.msra.mxu0 %v2279
      %2344 = vmatprep.subr.mxu0 %v2278
      %2345 = vmatpush1.msra.mxu0 %v2277
      %2346 = vmatprep.subr.mxu0 %v2276
      %2347 = vmatpush1.msra.mxu0 %v2275
      %2348 = vmatprep.subr.mxu0 0.0
      %2349 = vmatpush2.msra.mxu0 0.0
      %2350 = vmatprep.subr.mxu0 0.0
      %2351 = vmatpush2.msra.mxu0 0.0
      %2352 = vmatprep.subr.mxu0 0.0
      %2353 = vmatpush2.msra.mxu0 0.0
      %2354 = vmatprep.subr.mxu0 0.0
      %2355 = vmatpush2.msra.mxu0 0.0
      %2356 = vmatprep.subr.mxu0 0.0
      %2357 = vmatpush2.msra.mxu0 0.0
      %2358 = vmatprep.subr.mxu0 0.0
      %2359 = vmatpush2.msra.mxu0 0.0
      %2360 = vmatprep.subr.mxu0 0.0
      %2361 = vmatpush2.msra.mxu0 0.0
      %2362 = vmatprep.subr.mxu0 0.0
      %2363 = vmatpush2.msra.mxu0 0.0
      %2364 = vmatprep.subr.mxu0 0.0
      %2365 = vmatpush2.msra.mxu0 0.0
      %2366 = vmatprep.subr.mxu0 0.0
      %2367 = vmatpush2.msra.mxu0 0.0
      %2368 = vmatprep.subr.mxu0 0.0
      %2369 = vmatpush2.msra.mxu0 0.0
      %2370 = vmatprep.subr.mxu0 0.0
      %2371 = vmatpush2.msra.mxu0 0.0
      %2372 = vmatprep.subr.mxu0 0.0
      %2373 = vmatpush2.msra.mxu0 0.0
      %2374 = vmatprep.subr.mxu0 0.0
      %2375 = vmatpush2.msra.mxu0 0.0
      %2376 = vmatprep.subr.mxu0 0.0
      %2377 = vmatpush2.msra.mxu0 0.0
      %2378 = vmatprep.subr.mxu0 0.0
      %2379 = vmatpush2.msra.mxu0 0.0
      %2380 = vmatprep.mubr.f32.mxu0 0.0
      %2381 = vmatmul.mubr.f32.gmra.mxu0 %v2293
      %v2382 = vpop.f32.mrf.mxu0
      %v2383 = vadd.f32 0.0, %v2382
      %v2384 = vpop.f32.mrf.mxu0
      %v2385 = vadd.f32 0.0, %v2384
      %2386 = vmatprep.mubr.f32.mxu0 0.0
      %2387 = vmatmul.mubr.f32.gmra.mxu0 %v2296
      %v2388 = vpop.f32.mrf.mxu0
      %v2389 = vadd.f32 0.0, %v2388
      %v2390 = vpop.f32.mrf.mxu0
      %v2391 = vadd.f32 0.0, %v2390
      %2392 = vmatprep.mubr.f32.mxu0 0.0
      %2393 = vmatmul.mubr.f32.gmra.mxu0 %v2299
      %v2394 = vpop.f32.mrf.mxu0
      %v2395 = vadd.f32 0.0, %v2394
      %v2396 = vpop.f32.mrf.mxu0
      %v2397 = vadd.f32 0.0, %v2396
      %2398 = vmatprep.mubr.f32.mxu0 0.0
      %2399 = vmatmul.mubr.f32.gmra.mxu0 %v2302
      %v2400 = vpop.f32.mrf.mxu0
      %v2401 = vadd.f32 0.0, %v2400
      %v2402 = vpop.f32.mrf.mxu0
      %v2403 = vadd.f32 0.0, %v2402
      %2404 = vmatprep.mubr.f32.mxu0 0.0
      %2405 = vmatmul.mubr.f32.gmra.mxu0 %v2305
      %v2406 = vpop.f32.mrf.mxu0
      %v2407 = vadd.f32 0.0, %v2406
      %v2408 = vpop.f32.mrf.mxu0
      %v2409 = vadd.f32 0.0, %v2408
      %2410 = vmatprep.mubr.f32.mxu0 0.0
      %2411 = vmatmul.mubr.f32.gmra.mxu0 %v2308
      %v2412 = vpop.f32.mrf.mxu0
      %v2413 = vadd.f32 0.0, %v2412
      %v2414 = vpop.f32.mrf.mxu0
      %v2415 = vadd.f32 0.0, %v2414
      %2416 = vmatprep.mubr.f32.mxu0 0.0
      %2417 = vmatmul.mubr.f32.gmra.mxu0 %v2311
      %v2418 = vpop.f32.mrf.mxu0
      %v2419 = vadd.f32 0.0, %v2418
      %v2420 = vpop.f32.mrf.mxu0
      %v2421 = vadd.f32 0.0, %v2420
      %2422 = vmatprep.mubr.f32.mxu0 0.0
      %2423 = vmatmul.mubr.f32.gmra.mxu0 %v2314
      %v2424 = vpop.f32.mrf.mxu0
      %v2425 = vadd.f32 0.0, %v2424
      %v2426 = vpop.f32.mrf.mxu0
      %v2427 = vadd.f32 0.0, %v2426
      %2428 = vdwg.mxu0
      %v2429 = vadd.f32 %v2218, %v2383
      %v2430 = vadd.f32 %v2219, %v2385
      %v2431 = vadd.f32 %v2220, %v2389
      %v2432 = vadd.f32 %v2221, %v2391
      %v2433 = vadd.f32 %v2222, %v2395
      %v2434 = vadd.f32 %v2223, %v2397
      %v2435 = vadd.f32 %v2224, %v2401
      %v2436 = vadd.f32 %v2225, %v2403
      %v2437 = vadd.f32 %v2226, %v2407
      %v2438 = vadd.f32 %v2227, %v2409
      %v2439 = vadd.f32 %v2228, %v2413
      %v2440 = vadd.f32 %v2229, %v2415
      %v2441 = vadd.f32 %v2230, %v2419
      %v2442 = vadd.f32 %v2231, %v2421
      %v2443 = vadd.f32 %v2232, %v2425
      %v2444 = vadd.f32 %v2233, %v2427
      %v2445 = vld [vmem:[%s2] sm:$0xff]
      %v2446 = vld [vmem:[%s2 + $0x8] sm:$0xff]
      %v2447 = vld [vmem:[%s2 + $0x10] sm:$0xff]
      %v2448 = vld [vmem:[%s2 + $0x18] sm:$0xff]
      %v2449 = vld [vmem:[%s2 + $0x20] sm:$0xff]
      %v2450 = vld [vmem:[%s2 + $0x28] sm:$0xff]
      %v2451 = vld [vmem:[%s2 + $0x30] sm:$0xff]
      %v2452 = vld [vmem:[%s2 + $0x38] sm:$0xff]
      %2454 = vset.pattern.permute.xlu0 0
      %2455 = vperm.xlu0 %2454, %v2445
      %v2456 = vpop.permute.xlu0 %2455
      %2459 = vset.pattern.permute.xlu0 0
      %2460 = vperm.xlu0 %2459, %v2446
      %v2461 = vpop.permute.xlu0 %2460
      %2464 = vset.pattern.permute.xlu0 0
      %2465 = vperm.xlu0 %2464, %v2447
      %v2466 = vpop.permute.xlu0 %2465
      %2469 = vset.pattern.permute.xlu0 0
      %2470 = vperm.xlu0 %2469, %v2448
      %v2471 = vpop.permute.xlu0 %2470
      %2474 = vset.pattern.permute.xlu0 0
      %2475 = vperm.xlu0 %2474, %v2449
      %v2476 = vpop.permute.xlu0 %2475
      %2479 = vset.pattern.permute.xlu0 0
      %2480 = vperm.xlu0 %2479, %v2450
      %v2481 = vpop.permute.xlu0 %2480
      %2484 = vset.pattern.permute.xlu0 0
      %2485 = vperm.xlu0 %2484, %v2451
      %v2486 = vpop.permute.xlu0 %2485
      %2489 = vset.pattern.permute.xlu0 0
      %2490 = vperm.xlu0 %2489, %v2452
      %v2491 = vpop.permute.xlu0 %2490
      %v2493 = vadd.f32 %v2429, %v2456
      %v2494 = vadd.f32 %v2430, %v2456
      %v2495 = vadd.f32 %v2431, %v2461
      %v2496 = vadd.f32 %v2432, %v2461
      %v2497 = vadd.f32 %v2433, %v2466
      %v2498 = vadd.f32 %v2434, %v2466
      %v2499 = vadd.f32 %v2435, %v2471
      %v2500 = vadd.f32 %v2436, %v2471
      %v2501 = vadd.f32 %v2437, %v2476
      %v2502 = vadd.f32 %v2438, %v2476
      %v2503 = vadd.f32 %v2439, %v2481
      %v2504 = vadd.f32 %v2440, %v2481
      %v2505 = vadd.f32 %v2441, %v2486
      %v2506 = vadd.f32 %v2442, %v2486
      %v2507 = vadd.f32 %v2443, %v2491
      %v2508 = vadd.f32 %v2444, %v2491
      %v2509 = vld [vmem:[%s3] sm:$0xff]
      %v2510 = vld [vmem:[%s3 + $0x8] sm:$0xff]
      %v2511 = vld [vmem:[%s3 + $0x10] sm:$0xff]
      %v2512 = vld [vmem:[%s3 + $0x18] sm:$0xff]
      %v2513 = vld [vmem:[%s3 + $0x20] sm:$0xff]
      %v2514 = vld [vmem:[%s3 + $0x28] sm:$0xff]
      %v2515 = vld [vmem:[%s3 + $0x30] sm:$0xff]
      %v2516 = vld [vmem:[%s3 + $0x38] sm:$0xff]
      %vm2517 = vcmask 523264
      %v2519 = vsel %vm2517, %v2509, 0
      %v2522 = vsel %vm2517, %v2510, 0
      %v2525 = vsel %vm2517, %v2511, 0
      %v2528 = vsel %vm2517, %v2512, 0
      %v2531 = vsel %vm2517, %v2513, 0
      %v2534 = vsel %vm2517, %v2514, 0
      %v2537 = vsel %vm2517, %v2515, 0
      %v2540 = vsel %vm2517, %v2516, 0
      %2542 = vmatprep.subr.mxu0 0.0
      %2543 = vmatpush1.msra.mxu0 0.0
      %2544 = vmatprep.subr.mxu0 0.0
      %2545 = vmatpush1.msra.mxu0 0.0
      %2546 = vmatprep.subr.mxu0 0.0
      %2547 = vmatpush1.msra.mxu0 0.0
      %2548 = vmatprep.subr.mxu0 0.0
      %2549 = vmatpush1.msra.mxu0 0.0
      %2550 = vmatprep.subr.mxu0 0.0
      %2551 = vmatpush1.msra.mxu0 0.0
      %2552 = vmatprep.subr.mxu0 0.0
      %2553 = vmatpush1.msra.mxu0 0.0
      %2554 = vmatprep.subr.mxu0 0.0
      %2555 = vmatpush1.msra.mxu0 0.0
      %2556 = vmatprep.subr.mxu0 0.0
      %2557 = vmatpush1.msra.mxu0 0.0
      %2558 = vmatprep.subr.mxu0 %v2508
      %2559 = vmatpush1.msra.mxu0 %v2507
      %2560 = vmatprep.subr.mxu0 %v2506
      %2561 = vmatpush1.msra.mxu0 %v2505
      %2562 = vmatprep.subr.mxu0 %v2504
      %2563 = vmatpush1.msra.mxu0 %v2503
      %2564 = vmatprep.subr.mxu0 %v2502
      %2565 = vmatpush1.msra.mxu0 %v2501
      %2566 = vmatprep.subr.mxu0 %v2500
      %2567 = vmatpush1.msra.mxu0 %v2499
      %2568 = vmatprep.subr.mxu0 %v2498
      %2569 = vmatpush1.msra.mxu0 %v2497
      %2570 = vmatprep.subr.mxu0 %v2496
      %2571 = vmatpush1.msra.mxu0 %v2495
      %2572 = vmatprep.subr.mxu0 %v2494
      %2573 = vmatpush1.msra.mxu0 %v2493
      %2574 = vmatprep.subr.mxu0 0.0
      %2575 = vmatpush2.msra.mxu0 0.0
      %2576 = vmatprep.subr.mxu0 0.0
      %2577 = vmatpush2.msra.mxu0 0.0
      %2578 = vmatprep.subr.mxu0 0.0
      %2579 = vmatpush2.msra.mxu0 0.0
      %2580 = vmatprep.subr.mxu0 0.0
      %2581 = vmatpush2.msra.mxu0 0.0
      %2582 = vmatprep.subr.mxu0 0.0
      %2583 = vmatpush2.msra.mxu0 0.0
      %2584 = vmatprep.subr.mxu0 0.0
      %2585 = vmatpush2.msra.mxu0 0.0
      %2586 = vmatprep.subr.mxu0 0.0
      %2587 = vmatpush2.msra.mxu0 0.0
      %2588 = vmatprep.subr.mxu0 0.0
      %2589 = vmatpush2.msra.mxu0 0.0
      %2590 = vmatprep.subr.mxu0 0.0
      %2591 = vmatpush2.msra.mxu0 0.0
      %2592 = vmatprep.subr.mxu0 0.0
      %2593 = vmatpush2.msra.mxu0 0.0
      %2594 = vmatprep.subr.mxu0 0.0
      %2595 = vmatpush2.msra.mxu0 0.0
      %2596 = vmatprep.subr.mxu0 0.0
      %2597 = vmatpush2.msra.mxu0 0.0
      %2598 = vmatprep.subr.mxu0 0.0
      %2599 = vmatpush2.msra.mxu0 0.0
      %2600 = vmatprep.subr.mxu0 0.0
      %2601 = vmatpush2.msra.mxu0 0.0
      %2602 = vmatprep.subr.mxu0 0.0
      %2603 = vmatpush2.msra.mxu0 0.0
      %2604 = vmatprep.subr.mxu0 0.0
      %2605 = vmatpush2.msra.mxu0 0.0
      %2606 = vmatprep.mubr.f32.mxu0 0.0
      %2607 = vmatmul.mubr.f32.gmra.mxu0 %v2519
      %v2608 = vpop.f32.mrf.mxu0
      %v2609 = vadd.f32 0.0, %v2608
      %v2610 = vpop.f32.mrf.mxu0
      %v2611 = vadd.f32 0.0, %v2610
      %2612 = vmatprep.mubr.f32.mxu0 0.0
      %2613 = vmatmul.mubr.f32.gmra.mxu0 %v2522
      %v2614 = vpop.f32.mrf.mxu0
      %v2615 = vadd.f32 0.0, %v2614
      %v2616 = vpop.f32.mrf.mxu0
      %v2617 = vadd.f32 0.0, %v2616
      %2618 = vmatprep.mubr.f32.mxu0 0.0
      %2619 = vmatmul.mubr.f32.gmra.mxu0 %v2525
      %v2620 = vpop.f32.mrf.mxu0
      %v2621 = vadd.f32 0.0, %v2620
      %v2622 = vpop.f32.mrf.mxu0
      %v2623 = vadd.f32 0.0, %v2622
      %2624 = vmatprep.mubr.f32.mxu0 0.0
      %2625 = vmatmul.mubr.f32.gmra.mxu0 %v2528
      %v2626 = vpop.f32.mrf.mxu0
      %v2627 = vadd.f32 0.0, %v2626
      %v2628 = vpop.f32.mrf.mxu0
      %v2629 = vadd.f32 0.0, %v2628
      %2630 = vmatprep.mubr.f32.mxu0 0.0
      %2631 = vmatmul.mubr.f32.gmra.mxu0 %v2531
      %v2632 = vpop.f32.mrf.mxu0
      %v2633 = vadd.f32 0.0, %v2632
      %v2634 = vpop.f32.mrf.mxu0
      %v2635 = vadd.f32 0.0, %v2634
      %2636 = vmatprep.mubr.f32.mxu0 0.0
      %2637 = vmatmul.mubr.f32.gmra.mxu0 %v2534
      %v2638 = vpop.f32.mrf.mxu0
      %v2639 = vadd.f32 0.0, %v2638
      %v2640 = vpop.f32.mrf.mxu0
      %v2641 = vadd.f32 0.0, %v2640
      %2642 = vmatprep.mubr.f32.mxu0 0.0
      %2643 = vmatmul.mubr.f32.gmra.mxu0 %v2537
      %v2644 = vpop.f32.mrf.mxu0
      %v2645 = vadd.f32 0.0, %v2644
      %v2646 = vpop.f32.mrf.mxu0
      %v2647 = vadd.f32 0.0, %v2646
      %2648 = vmatprep.mubr.f32.mxu0 0.0
      %2649 = vmatmul.mubr.f32.gmra.mxu0 %v2540
      %v2650 = vpop.f32.mrf.mxu0
      %v2651 = vadd.f32 0.0, %v2650
      %v2652 = vpop.f32.mrf.mxu0
      %v2653 = vadd.f32 0.0, %v2652
      %2654 = vdwg.mxu0
      %v2655 = vmul.f32 %v2493, %v2493
      %v2656 = vmul.f32 %v2494, %v2494
      %v2657 = vmul.f32 %v2495, %v2495
      %v2658 = vmul.f32 %v2496, %v2496
      %v2659 = vmul.f32 %v2497, %v2497
      %v2660 = vmul.f32 %v2498, %v2498
      %v2661 = vmul.f32 %v2499, %v2499
      %v2662 = vmul.f32 %v2500, %v2500
      %v2663 = vmul.f32 %v2501, %v2501
      %v2664 = vmul.f32 %v2502, %v2502
      %v2665 = vmul.f32 %v2503, %v2503
      %v2666 = vmul.f32 %v2504, %v2504
      %v2667 = vmul.f32 %v2505, %v2505
      %v2668 = vmul.f32 %v2506, %v2506
      %v2669 = vmul.f32 %v2507, %v2507
      %v2670 = vmul.f32 %v2508, %v2508
      %2671 = vmatprep.subr.mxu0 0.0
      %2672 = vmatpush1.msra.mxu0 0.0
      %2673 = vmatprep.subr.mxu0 0.0
      %2674 = vmatpush1.msra.mxu0 0.0
      %2675 = vmatprep.subr.mxu0 0.0
      %2676 = vmatpush1.msra.mxu0 0.0
      %2677 = vmatprep.subr.mxu0 0.0
      %2678 = vmatpush1.msra.mxu0 0.0
      %2679 = vmatprep.subr.mxu0 0.0
      %2680 = vmatpush1.msra.mxu0 0.0
      %2681 = vmatprep.subr.mxu0 0.0
      %2682 = vmatpush1.msra.mxu0 0.0
      %2683 = vmatprep.subr.mxu0 0.0
      %2684 = vmatpush1.msra.mxu0 0.0
      %2685 = vmatprep.subr.mxu0 0.0
      %2686 = vmatpush1.msra.mxu0 0.0
      %2687 = vmatprep.subr.mxu0 %v2670
      %2688 = vmatpush1.msra.mxu0 %v2669
      %2689 = vmatprep.subr.mxu0 %v2668
      %2690 = vmatpush1.msra.mxu0 %v2667
      %2691 = vmatprep.subr.mxu0 %v2666
      %2692 = vmatpush1.msra.mxu0 %v2665
      %2693 = vmatprep.subr.mxu0 %v2664
      %2694 = vmatpush1.msra.mxu0 %v2663
      %2695 = vmatprep.subr.mxu0 %v2662
      %2696 = vmatpush1.msra.mxu0 %v2661
      %2697 = vmatprep.subr.mxu0 %v2660
      %2698 = vmatpush1.msra.mxu0 %v2659
      %2699 = vmatprep.subr.mxu0 %v2658
      %2700 = vmatpush1.msra.mxu0 %v2657
      %2701 = vmatprep.subr.mxu0 %v2656
      %2702 = vmatpush1.msra.mxu0 %v2655
      %2703 = vmatprep.subr.mxu0 0.0
      %2704 = vmatpush2.msra.mxu0 0.0
      %2705 = vmatprep.subr.mxu0 0.0
      %2706 = vmatpush2.msra.mxu0 0.0
      %2707 = vmatprep.subr.mxu0 0.0
      %2708 = vmatpush2.msra.mxu0 0.0
      %2709 = vmatprep.subr.mxu0 0.0
      %2710 = vmatpush2.msra.mxu0 0.0
      %2711 = vmatprep.subr.mxu0 0.0
      %2712 = vmatpush2.msra.mxu0 0.0
      %2713 = vmatprep.subr.mxu0 0.0
      %2714 = vmatpush2.msra.mxu0 0.0
      %2715 = vmatprep.subr.mxu0 0.0
      %2716 = vmatpush2.msra.mxu0 0.0
      %2717 = vmatprep.subr.mxu0 0.0
      %2718 = vmatpush2.msra.mxu0 0.0
      %2719 = vmatprep.subr.mxu0 0.0
      %2720 = vmatpush2.msra.mxu0 0.0
      %2721 = vmatprep.subr.mxu0 0.0
      %2722 = vmatpush2.msra.mxu0 0.0
      %2723 = vmatprep.subr.mxu0 0.0
      %2724 = vmatpush2.msra.mxu0 0.0
      %2725 = vmatprep.subr.mxu0 0.0
      %2726 = vmatpush2.msra.mxu0 0.0
      %2727 = vmatprep.subr.mxu0 0.0
      %2728 = vmatpush2.msra.mxu0 0.0
      %2729 = vmatprep.subr.mxu0 0.0
      %2730 = vmatpush2.msra.mxu0 0.0
      %2731 = vmatprep.subr.mxu0 0.0
      %2732 = vmatpush2.msra.mxu0 0.0
      %2733 = vmatprep.subr.mxu0 0.0
      %2734 = vmatpush2.msra.mxu0 0.0
      %2735 = vmatprep.mubr.f32.mxu0 0.0
      %2736 = vmatmul.mubr.f32.gmra.mxu0 %v2519
      %v2737 = vpop.f32.mrf.mxu0
      %v2738 = vadd.f32 0.0, %v2737
      %v2739 = vpop.f32.mrf.mxu0
      %v2740 = vadd.f32 0.0, %v2739
      %2741 = vmatprep.mubr.f32.mxu0 0.0
      %2742 = vmatmul.mubr.f32.gmra.mxu0 %v2522
      %v2743 = vpop.f32.mrf.mxu0
      %v2744 = vadd.f32 0.0, %v2743
      %v2745 = vpop.f32.mrf.mxu0
      %v2746 = vadd.f32 0.0, %v2745
      %2747 = vmatprep.mubr.f32.mxu0 0.0
      %2748 = vmatmul.mubr.f32.gmra.mxu0 %v2525
      %v2749 = vpop.f32.mrf.mxu0
      %v2750 = vadd.f32 0.0, %v2749
      %v2751 = vpop.f32.mrf.mxu0
      %v2752 = vadd.f32 0.0, %v2751
      %2753 = vmatprep.mubr.f32.mxu0 0.0
      %2754 = vmatmul.mubr.f32.gmra.mxu0 %v2528
      %v2755 = vpop.f32.mrf.mxu0
      %v2756 = vadd.f32 0.0, %v2755
      %v2757 = vpop.f32.mrf.mxu0
      %v2758 = vadd.f32 0.0, %v2757
      %2759 = vmatprep.mubr.f32.mxu0 0.0
      %2760 = vmatmul.mubr.f32.gmra.mxu0 %v2531
      %v2761 = vpop.f32.mrf.mxu0
      %v2762 = vadd.f32 0.0, %v2761
      %v2763 = vpop.f32.mrf.mxu0
      %v2764 = vadd.f32 0.0, %v2763
      %2765 = vmatprep.mubr.f32.mxu0 0.0
      %2766 = vmatmul.mubr.f32.gmra.mxu0 %v2534
      %v2767 = vpop.f32.mrf.mxu0
      %v2768 = vadd.f32 0.0, %v2767
      %v2769 = vpop.f32.mrf.mxu0
      %v2770 = vadd.f32 0.0, %v2769
      %2771 = vmatprep.mubr.f32.mxu0 0.0
      %2772 = vmatmul.mubr.f32.gmra.mxu0 %v2537
      %v2773 = vpop.f32.mrf.mxu0
      %v2774 = vadd.f32 0.0, %v2773
      %v2775 = vpop.f32.mrf.mxu0
      %v2776 = vadd.f32 0.0, %v2775
      %2777 = vmatprep.mubr.f32.mxu0 0.0
      %2778 = vmatmul.mubr.f32.gmra.mxu0 %v2540
      %v2779 = vpop.f32.mrf.mxu0
      %v2780 = vadd.f32 0.0, %v2779
      %v2781 = vpop.f32.mrf.mxu0
      %v2782 = vadd.f32 0.0, %v2781
      %2783 = vdwg.mxu0
      %v2784 = vadd.f32 %v2609, %v2611
      %2785 = vadd.xlane.f32.xlu0 %v2784
      %v2786 = vpop.xlane.xlu0 %2785
      %v2787 = vadd.f32 %v2615, %v2617
      %2788 = vadd.xlane.f32.xlu0 %v2787
      %v2789 = vpop.xlane.xlu0 %2788
      %v2790 = vadd.f32 %v2621, %v2623
      %2791 = vadd.xlane.f32.xlu0 %v2790
      %v2792 = vpop.xlane.xlu0 %2791
      %v2793 = vadd.f32 %v2627, %v2629
      %2794 = vadd.xlane.f32.xlu0 %v2793
      %v2795 = vpop.xlane.xlu0 %2794
      %v2796 = vadd.f32 %v2633, %v2635
      %2797 = vadd.xlane.f32.xlu0 %v2796
      %v2798 = vpop.xlane.xlu0 %2797
      %v2799 = vadd.f32 %v2639, %v2641
      %2800 = vadd.xlane.f32.xlu0 %v2799
      %v2801 = vpop.xlane.xlu0 %2800
      %v2802 = vadd.f32 %v2645, %v2647
      %2803 = vadd.xlane.f32.xlu0 %v2802
      %v2804 = vpop.xlane.xlu0 %2803
      %v2805 = vadd.f32 %v2651, %v2653
      %2806 = vadd.xlane.f32.xlu0 %v2805
      %v2807 = vpop.xlane.xlu0 %2806
      %v2808 = vadd.f32 %v2738, %v2740
      %2809 = vadd.xlane.f32.xlu0 %v2808
      %v2810 = vpop.xlane.xlu0 %2809
      %v2811 = vadd.f32 %v2744, %v2746
      %2812 = vadd.xlane.f32.xlu0 %v2811
      %v2813 = vpop.xlane.xlu0 %2812
      %v2814 = vadd.f32 %v2750, %v2752
      %2815 = vadd.xlane.f32.xlu0 %v2814
      %v2816 = vpop.xlane.xlu0 %2815
      %v2817 = vadd.f32 %v2756, %v2758
      %2818 = vadd.xlane.f32.xlu0 %v2817
      %v2819 = vpop.xlane.xlu0 %2818
      %v2820 = vadd.f32 %v2762, %v2764
      %2821 = vadd.xlane.f32.xlu0 %v2820
      %v2822 = vpop.xlane.xlu0 %2821
      %v2823 = vadd.f32 %v2768, %v2770
      %2824 = vadd.xlane.f32.xlu0 %v2823
      %v2825 = vpop.xlane.xlu0 %2824
      %v2826 = vadd.f32 %v2774, %v2776
      %2827 = vadd.xlane.f32.xlu0 %v2826
      %v2828 = vpop.xlane.xlu0 %2827
      %v2829 = vadd.f32 %v2780, %v2782
      %2830 = vadd.xlane.f32.xlu0 %v2829
      %v2831 = vpop.xlane.xlu0 %2830
      %v2832 = vmul.f32 %v2786, %v2786
      %v2833 = vmul.f32 %v2789, %v2789
      %v2834 = vmul.f32 %v2792, %v2792
      %v2835 = vmul.f32 %v2795, %v2795
      %v2836 = vmul.f32 %v2798, %v2798
      %v2837 = vmul.f32 %v2801, %v2801
      %v2838 = vmul.f32 %v2804, %v2804
      %v2839 = vmul.f32 %v2807, %v2807
      %v2840 = vsub.f32 %v2810, %v2832
      %v2841 = vsub.f32 %v2813, %v2833
      %v2842 = vsub.f32 %v2816, %v2834
      %v2843 = vsub.f32 %v2819, %v2835
      %v2844 = vsub.f32 %v2822, %v2836
      %v2845 = vsub.f32 %v2825, %v2837
      %v2846 = vsub.f32 %v2828, %v2838
      %v2847 = vsub.f32 %v2831, %v2839
      %v2848 = vadd.f32 %v2840, 1e-05
      %v2849 = vadd.f32 %v2841, 1e-05
      %v2850 = vadd.f32 %v2842, 1e-05
      %v2851 = vadd.f32 %v2843, 1e-05
      %v2852 = vadd.f32 %v2844, 1e-05
      %v2853 = vadd.f32 %v2845, 1e-05
      %v2854 = vadd.f32 %v2846, 1e-05
      %v2855 = vadd.f32 %v2847, 1e-05
      %v2856 = vrsqrt.pop %v2848
      %v2857 = vrsqrt.pop %v2849
      %v2858 = vrsqrt.pop %v2850
      %v2859 = vrsqrt.pop %v2851
      %v2860 = vrsqrt.pop %v2852
      %v2861 = vrsqrt.pop %v2853
      %v2862 = vrsqrt.pop %v2854
      %v2863 = vrsqrt.pop %v2855
      %v2864 = vsub.f32 %v2493, %v2786
      %v2865 = vsub.f32 %v2494, %v2786
      %v2866 = vsub.f32 %v2495, %v2789
      %v2867 = vsub.f32 %v2496, %v2789
      %v2868 = vsub.f32 %v2497, %v2792
      %v2869 = vsub.f32 %v2498, %v2792
      %v2870 = vsub.f32 %v2499, %v2795
      %v2871 = vsub.f32 %v2500, %v2795
      %v2872 = vsub.f32 %v2501, %v2798
      %v2873 = vsub.f32 %v2502, %v2798
      %v2874 = vsub.f32 %v2503, %v2801
      %v2875 = vsub.f32 %v2504, %v2801
      %v2876 = vsub.f32 %v2505, %v2804
      %v2877 = vsub.f32 %v2506, %v2804
      %v2878 = vsub.f32 %v2507, %v2807
      %v2879 = vsub.f32 %v2508, %v2807
      %v2880 = vld [vmem:[%s4] sm:$0xff]
      %v2881 = vld [vmem:[%s4 + $0x8] sm:$0xff]
      %v2882 = vld [vmem:[%s4 + $0x10] sm:$0xff]
      %v2883 = vld [vmem:[%s4 + $0x18] sm:$0xff]
      %v2884 = vld [vmem:[%s4 + $0x20] sm:$0xff]
      %v2885 = vld [vmem:[%s4 + $0x28] sm:$0xff]
      %v2886 = vld [vmem:[%s4 + $0x30] sm:$0xff]
      %v2887 = vld [vmem:[%s4 + $0x38] sm:$0xff]
      %v2888 = vmul.f32 %v2856, %v2880
      %v2889 = vmul.f32 %v2857, %v2881
      %v2890 = vmul.f32 %v2858, %v2882
      %v2891 = vmul.f32 %v2859, %v2883
      %v2892 = vmul.f32 %v2860, %v2884
      %v2893 = vmul.f32 %v2861, %v2885
      %v2894 = vmul.f32 %v2862, %v2886
      %v2895 = vmul.f32 %v2863, %v2887
      %2897 = vset.pattern.permute.xlu0 0
      %2898 = vperm.xlu0 %2897, %v2888
      %v2899 = vpop.permute.xlu0 %2898
      %2902 = vset.pattern.permute.xlu0 0
      %2903 = vperm.xlu0 %2902, %v2889
      %v2904 = vpop.permute.xlu0 %2903
      %2907 = vset.pattern.permute.xlu0 0
      %2908 = vperm.xlu0 %2907, %v2890
      %v2909 = vpop.permute.xlu0 %2908
      %2912 = vset.pattern.permute.xlu0 0
      %2913 = vperm.xlu0 %2912, %v2891
      %v2914 = vpop.permute.xlu0 %2913
      %2917 = vset.pattern.permute.xlu0 0
      %2918 = vperm.xlu0 %2917, %v2892
      %v2919 = vpop.permute.xlu0 %2918
      %2922 = vset.pattern.permute.xlu0 0
      %2923 = vperm.xlu0 %2922, %v2893
      %v2924 = vpop.permute.xlu0 %2923
      %2927 = vset.pattern.permute.xlu0 0
      %2928 = vperm.xlu0 %2927, %v2894
      %v2929 = vpop.permute.xlu0 %2928
      %2932 = vset.pattern.permute.xlu0 0
      %2933 = vperm.xlu0 %2932, %v2895
      %v2934 = vpop.permute.xlu0 %2933
      %v2936 = vmul.f32 %v2864, %v2899
      %v2937 = vmul.f32 %v2865, %v2899
      %v2938 = vmul.f32 %v2866, %v2904
      %v2939 = vmul.f32 %v2867, %v2904
      %v2940 = vmul.f32 %v2868, %v2909
      %v2941 = vmul.f32 %v2869, %v2909
      %v2942 = vmul.f32 %v2870, %v2914
      %v2943 = vmul.f32 %v2871, %v2914
      %v2944 = vmul.f32 %v2872, %v2919
      %v2945 = vmul.f32 %v2873, %v2919
      %v2946 = vmul.f32 %v2874, %v2924
      %v2947 = vmul.f32 %v2875, %v2924
      %v2948 = vmul.f32 %v2876, %v2929
      %v2949 = vmul.f32 %v2877, %v2929
      %v2950 = vmul.f32 %v2878, %v2934
      %v2951 = vmul.f32 %v2879, %v2934
      %v2952 = vld [vmem:[%s5] sm:$0xff]
      %v2953 = vld [vmem:[%s5 + $0x8] sm:$0xff]
      %v2954 = vld [vmem:[%s5 + $0x10] sm:$0xff]
      %v2955 = vld [vmem:[%s5 + $0x18] sm:$0xff]
      %v2956 = vld [vmem:[%s5 + $0x20] sm:$0xff]
      %v2957 = vld [vmem:[%s5 + $0x28] sm:$0xff]
      %v2958 = vld [vmem:[%s5 + $0x30] sm:$0xff]
      %v2959 = vld [vmem:[%s5 + $0x38] sm:$0xff]
      %2961 = vset.pattern.permute.xlu0 0
      %2962 = vperm.xlu0 %2961, %v2952
      %v2963 = vpop.permute.xlu0 %2962
      %2966 = vset.pattern.permute.xlu0 0
      %2967 = vperm.xlu0 %2966, %v2953
      %v2968 = vpop.permute.xlu0 %2967
      %2971 = vset.pattern.permute.xlu0 0
      %2972 = vperm.xlu0 %2971, %v2954
      %v2973 = vpop.permute.xlu0 %2972
      %2976 = vset.pattern.permute.xlu0 0
      %2977 = vperm.xlu0 %2976, %v2955
      %v2978 = vpop.permute.xlu0 %2977
      %2981 = vset.pattern.permute.xlu0 0
      %2982 = vperm.xlu0 %2981, %v2956
      %v2983 = vpop.permute.xlu0 %2982
      %2986 = vset.pattern.permute.xlu0 0
      %2987 = vperm.xlu0 %2986, %v2957
      %v2988 = vpop.permute.xlu0 %2987
      %2991 = vset.pattern.permute.xlu0 0
      %2992 = vperm.xlu0 %2991, %v2958
      %v2993 = vpop.permute.xlu0 %2992
      %2996 = vset.pattern.permute.xlu0 0
      %2997 = vperm.xlu0 %2996, %v2959
      %v2998 = vpop.permute.xlu0 %2997
      %v3000 = vadd.f32 %v2936, %v2963
      %v3001 = vadd.f32 %v2937, %v2963
      %v3002 = vadd.f32 %v2938, %v2968
      %v3003 = vadd.f32 %v2939, %v2968
      %v3004 = vadd.f32 %v2940, %v2973
      %v3005 = vadd.f32 %v2941, %v2973
      %v3006 = vadd.f32 %v2942, %v2978
      %v3007 = vadd.f32 %v2943, %v2978
      %v3008 = vadd.f32 %v2944, %v2983
      %v3009 = vadd.f32 %v2945, %v2983
      %v3010 = vadd.f32 %v2946, %v2988
      %v3011 = vadd.f32 %v2947, %v2988
      %v3012 = vadd.f32 %v2948, %v2993
      %v3013 = vadd.f32 %v2949, %v2993
      %v3014 = vadd.f32 %v2950, %v2998
      %v3015 = vadd.f32 %v2951, %v2998
      %v3016 = vmul.f32 %v3000, 0.5
      %v3017 = vmul.f32 %v3001, 0.5
      %v3018 = vmul.f32 %v3002, 0.5
      %v3019 = vmul.f32 %v3003, 0.5
      %v3020 = vmul.f32 %v3004, 0.5
      %v3021 = vmul.f32 %v3005, 0.5
      %v3022 = vmul.f32 %v3006, 0.5
      %v3023 = vmul.f32 %v3007, 0.5
      %v3024 = vmul.f32 %v3008, 0.5
      %v3025 = vmul.f32 %v3009, 0.5
      %v3026 = vmul.f32 %v3010, 0.5
      %v3027 = vmul.f32 %v3011, 0.5
      %v3028 = vmul.f32 %v3012, 0.5
      %v3029 = vmul.f32 %v3013, 0.5
      %v3030 = vmul.f32 %v3014, 0.5
      %v3031 = vmul.f32 %v3015, 0.5
      %v3032 = vmul.f32 %v3000, 0.70710677
      %v3033 = vmul.f32 %v3001, 0.70710677
      %v3034 = vmul.f32 %v3002, 0.70710677
      %v3035 = vmul.f32 %v3003, 0.70710677
      %v3036 = vmul.f32 %v3004, 0.70710677
      %v3037 = vmul.f32 %v3005, 0.70710677
      %v3038 = vmul.f32 %v3006, 0.70710677
      %v3039 = vmul.f32 %v3007, 0.70710677
      %v3040 = vmul.f32 %v3008, 0.70710677
      %v3041 = vmul.f32 %v3009, 0.70710677
      %v3042 = vmul.f32 %v3010, 0.70710677
      %v3043 = vmul.f32 %v3011, 0.70710677
      %v3044 = vmul.f32 %v3012, 0.70710677
      %v3045 = vmul.f32 %v3013, 0.70710677
      %v3046 = vmul.f32 %v3014, 0.70710677
      %v3047 = vmul.f32 %v3015, 0.70710677
      %vm3048 = vcmp.ge.f32.partialorder %v3032, 0.0
      %vm3049 = vcmp.ge.f32.partialorder %v3033, 0.0
      %vm3050 = vcmp.ge.f32.partialorder %v3034, 0.0
      %vm3051 = vcmp.ge.f32.partialorder %v3035, 0.0
      %vm3052 = vcmp.ge.f32.partialorder %v3036, 0.0
      %vm3053 = vcmp.ge.f32.partialorder %v3037, 0.0
      %vm3054 = vcmp.ge.f32.partialorder %v3038, 0.0
      %vm3055 = vcmp.ge.f32.partialorder %v3039, 0.0
      %vm3056 = vcmp.ge.f32.partialorder %v3040, 0.0
      %vm3057 = vcmp.ge.f32.partialorder %v3041, 0.0
      %vm3058 = vcmp.ge.f32.partialorder %v3042, 0.0
      %vm3059 = vcmp.ge.f32.partialorder %v3043, 0.0
      %vm3060 = vcmp.ge.f32.partialorder %v3044, 0.0
      %vm3061 = vcmp.ge.f32.partialorder %v3045, 0.0
      %vm3062 = vcmp.ge.f32.partialorder %v3046, 0.0
      %vm3063 = vcmp.ge.f32.partialorder %v3047, 0.0
      %v3064 = vsel %vm3048, 1.0, -1.0
      %v3065 = vsel %vm3049, 1.0, -1.0
      %v3066 = vsel %vm3050, 1.0, -1.0
      %v3067 = vsel %vm3051, 1.0, -1.0
      %v3068 = vsel %vm3052, 1.0, -1.0
      %v3069 = vsel %vm3053, 1.0, -1.0
      %v3070 = vsel %vm3054, 1.0, -1.0
      %v3071 = vsel %vm3055, 1.0, -1.0
      %v3072 = vsel %vm3056, 1.0, -1.0
      %v3073 = vsel %vm3057, 1.0, -1.0
      %v3074 = vsel %vm3058, 1.0, -1.0
      %v3075 = vsel %vm3059, 1.0, -1.0
      %v3076 = vsel %vm3060, 1.0, -1.0
      %v3077 = vsel %vm3061, 1.0, -1.0
      %v3078 = vsel %vm3062, 1.0, -1.0
      %v3079 = vsel %vm3063, 1.0, -1.0
      %v3080 = vand.u32 2147483647, %v3032
      %v3081 = vand.u32 2147483647, %v3033
      %v3082 = vand.u32 2147483647, %v3034
      %v3083 = vand.u32 2147483647, %v3035
      %v3084 = vand.u32 2147483647, %v3036
      %v3085 = vand.u32 2147483647, %v3037
      %v3086 = vand.u32 2147483647, %v3038
      %v3087 = vand.u32 2147483647, %v3039
      %v3088 = vand.u32 2147483647, %v3040
      %v3089 = vand.u32 2147483647, %v3041
      %v3090 = vand.u32 2147483647, %v3042
      %v3091 = vand.u32 2147483647, %v3043
      %v3092 = vand.u32 2147483647, %v3044
      %v3093 = vand.u32 2147483647, %v3045
      %v3094 = vand.u32 2147483647, %v3046
      %v3095 = vand.u32 2147483647, %v3047
      %v3096 = vmul.f32 %v3080, 0.3275911
      %v3097 = vmul.f32 %v3081, 0.3275911
      %v3098 = vmul.f32 %v3082, 0.3275911
      %v3099 = vmul.f32 %v3083, 0.3275911
      %v3100 = vmul.f32 %v3084, 0.3275911
      %v3101 = vmul.f32 %v3085, 0.3275911
      %v3102 = vmul.f32 %v3086, 0.3275911
      %v3103 = vmul.f32 %v3087, 0.3275911
      %v3104 = vmul.f32 %v3088, 0.3275911
      %v3105 = vmul.f32 %v3089, 0.3275911
      %v3106 = vmul.f32 %v3090, 0.3275911
      %v3107 = vmul.f32 %v3091, 0.3275911
      %v3108 = vmul.f32 %v3092, 0.3275911
      %v3109 = vmul.f32 %v3093, 0.3275911
      %v3110 = vmul.f32 %v3094, 0.3275911
      %v3111 = vmul.f32 %v3095, 0.3275911
      %v3112 = vadd.f32 %v3096, 1.0
      %v3113 = vadd.f32 %v3097, 1.0
      %v3114 = vadd.f32 %v3098, 1.0
      %v3115 = vadd.f32 %v3099, 1.0
      %v3116 = vadd.f32 %v3100, 1.0
      %v3117 = vadd.f32 %v3101, 1.0
      %v3118 = vadd.f32 %v3102, 1.0
      %v3119 = vadd.f32 %v3103, 1.0
      %v3120 = vadd.f32 %v3104, 1.0
      %v3121 = vadd.f32 %v3105, 1.0
      %v3122 = vadd.f32 %v3106, 1.0
      %v3123 = vadd.f32 %v3107, 1.0
      %v3124 = vadd.f32 %v3108, 1.0
      %v3125 = vadd.f32 %v3109, 1.0
      %v3126 = vadd.f32 %v3110, 1.0
      %v3127 = vadd.f32 %v3111, 1.0
      %v3128 = vrcp.pop %v3112
      %v3129 = vmul.f32 1.0, %v3128
      %v3130 = vrcp.pop %v3113
      %v3131 = vmul.f32 1.0, %v3130
      %v3132 = vrcp.pop %v3114
      %v3133 = vmul.f32 1.0, %v3132
      %v3134 = vrcp.pop %v3115
      %v3135 = vmul.f32 1.0, %v3134
      %v3136 = vrcp.pop %v3116
      %v3137 = vmul.f32 1.0, %v3136
      %v3138 = vrcp.pop %v3117
      %v3139 = vmul.f32 1.0, %v3138
      %v3140 = vrcp.pop %v3118
      %v3141 = vmul.f32 1.0, %v3140
      %v3142 = vrcp.pop %v3119
      %v3143 = vmul.f32 1.0, %v3142
      %v3144 = vrcp.pop %v3120
      %v3145 = vmul.f32 1.0, %v3144
      %v3146 = vrcp.pop %v3121
      %v3147 = vmul.f32 1.0, %v3146
      %v3148 = vrcp.pop %v3122
      %v3149 = vmul.f32 1.0, %v3148
      %v3150 = vrcp.pop %v3123
      %v3151 = vmul.f32 1.0, %v3150
      %v3152 = vrcp.pop %v3124
      %v3153 = vmul.f32 1.0, %v3152
      %v3154 = vrcp.pop %v3125
      %v3155 = vmul.f32 1.0, %v3154
      %v3156 = vrcp.pop %v3126
      %v3157 = vmul.f32 1.0, %v3156
      %v3158 = vrcp.pop %v3127
      %v3159 = vmul.f32 1.0, %v3158
      %v3160 = vmul.f32 %v3129, 1.0614054
      %v3161 = vmul.f32 %v3131, 1.0614054
      %v3162 = vmul.f32 %v3133, 1.0614054
      %v3163 = vmul.f32 %v3135, 1.0614054
      %v3164 = vmul.f32 %v3137, 1.0614054
      %v3165 = vmul.f32 %v3139, 1.0614054
      %v3166 = vmul.f32 %v3141, 1.0614054
      %v3167 = vmul.f32 %v3143, 1.0614054
      %v3168 = vmul.f32 %v3145, 1.0614054
      %v3169 = vmul.f32 %v3147, 1.0614054
      %v3170 = vmul.f32 %v3149, 1.0614054
      %v3171 = vmul.f32 %v3151, 1.0614054
      %v3172 = vmul.f32 %v3153, 1.0614054
      %v3173 = vmul.f32 %v3155, 1.0614054
      %v3174 = vmul.f32 %v3157, 1.0614054
      %v3175 = vmul.f32 %v3159, 1.0614054
      %v3176 = vadd.f32 %v3160, -1.4531521
      %v3177 = vadd.f32 %v3161, -1.4531521
      %v3178 = vadd.f32 %v3162, -1.4531521
      %v3179 = vadd.f32 %v3163, -1.4531521
      %v3180 = vadd.f32 %v3164, -1.4531521
      %v3181 = vadd.f32 %v3165, -1.4531521
      %v3182 = vadd.f32 %v3166, -1.4531521
      %v3183 = vadd.f32 %v3167, -1.4531521
      %v3184 = vadd.f32 %v3168, -1.4531521
      %v3185 = vadd.f32 %v3169, -1.4531521
      %v3186 = vadd.f32 %v3170, -1.4531521
      %v3187 = vadd.f32 %v3171, -1.4531521
      %v3188 = vadd.f32 %v3172, -1.4531521
      %v3189 = vadd.f32 %v3173, -1.4531521
      %v3190 = vadd.f32 %v3174, -1.4531521
      %v3191 = vadd.f32 %v3175, -1.4531521
      %v3192 = vmul.f32 %v3176, %v3129
      %v3193 = vmul.f32 %v3177, %v3131
      %v3194 = vmul.f32 %v3178, %v3133
      %v3195 = vmul.f32 %v3179, %v3135
      %v3196 = vmul.f32 %v3180, %v3137
      %v3197 = vmul.f32 %v3181, %v3139
      %v3198 = vmul.f32 %v3182, %v3141
      %v3199 = vmul.f32 %v3183, %v3143
      %v3200 = vmul.f32 %v3184, %v3145
      %v3201 = vmul.f32 %v3185, %v3147
      %v3202 = vmul.f32 %v3186, %v3149
      %v3203 = vmul.f32 %v3187, %v3151
      %v3204 = vmul.f32 %v3188, %v3153
      %v3205 = vmul.f32 %v3189, %v3155
      %v3206 = vmul.f32 %v3190, %v3157
      %v3207 = vmul.f32 %v3191, %v3159
      %v3208 = vadd.f32 %v3192, 1.4214138
      %v3209 = vadd.f32 %v3193, 1.4214138
      %v3210 = vadd.f32 %v3194, 1.4214138
      %v3211 = vadd.f32 %v3195, 1.4214138
      %v3212 = vadd.f32 %v3196, 1.4214138
      %v3213 = vadd.f32 %v3197, 1.4214138
      %v3214 = vadd.f32 %v3198, 1.4214138
      %v3215 = vadd.f32 %v3199, 1.4214138
      %v3216 = vadd.f32 %v3200, 1.4214138
      %v3217 = vadd.f32 %v3201, 1.4214138
      %v3218 = vadd.f32 %v3202, 1.4214138
      %v3219 = vadd.f32 %v3203, 1.4214138
      %v3220 = vadd.f32 %v3204, 1.4214138
      %v3221 = vadd.f32 %v3205, 1.4214138
      %v3222 = vadd.f32 %v3206, 1.4214138
      %v3223 = vadd.f32 %v3207, 1.4214138
      %v3224 = vmul.f32 %v3208, %v3129
      %v3225 = vmul.f32 %v3209, %v3131
      %v3226 = vmul.f32 %v3210, %v3133
      %v3227 = vmul.f32 %v3211, %v3135
      %v3228 = vmul.f32 %v3212, %v3137
      %v3229 = vmul.f32 %v3213, %v3139
      %v3230 = vmul.f32 %v3214, %v3141
      %v3231 = vmul.f32 %v3215, %v3143
      %v3232 = vmul.f32 %v3216, %v3145
      %v3233 = vmul.f32 %v3217, %v3147
      %v3234 = vmul.f32 %v3218, %v3149
      %v3235 = vmul.f32 %v3219, %v3151
      %v3236 = vmul.f32 %v3220, %v3153
      %v3237 = vmul.f32 %v3221, %v3155
      %v3238 = vmul.f32 %v3222, %v3157
      %v3239 = vmul.f32 %v3223, %v3159
      %v3240 = vadd.f32 %v3224, -0.28449672
      %v3241 = vadd.f32 %v3225, -0.28449672
      %v3242 = vadd.f32 %v3226, -0.28449672
      %v3243 = vadd.f32 %v3227, -0.28449672
      %v3244 = vadd.f32 %v3228, -0.28449672
      %v3245 = vadd.f32 %v3229, -0.28449672
      %v3246 = vadd.f32 %v3230, -0.28449672
      %v3247 = vadd.f32 %v3231, -0.28449672
      %v3248 = vadd.f32 %v3232, -0.28449672
      %v3249 = vadd.f32 %v3233, -0.28449672
      %v3250 = vadd.f32 %v3234, -0.28449672
      %v3251 = vadd.f32 %v3235, -0.28449672
      %v3252 = vadd.f32 %v3236, -0.28449672
      %v3253 = vadd.f32 %v3237, -0.28449672
      %v3254 = vadd.f32 %v3238, -0.28449672
      %v3255 = vadd.f32 %v3239, -0.28449672
      %v3256 = vmul.f32 %v3240, %v3129
      %v3257 = vmul.f32 %v3241, %v3131
      %v3258 = vmul.f32 %v3242, %v3133
      %v3259 = vmul.f32 %v3243, %v3135
      %v3260 = vmul.f32 %v3244, %v3137
      %v3261 = vmul.f32 %v3245, %v3139
      %v3262 = vmul.f32 %v3246, %v3141
      %v3263 = vmul.f32 %v3247, %v3143
      %v3264 = vmul.f32 %v3248, %v3145
      %v3265 = vmul.f32 %v3249, %v3147
      %v3266 = vmul.f32 %v3250, %v3149
      %v3267 = vmul.f32 %v3251, %v3151
      %v3268 = vmul.f32 %v3252, %v3153
      %v3269 = vmul.f32 %v3253, %v3155
      %v3270 = vmul.f32 %v3254, %v3157
      %v3271 = vmul.f32 %v3255, %v3159
      %v3272 = vadd.f32 %v3256, 0.2548296
      %v3273 = vadd.f32 %v3257, 0.2548296
      %v3274 = vadd.f32 %v3258, 0.2548296
      %v3275 = vadd.f32 %v3259, 0.2548296
      %v3276 = vadd.f32 %v3260, 0.2548296
      %v3277 = vadd.f32 %v3261, 0.2548296
      %v3278 = vadd.f32 %v3262, 0.2548296
      %v3279 = vadd.f32 %v3263, 0.2548296
      %v3280 = vadd.f32 %v3264, 0.2548296
      %v3281 = vadd.f32 %v3265, 0.2548296
      %v3282 = vadd.f32 %v3266, 0.2548296
      %v3283 = vadd.f32 %v3267, 0.2548296
      %v3284 = vadd.f32 %v3268, 0.2548296
      %v3285 = vadd.f32 %v3269, 0.2548296
      %v3286 = vadd.f32 %v3270, 0.2548296
      %v3287 = vadd.f32 %v3271, 0.2548296
      %v3288 = vmul.f32 %v3272, %v3129
      %v3289 = vmul.f32 %v3273, %v3131
      %v3290 = vmul.f32 %v3274, %v3133
      %v3291 = vmul.f32 %v3275, %v3135
      %v3292 = vmul.f32 %v3276, %v3137
      %v3293 = vmul.f32 %v3277, %v3139
      %v3294 = vmul.f32 %v3278, %v3141
      %v3295 = vmul.f32 %v3279, %v3143
      %v3296 = vmul.f32 %v3280, %v3145
      %v3297 = vmul.f32 %v3281, %v3147
      %v3298 = vmul.f32 %v3282, %v3149
      %v3299 = vmul.f32 %v3283, %v3151
      %v3300 = vmul.f32 %v3284, %v3153
      %v3301 = vmul.f32 %v3285, %v3155
      %v3302 = vmul.f32 %v3286, %v3157
      %v3303 = vmul.f32 %v3287, %v3159
      %v3304 = vsub.f32 0.0, %v3080
      %v3305 = vsub.f32 0.0, %v3081
      %v3306 = vsub.f32 0.0, %v3082
      %v3307 = vsub.f32 0.0, %v3083
      %v3308 = vsub.f32 0.0, %v3084
      %v3309 = vsub.f32 0.0, %v3085
      %v3310 = vsub.f32 0.0, %v3086
      %v3311 = vsub.f32 0.0, %v3087
      %v3312 = vsub.f32 0.0, %v3088
      %v3313 = vsub.f32 0.0, %v3089
      %v3314 = vsub.f32 0.0, %v3090
      %v3315 = vsub.f32 0.0, %v3091
      %v3316 = vsub.f32 0.0, %v3092
      %v3317 = vsub.f32 0.0, %v3093
      %v3318 = vsub.f32 0.0, %v3094
      %v3319 = vsub.f32 0.0, %v3095
      %v3320 = vmul.f32 %v3304, %v3080
      %v3321 = vmul.f32 %v3305, %v3081
      %v3322 = vmul.f32 %v3306, %v3082
      %v3323 = vmul.f32 %v3307, %v3083
      %v3324 = vmul.f32 %v3308, %v3084
      %v3325 = vmul.f32 %v3309, %v3085
      %v3326 = vmul.f32 %v3310, %v3086
      %v3327 = vmul.f32 %v3311, %v3087
      %v3328 = vmul.f32 %v3312, %v3088
      %v3329 = vmul.f32 %v3313, %v3089
      %v3330 = vmul.f32 %v3314, %v3090
      %v3331 = vmul.f32 %v3315, %v3091
      %v3332 = vmul.f32 %v3316, %v3092
      %v3333 = vmul.f32 %v3317, %v3093
      %v3334 = vmul.f32 %v3318, %v3094
      %v3335 = vmul.f32 %v3319, %v3095
      %v3336 = vmul.f32 %v3320, 1.442695
      %v3337 = vpow.pop %v3336
      %v3338 = vmul.f32 %v3321, 1.442695
      %v3339 = vpow.pop %v3338
      %v3340 = vmul.f32 %v3322, 1.442695
      %v3341 = vpow.pop %v3340
      %v3342 = vmul.f32 %v3323, 1.442695
      %v3343 = vpow.pop %v3342
      %v3344 = vmul.f32 %v3324, 1.442695
      %v3345 = vpow.pop %v3344
      %v3346 = vmul.f32 %v3325, 1.442695
      %v3347 = vpow.pop %v3346
      %v3348 = vmul.f32 %v3326, 1.442695
      %v3349 = vpow.pop %v3348
      %v3350 = vmul.f32 %v3327, 1.442695
      %v3351 = vpow.pop %v3350
      %v3352 = vmul.f32 %v3328, 1.442695
      %v3353 = vpow.pop %v3352
      %v3354 = vmul.f32 %v3329, 1.442695
      %v3355 = vpow.pop %v3354
      %v3356 = vmul.f32 %v3330, 1.442695
      %v3357 = vpow.pop %v3356
      %v3358 = vmul.f32 %v3331, 1.442695
      %v3359 = vpow.pop %v3358
      %v3360 = vmul.f32 %v3332, 1.442695
      %v3361 = vpow.pop %v3360
      %v3362 = vmul.f32 %v3333, 1.442695
      %v3363 = vpow.pop %v3362
      %v3364 = vmul.f32 %v3334, 1.442695
      %v3365 = vpow.pop %v3364
      %v3366 = vmul.f32 %v3335, 1.442695
      %v3367 = vpow.pop %v3366
      %v3368 = vmul.f32 %v3288, %v3337
      %v3369 = vmul.f32 %v3289, %v3339
      %v3370 = vmul.f32 %v3290, %v3341
      %v3371 = vmul.f32 %v3291, %v3343
      %v3372 = vmul.f32 %v3292, %v3345
      %v3373 = vmul.f32 %v3293, %v3347
      %v3374 = vmul.f32 %v3294, %v3349
      %v3375 = vmul.f32 %v3295, %v3351
      %v3376 = vmul.f32 %v3296, %v3353
      %v3377 = vmul.f32 %v3297, %v3355
      %v3378 = vmul.f32 %v3298, %v3357
      %v3379 = vmul.f32 %v3299, %v3359
      %v3380 = vmul.f32 %v3300, %v3361
      %v3381 = vmul.f32 %v3301, %v3363
      %v3382 = vmul.f32 %v3302, %v3365
      %v3383 = vmul.f32 %v3303, %v3367
      %v3384 = vsub.f32 1.0, %v3368
      %v3385 = vsub.f32 1.0, %v3369
      %v3386 = vsub.f32 1.0, %v3370
      %v3387 = vsub.f32 1.0, %v3371
      %v3388 = vsub.f32 1.0, %v3372
      %v3389 = vsub.f32 1.0, %v3373
      %v3390 = vsub.f32 1.0, %v3374
      %v3391 = vsub.f32 1.0, %v3375
      %v3392 = vsub.f32 1.0, %v3376
      %v3393 = vsub.f32 1.0, %v3377
      %v3394 = vsub.f32 1.0, %v3378
      %v3395 = vsub.f32 1.0, %v3379
      %v3396 = vsub.f32 1.0, %v3380
      %v3397 = vsub.f32 1.0, %v3381
      %v3398 = vsub.f32 1.0, %v3382
      %v3399 = vsub.f32 1.0, %v3383
      %v3400 = vmul.f32 %v3064, %v3384
      %v3401 = vmul.f32 %v3065, %v3385
      %v3402 = vmul.f32 %v3066, %v3386
      %v3403 = vmul.f32 %v3067, %v3387
      %v3404 = vmul.f32 %v3068, %v3388
      %v3405 = vmul.f32 %v3069, %v3389
      %v3406 = vmul.f32 %v3070, %v3390
      %v3407 = vmul.f32 %v3071, %v3391
      %v3408 = vmul.f32 %v3072, %v3392
      %v3409 = vmul.f32 %v3073, %v3393
      %v3410 = vmul.f32 %v3074, %v3394
      %v3411 = vmul.f32 %v3075, %v3395
      %v3412 = vmul.f32 %v3076, %v3396
      %v3413 = vmul.f32 %v3077, %v3397
      %v3414 = vmul.f32 %v3078, %v3398
      %v3415 = vmul.f32 %v3079, %v3399
      %v3416 = vadd.f32 %v3400, 1.0
      %v3417 = vadd.f32 %v3401, 1.0
      %v3418 = vadd.f32 %v3402, 1.0
      %v3419 = vadd.f32 %v3403, 1.0
      %v3420 = vadd.f32 %v3404, 1.0
      %v3421 = vadd.f32 %v3405, 1.0
      %v3422 = vadd.f32 %v3406, 1.0
      %v3423 = vadd.f32 %v3407, 1.0
      %v3424 = vadd.f32 %v3408, 1.0
      %v3425 = vadd.f32 %v3409, 1.0
      %v3426 = vadd.f32 %v3410, 1.0
      %v3427 = vadd.f32 %v3411, 1.0
      %v3428 = vadd.f32 %v3412, 1.0
      %v3429 = vadd.f32 %v3413, 1.0
      %v3430 = vadd.f32 %v3414, 1.0
      %v3431 = vadd.f32 %v3415, 1.0
      %v3432 = vmul.f32 %v3016, %v3416
      %v3433 = vmul.f32 %v3017, %v3417
      %v3434 = vmul.f32 %v3018, %v3418
      %v3435 = vmul.f32 %v3019, %v3419
      %v3436 = vmul.f32 %v3020, %v3420
      %v3437 = vmul.f32 %v3021, %v3421
      %v3438 = vmul.f32 %v3022, %v3422
      %v3439 = vmul.f32 %v3023, %v3423
      %v3440 = vmul.f32 %v3024, %v3424
      %v3441 = vmul.f32 %v3025, %v3425
      %v3442 = vmul.f32 %v3026, %v3426
      %v3443 = vmul.f32 %v3027, %v3427
      %v3444 = vmul.f32 %v3028, %v3428
      %v3445 = vmul.f32 %v3029, %v3429
      %v3446 = vmul.f32 %v3030, %v3430
      %v3447 = vmul.f32 %v3031, %v3431
      %3464 = vrot.lane.b32.xlu0 %v3432, 32
      %v3465 = vpop.permute.xlu0 %3464
      %3466 = vrot.lane.b32.xlu0 %v3433, 32
      %v3467 = vpop.permute.xlu0 %3466
      %3468 = vrot.lane.b32.xlu0 %v3434, 32
      %v3469 = vpop.permute.xlu0 %3468
      %3470 = vrot.lane.b32.xlu0 %v3435, 32
      %v3471 = vpop.permute.xlu0 %3470
      %3472 = vrot.lane.b32.xlu0 %v3436, 32
      %v3473 = vpop.permute.xlu0 %3472
      %3474 = vrot.lane.b32.xlu0 %v3437, 32
      %v3475 = vpop.permute.xlu0 %3474
      %3476 = vrot.lane.b32.xlu0 %v3438, 32
      %v3477 = vpop.permute.xlu0 %3476
      %3478 = vrot.lane.b32.xlu0 %v3439, 32
      %v3479 = vpop.permute.xlu0 %3478
      %3480 = vrot.lane.b32.xlu0 %v3440, 32
      %v3481 = vpop.permute.xlu0 %3480
      %3482 = vrot.lane.b32.xlu0 %v3441, 32
      %v3483 = vpop.permute.xlu0 %3482
      %3484 = vrot.lane.b32.xlu0 %v3442, 32
      %v3485 = vpop.permute.xlu0 %3484
      %3486 = vrot.lane.b32.xlu0 %v3443, 32
      %v3487 = vpop.permute.xlu0 %3486
      %3488 = vrot.lane.b32.xlu0 %v3444, 32
      %v3489 = vpop.permute.xlu0 %3488
      %3490 = vrot.lane.b32.xlu0 %v3445, 32
      %v3491 = vpop.permute.xlu0 %3490
      %3492 = vrot.lane.b32.xlu0 %v3446, 32
      %v3493 = vpop.permute.xlu0 %3492
      %3494 = vrot.lane.b32.xlu0 %v3447, 32
      %v3495 = vpop.permute.xlu0 %3494
      %v3496 = vsel %vm419, %v3465, %v3467
      %v3497 = vsel %vm419, %v3469, %v3471
      %v3498 = vsel %vm419, %v3473, %v3475
      %v3499 = vsel %vm419, %v3477, %v3479
      %v3500 = vsel %vm419, %v3481, %v3483
      %v3501 = vsel %vm419, %v3485, %v3487
      %v3502 = vsel %vm419, %v3489, %v3491
      %v3503 = vsel %vm419, %v3493, %v3495
      %3528 = vst.msk [vmem:[#allocation3] sm:$0xff] %vm436, %v3465
      %3529 = vst [vmem:[#allocation3 + $0x8] sm:$0xff] %v3496
      %3530 = vst.msk [vmem:[#allocation3 + $0x10] sm:$0xff] %vm419, %v3467
      %3531 = vst.msk [vmem:[#allocation3 + $0x18] sm:$0xff] %vm436, %v3469
      %3532 = vst [vmem:[#allocation3 + $0x20] sm:$0xff] %v3497
      %3533 = vst.msk [vmem:[#allocation3 + $0x28] sm:$0xff] %vm419, %v3471
      %3534 = vst.msk [vmem:[#allocation3 + $0x30] sm:$0xff] %vm436, %v3473
      %3535 = vst [vmem:[#allocation3 + $0x38] sm:$0xff] %v3498
      %3536 = vst.msk [vmem:[#allocation3 + $0x40] sm:$0xff] %vm419, %v3475
      %3537 = vst.msk [vmem:[#allocation3 + $0x48] sm:$0xff] %vm436, %v3477
      %3538 = vst [vmem:[#allocation3 + $0x50] sm:$0xff] %v3499
      %3539 = vst.msk [vmem:[#allocation3 + $0x58] sm:$0xff] %vm419, %v3479
      %3540 = vst.msk [vmem:[#allocation3 + $0x60] sm:$0xff] %vm436, %v3481
      %3541 = vst [vmem:[#allocation3 + $0x68] sm:$0xff] %v3500
      %3542 = vst.msk [vmem:[#allocation3 + $0x70] sm:$0xff] %vm419, %v3483
      %3543 = vst.msk [vmem:[#allocation3 + $0x78] sm:$0xff] %vm436, %v3485
      %3544 = vst [vmem:[#allocation3 + $0x80] sm:$0xff] %v3501
      %3545 = vst.msk [vmem:[#allocation3 + $0x88] sm:$0xff] %vm419, %v3487
      %3546 = vst.msk [vmem:[#allocation3 + $0x90] sm:$0xff] %vm436, %v3489
      %3547 = vst [vmem:[#allocation3 + $0x98] sm:$0xff] %v3502
      %3548 = vst.msk [vmem:[#allocation3 + $0xa0] sm:$0xff] %vm419, %v3491
      %3549 = vst.msk [vmem:[#allocation3 + $0xa8] sm:$0xff] %vm436, %v3493
      %3550 = vst [vmem:[#allocation3 + $0xb0] sm:$0xff] %v3503
      %3551 = vst.msk [vmem:[#allocation3 + $0xb8] sm:$0xff] %vm419, %v3495
      %v3552 = vld [vmem:[#allocation3 + $0x10] sm:$0xff]
      %v3553 = vld [vmem:[#allocation3 + $0x28] sm:$0xff]
      %v3554 = vld [vmem:[#allocation3 + $0x40] sm:$0xff]
      %v3555 = vld [vmem:[#allocation3 + $0x58] sm:$0xff]
      %v3556 = vld [vmem:[#allocation3 + $0x70] sm:$0xff]
      %v3557 = vld [vmem:[#allocation3 + $0x88] sm:$0xff]
      %v3558 = vld [vmem:[#allocation3 + $0xa0] sm:$0xff]
      %v3559 = vld [vmem:[#allocation3 + $0xb8] sm:$0xff]
      %3560 = vst.msk [vmem:[#allocation3] sm:$0xff] %vm419, %v3552
      %3561 = vst.msk [vmem:[#allocation3 + $0x18] sm:$0xff] %vm419, %v3553
      %3562 = vst.msk [vmem:[#allocation3 + $0x30] sm:$0xff] %vm419, %v3554
      %3563 = vst.msk [vmem:[#allocation3 + $0x48] sm:$0xff] %vm419, %v3555
      %3564 = vst.msk [vmem:[#allocation3 + $0x60] sm:$0xff] %vm419, %v3556
      %3565 = vst.msk [vmem:[#allocation3 + $0x78] sm:$0xff] %vm419, %v3557
      %3566 = vst.msk [vmem:[#allocation3 + $0x90] sm:$0xff] %vm419, %v3558
      %3567 = vst.msk [vmem:[#allocation3 + $0xa8] sm:$0xff] %vm419, %v3559
      %v3568 = vld [vmem:[#allocation3] sm:$0xff]
      %v3569 = vld [vmem:[#allocation3 + $0x18] sm:$0xff]
      %v3570 = vld [vmem:[#allocation3 + $0x30] sm:$0xff]
      %v3571 = vld [vmem:[#allocation3 + $0x48] sm:$0xff]
      %v3572 = vld [vmem:[#allocation3 + $0x60] sm:$0xff]
      %v3573 = vld [vmem:[#allocation3 + $0x78] sm:$0xff]
      %v3574 = vld [vmem:[#allocation3 + $0x90] sm:$0xff]
      %v3575 = vld [vmem:[#allocation3 + $0xa8] sm:$0xff]
      %3576 = vst.msk [vmem:[#allocation3 + $0x10] sm:$0xff] %vm461, %v3568
      %3577 = vst.msk [vmem:[#allocation3 + $0x28] sm:$0xff] %vm461, %v3569
      %3578 = vst.msk [vmem:[#allocation3 + $0x40] sm:$0xff] %vm461, %v3570
      %3579 = vst.msk [vmem:[#allocation3 + $0x58] sm:$0xff] %vm461, %v3571
      %3580 = vst.msk [vmem:[#allocation3 + $0x70] sm:$0xff] %vm461, %v3572
      %3581 = vst.msk [vmem:[#allocation3 + $0x88] sm:$0xff] %vm461, %v3573
      %3582 = vst.msk [vmem:[#allocation3 + $0xa0] sm:$0xff] %vm461, %v3574
      %3583 = vst.msk [vmem:[#allocation3 + $0xb8] sm:$0xff] %vm461, %v3575
      %v3584 = vld [vmem:[#allocation3] sm:$0xff]
      %v3585 = vld [vmem:[#allocation3 + $0x8] sm:$0xff]
      %v3586 = vld [vmem:[#allocation3 + $0x10] sm:$0xff]
      %v3587 = vld [vmem:[#allocation3 + $0x18] sm:$0xff]
      %v3588 = vld [vmem:[#allocation3 + $0x20] sm:$0xff]
      %v3589 = vld [vmem:[#allocation3 + $0x28] sm:$0xff]
      %v3590 = vld [vmem:[#allocation3 + $0x30] sm:$0xff]
      %v3591 = vld [vmem:[#allocation3 + $0x38] sm:$0xff]
      %v3592 = vld [vmem:[#allocation3 + $0x40] sm:$0xff]
      %v3593 = vld [vmem:[#allocation3 + $0x48] sm:$0xff]
      %v3594 = vld [vmem:[#allocation3 + $0x50] sm:$0xff]
      %v3595 = vld [vmem:[#allocation3 + $0x58] sm:$0xff]
      %v3596 = vld [vmem:[#allocation3 + $0x60] sm:$0xff]
      %v3597 = vld [vmem:[#allocation3 + $0x68] sm:$0xff]
      %v3598 = vld [vmem:[#allocation3 + $0x70] sm:$0xff]
      %v3599 = vld [vmem:[#allocation3 + $0x78] sm:$0xff]
      %v3600 = vld [vmem:[#allocation3 + $0x80] sm:$0xff]
      %v3601 = vld [vmem:[#allocation3 + $0x88] sm:$0xff]
      %v3602 = vld [vmem:[#allocation3 + $0x90] sm:$0xff]
      %v3603 = vld [vmem:[#allocation3 + $0x98] sm:$0xff]
      %v3604 = vld [vmem:[#allocation3 + $0xa0] sm:$0xff]
      %v3605 = vld [vmem:[#allocation3 + $0xa8] sm:$0xff]
      %v3606 = vld [vmem:[#allocation3 + $0xb0] sm:$0xff]
      %v3607 = vld [vmem:[#allocation3 + $0xb8] sm:$0xff]
      %3632 = vrot.lane.b32.xlu0 %v3584, 97
      %v3633 = vpop.permute.xlu0 %3632
      %3634 = vrot.lane.b32.xlu0 %v3585, 97
      %v3635 = vpop.permute.xlu0 %3634
      %3636 = vrot.lane.b32.xlu0 %v3586, 97
      %v3637 = vpop.permute.xlu0 %3636
      %3638 = vrot.lane.b32.xlu0 %v3587, 97
      %v3639 = vpop.permute.xlu0 %3638
      %3640 = vrot.lane.b32.xlu0 %v3588, 97
      %v3641 = vpop.permute.xlu0 %3640
      %3642 = vrot.lane.b32.xlu0 %v3589, 97
      %v3643 = vpop.permute.xlu0 %3642
      %3644 = vrot.lane.b32.xlu0 %v3590, 97
      %v3645 = vpop.permute.xlu0 %3644
      %3646 = vrot.lane.b32.xlu0 %v3591, 97
      %v3647 = vpop.permute.xlu0 %3646
      %3648 = vrot.lane.b32.xlu0 %v3592, 97
      %v3649 = vpop.permute.xlu0 %3648
      %3650 = vrot.lane.b32.xlu0 %v3593, 97
      %v3651 = vpop.permute.xlu0 %3650
      %3652 = vrot.lane.b32.xlu0 %v3594, 97
      %v3653 = vpop.permute.xlu0 %3652
      %3654 = vrot.lane.b32.xlu0 %v3595, 97
      %v3655 = vpop.permute.xlu0 %3654
      %3656 = vrot.lane.b32.xlu0 %v3596, 97
      %v3657 = vpop.permute.xlu0 %3656
      %3658 = vrot.lane.b32.xlu0 %v3597, 97
      %v3659 = vpop.permute.xlu0 %3658
      %3660 = vrot.lane.b32.xlu0 %v3598, 97
      %v3661 = vpop.permute.xlu0 %3660
      %3662 = vrot.lane.b32.xlu0 %v3599, 97
      %v3663 = vpop.permute.xlu0 %3662
      %3664 = vrot.lane.b32.xlu0 %v3600, 97
      %v3665 = vpop.permute.xlu0 %3664
      %3666 = vrot.lane.b32.xlu0 %v3601, 97
      %v3667 = vpop.permute.xlu0 %3666
      %3668 = vrot.lane.b32.xlu0 %v3602, 97
      %v3669 = vpop.permute.xlu0 %3668
      %3670 = vrot.lane.b32.xlu0 %v3603, 97
      %v3671 = vpop.permute.xlu0 %3670
      %3672 = vrot.lane.b32.xlu0 %v3604, 97
      %v3673 = vpop.permute.xlu0 %3672
      %3674 = vrot.lane.b32.xlu0 %v3605, 97
      %v3675 = vpop.permute.xlu0 %3674
      %3676 = vrot.lane.b32.xlu0 %v3606, 97
      %v3677 = vpop.permute.xlu0 %3676
      %3678 = vrot.lane.b32.xlu0 %v3607, 97
      %v3679 = vpop.permute.xlu0 %3678
      %v3680 = vsel %vm545, %v3633, %v3635
      %v3681 = vsel %vm545, %v3635, %v3637
      %v3682 = vsel %vm545, %v3639, %v3641
      %v3683 = vsel %vm545, %v3641, %v3643
      %v3684 = vsel %vm545, %v3645, %v3647
      %v3685 = vsel %vm545, %v3647, %v3649
      %v3686 = vsel %vm545, %v3651, %v3653
      %v3687 = vsel %vm545, %v3653, %v3655
      %v3688 = vsel %vm545, %v3657, %v3659
      %v3689 = vsel %vm545, %v3659, %v3661
      %v3690 = vsel %vm545, %v3663, %v3665
      %v3691 = vsel %vm545, %v3665, %v3667
      %v3692 = vsel %vm545, %v3669, %v3671
      %v3693 = vsel %vm545, %v3671, %v3673
      %v3694 = vsel %vm545, %v3675, %v3677
      %v3695 = vsel %vm545, %v3677, %v3679
      %3712 = vrot.lane.b32.xlu0 %v3584, 113
      %v3713 = vpop.permute.xlu0 %3712
      %3714 = vrot.lane.b32.xlu0 %v3585, 113
      %v3715 = vpop.permute.xlu0 %3714
      %3716 = vrot.lane.b32.xlu0 %v3586, 113
      %v3717 = vpop.permute.xlu0 %3716
      %3718 = vrot.lane.b32.xlu0 %v3587, 113
      %v3719 = vpop.permute.xlu0 %3718
      %3720 = vrot.lane.b32.xlu0 %v3588, 113
      %v3721 = vpop.permute.xlu0 %3720
      %3722 = vrot.lane.b32.xlu0 %v3589, 113
      %v3723 = vpop.permute.xlu0 %3722
      %3724 = vrot.lane.b32.xlu0 %v3590, 113
      %v3725 = vpop.permute.xlu0 %3724
      %3726 = vrot.lane.b32.xlu0 %v3591, 113
      %v3727 = vpop.permute.xlu0 %3726
      %3728 = vrot.lane.b32.xlu0 %v3592, 113
      %v3729 = vpop.permute.xlu0 %3728
      %3730 = vrot.lane.b32.xlu0 %v3593, 113
      %v3731 = vpop.permute.xlu0 %3730
      %3732 = vrot.lane.b32.xlu0 %v3594, 113
      %v3733 = vpop.permute.xlu0 %3732
      %3734 = vrot.lane.b32.xlu0 %v3595, 113
      %v3735 = vpop.permute.xlu0 %3734
      %3736 = vrot.lane.b32.xlu0 %v3596, 113
      %v3737 = vpop.permute.xlu0 %3736
      %3738 = vrot.lane.b32.xlu0 %v3597, 113
      %v3739 = vpop.permute.xlu0 %3738
      %3740 = vrot.lane.b32.xlu0 %v3598, 113
      %v3741 = vpop.permute.xlu0 %3740
      %3742 = vrot.lane.b32.xlu0 %v3599, 113
      %v3743 = vpop.permute.xlu0 %3742
      %3744 = vrot.lane.b32.xlu0 %v3600, 113
      %v3745 = vpop.permute.xlu0 %3744
      %3746 = vrot.lane.b32.xlu0 %v3601, 113
      %v3747 = vpop.permute.xlu0 %3746
      %3748 = vrot.lane.b32.xlu0 %v3602, 113
      %v3749 = vpop.permute.xlu0 %3748
      %3750 = vrot.lane.b32.xlu0 %v3603, 113
      %v3751 = vpop.permute.xlu0 %3750
      %3752 = vrot.lane.b32.xlu0 %v3604, 113
      %v3753 = vpop.permute.xlu0 %3752
      %3754 = vrot.lane.b32.xlu0 %v3605, 113
      %v3755 = vpop.permute.xlu0 %3754
      %3756 = vrot.lane.b32.xlu0 %v3606, 113
      %v3757 = vpop.permute.xlu0 %3756
      %3758 = vrot.lane.b32.xlu0 %v3607, 113
      %v3759 = vpop.permute.xlu0 %3758
      %v3760 = vsel %vm586, %v3713, %v3715
      %v3761 = vsel %vm586, %v3715, %v3717
      %v3762 = vsel %vm586, %v3719, %v3721
      %v3763 = vsel %vm586, %v3721, %v3723
      %v3764 = vsel %vm586, %v3725, %v3727
      %v3765 = vsel %vm586, %v3727, %v3729
      %v3766 = vsel %vm586, %v3731, %v3733
      %v3767 = vsel %vm586, %v3733, %v3735
      %v3768 = vsel %vm586, %v3737, %v3739
      %v3769 = vsel %vm586, %v3739, %v3741
      %v3770 = vsel %vm586, %v3743, %v3745
      %v3771 = vsel %vm586, %v3745, %v3747
      %v3772 = vsel %vm586, %v3749, %v3751
      %v3773 = vsel %vm586, %v3751, %v3753
      %v3774 = vsel %vm586, %v3755, %v3757
      %v3775 = vsel %vm586, %v3757, %v3759
      %v3792 = vsel %vm493, %v3680, %v3760
      %v3793 = vsel %vm494, %v3681, %v3761
      %v3794 = vsel %vm493, %v3682, %v3762
      %v3795 = vsel %vm494, %v3683, %v3763
      %v3796 = vsel %vm493, %v3684, %v3764
      %v3797 = vsel %vm494, %v3685, %v3765
      %v3798 = vsel %vm493, %v3686, %v3766
      %v3799 = vsel %vm494, %v3687, %v3767
      %v3800 = vsel %vm493, %v3688, %v3768
      %v3801 = vsel %vm494, %v3689, %v3769
      %v3802 = vsel %vm493, %v3690, %v3770
      %v3803 = vsel %vm494, %v3691, %v3771
      %v3804 = vsel %vm493, %v3692, %v3772
      %v3805 = vsel %vm494, %v3693, %v3773
      %v3806 = vsel %vm493, %v3694, %v3774
      %v3807 = vsel %vm494, %v3695, %v3775
      %v3808 = vld [vmem:[%s6] sm:$0xff]
      %v3809 = vld [vmem:[%s6 + $0x8] sm:$0xff]
      %v3810 = vld [vmem:[%s6 + $0x10] sm:$0xff]
      %v3811 = vld [vmem:[%s6 + $0x18] sm:$0xff]
      %v3812 = vld [vmem:[%s6 + $0x20] sm:$0xff]
      %v3813 = vld [vmem:[%s6 + $0x28] sm:$0xff]
      %v3814 = vld [vmem:[%s6 + $0x30] sm:$0xff]
      %v3815 = vld [vmem:[%s6 + $0x38] sm:$0xff]
      %s3816 = scalar_lea.vmem %s6, 64
      %v3817 = vld [vmem:[%s3816] sm:$0xff]
      %v3818 = vld [vmem:[%s3816 + $0x8] sm:$0xff]
      %v3819 = vld [vmem:[%s3816 + $0x10] sm:$0xff]
      %v3820 = vld [vmem:[%s3816 + $0x18] sm:$0xff]
      %v3821 = vld [vmem:[%s3816 + $0x20] sm:$0xff]
      %v3822 = vld [vmem:[%s3816 + $0x28] sm:$0xff]
      %v3823 = vld [vmem:[%s3816 + $0x30] sm:$0xff]
      %v3824 = vld [vmem:[%s3816 + $0x38] sm:$0xff]
      %3825 = vrot.lane.b32.xlu0 %v3584, 112
      %v3826 = vpop.permute.xlu0 %3825
      %3827 = vrot.lane.b32.xlu0 %v3585, 112
      %v3828 = vpop.permute.xlu0 %3827
      %3829 = vrot.lane.b32.xlu0 %v3586, 112
      %v3830 = vpop.permute.xlu0 %3829
      %3831 = vrot.lane.b32.xlu0 %v3587, 112
      %v3832 = vpop.permute.xlu0 %3831
      %3833 = vrot.lane.b32.xlu0 %v3588, 112
      %v3834 = vpop.permute.xlu0 %3833
      %3835 = vrot.lane.b32.xlu0 %v3589, 112
      %v3836 = vpop.permute.xlu0 %3835
      %3837 = vrot.lane.b32.xlu0 %v3590, 112
      %v3838 = vpop.permute.xlu0 %3837
      %3839 = vrot.lane.b32.xlu0 %v3591, 112
      %v3840 = vpop.permute.xlu0 %3839
      %3841 = vrot.lane.b32.xlu0 %v3592, 112
      %v3842 = vpop.permute.xlu0 %3841
      %3843 = vrot.lane.b32.xlu0 %v3593, 112
      %v3844 = vpop.permute.xlu0 %3843
      %3845 = vrot.lane.b32.xlu0 %v3594, 112
      %v3846 = vpop.permute.xlu0 %3845
      %3847 = vrot.lane.b32.xlu0 %v3595, 112
      %v3848 = vpop.permute.xlu0 %3847
      %3849 = vrot.lane.b32.xlu0 %v3596, 112
      %v3850 = vpop.permute.xlu0 %3849
      %3851 = vrot.lane.b32.xlu0 %v3597, 112
      %v3852 = vpop.permute.xlu0 %3851
      %3853 = vrot.lane.b32.xlu0 %v3598, 112
      %v3854 = vpop.permute.xlu0 %3853
      %3855 = vrot.lane.b32.xlu0 %v3599, 112
      %v3856 = vpop.permute.xlu0 %3855
      %3857 = vrot.lane.b32.xlu0 %v3600, 112
      %v3858 = vpop.permute.xlu0 %3857
      %3859 = vrot.lane.b32.xlu0 %v3601, 112
      %v3860 = vpop.permute.xlu0 %3859
      %3861 = vrot.lane.b32.xlu0 %v3602, 112
      %v3862 = vpop.permute.xlu0 %3861
      %3863 = vrot.lane.b32.xlu0 %v3603, 112
      %v3864 = vpop.permute.xlu0 %3863
      %3865 = vrot.lane.b32.xlu0 %v3604, 112
      %v3866 = vpop.permute.xlu0 %3865
      %3867 = vrot.lane.b32.xlu0 %v3605, 112
      %v3868 = vpop.permute.xlu0 %3867
      %3869 = vrot.lane.b32.xlu0 %v3606, 112
      %v3870 = vpop.permute.xlu0 %3869
      %3871 = vrot.lane.b32.xlu0 %v3607, 112
      %v3872 = vpop.permute.xlu0 %3871
      %v3873 = vsel %vm652, %v3826, %v3828
      %v3874 = vsel %vm652, %v3828, %v3830
      %v3875 = vsel %vm652, %v3832, %v3834
      %v3876 = vsel %vm652, %v3834, %v3836
      %v3877 = vsel %vm652, %v3838, %v3840
      %v3878 = vsel %vm652, %v3840, %v3842
      %v3879 = vsel %vm652, %v3844, %v3846
      %v3880 = vsel %vm652, %v3846, %v3848
      %v3881 = vsel %vm652, %v3850, %v3852
      %v3882 = vsel %vm652, %v3852, %v3854
      %v3883 = vsel %vm652, %v3856, %v3858
      %v3884 = vsel %vm652, %v3858, %v3860
      %v3885 = vsel %vm652, %v3862, %v3864
      %v3886 = vsel %vm652, %v3864, %v3866
      %v3887 = vsel %vm652, %v3868, %v3870
      %v3888 = vsel %vm652, %v3870, %v3872
      %v3906 = vsel %vm2517, %v3817, 0
      %v3909 = vsel %vm2517, %v3818, 0
      %v3912 = vsel %vm2517, %v3819, 0
      %v3915 = vsel %vm2517, %v3820, 0
      %v3918 = vsel %vm2517, %v3821, 0
      %v3921 = vsel %vm2517, %v3822, 0
      %v3924 = vsel %vm2517, %v3823, 0
      %v3927 = vsel %vm2517, %v3824, 0
      %3929 = vmatprep.subr.mxu0 0.0
      %3930 = vmatpush1.msra.mxu0 0.0
      %3931 = vmatprep.subr.mxu0 0.0
      %3932 = vmatpush1.msra.mxu0 0.0
      %3933 = vmatprep.subr.mxu0 0.0
      %3934 = vmatpush1.msra.mxu0 0.0
      %3935 = vmatprep.subr.mxu0 0.0
      %3936 = vmatpush1.msra.mxu0 0.0
      %3937 = vmatprep.subr.mxu0 0.0
      %3938 = vmatpush1.msra.mxu0 0.0
      %3939 = vmatprep.subr.mxu0 0.0
      %3940 = vmatpush1.msra.mxu0 0.0
      %3941 = vmatprep.subr.mxu0 0.0
      %3942 = vmatpush1.msra.mxu0 0.0
      %3943 = vmatprep.subr.mxu0 0.0
      %3944 = vmatpush1.msra.mxu0 0.0
      %3945 = vmatprep.subr.mxu0 %v3888
      %3946 = vmatpush1.msra.mxu0 %v3887
      %3947 = vmatprep.subr.mxu0 %v3886
      %3948 = vmatpush1.msra.mxu0 %v3885
      %3949 = vmatprep.subr.mxu0 %v3884
      %3950 = vmatpush1.msra.mxu0 %v3883
      %3951 = vmatprep.subr.mxu0 %v3882
      %3952 = vmatpush1.msra.mxu0 %v3881
      %3953 = vmatprep.subr.mxu0 %v3880
      %3954 = vmatpush1.msra.mxu0 %v3879
      %3955 = vmatprep.subr.mxu0 %v3878
      %3956 = vmatpush1.msra.mxu0 %v3877
      %3957 = vmatprep.subr.mxu0 %v3876
      %3958 = vmatpush1.msra.mxu0 %v3875
      %3959 = vmatprep.subr.mxu0 %v3874
      %3960 = vmatpush1.msra.mxu0 %v3873
      %3961 = vmatprep.subr.mxu0 0.0
      %3962 = vmatpush2.msra.mxu0 0.0
      %3963 = vmatprep.subr.mxu0 0.0
      %3964 = vmatpush2.msra.mxu0 0.0
      %3965 = vmatprep.subr.mxu0 0.0
      %3966 = vmatpush2.msra.mxu0 0.0
      %3967 = vmatprep.subr.mxu0 0.0
      %3968 = vmatpush2.msra.mxu0 0.0
      %3969 = vmatprep.subr.mxu0 0.0
      %3970 = vmatpush2.msra.mxu0 0.0
      %3971 = vmatprep.subr.mxu0 0.0
      %3972 = vmatpush2.msra.mxu0 0.0
      %3973 = vmatprep.subr.mxu0 0.0
      %3974 = vmatpush2.msra.mxu0 0.0
      %3975 = vmatprep.subr.mxu0 0.0
      %3976 = vmatpush2.msra.mxu0 0.0
      %3977 = vmatprep.subr.mxu0 0.0
      %3978 = vmatpush2.msra.mxu0 0.0
      %3979 = vmatprep.subr.mxu0 0.0
      %3980 = vmatpush2.msra.mxu0 0.0
      %3981 = vmatprep.subr.mxu0 0.0
      %3982 = vmatpush2.msra.mxu0 0.0
      %3983 = vmatprep.subr.mxu0 0.0
      %3984 = vmatpush2.msra.mxu0 0.0
      %3985 = vmatprep.subr.mxu0 0.0
      %3986 = vmatpush2.msra.mxu0 0.0
      %3987 = vmatprep.subr.mxu0 0.0
      %3988 = vmatpush2.msra.mxu0 0.0
      %3989 = vmatprep.subr.mxu0 0.0
      %3990 = vmatpush2.msra.mxu0 0.0
      %3991 = vmatprep.subr.mxu0 0.0
      %3992 = vmatpush2.msra.mxu0 0.0
      %3993 = vmatprep.mubr.f32.mxu0 0.0
      %3994 = vmatmul.mubr.f32.gmra.mxu0 %v3906
      %v3995 = vpop.f32.mrf.mxu0
      %v3996 = vadd.f32 0.0, %v3995
      %v3997 = vpop.f32.mrf.mxu0
      %v3998 = vadd.f32 0.0, %v3997
      %3999 = vmatprep.mubr.f32.mxu0 0.0
      %4000 = vmatmul.mubr.f32.gmra.mxu0 %v3909
      %v4001 = vpop.f32.mrf.mxu0
      %v4002 = vadd.f32 0.0, %v4001
      %v4003 = vpop.f32.mrf.mxu0
      %v4004 = vadd.f32 0.0, %v4003
      %4005 = vmatprep.mubr.f32.mxu0 0.0
      %4006 = vmatmul.mubr.f32.gmra.mxu0 %v3912
      %v4007 = vpop.f32.mrf.mxu0
      %v4008 = vadd.f32 0.0, %v4007
      %v4009 = vpop.f32.mrf.mxu0
      %v4010 = vadd.f32 0.0, %v4009
      %4011 = vmatprep.mubr.f32.mxu0 0.0
      %4012 = vmatmul.mubr.f32.gmra.mxu0 %v3915
      %v4013 = vpop.f32.mrf.mxu0
      %v4014 = vadd.f32 0.0, %v4013
      %v4015 = vpop.f32.mrf.mxu0
      %v4016 = vadd.f32 0.0, %v4015
      %4017 = vmatprep.mubr.f32.mxu0 0.0
      %4018 = vmatmul.mubr.f32.gmra.mxu0 %v3918
      %v4019 = vpop.f32.mrf.mxu0
      %v4020 = vadd.f32 0.0, %v4019
      %v4021 = vpop.f32.mrf.mxu0
      %v4022 = vadd.f32 0.0, %v4021
      %4023 = vmatprep.mubr.f32.mxu0 0.0
      %4024 = vmatmul.mubr.f32.gmra.mxu0 %v3921
      %v4025 = vpop.f32.mrf.mxu0
      %v4026 = vadd.f32 0.0, %v4025
      %v4027 = vpop.f32.mrf.mxu0
      %v4028 = vadd.f32 0.0, %v4027
      %4029 = vmatprep.mubr.f32.mxu0 0.0
      %4030 = vmatmul.mubr.f32.gmra.mxu0 %v3924
      %v4031 = vpop.f32.mrf.mxu0
      %v4032 = vadd.f32 0.0, %v4031
      %v4033 = vpop.f32.mrf.mxu0
      %v4034 = vadd.f32 0.0, %v4033
      %4035 = vmatprep.mubr.f32.mxu0 0.0
      %4036 = vmatmul.mubr.f32.gmra.mxu0 %v3927
      %v4037 = vpop.f32.mrf.mxu0
      %v4038 = vadd.f32 0.0, %v4037
      %v4039 = vpop.f32.mrf.mxu0
      %v4040 = vadd.f32 0.0, %v4039
      %4041 = vdwg.mxu0
      %v4043 = vsel %vm2517, %v3808, 0
      %v4046 = vsel %vm2517, %v3809, 0
      %v4049 = vsel %vm2517, %v3810, 0
      %v4052 = vsel %vm2517, %v3811, 0
      %v4055 = vsel %vm2517, %v3812, 0
      %v4058 = vsel %vm2517, %v3813, 0
      %v4061 = vsel %vm2517, %v3814, 0
      %v4064 = vsel %vm2517, %v3815, 0
      %4066 = vmatprep.subr.mxu0 0.0
      %4067 = vmatpush1.msra.mxu0 0.0
      %4068 = vmatprep.subr.mxu0 0.0
      %4069 = vmatpush1.msra.mxu0 0.0
      %4070 = vmatprep.subr.mxu0 0.0
      %4071 = vmatpush1.msra.mxu0 0.0
      %4072 = vmatprep.subr.mxu0 0.0
      %4073 = vmatpush1.msra.mxu0 0.0
      %4074 = vmatprep.subr.mxu0 0.0
      %4075 = vmatpush1.msra.mxu0 0.0
      %4076 = vmatprep.subr.mxu0 0.0
      %4077 = vmatpush1.msra.mxu0 0.0
      %4078 = vmatprep.subr.mxu0 0.0
      %4079 = vmatpush1.msra.mxu0 0.0
      %4080 = vmatprep.subr.mxu0 0.0
      %4081 = vmatpush1.msra.mxu0 0.0
      %4082 = vmatprep.subr.mxu0 %v3807
      %4083 = vmatpush1.msra.mxu0 %v3806
      %4084 = vmatprep.subr.mxu0 %v3805
      %4085 = vmatpush1.msra.mxu0 %v3804
      %4086 = vmatprep.subr.mxu0 %v3803
      %4087 = vmatpush1.msra.mxu0 %v3802
      %4088 = vmatprep.subr.mxu0 %v3801
      %4089 = vmatpush1.msra.mxu0 %v3800
      %4090 = vmatprep.subr.mxu0 %v3799
      %4091 = vmatpush1.msra.mxu0 %v3798
      %4092 = vmatprep.subr.mxu0 %v3797
      %4093 = vmatpush1.msra.mxu0 %v3796
      %4094 = vmatprep.subr.mxu0 %v3795
      %4095 = vmatpush1.msra.mxu0 %v3794
      %4096 = vmatprep.subr.mxu0 %v3793
      %4097 = vmatpush1.msra.mxu0 %v3792
      %4098 = vmatprep.subr.mxu0 0.0
      %4099 = vmatpush2.msra.mxu0 0.0
      %4100 = vmatprep.subr.mxu0 0.0
      %4101 = vmatpush2.msra.mxu0 0.0
      %4102 = vmatprep.subr.mxu0 0.0
      %4103 = vmatpush2.msra.mxu0 0.0
      %4104 = vmatprep.subr.mxu0 0.0
      %4105 = vmatpush2.msra.mxu0 0.0
      %4106 = vmatprep.subr.mxu0 0.0
      %4107 = vmatpush2.msra.mxu0 0.0
      %4108 = vmatprep.subr.mxu0 0.0
      %4109 = vmatpush2.msra.mxu0 0.0
      %4110 = vmatprep.subr.mxu0 0.0
      %4111 = vmatpush2.msra.mxu0 0.0
      %4112 = vmatprep.subr.mxu0 0.0
      %4113 = vmatpush2.msra.mxu0 0.0
      %4114 = vmatprep.subr.mxu0 0.0
      %4115 = vmatpush2.msra.mxu0 0.0
      %4116 = vmatprep.subr.mxu0 0.0
      %4117 = vmatpush2.msra.mxu0 0.0
      %4118 = vmatprep.subr.mxu0 0.0
      %4119 = vmatpush2.msra.mxu0 0.0
      %4120 = vmatprep.subr.mxu0 0.0
      %4121 = vmatpush2.msra.mxu0 0.0
      %4122 = vmatprep.subr.mxu0 0.0
      %4123 = vmatpush2.msra.mxu0 0.0
      %4124 = vmatprep.subr.mxu0 0.0
      %4125 = vmatpush2.msra.mxu0 0.0
      %4126 = vmatprep.subr.mxu0 0.0
      %4127 = vmatpush2.msra.mxu0 0.0
      %4128 = vmatprep.subr.mxu0 0.0
      %4129 = vmatpush2.msra.mxu0 0.0
      %4130 = vmatprep.mubr.f32.mxu0 0.0
      %4131 = vmatmul.mubr.f32.gmra.mxu0 %v4043
      %v4132 = vpop.f32.mrf.mxu0
      %v4133 = vadd.f32 %v3996, %v4132
      %v4134 = vpop.f32.mrf.mxu0
      %v4135 = vadd.f32 %v3998, %v4134
      %4136 = vmatprep.mubr.f32.mxu0 0.0
      %4137 = vmatmul.mubr.f32.gmra.mxu0 %v4046
      %v4138 = vpop.f32.mrf.mxu0
      %v4139 = vadd.f32 %v4002, %v4138
      %v4140 = vpop.f32.mrf.mxu0
      %v4141 = vadd.f32 %v4004, %v4140
      %4142 = vmatprep.mubr.f32.mxu0 0.0
      %4143 = vmatmul.mubr.f32.gmra.mxu0 %v4049
      %v4144 = vpop.f32.mrf.mxu0
      %v4145 = vadd.f32 %v4008, %v4144
      %v4146 = vpop.f32.mrf.mxu0
      %v4147 = vadd.f32 %v4010, %v4146
      %4148 = vmatprep.mubr.f32.mxu0 0.0
      %4149 = vmatmul.mubr.f32.gmra.mxu0 %v4052
      %v4150 = vpop.f32.mrf.mxu0
      %v4151 = vadd.f32 %v4014, %v4150
      %v4152 = vpop.f32.mrf.mxu0
      %v4153 = vadd.f32 %v4016, %v4152
      %4154 = vmatprep.mubr.f32.mxu0 0.0
      %4155 = vmatmul.mubr.f32.gmra.mxu0 %v4055
      %v4156 = vpop.f32.mrf.mxu0
      %v4157 = vadd.f32 %v4020, %v4156
      %v4158 = vpop.f32.mrf.mxu0
      %v4159 = vadd.f32 %v4022, %v4158
      %4160 = vmatprep.mubr.f32.mxu0 0.0
      %4161 = vmatmul.mubr.f32.gmra.mxu0 %v4058
      %v4162 = vpop.f32.mrf.mxu0
      %v4163 = vadd.f32 %v4026, %v4162
      %v4164 = vpop.f32.mrf.mxu0
      %v4165 = vadd.f32 %v4028, %v4164
      %4166 = vmatprep.mubr.f32.mxu0 0.0
      %4167 = vmatmul.mubr.f32.gmra.mxu0 %v4061
      %v4168 = vpop.f32.mrf.mxu0
      %v4169 = vadd.f32 %v4032, %v4168
      %v4170 = vpop.f32.mrf.mxu0
      %v4171 = vadd.f32 %v4034, %v4170
      %4172 = vmatprep.mubr.f32.mxu0 0.0
      %4173 = vmatmul.mubr.f32.gmra.mxu0 %v4064
      %v4174 = vpop.f32.mrf.mxu0
      %v4175 = vadd.f32 %v4038, %v4174
      %v4176 = vpop.f32.mrf.mxu0
      %v4177 = vadd.f32 %v4040, %v4176
      %4178 = vdwg.mxu0
      %4179 = vrot.lane.b32.xlu0 %v3584, 127
      %v4180 = vpop.permute.xlu0 %4179
      %4181 = vrot.lane.b32.xlu0 %v3585, 127
      %v4182 = vpop.permute.xlu0 %4181
      %4183 = vrot.lane.b32.xlu0 %v3586, 127
      %v4184 = vpop.permute.xlu0 %4183
      %4185 = vrot.lane.b32.xlu0 %v3587, 127
      %v4186 = vpop.permute.xlu0 %4185
      %4187 = vrot.lane.b32.xlu0 %v3588, 127
      %v4188 = vpop.permute.xlu0 %4187
      %4189 = vrot.lane.b32.xlu0 %v3589, 127
      %v4190 = vpop.permute.xlu0 %4189
      %4191 = vrot.lane.b32.xlu0 %v3590, 127
      %v4192 = vpop.permute.xlu0 %4191
      %4193 = vrot.lane.b32.xlu0 %v3591, 127
      %v4194 = vpop.permute.xlu0 %4193
      %4195 = vrot.lane.b32.xlu0 %v3592, 127
      %v4196 = vpop.permute.xlu0 %4195
      %4197 = vrot.lane.b32.xlu0 %v3593, 127
      %v4198 = vpop.permute.xlu0 %4197
      %4199 = vrot.lane.b32.xlu0 %v3594, 127
      %v4200 = vpop.permute.xlu0 %4199
      %4201 = vrot.lane.b32.xlu0 %v3595, 127
      %v4202 = vpop.permute.xlu0 %4201
      %4203 = vrot.lane.b32.xlu0 %v3596, 127
      %v4204 = vpop.permute.xlu0 %4203
      %4205 = vrot.lane.b32.xlu0 %v3597, 127
      %v4206 = vpop.permute.xlu0 %4205
      %4207 = vrot.lane.b32.xlu0 %v3598, 127
      %v4208 = vpop.permute.xlu0 %4207
      %4209 = vrot.lane.b32.xlu0 %v3599, 127
      %v4210 = vpop.permute.xlu0 %4209
      %4211 = vrot.lane.b32.xlu0 %v3600, 127
      %v4212 = vpop.permute.xlu0 %4211
      %4213 = vrot.lane.b32.xlu0 %v3601, 127
      %v4214 = vpop.permute.xlu0 %4213
      %4215 = vrot.lane.b32.xlu0 %v3602, 127
      %v4216 = vpop.permute.xlu0 %4215
      %4217 = vrot.lane.b32.xlu0 %v3603, 127
      %v4218 = vpop.permute.xlu0 %4217
      %4219 = vrot.lane.b32.xlu0 %v3604, 127
      %v4220 = vpop.permute.xlu0 %4219
      %4221 = vrot.lane.b32.xlu0 %v3605, 127
      %v4222 = vpop.permute.xlu0 %4221
      %4223 = vrot.lane.b32.xlu0 %v3606, 127
      %v4224 = vpop.permute.xlu0 %4223
      %4225 = vrot.lane.b32.xlu0 %v3607, 127
      %v4226 = vpop.permute.xlu0 %4225
      %v4227 = vsel %vm967, %v4180, %v4182
      %v4228 = vsel %vm967, %v4182, %v4184
      %v4229 = vsel %vm967, %v4186, %v4188
      %v4230 = vsel %vm967, %v4188, %v4190
      %v4231 = vsel %vm967, %v4192, %v4194
      %v4232 = vsel %vm967, %v4194, %v4196
      %v4233 = vsel %vm967, %v4198, %v4200
      %v4234 = vsel %vm967, %v4200, %v4202
      %v4235 = vsel %vm967, %v4204, %v4206
      %v4236 = vsel %vm967, %v4206, %v4208
      %v4237 = vsel %vm967, %v4210, %v4212
      %v4238 = vsel %vm967, %v4212, %v4214
      %v4239 = vsel %vm967, %v4216, %v4218
      %v4240 = vsel %vm967, %v4218, %v4220
      %v4241 = vsel %vm967, %v4222, %v4224
      %v4242 = vsel %vm967, %v4224, %v4226
      %4259 = vrot.lane.b32.xlu0 %v3584, 111
      %v4260 = vpop.permute.xlu0 %4259
      %4261 = vrot.lane.b32.xlu0 %v3585, 111
      %v4262 = vpop.permute.xlu0 %4261
      %4263 = vrot.lane.b32.xlu0 %v3586, 111
      %v4264 = vpop.permute.xlu0 %4263
      %4265 = vrot.lane.b32.xlu0 %v3587, 111
      %v4266 = vpop.permute.xlu0 %4265
      %4267 = vrot.lane.b32.xlu0 %v3588, 111
      %v4268 = vpop.permute.xlu0 %4267
      %4269 = vrot.lane.b32.xlu0 %v3589, 111
      %v4270 = vpop.permute.xlu0 %4269
      %4271 = vrot.lane.b32.xlu0 %v3590, 111
      %v4272 = vpop.permute.xlu0 %4271
      %4273 = vrot.lane.b32.xlu0 %v3591, 111
      %v4274 = vpop.permute.xlu0 %4273
      %4275 = vrot.lane.b32.xlu0 %v3592, 111
      %v4276 = vpop.permute.xlu0 %4275
      %4277 = vrot.lane.b32.xlu0 %v3593, 111
      %v4278 = vpop.permute.xlu0 %4277
      %4279 = vrot.lane.b32.xlu0 %v3594, 111
      %v4280 = vpop.permute.xlu0 %4279
      %4281 = vrot.lane.b32.xlu0 %v3595, 111
      %v4282 = vpop.permute.xlu0 %4281
      %4283 = vrot.lane.b32.xlu0 %v3596, 111
      %v4284 = vpop.permute.xlu0 %4283
      %4285 = vrot.lane.b32.xlu0 %v3597, 111
      %v4286 = vpop.permute.xlu0 %4285
      %4287 = vrot.lane.b32.xlu0 %v3598, 111
      %v4288 = vpop.permute.xlu0 %4287
      %4289 = vrot.lane.b32.xlu0 %v3599, 111
      %v4290 = vpop.permute.xlu0 %4289
      %4291 = vrot.lane.b32.xlu0 %v3600, 111
      %v4292 = vpop.permute.xlu0 %4291
      %4293 = vrot.lane.b32.xlu0 %v3601, 111
      %v4294 = vpop.permute.xlu0 %4293
      %4295 = vrot.lane.b32.xlu0 %v3602, 111
      %v4296 = vpop.permute.xlu0 %4295
      %4297 = vrot.lane.b32.xlu0 %v3603, 111
      %v4298 = vpop.permute.xlu0 %4297
      %4299 = vrot.lane.b32.xlu0 %v3604, 111
      %v4300 = vpop.permute.xlu0 %4299
      %4301 = vrot.lane.b32.xlu0 %v3605, 111
      %v4302 = vpop.permute.xlu0 %4301
      %4303 = vrot.lane.b32.xlu0 %v3606, 111
      %v4304 = vpop.permute.xlu0 %4303
      %4305 = vrot.lane.b32.xlu0 %v3607, 111
      %v4306 = vpop.permute.xlu0 %4305
      %v4307 = vsel %vm1008, %v4260, %v4262
      %v4308 = vsel %vm1008, %v4262, %v4264
      %v4309 = vsel %vm1008, %v4266, %v4268
      %v4310 = vsel %vm1008, %v4268, %v4270
      %v4311 = vsel %vm1008, %v4272, %v4274
      %v4312 = vsel %vm1008, %v4274, %v4276
      %v4313 = vsel %vm1008, %v4278, %v4280
      %v4314 = vsel %vm1008, %v4280, %v4282
      %v4315 = vsel %vm1008, %v4284, %v4286
      %v4316 = vsel %vm1008, %v4286, %v4288
      %v4317 = vsel %vm1008, %v4290, %v4292
      %v4318 = vsel %vm1008, %v4292, %v4294
      %v4319 = vsel %vm1008, %v4296, %v4298
      %v4320 = vsel %vm1008, %v4298, %v4300
      %v4321 = vsel %vm1008, %v4302, %v4304
      %v4322 = vsel %vm1008, %v4304, %v4306
      %v4339 = vsel %vm495, %v4227, %v4307
      %v4340 = vsel %vm496, %v4228, %v4308
      %v4341 = vsel %vm495, %v4229, %v4309
      %v4342 = vsel %vm496, %v4230, %v4310
      %v4343 = vsel %vm495, %v4231, %v4311
      %v4344 = vsel %vm496, %v4232, %v4312
      %v4345 = vsel %vm495, %v4233, %v4313
      %v4346 = vsel %vm496, %v4234, %v4314
      %v4347 = vsel %vm495, %v4235, %v4315
      %v4348 = vsel %vm496, %v4236, %v4316
      %v4349 = vsel %vm495, %v4237, %v4317
      %v4350 = vsel %vm496, %v4238, %v4318
      %v4351 = vsel %vm495, %v4239, %v4319
      %v4352 = vsel %vm496, %v4240, %v4320
      %v4353 = vsel %vm495, %v4241, %v4321
      %v4354 = vsel %vm496, %v4242, %v4322
      %s4355 = scalar_lea.vmem %s6, 128
      %v4356 = vld [vmem:[%s4355] sm:$0xff]
      %v4357 = vld [vmem:[%s4355 + $0x8] sm:$0xff]
      %v4358 = vld [vmem:[%s4355 + $0x10] sm:$0xff]
      %v4359 = vld [vmem:[%s4355 + $0x18] sm:$0xff]
      %v4360 = vld [vmem:[%s4355 + $0x20] sm:$0xff]
      %v4361 = vld [vmem:[%s4355 + $0x28] sm:$0xff]
      %v4362 = vld [vmem:[%s4355 + $0x30] sm:$0xff]
      %v4363 = vld [vmem:[%s4355 + $0x38] sm:$0xff]
      %v4365 = vsel %vm2517, %v4356, 0
      %v4368 = vsel %vm2517, %v4357, 0
      %v4371 = vsel %vm2517, %v4358, 0
      %v4374 = vsel %vm2517, %v4359, 0
      %v4377 = vsel %vm2517, %v4360, 0
      %v4380 = vsel %vm2517, %v4361, 0
      %v4383 = vsel %vm2517, %v4362, 0
      %v4386 = vsel %vm2517, %v4363, 0
      %4388 = vmatprep.subr.mxu0 0.0
      %4389 = vmatpush1.msra.mxu0 0.0
      %4390 = vmatprep.subr.mxu0 0.0
      %4391 = vmatpush1.msra.mxu0 0.0
      %4392 = vmatprep.subr.mxu0 0.0
      %4393 = vmatpush1.msra.mxu0 0.0
      %4394 = vmatprep.subr.mxu0 0.0
      %4395 = vmatpush1.msra.mxu0 0.0
      %4396 = vmatprep.subr.mxu0 0.0
      %4397 = vmatpush1.msra.mxu0 0.0
      %4398 = vmatprep.subr.mxu0 0.0
      %4399 = vmatpush1.msra.mxu0 0.0
      %4400 = vmatprep.subr.mxu0 0.0
      %4401 = vmatpush1.msra.mxu0 0.0
      %4402 = vmatprep.subr.mxu0 0.0
      %4403 = vmatpush1.msra.mxu0 0.0
      %4404 = vmatprep.subr.mxu0 %v4354
      %4405 = vmatpush1.msra.mxu0 %v4353
      %4406 = vmatprep.subr.mxu0 %v4352
      %4407 = vmatpush1.msra.mxu0 %v4351
      %4408 = vmatprep.subr.mxu0 %v4350
      %4409 = vmatpush1.msra.mxu0 %v4349
      %4410 = vmatprep.subr.mxu0 %v4348
      %4411 = vmatpush1.msra.mxu0 %v4347
      %4412 = vmatprep.subr.mxu0 %v4346
      %4413 = vmatpush1.msra.mxu0 %v4345
      %4414 = vmatprep.subr.mxu0 %v4344
      %4415 = vmatpush1.msra.mxu0 %v4343
      %4416 = vmatprep.subr.mxu0 %v4342
      %4417 = vmatpush1.msra.mxu0 %v4341
      %4418 = vmatprep.subr.mxu0 %v4340
      %4419 = vmatpush1.msra.mxu0 %v4339
      %4420 = vmatprep.subr.mxu0 0.0
      %4421 = vmatpush2.msra.mxu0 0.0
      %4422 = vmatprep.subr.mxu0 0.0
      %4423 = vmatpush2.msra.mxu0 0.0
      %4424 = vmatprep.subr.mxu0 0.0
      %4425 = vmatpush2.msra.mxu0 0.0
      %4426 = vmatprep.subr.mxu0 0.0
      %4427 = vmatpush2.msra.mxu0 0.0
      %4428 = vmatprep.subr.mxu0 0.0
      %4429 = vmatpush2.msra.mxu0 0.0
      %4430 = vmatprep.subr.mxu0 0.0
      %4431 = vmatpush2.msra.mxu0 0.0
      %4432 = vmatprep.subr.mxu0 0.0
      %4433 = vmatpush2.msra.mxu0 0.0
      %4434 = vmatprep.subr.mxu0 0.0
      %4435 = vmatpush2.msra.mxu0 0.0
      %4436 = vmatprep.subr.mxu0 0.0
      %4437 = vmatpush2.msra.mxu0 0.0
      %4438 = vmatprep.subr.mxu0 0.0
      %4439 = vmatpush2.msra.mxu0 0.0
      %4440 = vmatprep.subr.mxu0 0.0
      %4441 = vmatpush2.msra.mxu0 0.0
      %4442 = vmatprep.subr.mxu0 0.0
      %4443 = vmatpush2.msra.mxu0 0.0
      %4444 = vmatprep.subr.mxu0 0.0
      %4445 = vmatpush2.msra.mxu0 0.0
      %4446 = vmatprep.subr.mxu0 0.0
      %4447 = vmatpush2.msra.mxu0 0.0
      %4448 = vmatprep.subr.mxu0 0.0
      %4449 = vmatpush2.msra.mxu0 0.0
      %4450 = vmatprep.subr.mxu0 0.0
      %4451 = vmatpush2.msra.mxu0 0.0
      %4452 = vmatprep.mubr.f32.mxu0 0.0
      %4453 = vmatmul.mubr.f32.gmra.mxu0 %v4365
      %v4454 = vpop.f32.mrf.mxu0
      %v4455 = vadd.f32 0.0, %v4454
      %v4456 = vpop.f32.mrf.mxu0
      %v4457 = vadd.f32 0.0, %v4456
      %4458 = vmatprep.mubr.f32.mxu0 0.0
      %4459 = vmatmul.mubr.f32.gmra.mxu0 %v4368
      %v4460 = vpop.f32.mrf.mxu0
      %v4461 = vadd.f32 0.0, %v4460
      %v4462 = vpop.f32.mrf.mxu0
      %v4463 = vadd.f32 0.0, %v4462
      %4464 = vmatprep.mubr.f32.mxu0 0.0
      %4465 = vmatmul.mubr.f32.gmra.mxu0 %v4371
      %v4466 = vpop.f32.mrf.mxu0
      %v4467 = vadd.f32 0.0, %v4466
      %v4468 = vpop.f32.mrf.mxu0
      %v4469 = vadd.f32 0.0, %v4468
      %4470 = vmatprep.mubr.f32.mxu0 0.0
      %4471 = vmatmul.mubr.f32.gmra.mxu0 %v4374
      %v4472 = vpop.f32.mrf.mxu0
      %v4473 = vadd.f32 0.0, %v4472
      %v4474 = vpop.f32.mrf.mxu0
      %v4475 = vadd.f32 0.0, %v4474
      %4476 = vmatprep.mubr.f32.mxu0 0.0
      %4477 = vmatmul.mubr.f32.gmra.mxu0 %v4377
      %v4478 = vpop.f32.mrf.mxu0
      %v4479 = vadd.f32 0.0, %v4478
      %v4480 = vpop.f32.mrf.mxu0
      %v4481 = vadd.f32 0.0, %v4480
      %4482 = vmatprep.mubr.f32.mxu0 0.0
      %4483 = vmatmul.mubr.f32.gmra.mxu0 %v4380
      %v4484 = vpop.f32.mrf.mxu0
      %v4485 = vadd.f32 0.0, %v4484
      %v4486 = vpop.f32.mrf.mxu0
      %v4487 = vadd.f32 0.0, %v4486
      %4488 = vmatprep.mubr.f32.mxu0 0.0
      %4489 = vmatmul.mubr.f32.gmra.mxu0 %v4383
      %v4490 = vpop.f32.mrf.mxu0
      %v4491 = vadd.f32 0.0, %v4490
      %v4492 = vpop.f32.mrf.mxu0
      %v4493 = vadd.f32 0.0, %v4492
      %4494 = vmatprep.mubr.f32.mxu0 0.0
      %4495 = vmatmul.mubr.f32.gmra.mxu0 %v4386
      %v4496 = vpop.f32.mrf.mxu0
      %v4497 = vadd.f32 0.0, %v4496
      %v4498 = vpop.f32.mrf.mxu0
      %v4499 = vadd.f32 0.0, %v4498
      %4500 = vdwg.mxu0
      %v4501 = vadd.f32 %v4133, %v4455
      %v4502 = vadd.f32 %v4135, %v4457
      %v4503 = vadd.f32 %v4139, %v4461
      %v4504 = vadd.f32 %v4141, %v4463
      %v4505 = vadd.f32 %v4145, %v4467
      %v4506 = vadd.f32 %v4147, %v4469
      %v4507 = vadd.f32 %v4151, %v4473
      %v4508 = vadd.f32 %v4153, %v4475
      %v4509 = vadd.f32 %v4157, %v4479
      %v4510 = vadd.f32 %v4159, %v4481
      %v4511 = vadd.f32 %v4163, %v4485
      %v4512 = vadd.f32 %v4165, %v4487
      %v4513 = vadd.f32 %v4169, %v4491
      %v4514 = vadd.f32 %v4171, %v4493
      %v4515 = vadd.f32 %v4175, %v4497
      %v4516 = vadd.f32 %v4177, %v4499
      %4517 = vrot.lane.b32.xlu0 %v3584, 81
      %v4518 = vpop.permute.xlu0 %4517
      %4519 = vrot.lane.b32.xlu0 %v3585, 81
      %v4520 = vpop.permute.xlu0 %4519
      %4521 = vrot.lane.b32.xlu0 %v3586, 81
      %v4522 = vpop.permute.xlu0 %4521
      %4523 = vrot.lane.b32.xlu0 %v3587, 81
      %v4524 = vpop.permute.xlu0 %4523
      %4525 = vrot.lane.b32.xlu0 %v3588, 81
      %v4526 = vpop.permute.xlu0 %4525
      %4527 = vrot.lane.b32.xlu0 %v3589, 81
      %v4528 = vpop.permute.xlu0 %4527
      %4529 = vrot.lane.b32.xlu0 %v3590, 81
      %v4530 = vpop.permute.xlu0 %4529
      %4531 = vrot.lane.b32.xlu0 %v3591, 81
      %v4532 = vpop.permute.xlu0 %4531
      %4533 = vrot.lane.b32.xlu0 %v3592, 81
      %v4534 = vpop.permute.xlu0 %4533
      %4535 = vrot.lane.b32.xlu0 %v3593, 81
      %v4536 = vpop.permute.xlu0 %4535
      %4537 = vrot.lane.b32.xlu0 %v3594, 81
      %v4538 = vpop.permute.xlu0 %4537
      %4539 = vrot.lane.b32.xlu0 %v3595, 81
      %v4540 = vpop.permute.xlu0 %4539
      %4541 = vrot.lane.b32.xlu0 %v3596, 81
      %v4542 = vpop.permute.xlu0 %4541
      %4543 = vrot.lane.b32.xlu0 %v3597, 81
      %v4544 = vpop.permute.xlu0 %4543
      %4545 = vrot.lane.b32.xlu0 %v3598, 81
      %v4546 = vpop.permute.xlu0 %4545
      %4547 = vrot.lane.b32.xlu0 %v3599, 81
      %v4548 = vpop.permute.xlu0 %4547
      %4549 = vrot.lane.b32.xlu0 %v3600, 81
      %v4550 = vpop.permute.xlu0 %4549
      %4551 = vrot.lane.b32.xlu0 %v3601, 81
      %v4552 = vpop.permute.xlu0 %4551
      %4553 = vrot.lane.b32.xlu0 %v3602, 81
      %v4554 = vpop.permute.xlu0 %4553
      %4555 = vrot.lane.b32.xlu0 %v3603, 81
      %v4556 = vpop.permute.xlu0 %4555
      %4557 = vrot.lane.b32.xlu0 %v3604, 81
      %v4558 = vpop.permute.xlu0 %4557
      %4559 = vrot.lane.b32.xlu0 %v3605, 81
      %v4560 = vpop.permute.xlu0 %4559
      %4561 = vrot.lane.b32.xlu0 %v3606, 81
      %v4562 = vpop.permute.xlu0 %4561
      %4563 = vrot.lane.b32.xlu0 %v3607, 81
      %v4564 = vpop.permute.xlu0 %4563
      %v4565 = vsel %vm1219, %v4518, %v4520
      %v4566 = vsel %vm1219, %v4520, %v4522
      %v4567 = vsel %vm1219, %v4524, %v4526
      %v4568 = vsel %vm1219, %v4526, %v4528
      %v4569 = vsel %vm1219, %v4530, %v4532
      %v4570 = vsel %vm1219, %v4532, %v4534
      %v4571 = vsel %vm1219, %v4536, %v4538
      %v4572 = vsel %vm1219, %v4538, %v4540
      %v4573 = vsel %vm1219, %v4542, %v4544
      %v4574 = vsel %vm1219, %v4544, %v4546
      %v4575 = vsel %vm1219, %v4548, %v4550
      %v4576 = vsel %vm1219, %v4550, %v4552
      %v4577 = vsel %vm1219, %v4554, %v4556
      %v4578 = vsel %vm1219, %v4556, %v4558
      %v4579 = vsel %vm1219, %v4560, %v4562
      %v4580 = vsel %vm1219, %v4562, %v4564
      %v4597 = vsel %vm493, %v4565, %v3680
      %v4598 = vsel %vm494, %v4566, %v3681
      %v4599 = vsel %vm493, %v4567, %v3682
      %v4600 = vsel %vm494, %v4568, %v3683
      %v4601 = vsel %vm493, %v4569, %v3684
      %v4602 = vsel %vm494, %v4570, %v3685
      %v4603 = vsel %vm493, %v4571, %v3686
      %v4604 = vsel %vm494, %v4572, %v3687
      %v4605 = vsel %vm493, %v4573, %v3688
      %v4606 = vsel %vm494, %v4574, %v3689
      %v4607 = vsel %vm493, %v4575, %v3690
      %v4608 = vsel %vm494, %v4576, %v3691
      %v4609 = vsel %vm493, %v4577, %v3692
      %v4610 = vsel %vm494, %v4578, %v3693
      %v4611 = vsel %vm493, %v4579, %v3694
      %v4612 = vsel %vm494, %v4580, %v3695
      %s4613 = scalar_lea.vmem %s6, 192
      %v4614 = vld [vmem:[%s4613] sm:$0xff]
      %v4615 = vld [vmem:[%s4613 + $0x8] sm:$0xff]
      %v4616 = vld [vmem:[%s4613 + $0x10] sm:$0xff]
      %v4617 = vld [vmem:[%s4613 + $0x18] sm:$0xff]
      %v4618 = vld [vmem:[%s4613 + $0x20] sm:$0xff]
      %v4619 = vld [vmem:[%s4613 + $0x28] sm:$0xff]
      %v4620 = vld [vmem:[%s4613 + $0x30] sm:$0xff]
      %v4621 = vld [vmem:[%s4613 + $0x38] sm:$0xff]
      %v4623 = vsel %vm2517, %v4614, 0
      %v4626 = vsel %vm2517, %v4615, 0
      %v4629 = vsel %vm2517, %v4616, 0
      %v4632 = vsel %vm2517, %v4617, 0
      %v4635 = vsel %vm2517, %v4618, 0
      %v4638 = vsel %vm2517, %v4619, 0
      %v4641 = vsel %vm2517, %v4620, 0
      %v4644 = vsel %vm2517, %v4621, 0
      %4646 = vmatprep.subr.mxu0 0.0
      %4647 = vmatpush1.msra.mxu0 0.0
      %4648 = vmatprep.subr.mxu0 0.0
      %4649 = vmatpush1.msra.mxu0 0.0
      %4650 = vmatprep.subr.mxu0 0.0
      %4651 = vmatpush1.msra.mxu0 0.0
      %4652 = vmatprep.subr.mxu0 0.0
      %4653 = vmatpush1.msra.mxu0 0.0
      %4654 = vmatprep.subr.mxu0 0.0
      %4655 = vmatpush1.msra.mxu0 0.0
      %4656 = vmatprep.subr.mxu0 0.0
      %4657 = vmatpush1.msra.mxu0 0.0
      %4658 = vmatprep.subr.mxu0 0.0
      %4659 = vmatpush1.msra.mxu0 0.0
      %4660 = vmatprep.subr.mxu0 0.0
      %4661 = vmatpush1.msra.mxu0 0.0
      %4662 = vmatprep.subr.mxu0 %v4612
      %4663 = vmatpush1.msra.mxu0 %v4611
      %4664 = vmatprep.subr.mxu0 %v4610
      %4665 = vmatpush1.msra.mxu0 %v4609
      %4666 = vmatprep.subr.mxu0 %v4608
      %4667 = vmatpush1.msra.mxu0 %v4607
      %4668 = vmatprep.subr.mxu0 %v4606
      %4669 = vmatpush1.msra.mxu0 %v4605
      %4670 = vmatprep.subr.mxu0 %v4604
      %4671 = vmatpush1.msra.mxu0 %v4603
      %4672 = vmatprep.subr.mxu0 %v4602
      %4673 = vmatpush1.msra.mxu0 %v4601
      %4674 = vmatprep.subr.mxu0 %v4600
      %4675 = vmatpush1.msra.mxu0 %v4599
      %4676 = vmatprep.subr.mxu0 %v4598
      %4677 = vmatpush1.msra.mxu0 %v4597
      %4678 = vmatprep.subr.mxu0 0.0
      %4679 = vmatpush2.msra.mxu0 0.0
      %4680 = vmatprep.subr.mxu0 0.0
      %4681 = vmatpush2.msra.mxu0 0.0
      %4682 = vmatprep.subr.mxu0 0.0
      %4683 = vmatpush2.msra.mxu0 0.0
      %4684 = vmatprep.subr.mxu0 0.0
      %4685 = vmatpush2.msra.mxu0 0.0
      %4686 = vmatprep.subr.mxu0 0.0
      %4687 = vmatpush2.msra.mxu0 0.0
      %4688 = vmatprep.subr.mxu0 0.0
      %4689 = vmatpush2.msra.mxu0 0.0
      %4690 = vmatprep.subr.mxu0 0.0
      %4691 = vmatpush2.msra.mxu0 0.0
      %4692 = vmatprep.subr.mxu0 0.0
      %4693 = vmatpush2.msra.mxu0 0.0
      %4694 = vmatprep.subr.mxu0 0.0
      %4695 = vmatpush2.msra.mxu0 0.0
      %4696 = vmatprep.subr.mxu0 0.0
      %4697 = vmatpush2.msra.mxu0 0.0
      %4698 = vmatprep.subr.mxu0 0.0
      %4699 = vmatpush2.msra.mxu0 0.0
      %4700 = vmatprep.subr.mxu0 0.0
      %4701 = vmatpush2.msra.mxu0 0.0
      %4702 = vmatprep.subr.mxu0 0.0
      %4703 = vmatpush2.msra.mxu0 0.0
      %4704 = vmatprep.subr.mxu0 0.0
      %4705 = vmatpush2.msra.mxu0 0.0
      %4706 = vmatprep.subr.mxu0 0.0
      %4707 = vmatpush2.msra.mxu0 0.0
      %4708 = vmatprep.subr.mxu0 0.0
      %4709 = vmatpush2.msra.mxu0 0.0
      %4710 = vmatprep.mubr.f32.mxu0 0.0
      %4711 = vmatmul.mubr.f32.gmra.mxu0 %v4623
      %v4712 = vpop.f32.mrf.mxu0
      %v4713 = vadd.f32 0.0, %v4712
      %v4714 = vpop.f32.mrf.mxu0
      %v4715 = vadd.f32 0.0, %v4714
      %4716 = vmatprep.mubr.f32.mxu0 0.0
      %4717 = vmatmul.mubr.f32.gmra.mxu0 %v4626
      %v4718 = vpop.f32.mrf.mxu0
      %v4719 = vadd.f32 0.0, %v4718
      %v4720 = vpop.f32.mrf.mxu0
      %v4721 = vadd.f32 0.0, %v4720
      %4722 = vmatprep.mubr.f32.mxu0 0.0
      %4723 = vmatmul.mubr.f32.gmra.mxu0 %v4629
      %v4724 = vpop.f32.mrf.mxu0
      %v4725 = vadd.f32 0.0, %v4724
      %v4726 = vpop.f32.mrf.mxu0
      %v4727 = vadd.f32 0.0, %v4726
      %4728 = vmatprep.mubr.f32.mxu0 0.0
      %4729 = vmatmul.mubr.f32.gmra.mxu0 %v4632
      %v4730 = vpop.f32.mrf.mxu0
      %v4731 = vadd.f32 0.0, %v4730
      %v4732 = vpop.f32.mrf.mxu0
      %v4733 = vadd.f32 0.0, %v4732
      %4734 = vmatprep.mubr.f32.mxu0 0.0
      %4735 = vmatmul.mubr.f32.gmra.mxu0 %v4635
      %v4736 = vpop.f32.mrf.mxu0
      %v4737 = vadd.f32 0.0, %v4736
      %v4738 = vpop.f32.mrf.mxu0
      %v4739 = vadd.f32 0.0, %v4738
      %4740 = vmatprep.mubr.f32.mxu0 0.0
      %4741 = vmatmul.mubr.f32.gmra.mxu0 %v4638
      %v4742 = vpop.f32.mrf.mxu0
      %v4743 = vadd.f32 0.0, %v4742
      %v4744 = vpop.f32.mrf.mxu0
      %v4745 = vadd.f32 0.0, %v4744
      %4746 = vmatprep.mubr.f32.mxu0 0.0
      %4747 = vmatmul.mubr.f32.gmra.mxu0 %v4641
      %v4748 = vpop.f32.mrf.mxu0
      %v4749 = vadd.f32 0.0, %v4748
      %v4750 = vpop.f32.mrf.mxu0
      %v4751 = vadd.f32 0.0, %v4750
      %4752 = vmatprep.mubr.f32.mxu0 0.0
      %4753 = vmatmul.mubr.f32.gmra.mxu0 %v4644
      %v4754 = vpop.f32.mrf.mxu0
      %v4755 = vadd.f32 0.0, %v4754
      %v4756 = vpop.f32.mrf.mxu0
      %v4757 = vadd.f32 0.0, %v4756
      %4758 = vdwg.mxu0
      %v4759 = vadd.f32 %v4501, %v4713
      %v4760 = vadd.f32 %v4502, %v4715
      %v4761 = vadd.f32 %v4503, %v4719
      %v4762 = vadd.f32 %v4504, %v4721
      %v4763 = vadd.f32 %v4505, %v4725
      %v4764 = vadd.f32 %v4506, %v4727
      %v4765 = vadd.f32 %v4507, %v4731
      %v4766 = vadd.f32 %v4508, %v4733
      %v4767 = vadd.f32 %v4509, %v4737
      %v4768 = vadd.f32 %v4510, %v4739
      %v4769 = vadd.f32 %v4511, %v4743
      %v4770 = vadd.f32 %v4512, %v4745
      %v4771 = vadd.f32 %v4513, %v4749
      %v4772 = vadd.f32 %v4514, %v4751
      %v4773 = vadd.f32 %v4515, %v4755
      %v4774 = vadd.f32 %v4516, %v4757
      %s4775 = scalar_lea.vmem %s6, 256
      %v4776 = vld [vmem:[%s4775] sm:$0xff]
      %v4777 = vld [vmem:[%s4775 + $0x8] sm:$0xff]
      %v4778 = vld [vmem:[%s4775 + $0x10] sm:$0xff]
      %v4779 = vld [vmem:[%s4775 + $0x18] sm:$0xff]
      %v4780 = vld [vmem:[%s4775 + $0x20] sm:$0xff]
      %v4781 = vld [vmem:[%s4775 + $0x28] sm:$0xff]
      %v4782 = vld [vmem:[%s4775 + $0x30] sm:$0xff]
      %v4783 = vld [vmem:[%s4775 + $0x38] sm:$0xff]
      %4784 = vrot.lane.b32.xlu0 %v3584, 96
      %v4785 = vpop.permute.xlu0 %4784
      %4786 = vrot.lane.b32.xlu0 %v3585, 96
      %v4787 = vpop.permute.xlu0 %4786
      %4788 = vrot.lane.b32.xlu0 %v3586, 96
      %v4789 = vpop.permute.xlu0 %4788
      %4790 = vrot.lane.b32.xlu0 %v3587, 96
      %v4791 = vpop.permute.xlu0 %4790
      %4792 = vrot.lane.b32.xlu0 %v3588, 96
      %v4793 = vpop.permute.xlu0 %4792
      %4794 = vrot.lane.b32.xlu0 %v3589, 96
      %v4795 = vpop.permute.xlu0 %4794
      %4796 = vrot.lane.b32.xlu0 %v3590, 96
      %v4797 = vpop.permute.xlu0 %4796
      %4798 = vrot.lane.b32.xlu0 %v3591, 96
      %v4799 = vpop.permute.xlu0 %4798
      %4800 = vrot.lane.b32.xlu0 %v3592, 96
      %v4801 = vpop.permute.xlu0 %4800
      %4802 = vrot.lane.b32.xlu0 %v3593, 96
      %v4803 = vpop.permute.xlu0 %4802
      %4804 = vrot.lane.b32.xlu0 %v3594, 96
      %v4805 = vpop.permute.xlu0 %4804
      %4806 = vrot.lane.b32.xlu0 %v3595, 96
      %v4807 = vpop.permute.xlu0 %4806
      %4808 = vrot.lane.b32.xlu0 %v3596, 96
      %v4809 = vpop.permute.xlu0 %4808
      %4810 = vrot.lane.b32.xlu0 %v3597, 96
      %v4811 = vpop.permute.xlu0 %4810
      %4812 = vrot.lane.b32.xlu0 %v3598, 96
      %v4813 = vpop.permute.xlu0 %4812
      %4814 = vrot.lane.b32.xlu0 %v3599, 96
      %v4815 = vpop.permute.xlu0 %4814
      %4816 = vrot.lane.b32.xlu0 %v3600, 96
      %v4817 = vpop.permute.xlu0 %4816
      %4818 = vrot.lane.b32.xlu0 %v3601, 96
      %v4819 = vpop.permute.xlu0 %4818
      %4820 = vrot.lane.b32.xlu0 %v3602, 96
      %v4821 = vpop.permute.xlu0 %4820
      %4822 = vrot.lane.b32.xlu0 %v3603, 96
      %v4823 = vpop.permute.xlu0 %4822
      %4824 = vrot.lane.b32.xlu0 %v3604, 96
      %v4825 = vpop.permute.xlu0 %4824
      %4826 = vrot.lane.b32.xlu0 %v3605, 96
      %v4827 = vpop.permute.xlu0 %4826
      %4828 = vrot.lane.b32.xlu0 %v3606, 96
      %v4829 = vpop.permute.xlu0 %4828
      %4830 = vrot.lane.b32.xlu0 %v3607, 96
      %v4831 = vpop.permute.xlu0 %4830
      %v4832 = vsel %vm1439, %v4785, %v4787
      %v4833 = vsel %vm1439, %v4787, %v4789
      %v4834 = vsel %vm1439, %v4791, %v4793
      %v4835 = vsel %vm1439, %v4793, %v4795
      %v4836 = vsel %vm1439, %v4797, %v4799
      %v4837 = vsel %vm1439, %v4799, %v4801
      %v4838 = vsel %vm1439, %v4803, %v4805
      %v4839 = vsel %vm1439, %v4805, %v4807
      %v4840 = vsel %vm1439, %v4809, %v4811
      %v4841 = vsel %vm1439, %v4811, %v4813
      %v4842 = vsel %vm1439, %v4815, %v4817
      %v4843 = vsel %vm1439, %v4817, %v4819
      %v4844 = vsel %vm1439, %v4821, %v4823
      %v4845 = vsel %vm1439, %v4823, %v4825
      %v4846 = vsel %vm1439, %v4827, %v4829
      %v4847 = vsel %vm1439, %v4829, %v4831
      %v4865 = vsel %vm2517, %v4776, 0
      %v4868 = vsel %vm2517, %v4777, 0
      %v4871 = vsel %vm2517, %v4778, 0
      %v4874 = vsel %vm2517, %v4779, 0
      %v4877 = vsel %vm2517, %v4780, 0
      %v4880 = vsel %vm2517, %v4781, 0
      %v4883 = vsel %vm2517, %v4782, 0
      %v4886 = vsel %vm2517, %v4783, 0
      %4888 = vmatprep.subr.mxu0 0.0
      %4889 = vmatpush1.msra.mxu0 0.0
      %4890 = vmatprep.subr.mxu0 0.0
      %4891 = vmatpush1.msra.mxu0 0.0
      %4892 = vmatprep.subr.mxu0 0.0
      %4893 = vmatpush1.msra.mxu0 0.0
      %4894 = vmatprep.subr.mxu0 0.0
      %4895 = vmatpush1.msra.mxu0 0.0
      %4896 = vmatprep.subr.mxu0 0.0
      %4897 = vmatpush1.msra.mxu0 0.0
      %4898 = vmatprep.subr.mxu0 0.0
      %4899 = vmatpush1.msra.mxu0 0.0
      %4900 = vmatprep.subr.mxu0 0.0
      %4901 = vmatpush1.msra.mxu0 0.0
      %4902 = vmatprep.subr.mxu0 0.0
      %4903 = vmatpush1.msra.mxu0 0.0
      %4904 = vmatprep.subr.mxu0 %v4847
      %4905 = vmatpush1.msra.mxu0 %v4846
      %4906 = vmatprep.subr.mxu0 %v4845
      %4907 = vmatpush1.msra.mxu0 %v4844
      %4908 = vmatprep.subr.mxu0 %v4843
      %4909 = vmatpush1.msra.mxu0 %v4842
      %4910 = vmatprep.subr.mxu0 %v4841
      %4911 = vmatpush1.msra.mxu0 %v4840
      %4912 = vmatprep.subr.mxu0 %v4839
      %4913 = vmatpush1.msra.mxu0 %v4838
      %4914 = vmatprep.subr.mxu0 %v4837
      %4915 = vmatpush1.msra.mxu0 %v4836
      %4916 = vmatprep.subr.mxu0 %v4835
      %4917 = vmatpush1.msra.mxu0 %v4834
      %4918 = vmatprep.subr.mxu0 %v4833
      %4919 = vmatpush1.msra.mxu0 %v4832
      %4920 = vmatprep.subr.mxu0 0.0
      %4921 = vmatpush2.msra.mxu0 0.0
      %4922 = vmatprep.subr.mxu0 0.0
      %4923 = vmatpush2.msra.mxu0 0.0
      %4924 = vmatprep.subr.mxu0 0.0
      %4925 = vmatpush2.msra.mxu0 0.0
      %4926 = vmatprep.subr.mxu0 0.0
      %4927 = vmatpush2.msra.mxu0 0.0
      %4928 = vmatprep.subr.mxu0 0.0
      %4929 = vmatpush2.msra.mxu0 0.0
      %4930 = vmatprep.subr.mxu0 0.0
      %4931 = vmatpush2.msra.mxu0 0.0
      %4932 = vmatprep.subr.mxu0 0.0
      %4933 = vmatpush2.msra.mxu0 0.0
      %4934 = vmatprep.subr.mxu0 0.0
      %4935 = vmatpush2.msra.mxu0 0.0
      %4936 = vmatprep.subr.mxu0 0.0
      %4937 = vmatpush2.msra.mxu0 0.0
      %4938 = vmatprep.subr.mxu0 0.0
      %4939 = vmatpush2.msra.mxu0 0.0
      %4940 = vmatprep.subr.mxu0 0.0
      %4941 = vmatpush2.msra.mxu0 0.0
      %4942 = vmatprep.subr.mxu0 0.0
      %4943 = vmatpush2.msra.mxu0 0.0
      %4944 = vmatprep.subr.mxu0 0.0
      %4945 = vmatpush2.msra.mxu0 0.0
      %4946 = vmatprep.subr.mxu0 0.0
      %4947 = vmatpush2.msra.mxu0 0.0
      %4948 = vmatprep.subr.mxu0 0.0
      %4949 = vmatpush2.msra.mxu0 0.0
      %4950 = vmatprep.subr.mxu0 0.0
      %4951 = vmatpush2.msra.mxu0 0.0
      %4952 = vmatprep.mubr.f32.mxu0 0.0
      %4953 = vmatmul.mubr.f32.gmra.mxu0 %v4865
      %v4954 = vpop.f32.mrf.mxu0
      %v4955 = vadd.f32 0.0, %v4954
      %v4956 = vpop.f32.mrf.mxu0
      %v4957 = vadd.f32 0.0, %v4956
      %4958 = vmatprep.mubr.f32.mxu0 0.0
      %4959 = vmatmul.mubr.f32.gmra.mxu0 %v4868
      %v4960 = vpop.f32.mrf.mxu0
      %v4961 = vadd.f32 0.0, %v4960
      %v4962 = vpop.f32.mrf.mxu0
      %v4963 = vadd.f32 0.0, %v4962
      %4964 = vmatprep.mubr.f32.mxu0 0.0
      %4965 = vmatmul.mubr.f32.gmra.mxu0 %v4871
      %v4966 = vpop.f32.mrf.mxu0
      %v4967 = vadd.f32 0.0, %v4966
      %v4968 = vpop.f32.mrf.mxu0
      %v4969 = vadd.f32 0.0, %v4968
      %4970 = vmatprep.mubr.f32.mxu0 0.0
      %4971 = vmatmul.mubr.f32.gmra.mxu0 %v4874
      %v4972 = vpop.f32.mrf.mxu0
      %v4973 = vadd.f32 0.0, %v4972
      %v4974 = vpop.f32.mrf.mxu0
      %v4975 = vadd.f32 0.0, %v4974
      %4976 = vmatprep.mubr.f32.mxu0 0.0
      %4977 = vmatmul.mubr.f32.gmra.mxu0 %v4877
      %v4978 = vpop.f32.mrf.mxu0
      %v4979 = vadd.f32 0.0, %v4978
      %v4980 = vpop.f32.mrf.mxu0
      %v4981 = vadd.f32 0.0, %v4980
      %4982 = vmatprep.mubr.f32.mxu0 0.0
      %4983 = vmatmul.mubr.f32.gmra.mxu0 %v4880
      %v4984 = vpop.f32.mrf.mxu0
      %v4985 = vadd.f32 0.0, %v4984
      %v4986 = vpop.f32.mrf.mxu0
      %v4987 = vadd.f32 0.0, %v4986
      %4988 = vmatprep.mubr.f32.mxu0 0.0
      %4989 = vmatmul.mubr.f32.gmra.mxu0 %v4883
      %v4990 = vpop.f32.mrf.mxu0
      %v4991 = vadd.f32 0.0, %v4990
      %v4992 = vpop.f32.mrf.mxu0
      %v4993 = vadd.f32 0.0, %v4992
      %4994 = vmatprep.mubr.f32.mxu0 0.0
      %4995 = vmatmul.mubr.f32.gmra.mxu0 %v4886
      %v4996 = vpop.f32.mrf.mxu0
      %v4997 = vadd.f32 0.0, %v4996
      %v4998 = vpop.f32.mrf.mxu0
      %v4999 = vadd.f32 0.0, %v4998
      %5000 = vdwg.mxu0
      %v5001 = vadd.f32 %v4759, %v4955
      %v5002 = vadd.f32 %v4760, %v4957
      %v5003 = vadd.f32 %v4761, %v4961
      %v5004 = vadd.f32 %v4762, %v4963
      %v5005 = vadd.f32 %v4763, %v4967
      %v5006 = vadd.f32 %v4764, %v4969
      %v5007 = vadd.f32 %v4765, %v4973
      %v5008 = vadd.f32 %v4766, %v4975
      %v5009 = vadd.f32 %v4767, %v4979
      %v5010 = vadd.f32 %v4768, %v4981
      %v5011 = vadd.f32 %v4769, %v4985
      %v5012 = vadd.f32 %v4770, %v4987
      %v5013 = vadd.f32 %v4771, %v4991
      %v5014 = vadd.f32 %v4772, %v4993
      %v5015 = vadd.f32 %v4773, %v4997
      %v5016 = vadd.f32 %v4774, %v4999
      %5017 = vrot.lane.b32.xlu0 %v3584, 95
      %v5018 = vpop.permute.xlu0 %5017
      %5019 = vrot.lane.b32.xlu0 %v3585, 95
      %v5020 = vpop.permute.xlu0 %5019
      %5021 = vrot.lane.b32.xlu0 %v3586, 95
      %v5022 = vpop.permute.xlu0 %5021
      %5023 = vrot.lane.b32.xlu0 %v3587, 95
      %v5024 = vpop.permute.xlu0 %5023
      %5025 = vrot.lane.b32.xlu0 %v3588, 95
      %v5026 = vpop.permute.xlu0 %5025
      %5027 = vrot.lane.b32.xlu0 %v3589, 95
      %v5028 = vpop.permute.xlu0 %5027
      %5029 = vrot.lane.b32.xlu0 %v3590, 95
      %v5030 = vpop.permute.xlu0 %5029
      %5031 = vrot.lane.b32.xlu0 %v3591, 95
      %v5032 = vpop.permute.xlu0 %5031
      %5033 = vrot.lane.b32.xlu0 %v3592, 95
      %v5034 = vpop.permute.xlu0 %5033
      %5035 = vrot.lane.b32.xlu0 %v3593, 95
      %v5036 = vpop.permute.xlu0 %5035
      %5037 = vrot.lane.b32.xlu0 %v3594, 95
      %v5038 = vpop.permute.xlu0 %5037
      %5039 = vrot.lane.b32.xlu0 %v3595, 95
      %v5040 = vpop.permute.xlu0 %5039
      %5041 = vrot.lane.b32.xlu0 %v3596, 95
      %v5042 = vpop.permute.xlu0 %5041
      %5043 = vrot.lane.b32.xlu0 %v3597, 95
      %v5044 = vpop.permute.xlu0 %5043
      %5045 = vrot.lane.b32.xlu0 %v3598, 95
      %v5046 = vpop.permute.xlu0 %5045
      %5047 = vrot.lane.b32.xlu0 %v3599, 95
      %v5048 = vpop.permute.xlu0 %5047
      %5049 = vrot.lane.b32.xlu0 %v3600, 95
      %v5050 = vpop.permute.xlu0 %5049
      %5051 = vrot.lane.b32.xlu0 %v3601, 95
      %v5052 = vpop.permute.xlu0 %5051
      %5053 = vrot.lane.b32.xlu0 %v3602, 95
      %v5054 = vpop.permute.xlu0 %5053
      %5055 = vrot.lane.b32.xlu0 %v3603, 95
      %v5056 = vpop.permute.xlu0 %5055
      %5057 = vrot.lane.b32.xlu0 %v3604, 95
      %v5058 = vpop.permute.xlu0 %5057
      %5059 = vrot.lane.b32.xlu0 %v3605, 95
      %v5060 = vpop.permute.xlu0 %5059
      %5061 = vrot.lane.b32.xlu0 %v3606, 95
      %v5062 = vpop.permute.xlu0 %5061
      %5063 = vrot.lane.b32.xlu0 %v3607, 95
      %v5064 = vpop.permute.xlu0 %5063
      %v5065 = vsel %vm1633, %v5018, %v5020
      %v5066 = vsel %vm1633, %v5020, %v5022
      %v5067 = vsel %vm1633, %v5024, %v5026
      %v5068 = vsel %vm1633, %v5026, %v5028
      %v5069 = vsel %vm1633, %v5030, %v5032
      %v5070 = vsel %vm1633, %v5032, %v5034
      %v5071 = vsel %vm1633, %v5036, %v5038
      %v5072 = vsel %vm1633, %v5038, %v5040
      %v5073 = vsel %vm1633, %v5042, %v5044
      %v5074 = vsel %vm1633, %v5044, %v5046
      %v5075 = vsel %vm1633, %v5048, %v5050
      %v5076 = vsel %vm1633, %v5050, %v5052
      %v5077 = vsel %vm1633, %v5054, %v5056
      %v5078 = vsel %vm1633, %v5056, %v5058
      %v5079 = vsel %vm1633, %v5060, %v5062
      %v5080 = vsel %vm1633, %v5062, %v5064
      %v5097 = vsel %vm495, %v4307, %v5065
      %v5098 = vsel %vm496, %v4308, %v5066
      %v5099 = vsel %vm495, %v4309, %v5067
      %v5100 = vsel %vm496, %v4310, %v5068
      %v5101 = vsel %vm495, %v4311, %v5069
      %v5102 = vsel %vm496, %v4312, %v5070
      %v5103 = vsel %vm495, %v4313, %v5071
      %v5104 = vsel %vm496, %v4314, %v5072
      %v5105 = vsel %vm495, %v4315, %v5073
      %v5106 = vsel %vm496, %v4316, %v5074
      %v5107 = vsel %vm495, %v4317, %v5075
      %v5108 = vsel %vm496, %v4318, %v5076
      %v5109 = vsel %vm495, %v4319, %v5077
      %v5110 = vsel %vm496, %v4320, %v5078
      %v5111 = vsel %vm495, %v4321, %v5079
      %v5112 = vsel %vm496, %v4322, %v5080
      %s5113 = scalar_lea.vmem %s6, 320
      %v5114 = vld [vmem:[%s5113] sm:$0xff]
      %v5115 = vld [vmem:[%s5113 + $0x8] sm:$0xff]
      %v5116 = vld [vmem:[%s5113 + $0x10] sm:$0xff]
      %v5117 = vld [vmem:[%s5113 + $0x18] sm:$0xff]
      %v5118 = vld [vmem:[%s5113 + $0x20] sm:$0xff]
      %v5119 = vld [vmem:[%s5113 + $0x28] sm:$0xff]
      %v5120 = vld [vmem:[%s5113 + $0x30] sm:$0xff]
      %v5121 = vld [vmem:[%s5113 + $0x38] sm:$0xff]
      %v5123 = vsel %vm2517, %v5114, 0
      %v5126 = vsel %vm2517, %v5115, 0
      %v5129 = vsel %vm2517, %v5116, 0
      %v5132 = vsel %vm2517, %v5117, 0
      %v5135 = vsel %vm2517, %v5118, 0
      %v5138 = vsel %vm2517, %v5119, 0
      %v5141 = vsel %vm2517, %v5120, 0
      %v5144 = vsel %vm2517, %v5121, 0
      %5146 = vmatprep.subr.mxu0 0.0
      %5147 = vmatpush1.msra.mxu0 0.0
      %5148 = vmatprep.subr.mxu0 0.0
      %5149 = vmatpush1.msra.mxu0 0.0
      %5150 = vmatprep.subr.mxu0 0.0
      %5151 = vmatpush1.msra.mxu0 0.0
      %5152 = vmatprep.subr.mxu0 0.0
      %5153 = vmatpush1.msra.mxu0 0.0
      %5154 = vmatprep.subr.mxu0 0.0
      %5155 = vmatpush1.msra.mxu0 0.0
      %5156 = vmatprep.subr.mxu0 0.0
      %5157 = vmatpush1.msra.mxu0 0.0
      %5158 = vmatprep.subr.mxu0 0.0
      %5159 = vmatpush1.msra.mxu0 0.0
      %5160 = vmatprep.subr.mxu0 0.0
      %5161 = vmatpush1.msra.mxu0 0.0
      %5162 = vmatprep.subr.mxu0 %v5112
      %5163 = vmatpush1.msra.mxu0 %v5111
      %5164 = vmatprep.subr.mxu0 %v5110
      %5165 = vmatpush1.msra.mxu0 %v5109
      %5166 = vmatprep.subr.mxu0 %v5108
      %5167 = vmatpush1.msra.mxu0 %v5107
      %5168 = vmatprep.subr.mxu0 %v5106
      %5169 = vmatpush1.msra.mxu0 %v5105
      %5170 = vmatprep.subr.mxu0 %v5104
      %5171 = vmatpush1.msra.mxu0 %v5103
      %5172 = vmatprep.subr.mxu0 %v5102
      %5173 = vmatpush1.msra.mxu0 %v5101
      %5174 = vmatprep.subr.mxu0 %v5100
      %5175 = vmatpush1.msra.mxu0 %v5099
      %5176 = vmatprep.subr.mxu0 %v5098
      %5177 = vmatpush1.msra.mxu0 %v5097
      %5178 = vmatprep.subr.mxu0 0.0
      %5179 = vmatpush2.msra.mxu0 0.0
      %5180 = vmatprep.subr.mxu0 0.0
      %5181 = vmatpush2.msra.mxu0 0.0
      %5182 = vmatprep.subr.mxu0 0.0
      %5183 = vmatpush2.msra.mxu0 0.0
      %5184 = vmatprep.subr.mxu0 0.0
      %5185 = vmatpush2.msra.mxu0 0.0
      %5186 = vmatprep.subr.mxu0 0.0
      %5187 = vmatpush2.msra.mxu0 0.0
      %5188 = vmatprep.subr.mxu0 0.0
      %5189 = vmatpush2.msra.mxu0 0.0
      %5190 = vmatprep.subr.mxu0 0.0
      %5191 = vmatpush2.msra.mxu0 0.0
      %5192 = vmatprep.subr.mxu0 0.0
      %5193 = vmatpush2.msra.mxu0 0.0
      %5194 = vmatprep.subr.mxu0 0.0
      %5195 = vmatpush2.msra.mxu0 0.0
      %5196 = vmatprep.subr.mxu0 0.0
      %5197 = vmatpush2.msra.mxu0 0.0
      %5198 = vmatprep.subr.mxu0 0.0
      %5199 = vmatpush2.msra.mxu0 0.0
      %5200 = vmatprep.subr.mxu0 0.0
      %5201 = vmatpush2.msra.mxu0 0.0
      %5202 = vmatprep.subr.mxu0 0.0
      %5203 = vmatpush2.msra.mxu0 0.0
      %5204 = vmatprep.subr.mxu0 0.0
      %5205 = vmatpush2.msra.mxu0 0.0
      %5206 = vmatprep.subr.mxu0 0.0
      %5207 = vmatpush2.msra.mxu0 0.0
      %5208 = vmatprep.subr.mxu0 0.0
      %5209 = vmatpush2.msra.mxu0 0.0
      %5210 = vmatprep.mubr.f32.mxu0 0.0
      %5211 = vmatmul.mubr.f32.gmra.mxu0 %v5123
      %v5212 = vpop.f32.mrf.mxu0
      %v5213 = vadd.f32 0.0, %v5212
      %v5214 = vpop.f32.mrf.mxu0
      %v5215 = vadd.f32 0.0, %v5214
      %5216 = vmatprep.mubr.f32.mxu0 0.0
      %5217 = vmatmul.mubr.f32.gmra.mxu0 %v5126
      %v5218 = vpop.f32.mrf.mxu0
      %v5219 = vadd.f32 0.0, %v5218
      %v5220 = vpop.f32.mrf.mxu0
      %v5221 = vadd.f32 0.0, %v5220
      %5222 = vmatprep.mubr.f32.mxu0 0.0
      %5223 = vmatmul.mubr.f32.gmra.mxu0 %v5129
      %v5224 = vpop.f32.mrf.mxu0
      %v5225 = vadd.f32 0.0, %v5224
      %v5226 = vpop.f32.mrf.mxu0
      %v5227 = vadd.f32 0.0, %v5226
      %5228 = vmatprep.mubr.f32.mxu0 0.0
      %5229 = vmatmul.mubr.f32.gmra.mxu0 %v5132
      %v5230 = vpop.f32.mrf.mxu0
      %v5231 = vadd.f32 0.0, %v5230
      %v5232 = vpop.f32.mrf.mxu0
      %v5233 = vadd.f32 0.0, %v5232
      %5234 = vmatprep.mubr.f32.mxu0 0.0
      %5235 = vmatmul.mubr.f32.gmra.mxu0 %v5135
      %v5236 = vpop.f32.mrf.mxu0
      %v5237 = vadd.f32 0.0, %v5236
      %v5238 = vpop.f32.mrf.mxu0
      %v5239 = vadd.f32 0.0, %v5238
      %5240 = vmatprep.mubr.f32.mxu0 0.0
      %5241 = vmatmul.mubr.f32.gmra.mxu0 %v5138
      %v5242 = vpop.f32.mrf.mxu0
      %v5243 = vadd.f32 0.0, %v5242
      %v5244 = vpop.f32.mrf.mxu0
      %v5245 = vadd.f32 0.0, %v5244
      %5246 = vmatprep.mubr.f32.mxu0 0.0
      %5247 = vmatmul.mubr.f32.gmra.mxu0 %v5141
      %v5248 = vpop.f32.mrf.mxu0
      %v5249 = vadd.f32 0.0, %v5248
      %v5250 = vpop.f32.mrf.mxu0
      %v5251 = vadd.f32 0.0, %v5250
      %5252 = vmatprep.mubr.f32.mxu0 0.0
      %5253 = vmatmul.mubr.f32.gmra.mxu0 %v5144
      %v5254 = vpop.f32.mrf.mxu0
      %v5255 = vadd.f32 0.0, %v5254
      %v5256 = vpop.f32.mrf.mxu0
      %v5257 = vadd.f32 0.0, %v5256
      %5258 = vdwg.mxu0
      %v5259 = vadd.f32 %v5001, %v5213
      %v5260 = vadd.f32 %v5002, %v5215
      %v5261 = vadd.f32 %v5003, %v5219
      %v5262 = vadd.f32 %v5004, %v5221
      %v5263 = vadd.f32 %v5005, %v5225
      %v5264 = vadd.f32 %v5006, %v5227
      %v5265 = vadd.f32 %v5007, %v5231
      %v5266 = vadd.f32 %v5008, %v5233
      %v5267 = vadd.f32 %v5009, %v5237
      %v5268 = vadd.f32 %v5010, %v5239
      %v5269 = vadd.f32 %v5011, %v5243
      %v5270 = vadd.f32 %v5012, %v5245
      %v5271 = vadd.f32 %v5013, %v5249
      %v5272 = vadd.f32 %v5014, %v5251
      %v5273 = vadd.f32 %v5015, %v5255
      %v5274 = vadd.f32 %v5016, %v5257
      %5275 = vrot.lane.b32.xlu0 %v3584, 65
      %v5276 = vpop.permute.xlu0 %5275
      %5277 = vrot.lane.b32.xlu0 %v3585, 65
      %v5278 = vpop.permute.xlu0 %5277
      %5279 = vrot.lane.b32.xlu0 %v3586, 65
      %v5280 = vpop.permute.xlu0 %5279
      %5281 = vrot.lane.b32.xlu0 %v3587, 65
      %v5282 = vpop.permute.xlu0 %5281
      %5283 = vrot.lane.b32.xlu0 %v3588, 65
      %v5284 = vpop.permute.xlu0 %5283
      %5285 = vrot.lane.b32.xlu0 %v3589, 65
      %v5286 = vpop.permute.xlu0 %5285
      %5287 = vrot.lane.b32.xlu0 %v3590, 65
      %v5288 = vpop.permute.xlu0 %5287
      %5289 = vrot.lane.b32.xlu0 %v3591, 65
      %v5290 = vpop.permute.xlu0 %5289
      %5291 = vrot.lane.b32.xlu0 %v3592, 65
      %v5292 = vpop.permute.xlu0 %5291
      %5293 = vrot.lane.b32.xlu0 %v3593, 65
      %v5294 = vpop.permute.xlu0 %5293
      %5295 = vrot.lane.b32.xlu0 %v3594, 65
      %v5296 = vpop.permute.xlu0 %5295
      %5297 = vrot.lane.b32.xlu0 %v3595, 65
      %v5298 = vpop.permute.xlu0 %5297
      %5299 = vrot.lane.b32.xlu0 %v3596, 65
      %v5300 = vpop.permute.xlu0 %5299
      %5301 = vrot.lane.b32.xlu0 %v3597, 65
      %v5302 = vpop.permute.xlu0 %5301
      %5303 = vrot.lane.b32.xlu0 %v3598, 65
      %v5304 = vpop.permute.xlu0 %5303
      %5305 = vrot.lane.b32.xlu0 %v3599, 65
      %v5306 = vpop.permute.xlu0 %5305
      %5307 = vrot.lane.b32.xlu0 %v3600, 65
      %v5308 = vpop.permute.xlu0 %5307
      %5309 = vrot.lane.b32.xlu0 %v3601, 65
      %v5310 = vpop.permute.xlu0 %5309
      %5311 = vrot.lane.b32.xlu0 %v3602, 65
      %v5312 = vpop.permute.xlu0 %5311
      %5313 = vrot.lane.b32.xlu0 %v3603, 65
      %v5314 = vpop.permute.xlu0 %5313
      %5315 = vrot.lane.b32.xlu0 %v3604, 65
      %v5316 = vpop.permute.xlu0 %5315
      %5317 = vrot.lane.b32.xlu0 %v3605, 65
      %v5318 = vpop.permute.xlu0 %5317
      %5319 = vrot.lane.b32.xlu0 %v3606, 65
      %v5320 = vpop.permute.xlu0 %5319
      %5321 = vrot.lane.b32.xlu0 %v3607, 65
      %v5322 = vpop.permute.xlu0 %5321
      %v5323 = vsel %vm1844, %v5276, %v5278
      %v5324 = vsel %vm1844, %v5278, %v5280
      %v5325 = vsel %vm1844, %v5282, %v5284
      %v5326 = vsel %vm1844, %v5284, %v5286
      %v5327 = vsel %vm1844, %v5288, %v5290
      %v5328 = vsel %vm1844, %v5290, %v5292
      %v5329 = vsel %vm1844, %v5294, %v5296
      %v5330 = vsel %vm1844, %v5296, %v5298
      %v5331 = vsel %vm1844, %v5300, %v5302
      %v5332 = vsel %vm1844, %v5302, %v5304
      %v5333 = vsel %vm1844, %v5306, %v5308
      %v5334 = vsel %vm1844, %v5308, %v5310
      %v5335 = vsel %vm1844, %v5312, %v5314
      %v5336 = vsel %vm1844, %v5314, %v5316
      %v5337 = vsel %vm1844, %v5318, %v5320
      %v5338 = vsel %vm1844, %v5320, %v5322
      %v5355 = vsel %vm493, %v5323, %v4565
      %v5356 = vsel %vm494, %v5324, %v4566
      %v5357 = vsel %vm493, %v5325, %v4567
      %v5358 = vsel %vm494, %v5326, %v4568
      %v5359 = vsel %vm493, %v5327, %v4569
      %v5360 = vsel %vm494, %v5328, %v4570
      %v5361 = vsel %vm493, %v5329, %v4571
      %v5362 = vsel %vm494, %v5330, %v4572
      %v5363 = vsel %vm493, %v5331, %v4573
      %v5364 = vsel %vm494, %v5332, %v4574
      %v5365 = vsel %vm493, %v5333, %v4575
      %v5366 = vsel %vm494, %v5334, %v4576
      %v5367 = vsel %vm493, %v5335, %v4577
      %v5368 = vsel %vm494, %v5336, %v4578
      %v5369 = vsel %vm493, %v5337, %v4579
      %v5370 = vsel %vm494, %v5338, %v4580
      %s5371 = scalar_lea.vmem %s6, 384
      %v5372 = vld [vmem:[%s5371] sm:$0xff]
      %v5373 = vld [vmem:[%s5371 + $0x8] sm:$0xff]
      %v5374 = vld [vmem:[%s5371 + $0x10] sm:$0xff]
      %v5375 = vld [vmem:[%s5371 + $0x18] sm:$0xff]
      %v5376 = vld [vmem:[%s5371 + $0x20] sm:$0xff]
      %v5377 = vld [vmem:[%s5371 + $0x28] sm:$0xff]
      %v5378 = vld [vmem:[%s5371 + $0x30] sm:$0xff]
      %v5379 = vld [vmem:[%s5371 + $0x38] sm:$0xff]
      %v5381 = vsel %vm2517, %v5372, 0
      %v5384 = vsel %vm2517, %v5373, 0
      %v5387 = vsel %vm2517, %v5374, 0
      %v5390 = vsel %vm2517, %v5375, 0
      %v5393 = vsel %vm2517, %v5376, 0
      %v5396 = vsel %vm2517, %v5377, 0
      %v5399 = vsel %vm2517, %v5378, 0
      %v5402 = vsel %vm2517, %v5379, 0
      %5404 = vmatprep.subr.mxu0 0.0
      %5405 = vmatpush1.msra.mxu0 0.0
      %5406 = vmatprep.subr.mxu0 0.0
      %5407 = vmatpush1.msra.mxu0 0.0
      %5408 = vmatprep.subr.mxu0 0.0
      %5409 = vmatpush1.msra.mxu0 0.0
      %5410 = vmatprep.subr.mxu0 0.0
      %5411 = vmatpush1.msra.mxu0 0.0
      %5412 = vmatprep.subr.mxu0 0.0
      %5413 = vmatpush1.msra.mxu0 0.0
      %5414 = vmatprep.subr.mxu0 0.0
      %5415 = vmatpush1.msra.mxu0 0.0
      %5416 = vmatprep.subr.mxu0 0.0
      %5417 = vmatpush1.msra.mxu0 0.0
      %5418 = vmatprep.subr.mxu0 0.0
      %5419 = vmatpush1.msra.mxu0 0.0
      %5420 = vmatprep.subr.mxu0 %v5370
      %5421 = vmatpush1.msra.mxu0 %v5369
      %5422 = vmatprep.subr.mxu0 %v5368
      %5423 = vmatpush1.msra.mxu0 %v5367
      %5424 = vmatprep.subr.mxu0 %v5366
      %5425 = vmatpush1.msra.mxu0 %v5365
      %5426 = vmatprep.subr.mxu0 %v5364
      %5427 = vmatpush1.msra.mxu0 %v5363
      %5428 = vmatprep.subr.mxu0 %v5362
      %5429 = vmatpush1.msra.mxu0 %v5361
      %5430 = vmatprep.subr.mxu0 %v5360
      %5431 = vmatpush1.msra.mxu0 %v5359
      %5432 = vmatprep.subr.mxu0 %v5358
      %5433 = vmatpush1.msra.mxu0 %v5357
      %5434 = vmatprep.subr.mxu0 %v5356
      %5435 = vmatpush1.msra.mxu0 %v5355
      %5436 = vmatprep.subr.mxu0 0.0
      %5437 = vmatpush2.msra.mxu0 0.0
      %5438 = vmatprep.subr.mxu0 0.0
      %5439 = vmatpush2.msra.mxu0 0.0
      %5440 = vmatprep.subr.mxu0 0.0
      %5441 = vmatpush2.msra.mxu0 0.0
      %5442 = vmatprep.subr.mxu0 0.0
      %5443 = vmatpush2.msra.mxu0 0.0
      %5444 = vmatprep.subr.mxu0 0.0
      %5445 = vmatpush2.msra.mxu0 0.0
      %5446 = vmatprep.subr.mxu0 0.0
      %5447 = vmatpush2.msra.mxu0 0.0
      %5448 = vmatprep.subr.mxu0 0.0
      %5449 = vmatpush2.msra.mxu0 0.0
      %5450 = vmatprep.subr.mxu0 0.0
      %5451 = vmatpush2.msra.mxu0 0.0
      %5452 = vmatprep.subr.mxu0 0.0
      %5453 = vmatpush2.msra.mxu0 0.0
      %5454 = vmatprep.subr.mxu0 0.0
      %5455 = vmatpush2.msra.mxu0 0.0
      %5456 = vmatprep.subr.mxu0 0.0
      %5457 = vmatpush2.msra.mxu0 0.0
      %5458 = vmatprep.subr.mxu0 0.0
      %5459 = vmatpush2.msra.mxu0 0.0
      %5460 = vmatprep.subr.mxu0 0.0
      %5461 = vmatpush2.msra.mxu0 0.0
      %5462 = vmatprep.subr.mxu0 0.0
      %5463 = vmatpush2.msra.mxu0 0.0
      %5464 = vmatprep.subr.mxu0 0.0
      %5465 = vmatpush2.msra.mxu0 0.0
      %5466 = vmatprep.subr.mxu0 0.0
      %5467 = vmatpush2.msra.mxu0 0.0
      %5468 = vmatprep.mubr.f32.mxu0 0.0
      %5469 = vmatmul.mubr.f32.gmra.mxu0 %v5381
      %v5470 = vpop.f32.mrf.mxu0
      %v5471 = vadd.f32 0.0, %v5470
      %v5472 = vpop.f32.mrf.mxu0
      %v5473 = vadd.f32 0.0, %v5472
      %5474 = vmatprep.mubr.f32.mxu0 0.0
      %5475 = vmatmul.mubr.f32.gmra.mxu0 %v5384
      %v5476 = vpop.f32.mrf.mxu0
      %v5477 = vadd.f32 0.0, %v5476
      %v5478 = vpop.f32.mrf.mxu0
      %v5479 = vadd.f32 0.0, %v5478
      %5480 = vmatprep.mubr.f32.mxu0 0.0
      %5481 = vmatmul.mubr.f32.gmra.mxu0 %v5387
      %v5482 = vpop.f32.mrf.mxu0
      %v5483 = vadd.f32 0.0, %v5482
      %v5484 = vpop.f32.mrf.mxu0
      %v5485 = vadd.f32 0.0, %v5484
      %5486 = vmatprep.mubr.f32.mxu0 0.0
      %5487 = vmatmul.mubr.f32.gmra.mxu0 %v5390
      %v5488 = vpop.f32.mrf.mxu0
      %v5489 = vadd.f32 0.0, %v5488
      %v5490 = vpop.f32.mrf.mxu0
      %v5491 = vadd.f32 0.0, %v5490
      %5492 = vmatprep.mubr.f32.mxu0 0.0
      %5493 = vmatmul.mubr.f32.gmra.mxu0 %v5393
      %v5494 = vpop.f32.mrf.mxu0
      %v5495 = vadd.f32 0.0, %v5494
      %v5496 = vpop.f32.mrf.mxu0
      %v5497 = vadd.f32 0.0, %v5496
      %5498 = vmatprep.mubr.f32.mxu0 0.0
      %5499 = vmatmul.mubr.f32.gmra.mxu0 %v5396
      %v5500 = vpop.f32.mrf.mxu0
      %v5501 = vadd.f32 0.0, %v5500
      %v5502 = vpop.f32.mrf.mxu0
      %v5503 = vadd.f32 0.0, %v5502
      %5504 = vmatprep.mubr.f32.mxu0 0.0
      %5505 = vmatmul.mubr.f32.gmra.mxu0 %v5399
      %v5506 = vpop.f32.mrf.mxu0
      %v5507 = vadd.f32 0.0, %v5506
      %v5508 = vpop.f32.mrf.mxu0
      %v5509 = vadd.f32 0.0, %v5508
      %5510 = vmatprep.mubr.f32.mxu0 0.0
      %5511 = vmatmul.mubr.f32.gmra.mxu0 %v5402
      %v5512 = vpop.f32.mrf.mxu0
      %v5513 = vadd.f32 0.0, %v5512
      %v5514 = vpop.f32.mrf.mxu0
      %v5515 = vadd.f32 0.0, %v5514
      %5516 = vdwg.mxu0
      %v5517 = vadd.f32 %v5259, %v5471
      %v5518 = vadd.f32 %v5260, %v5473
      %v5519 = vadd.f32 %v5261, %v5477
      %v5520 = vadd.f32 %v5262, %v5479
      %v5521 = vadd.f32 %v5263, %v5483
      %v5522 = vadd.f32 %v5264, %v5485
      %v5523 = vadd.f32 %v5265, %v5489
      %v5524 = vadd.f32 %v5266, %v5491
      %v5525 = vadd.f32 %v5267, %v5495
      %v5526 = vadd.f32 %v5268, %v5497
      %v5527 = vadd.f32 %v5269, %v5501
      %v5528 = vadd.f32 %v5270, %v5503
      %v5529 = vadd.f32 %v5271, %v5507
      %v5530 = vadd.f32 %v5272, %v5509
      %v5531 = vadd.f32 %v5273, %v5513
      %v5532 = vadd.f32 %v5274, %v5515
      %s5533 = scalar_lea.vmem %s6, 448
      %v5534 = vld [vmem:[%s5533] sm:$0xff]
      %v5535 = vld [vmem:[%s5533 + $0x8] sm:$0xff]
      %v5536 = vld [vmem:[%s5533 + $0x10] sm:$0xff]
      %v5537 = vld [vmem:[%s5533 + $0x18] sm:$0xff]
      %v5538 = vld [vmem:[%s5533 + $0x20] sm:$0xff]
      %v5539 = vld [vmem:[%s5533 + $0x28] sm:$0xff]
      %v5540 = vld [vmem:[%s5533 + $0x30] sm:$0xff]
      %v5541 = vld [vmem:[%s5533 + $0x38] sm:$0xff]
      %5542 = vrot.lane.b32.xlu0 %v3584, 80
      %v5543 = vpop.permute.xlu0 %5542
      %5544 = vrot.lane.b32.xlu0 %v3585, 80
      %v5545 = vpop.permute.xlu0 %5544
      %5546 = vrot.lane.b32.xlu0 %v3586, 80
      %v5547 = vpop.permute.xlu0 %5546
      %5548 = vrot.lane.b32.xlu0 %v3587, 80
      %v5549 = vpop.permute.xlu0 %5548
      %5550 = vrot.lane.b32.xlu0 %v3588, 80
      %v5551 = vpop.permute.xlu0 %5550
      %5552 = vrot.lane.b32.xlu0 %v3589, 80
      %v5553 = vpop.permute.xlu0 %5552
      %5554 = vrot.lane.b32.xlu0 %v3590, 80
      %v5555 = vpop.permute.xlu0 %5554
      %5556 = vrot.lane.b32.xlu0 %v3591, 80
      %v5557 = vpop.permute.xlu0 %5556
      %5558 = vrot.lane.b32.xlu0 %v3592, 80
      %v5559 = vpop.permute.xlu0 %5558
      %5560 = vrot.lane.b32.xlu0 %v3593, 80
      %v5561 = vpop.permute.xlu0 %5560
      %5562 = vrot.lane.b32.xlu0 %v3594, 80
      %v5563 = vpop.permute.xlu0 %5562
      %5564 = vrot.lane.b32.xlu0 %v3595, 80
      %v5565 = vpop.permute.xlu0 %5564
      %5566 = vrot.lane.b32.xlu0 %v3596, 80
      %v5567 = vpop.permute.xlu0 %5566
      %5568 = vrot.lane.b32.xlu0 %v3597, 80
      %v5569 = vpop.permute.xlu0 %5568
      %5570 = vrot.lane.b32.xlu0 %v3598, 80
      %v5571 = vpop.permute.xlu0 %5570
      %5572 = vrot.lane.b32.xlu0 %v3599, 80
      %v5573 = vpop.permute.xlu0 %5572
      %5574 = vrot.lane.b32.xlu0 %v3600, 80
      %v5575 = vpop.permute.xlu0 %5574
      %5576 = vrot.lane.b32.xlu0 %v3601, 80
      %v5577 = vpop.permute.xlu0 %5576
      %5578 = vrot.lane.b32.xlu0 %v3602, 80
      %v5579 = vpop.permute.xlu0 %5578
      %5580 = vrot.lane.b32.xlu0 %v3603, 80
      %v5581 = vpop.permute.xlu0 %5580
      %5582 = vrot.lane.b32.xlu0 %v3604, 80
      %v5583 = vpop.permute.xlu0 %5582
      %5584 = vrot.lane.b32.xlu0 %v3605, 80
      %v5585 = vpop.permute.xlu0 %5584
      %5586 = vrot.lane.b32.xlu0 %v3606, 80
      %v5587 = vpop.permute.xlu0 %5586
      %5588 = vrot.lane.b32.xlu0 %v3607, 80
      %v5589 = vpop.permute.xlu0 %5588
      %v5590 = vsel %vm2064, %v5543, %v5545
      %v5591 = vsel %vm2064, %v5545, %v5547
      %v5592 = vsel %vm2064, %v5549, %v5551
      %v5593 = vsel %vm2064, %v5551, %v5553
      %v5594 = vsel %vm2064, %v5555, %v5557
      %v5595 = vsel %vm2064, %v5557, %v5559
      %v5596 = vsel %vm2064, %v5561, %v5563
      %v5597 = vsel %vm2064, %v5563, %v5565
      %v5598 = vsel %vm2064, %v5567, %v5569
      %v5599 = vsel %vm2064, %v5569, %v5571
      %v5600 = vsel %vm2064, %v5573, %v5575
      %v5601 = vsel %vm2064, %v5575, %v5577
      %v5602 = vsel %vm2064, %v5579, %v5581
      %v5603 = vsel %vm2064, %v5581, %v5583
      %v5604 = vsel %vm2064, %v5585, %v5587
      %v5605 = vsel %vm2064, %v5587, %v5589
      %v5623 = vsel %vm2517, %v5534, 0
      %v5626 = vsel %vm2517, %v5535, 0
      %v5629 = vsel %vm2517, %v5536, 0
      %v5632 = vsel %vm2517, %v5537, 0
      %v5635 = vsel %vm2517, %v5538, 0
      %v5638 = vsel %vm2517, %v5539, 0
      %v5641 = vsel %vm2517, %v5540, 0
      %v5644 = vsel %vm2517, %v5541, 0
      %5646 = vmatprep.subr.mxu0 0.0
      %5647 = vmatpush1.msra.mxu0 0.0
      %5648 = vmatprep.subr.mxu0 0.0
      %5649 = vmatpush1.msra.mxu0 0.0
      %5650 = vmatprep.subr.mxu0 0.0
      %5651 = vmatpush1.msra.mxu0 0.0
      %5652 = vmatprep.subr.mxu0 0.0
      %5653 = vmatpush1.msra.mxu0 0.0
      %5654 = vmatprep.subr.mxu0 0.0
      %5655 = vmatpush1.msra.mxu0 0.0
      %5656 = vmatprep.subr.mxu0 0.0
      %5657 = vmatpush1.msra.mxu0 0.0
      %5658 = vmatprep.subr.mxu0 0.0
      %5659 = vmatpush1.msra.mxu0 0.0
      %5660 = vmatprep.subr.mxu0 0.0
      %5661 = vmatpush1.msra.mxu0 0.0
      %5662 = vmatprep.subr.mxu0 %v5605
      %5663 = vmatpush1.msra.mxu0 %v5604
      %5664 = vmatprep.subr.mxu0 %v5603
      %5665 = vmatpush1.msra.mxu0 %v5602
      %5666 = vmatprep.subr.mxu0 %v5601
      %5667 = vmatpush1.msra.mxu0 %v5600
      %5668 = vmatprep.subr.mxu0 %v5599
      %5669 = vmatpush1.msra.mxu0 %v5598
      %5670 = vmatprep.subr.mxu0 %v5597
      %5671 = vmatpush1.msra.mxu0 %v5596
      %5672 = vmatprep.subr.mxu0 %v5595
      %5673 = vmatpush1.msra.mxu0 %v5594
      %5674 = vmatprep.subr.mxu0 %v5593
      %5675 = vmatpush1.msra.mxu0 %v5592
      %5676 = vmatprep.subr.mxu0 %v5591
      %5677 = vmatpush1.msra.mxu0 %v5590
      %5678 = vmatprep.subr.mxu0 0.0
      %5679 = vmatpush2.msra.mxu0 0.0
      %5680 = vmatprep.subr.mxu0 0.0
      %5681 = vmatpush2.msra.mxu0 0.0
      %5682 = vmatprep.subr.mxu0 0.0
      %5683 = vmatpush2.msra.mxu0 0.0
      %5684 = vmatprep.subr.mxu0 0.0
      %5685 = vmatpush2.msra.mxu0 0.0
      %5686 = vmatprep.subr.mxu0 0.0
      %5687 = vmatpush2.msra.mxu0 0.0
      %5688 = vmatprep.subr.mxu0 0.0
      %5689 = vmatpush2.msra.mxu0 0.0
      %5690 = vmatprep.subr.mxu0 0.0
      %5691 = vmatpush2.msra.mxu0 0.0
      %5692 = vmatprep.subr.mxu0 0.0
      %5693 = vmatpush2.msra.mxu0 0.0
      %5694 = vmatprep.subr.mxu0 0.0
      %5695 = vmatpush2.msra.mxu0 0.0
      %5696 = vmatprep.subr.mxu0 0.0
      %5697 = vmatpush2.msra.mxu0 0.0
      %5698 = vmatprep.subr.mxu0 0.0
      %5699 = vmatpush2.msra.mxu0 0.0
      %5700 = vmatprep.subr.mxu0 0.0
      %5701 = vmatpush2.msra.mxu0 0.0
      %5702 = vmatprep.subr.mxu0 0.0
      %5703 = vmatpush2.msra.mxu0 0.0
      %5704 = vmatprep.subr.mxu0 0.0
      %5705 = vmatpush2.msra.mxu0 0.0
      %5706 = vmatprep.subr.mxu0 0.0
      %5707 = vmatpush2.msra.mxu0 0.0
      %5708 = vmatprep.subr.mxu0 0.0
      %5709 = vmatpush2.msra.mxu0 0.0
      %5710 = vmatprep.mubr.f32.mxu0 0.0
      %5711 = vmatmul.mubr.f32.gmra.mxu0 %v5623
      %v5712 = vpop.f32.mrf.mxu0
      %v5713 = vadd.f32 0.0, %v5712
      %v5714 = vpop.f32.mrf.mxu0
      %v5715 = vadd.f32 0.0, %v5714
      %5716 = vmatprep.mubr.f32.mxu0 0.0
      %5717 = vmatmul.mubr.f32.gmra.mxu0 %v5626
      %v5718 = vpop.f32.mrf.mxu0
      %v5719 = vadd.f32 0.0, %v5718
      %v5720 = vpop.f32.mrf.mxu0
      %v5721 = vadd.f32 0.0, %v5720
      %5722 = vmatprep.mubr.f32.mxu0 0.0
      %5723 = vmatmul.mubr.f32.gmra.mxu0 %v5629
      %v5724 = vpop.f32.mrf.mxu0
      %v5725 = vadd.f32 0.0, %v5724
      %v5726 = vpop.f32.mrf.mxu0
      %v5727 = vadd.f32 0.0, %v5726
      %5728 = vmatprep.mubr.f32.mxu0 0.0
      %5729 = vmatmul.mubr.f32.gmra.mxu0 %v5632
      %v5730 = vpop.f32.mrf.mxu0
      %v5731 = vadd.f32 0.0, %v5730
      %v5732 = vpop.f32.mrf.mxu0
      %v5733 = vadd.f32 0.0, %v5732
      %5734 = vmatprep.mubr.f32.mxu0 0.0
      %5735 = vmatmul.mubr.f32.gmra.mxu0 %v5635
      %v5736 = vpop.f32.mrf.mxu0
      %v5737 = vadd.f32 0.0, %v5736
      %v5738 = vpop.f32.mrf.mxu0
      %v5739 = vadd.f32 0.0, %v5738
      %5740 = vmatprep.mubr.f32.mxu0 0.0
      %5741 = vmatmul.mubr.f32.gmra.mxu0 %v5638
      %v5742 = vpop.f32.mrf.mxu0
      %v5743 = vadd.f32 0.0, %v5742
      %v5744 = vpop.f32.mrf.mxu0
      %v5745 = vadd.f32 0.0, %v5744
      %5746 = vmatprep.mubr.f32.mxu0 0.0
      %5747 = vmatmul.mubr.f32.gmra.mxu0 %v5641
      %v5748 = vpop.f32.mrf.mxu0
      %v5749 = vadd.f32 0.0, %v5748
      %v5750 = vpop.f32.mrf.mxu0
      %v5751 = vadd.f32 0.0, %v5750
      %5752 = vmatprep.mubr.f32.mxu0 0.0
      %5753 = vmatmul.mubr.f32.gmra.mxu0 %v5644
      %v5754 = vpop.f32.mrf.mxu0
      %v5755 = vadd.f32 0.0, %v5754
      %v5756 = vpop.f32.mrf.mxu0
      %v5757 = vadd.f32 0.0, %v5756
      %5758 = vdwg.mxu0
      %v5759 = vadd.f32 %v5517, %v5713
      %v5760 = vadd.f32 %v5518, %v5715
      %v5761 = vadd.f32 %v5519, %v5719
      %v5762 = vadd.f32 %v5520, %v5721
      %v5763 = vadd.f32 %v5521, %v5725
      %v5764 = vadd.f32 %v5522, %v5727
      %v5765 = vadd.f32 %v5523, %v5731
      %v5766 = vadd.f32 %v5524, %v5733
      %v5767 = vadd.f32 %v5525, %v5737
      %v5768 = vadd.f32 %v5526, %v5739
      %v5769 = vadd.f32 %v5527, %v5743
      %v5770 = vadd.f32 %v5528, %v5745
      %v5771 = vadd.f32 %v5529, %v5749
      %v5772 = vadd.f32 %v5530, %v5751
      %v5773 = vadd.f32 %v5531, %v5755
      %v5774 = vadd.f32 %v5532, %v5757
      %5775 = vrot.lane.b32.xlu0 %v3584, 79
      %v5776 = vpop.permute.xlu0 %5775
      %5777 = vrot.lane.b32.xlu0 %v3585, 79
      %v5778 = vpop.permute.xlu0 %5777
      %5779 = vrot.lane.b32.xlu0 %v3586, 79
      %v5780 = vpop.permute.xlu0 %5779
      %5781 = vrot.lane.b32.xlu0 %v3587, 79
      %v5782 = vpop.permute.xlu0 %5781
      %5783 = vrot.lane.b32.xlu0 %v3588, 79
      %v5784 = vpop.permute.xlu0 %5783
      %5785 = vrot.lane.b32.xlu0 %v3589, 79
      %v5786 = vpop.permute.xlu0 %5785
      %5787 = vrot.lane.b32.xlu0 %v3590, 79
      %v5788 = vpop.permute.xlu0 %5787
      %5789 = vrot.lane.b32.xlu0 %v3591, 79
      %v5790 = vpop.permute.xlu0 %5789
      %5791 = vrot.lane.b32.xlu0 %v3592, 79
      %v5792 = vpop.permute.xlu0 %5791
      %5793 = vrot.lane.b32.xlu0 %v3593, 79
      %v5794 = vpop.permute.xlu0 %5793
      %5795 = vrot.lane.b32.xlu0 %v3594, 79
      %v5796 = vpop.permute.xlu0 %5795
      %5797 = vrot.lane.b32.xlu0 %v3595, 79
      %v5798 = vpop.permute.xlu0 %5797
      %5799 = vrot.lane.b32.xlu0 %v3596, 79
      %v5800 = vpop.permute.xlu0 %5799
      %5801 = vrot.lane.b32.xlu0 %v3597, 79
      %v5802 = vpop.permute.xlu0 %5801
      %5803 = vrot.lane.b32.xlu0 %v3598, 79
      %v5804 = vpop.permute.xlu0 %5803
      %5805 = vrot.lane.b32.xlu0 %v3599, 79
      %v5806 = vpop.permute.xlu0 %5805
      %5807 = vrot.lane.b32.xlu0 %v3600, 79
      %v5808 = vpop.permute.xlu0 %5807
      %5809 = vrot.lane.b32.xlu0 %v3601, 79
      %v5810 = vpop.permute.xlu0 %5809
      %5811 = vrot.lane.b32.xlu0 %v3602, 79
      %v5812 = vpop.permute.xlu0 %5811
      %5813 = vrot.lane.b32.xlu0 %v3603, 79
      %v5814 = vpop.permute.xlu0 %5813
      %5815 = vrot.lane.b32.xlu0 %v3604, 79
      %v5816 = vpop.permute.xlu0 %5815
      %5817 = vrot.lane.b32.xlu0 %v3605, 79
      %v5818 = vpop.permute.xlu0 %5817
      %5819 = vrot.lane.b32.xlu0 %v3606, 79
      %v5820 = vpop.permute.xlu0 %5819
      %5821 = vrot.lane.b32.xlu0 %v3607, 79
      %v5822 = vpop.permute.xlu0 %5821
      %v5823 = vsel %vm2258, %v5776, %v5778
      %v5824 = vsel %vm2258, %v5778, %v5780
      %v5825 = vsel %vm2258, %v5782, %v5784
      %v5826 = vsel %vm2258, %v5784, %v5786
      %v5827 = vsel %vm2258, %v5788, %v5790
      %v5828 = vsel %vm2258, %v5790, %v5792
      %v5829 = vsel %vm2258, %v5794, %v5796
      %v5830 = vsel %vm2258, %v5796, %v5798
      %v5831 = vsel %vm2258, %v5800, %v5802
      %v5832 = vsel %vm2258, %v5802, %v5804
      %v5833 = vsel %vm2258, %v5806, %v5808
      %v5834 = vsel %vm2258, %v5808, %v5810
      %v5835 = vsel %vm2258, %v5812, %v5814
      %v5836 = vsel %vm2258, %v5814, %v5816
      %v5837 = vsel %vm2258, %v5818, %v5820
      %v5838 = vsel %vm2258, %v5820, %v5822
      %v5855 = vsel %vm495, %v5065, %v5823
      %v5856 = vsel %vm496, %v5066, %v5824
      %v5857 = vsel %vm495, %v5067, %v5825
      %v5858 = vsel %vm496, %v5068, %v5826
      %v5859 = vsel %vm495, %v5069, %v5827
      %v5860 = vsel %vm496, %v5070, %v5828
      %v5861 = vsel %vm495, %v5071, %v5829
      %v5862 = vsel %vm496, %v5072, %v5830
      %v5863 = vsel %vm495, %v5073, %v5831
      %v5864 = vsel %vm496, %v5074, %v5832
      %v5865 = vsel %vm495, %v5075, %v5833
      %v5866 = vsel %vm496, %v5076, %v5834
      %v5867 = vsel %vm495, %v5077, %v5835
      %v5868 = vsel %vm496, %v5078, %v5836
      %v5869 = vsel %vm495, %v5079, %v5837
      %v5870 = vsel %vm496, %v5080, %v5838
      %s5871 = scalar_lea.vmem %s6, 512
      %v5872 = vld [vmem:[%s5871] sm:$0xff]
      %v5873 = vld [vmem:[%s5871 + $0x8] sm:$0xff]
      %v5874 = vld [vmem:[%s5871 + $0x10] sm:$0xff]
      %v5875 = vld [vmem:[%s5871 + $0x18] sm:$0xff]
      %v5876 = vld [vmem:[%s5871 + $0x20] sm:$0xff]
      %v5877 = vld [vmem:[%s5871 + $0x28] sm:$0xff]
      %v5878 = vld [vmem:[%s5871 + $0x30] sm:$0xff]
      %v5879 = vld [vmem:[%s5871 + $0x38] sm:$0xff]
      %v5881 = vsel %vm2517, %v5872, 0
      %v5884 = vsel %vm2517, %v5873, 0
      %v5887 = vsel %vm2517, %v5874, 0
      %v5890 = vsel %vm2517, %v5875, 0
      %v5893 = vsel %vm2517, %v5876, 0
      %v5896 = vsel %vm2517, %v5877, 0
      %v5899 = vsel %vm2517, %v5878, 0
      %v5902 = vsel %vm2517, %v5879, 0
      %5904 = vmatprep.subr.mxu0 0.0
      %5905 = vmatpush1.msra.mxu0 0.0
      %5906 = vmatprep.subr.mxu0 0.0
      %5907 = vmatpush1.msra.mxu0 0.0
      %5908 = vmatprep.subr.mxu0 0.0
      %5909 = vmatpush1.msra.mxu0 0.0
      %5910 = vmatprep.subr.mxu0 0.0
      %5911 = vmatpush1.msra.mxu0 0.0
      %5912 = vmatprep.subr.mxu0 0.0
      %5913 = vmatpush1.msra.mxu0 0.0
      %5914 = vmatprep.subr.mxu0 0.0
      %5915 = vmatpush1.msra.mxu0 0.0
      %5916 = vmatprep.subr.mxu0 0.0
      %5917 = vmatpush1.msra.mxu0 0.0
      %5918 = vmatprep.subr.mxu0 0.0
      %5919 = vmatpush1.msra.mxu0 0.0
      %5920 = vmatprep.subr.mxu0 %v5870
      %5921 = vmatpush1.msra.mxu0 %v5869
      %5922 = vmatprep.subr.mxu0 %v5868
      %5923 = vmatpush1.msra.mxu0 %v5867
      %5924 = vmatprep.subr.mxu0 %v5866
      %5925 = vmatpush1.msra.mxu0 %v5865
      %5926 = vmatprep.subr.mxu0 %v5864
      %5927 = vmatpush1.msra.mxu0 %v5863
      %5928 = vmatprep.subr.mxu0 %v5862
      %5929 = vmatpush1.msra.mxu0 %v5861
      %5930 = vmatprep.subr.mxu0 %v5860
      %5931 = vmatpush1.msra.mxu0 %v5859
      %5932 = vmatprep.subr.mxu0 %v5858
      %5933 = vmatpush1.msra.mxu0 %v5857
      %5934 = vmatprep.subr.mxu0 %v5856
      %5935 = vmatpush1.msra.mxu0 %v5855
      %5936 = vmatprep.subr.mxu0 0.0
      %5937 = vmatpush2.msra.mxu0 0.0
      %5938 = vmatprep.subr.mxu0 0.0
      %5939 = vmatpush2.msra.mxu0 0.0
      %5940 = vmatprep.subr.mxu0 0.0
      %5941 = vmatpush2.msra.mxu0 0.0
      %5942 = vmatprep.subr.mxu0 0.0
      %5943 = vmatpush2.msra.mxu0 0.0
      %5944 = vmatprep.subr.mxu0 0.0
      %5945 = vmatpush2.msra.mxu0 0.0
      %5946 = vmatprep.subr.mxu0 0.0
      %5947 = vmatpush2.msra.mxu0 0.0
      %5948 = vmatprep.subr.mxu0 0.0
      %5949 = vmatpush2.msra.mxu0 0.0
      %5950 = vmatprep.subr.mxu0 0.0
      %5951 = vmatpush2.msra.mxu0 0.0
      %5952 = vmatprep.subr.mxu0 0.0
      %5953 = vmatpush2.msra.mxu0 0.0
      %5954 = vmatprep.subr.mxu0 0.0
      %5955 = vmatpush2.msra.mxu0 0.0
      %5956 = vmatprep.subr.mxu0 0.0
      %5957 = vmatpush2.msra.mxu0 0.0
      %5958 = vmatprep.subr.mxu0 0.0
      %5959 = vmatpush2.msra.mxu0 0.0
      %5960 = vmatprep.subr.mxu0 0.0
      %5961 = vmatpush2.msra.mxu0 0.0
      %5962 = vmatprep.subr.mxu0 0.0
      %5963 = vmatpush2.msra.mxu0 0.0
      %5964 = vmatprep.subr.mxu0 0.0
      %5965 = vmatpush2.msra.mxu0 0.0
      %5966 = vmatprep.subr.mxu0 0.0
      %5967 = vmatpush2.msra.mxu0 0.0
      %5968 = vmatprep.mubr.f32.mxu0 0.0
      %5969 = vmatmul.mubr.f32.gmra.mxu0 %v5881
      %v5970 = vpop.f32.mrf.mxu0
      %v5971 = vadd.f32 0.0, %v5970
      %v5972 = vpop.f32.mrf.mxu0
      %v5973 = vadd.f32 0.0, %v5972
      %5974 = vmatprep.mubr.f32.mxu0 0.0
      %5975 = vmatmul.mubr.f32.gmra.mxu0 %v5884
      %v5976 = vpop.f32.mrf.mxu0
      %v5977 = vadd.f32 0.0, %v5976
      %v5978 = vpop.f32.mrf.mxu0
      %v5979 = vadd.f32 0.0, %v5978
      %5980 = vmatprep.mubr.f32.mxu0 0.0
      %5981 = vmatmul.mubr.f32.gmra.mxu0 %v5887
      %v5982 = vpop.f32.mrf.mxu0
      %v5983 = vadd.f32 0.0, %v5982
      %v5984 = vpop.f32.mrf.mxu0
      %v5985 = vadd.f32 0.0, %v5984
      %5986 = vmatprep.mubr.f32.mxu0 0.0
      %5987 = vmatmul.mubr.f32.gmra.mxu0 %v5890
      %v5988 = vpop.f32.mrf.mxu0
      %v5989 = vadd.f32 0.0, %v5988
      %v5990 = vpop.f32.mrf.mxu0
      %v5991 = vadd.f32 0.0, %v5990
      %5992 = vmatprep.mubr.f32.mxu0 0.0
      %5993 = vmatmul.mubr.f32.gmra.mxu0 %v5893
      %v5994 = vpop.f32.mrf.mxu0
      %v5995 = vadd.f32 0.0, %v5994
      %v5996 = vpop.f32.mrf.mxu0
      %v5997 = vadd.f32 0.0, %v5996
      %5998 = vmatprep.mubr.f32.mxu0 0.0
      %5999 = vmatmul.mubr.f32.gmra.mxu0 %v5896
      %v6000 = vpop.f32.mrf.mxu0
      %v6001 = vadd.f32 0.0, %v6000
      %v6002 = vpop.f32.mrf.mxu0
      %v6003 = vadd.f32 0.0, %v6002
      %6004 = vmatprep.mubr.f32.mxu0 0.0
      %6005 = vmatmul.mubr.f32.gmra.mxu0 %v5899
      %v6006 = vpop.f32.mrf.mxu0
      %v6007 = vadd.f32 0.0, %v6006
      %v6008 = vpop.f32.mrf.mxu0
      %v6009 = vadd.f32 0.0, %v6008
      %6010 = vmatprep.mubr.f32.mxu0 0.0
      %6011 = vmatmul.mubr.f32.gmra.mxu0 %v5902
      %v6012 = vpop.f32.mrf.mxu0
      %v6013 = vadd.f32 0.0, %v6012
      %v6014 = vpop.f32.mrf.mxu0
      %v6015 = vadd.f32 0.0, %v6014
      %6016 = vdwg.mxu0
      %v6017 = vadd.f32 %v5759, %v5971
      %v6018 = vadd.f32 %v5760, %v5973
      %v6019 = vadd.f32 %v5761, %v5977
      %v6020 = vadd.f32 %v5762, %v5979
      %v6021 = vadd.f32 %v5763, %v5983
      %v6022 = vadd.f32 %v5764, %v5985
      %v6023 = vadd.f32 %v5765, %v5989
      %v6024 = vadd.f32 %v5766, %v5991
      %v6025 = vadd.f32 %v5767, %v5995
      %v6026 = vadd.f32 %v5768, %v5997
      %v6027 = vadd.f32 %v5769, %v6001
      %v6028 = vadd.f32 %v5770, %v6003
      %v6029 = vadd.f32 %v5771, %v6007
      %v6030 = vadd.f32 %v5772, %v6009
      %v6031 = vadd.f32 %v5773, %v6013
      %v6032 = vadd.f32 %v5774, %v6015
      %v6033 = vld [vmem:[%s7] sm:$0xff]
      %v6034 = vld [vmem:[%s7 + $0x8] sm:$0xff]
      %v6035 = vld [vmem:[%s7 + $0x10] sm:$0xff]
      %v6036 = vld [vmem:[%s7 + $0x18] sm:$0xff]
      %v6037 = vld [vmem:[%s7 + $0x20] sm:$0xff]
      %v6038 = vld [vmem:[%s7 + $0x28] sm:$0xff]
      %v6039 = vld [vmem:[%s7 + $0x30] sm:$0xff]
      %v6040 = vld [vmem:[%s7 + $0x38] sm:$0xff]
      %6042 = vset.pattern.permute.xlu0 0
      %6043 = vperm.xlu0 %6042, %v6033
      %v6044 = vpop.permute.xlu0 %6043
      %6047 = vset.pattern.permute.xlu0 0
      %6048 = vperm.xlu0 %6047, %v6034
      %v6049 = vpop.permute.xlu0 %6048
      %6052 = vset.pattern.permute.xlu0 0
      %6053 = vperm.xlu0 %6052, %v6035
      %v6054 = vpop.permute.xlu0 %6053
      %6057 = vset.pattern.permute.xlu0 0
      %6058 = vperm.xlu0 %6057, %v6036
      %v6059 = vpop.permute.xlu0 %6058
      %6062 = vset.pattern.permute.xlu0 0
      %6063 = vperm.xlu0 %6062, %v6037
      %v6064 = vpop.permute.xlu0 %6063
      %6067 = vset.pattern.permute.xlu0 0
      %6068 = vperm.xlu0 %6067, %v6038
      %v6069 = vpop.permute.xlu0 %6068
      %6072 = vset.pattern.permute.xlu0 0
      %6073 = vperm.xlu0 %6072, %v6039
      %v6074 = vpop.permute.xlu0 %6073
      %6077 = vset.pattern.permute.xlu0 0
      %6078 = vperm.xlu0 %6077, %v6040
      %v6079 = vpop.permute.xlu0 %6078
      %v6081 = vadd.f32 %v6017, %v6044
      %v6082 = vadd.f32 %v6018, %v6044
      %v6083 = vadd.f32 %v6019, %v6049
      %v6084 = vadd.f32 %v6020, %v6049
      %v6085 = vadd.f32 %v6021, %v6054
      %v6086 = vadd.f32 %v6022, %v6054
      %v6087 = vadd.f32 %v6023, %v6059
      %v6088 = vadd.f32 %v6024, %v6059
      %v6089 = vadd.f32 %v6025, %v6064
      %v6090 = vadd.f32 %v6026, %v6064
      %v6091 = vadd.f32 %v6027, %v6069
      %v6092 = vadd.f32 %v6028, %v6069
      %v6093 = vadd.f32 %v6029, %v6074
      %v6094 = vadd.f32 %v6030, %v6074
      %v6095 = vadd.f32 %v6031, %v6079
      %v6096 = vadd.f32 %v6032, %v6079
      %v6097 = vld [vmem:[%s8] sm:$0xff]
      %v6098 = vld [vmem:[%s8 + $0x8] sm:$0xff]
      %v6099 = vld [vmem:[%s8 + $0x10] sm:$0xff]
      %v6100 = vld [vmem:[%s8 + $0x18] sm:$0xff]
      %v6101 = vld [vmem:[%s8 + $0x20] sm:$0xff]
      %v6102 = vld [vmem:[%s8 + $0x28] sm:$0xff]
      %v6103 = vld [vmem:[%s8 + $0x30] sm:$0xff]
      %v6104 = vld [vmem:[%s8 + $0x38] sm:$0xff]
      %v6106 = vsel %vm2517, %v6097, 0
      %v6109 = vsel %vm2517, %v6098, 0
      %v6112 = vsel %vm2517, %v6099, 0
      %v6115 = vsel %vm2517, %v6100, 0
      %v6118 = vsel %vm2517, %v6101, 0
      %v6121 = vsel %vm2517, %v6102, 0
      %v6124 = vsel %vm2517, %v6103, 0
      %v6127 = vsel %vm2517, %v6104, 0
      %6129 = vmatprep.subr.mxu0 0.0
      %6130 = vmatpush1.msra.mxu0 0.0
      %6131 = vmatprep.subr.mxu0 0.0
      %6132 = vmatpush1.msra.mxu0 0.0
      %6133 = vmatprep.subr.mxu0 0.0
      %6134 = vmatpush1.msra.mxu0 0.0
      %6135 = vmatprep.subr.mxu0 0.0
      %6136 = vmatpush1.msra.mxu0 0.0
      %6137 = vmatprep.subr.mxu0 0.0
      %6138 = vmatpush1.msra.mxu0 0.0
      %6139 = vmatprep.subr.mxu0 0.0
      %6140 = vmatpush1.msra.mxu0 0.0
      %6141 = vmatprep.subr.mxu0 0.0
      %6142 = vmatpush1.msra.mxu0 0.0
      %6143 = vmatprep.subr.mxu0 0.0
      %6144 = vmatpush1.msra.mxu0 0.0
      %6145 = vmatprep.subr.mxu0 %v6096
      %6146 = vmatpush1.msra.mxu0 %v6095
      %6147 = vmatprep.subr.mxu0 %v6094
      %6148 = vmatpush1.msra.mxu0 %v6093
      %6149 = vmatprep.subr.mxu0 %v6092
      %6150 = vmatpush1.msra.mxu0 %v6091
      %6151 = vmatprep.subr.mxu0 %v6090
      %6152 = vmatpush1.msra.mxu0 %v6089
      %6153 = vmatprep.subr.mxu0 %v6088
      %6154 = vmatpush1.msra.mxu0 %v6087
      %6155 = vmatprep.subr.mxu0 %v6086
      %6156 = vmatpush1.msra.mxu0 %v6085
      %6157 = vmatprep.subr.mxu0 %v6084
      %6158 = vmatpush1.msra.mxu0 %v6083
      %6159 = vmatprep.subr.mxu0 %v6082
      %6160 = vmatpush1.msra.mxu0 %v6081
      %6161 = vmatprep.subr.mxu0 0.0
      %6162 = vmatpush2.msra.mxu0 0.0
      %6163 = vmatprep.subr.mxu0 0.0
      %6164 = vmatpush2.msra.mxu0 0.0
      %6165 = vmatprep.subr.mxu0 0.0
      %6166 = vmatpush2.msra.mxu0 0.0
      %6167 = vmatprep.subr.mxu0 0.0
      %6168 = vmatpush2.msra.mxu0 0.0
      %6169 = vmatprep.subr.mxu0 0.0
      %6170 = vmatpush2.msra.mxu0 0.0
      %6171 = vmatprep.subr.mxu0 0.0
      %6172 = vmatpush2.msra.mxu0 0.0
      %6173 = vmatprep.subr.mxu0 0.0
      %6174 = vmatpush2.msra.mxu0 0.0
      %6175 = vmatprep.subr.mxu0 0.0
      %6176 = vmatpush2.msra.mxu0 0.0
      %6177 = vmatprep.subr.mxu0 0.0
      %6178 = vmatpush2.msra.mxu0 0.0
      %6179 = vmatprep.subr.mxu0 0.0
      %6180 = vmatpush2.msra.mxu0 0.0
      %6181 = vmatprep.subr.mxu0 0.0
      %6182 = vmatpush2.msra.mxu0 0.0
      %6183 = vmatprep.subr.mxu0 0.0
      %6184 = vmatpush2.msra.mxu0 0.0
      %6185 = vmatprep.subr.mxu0 0.0
      %6186 = vmatpush2.msra.mxu0 0.0
      %6187 = vmatprep.subr.mxu0 0.0
      %6188 = vmatpush2.msra.mxu0 0.0
      %6189 = vmatprep.subr.mxu0 0.0
      %6190 = vmatpush2.msra.mxu0 0.0
      %6191 = vmatprep.subr.mxu0 0.0
      %6192 = vmatpush2.msra.mxu0 0.0
      %6193 = vmatprep.mubr.f32.mxu0 0.0
      %6194 = vmatmul.mubr.f32.gmra.mxu0 %v6106
      %v6195 = vpop.f32.mrf.mxu0
      %v6196 = vadd.f32 0.0, %v6195
      %v6197 = vpop.f32.mrf.mxu0
      %v6198 = vadd.f32 0.0, %v6197
      %6199 = vmatprep.mubr.f32.mxu0 0.0
      %6200 = vmatmul.mubr.f32.gmra.mxu0 %v6109
      %v6201 = vpop.f32.mrf.mxu0
      %v6202 = vadd.f32 0.0, %v6201
      %v6203 = vpop.f32.mrf.mxu0
      %v6204 = vadd.f32 0.0, %v6203
      %6205 = vmatprep.mubr.f32.mxu0 0.0
      %6206 = vmatmul.mubr.f32.gmra.mxu0 %v6112
      %v6207 = vpop.f32.mrf.mxu0
      %v6208 = vadd.f32 0.0, %v6207
      %v6209 = vpop.f32.mrf.mxu0
      %v6210 = vadd.f32 0.0, %v6209
      %6211 = vmatprep.mubr.f32.mxu0 0.0
      %6212 = vmatmul.mubr.f32.gmra.mxu0 %v6115
      %v6213 = vpop.f32.mrf.mxu0
      %v6214 = vadd.f32 0.0, %v6213
      %v6215 = vpop.f32.mrf.mxu0
      %v6216 = vadd.f32 0.0, %v6215
      %6217 = vmatprep.mubr.f32.mxu0 0.0
      %6218 = vmatmul.mubr.f32.gmra.mxu0 %v6118
      %v6219 = vpop.f32.mrf.mxu0
      %v6220 = vadd.f32 0.0, %v6219
      %v6221 = vpop.f32.mrf.mxu0
      %v6222 = vadd.f32 0.0, %v6221
      %6223 = vmatprep.mubr.f32.mxu0 0.0
      %6224 = vmatmul.mubr.f32.gmra.mxu0 %v6121
      %v6225 = vpop.f32.mrf.mxu0
      %v6226 = vadd.f32 0.0, %v6225
      %v6227 = vpop.f32.mrf.mxu0
      %v6228 = vadd.f32 0.0, %v6227
      %6229 = vmatprep.mubr.f32.mxu0 0.0
      %6230 = vmatmul.mubr.f32.gmra.mxu0 %v6124
      %v6231 = vpop.f32.mrf.mxu0
      %v6232 = vadd.f32 0.0, %v6231
      %v6233 = vpop.f32.mrf.mxu0
      %v6234 = vadd.f32 0.0, %v6233
      %6235 = vmatprep.mubr.f32.mxu0 0.0
      %6236 = vmatmul.mubr.f32.gmra.mxu0 %v6127
      %v6237 = vpop.f32.mrf.mxu0
      %v6238 = vadd.f32 0.0, %v6237
      %v6239 = vpop.f32.mrf.mxu0
      %v6240 = vadd.f32 0.0, %v6239
      %6241 = vdwg.mxu0
      %v6242 = vmul.f32 %v6081, %v6081
      %v6243 = vmul.f32 %v6082, %v6082
      %v6244 = vmul.f32 %v6083, %v6083
      %v6245 = vmul.f32 %v6084, %v6084
      %v6246 = vmul.f32 %v6085, %v6085
      %v6247 = vmul.f32 %v6086, %v6086
      %v6248 = vmul.f32 %v6087, %v6087
      %v6249 = vmul.f32 %v6088, %v6088
      %v6250 = vmul.f32 %v6089, %v6089
      %v6251 = vmul.f32 %v6090, %v6090
      %v6252 = vmul.f32 %v6091, %v6091
      %v6253 = vmul.f32 %v6092, %v6092
      %v6254 = vmul.f32 %v6093, %v6093
      %v6255 = vmul.f32 %v6094, %v6094
      %v6256 = vmul.f32 %v6095, %v6095
      %v6257 = vmul.f32 %v6096, %v6096
      %6258 = vmatprep.subr.mxu0 0.0
      %6259 = vmatpush1.msra.mxu0 0.0
      %6260 = vmatprep.subr.mxu0 0.0
      %6261 = vmatpush1.msra.mxu0 0.0
      %6262 = vmatprep.subr.mxu0 0.0
      %6263 = vmatpush1.msra.mxu0 0.0
      %6264 = vmatprep.subr.mxu0 0.0
      %6265 = vmatpush1.msra.mxu0 0.0
      %6266 = vmatprep.subr.mxu0 0.0
      %6267 = vmatpush1.msra.mxu0 0.0
      %6268 = vmatprep.subr.mxu0 0.0
      %6269 = vmatpush1.msra.mxu0 0.0
      %6270 = vmatprep.subr.mxu0 0.0
      %6271 = vmatpush1.msra.mxu0 0.0
      %6272 = vmatprep.subr.mxu0 0.0
      %6273 = vmatpush1.msra.mxu0 0.0
      %6274 = vmatprep.subr.mxu0 %v6257
      %6275 = vmatpush1.msra.mxu0 %v6256
      %6276 = vmatprep.subr.mxu0 %v6255
      %6277 = vmatpush1.msra.mxu0 %v6254
      %6278 = vmatprep.subr.mxu0 %v6253
      %6279 = vmatpush1.msra.mxu0 %v6252
      %6280 = vmatprep.subr.mxu0 %v6251
      %6281 = vmatpush1.msra.mxu0 %v6250
      %6282 = vmatprep.subr.mxu0 %v6249
      %6283 = vmatpush1.msra.mxu0 %v6248
      %6284 = vmatprep.subr.mxu0 %v6247
      %6285 = vmatpush1.msra.mxu0 %v6246
      %6286 = vmatprep.subr.mxu0 %v6245
      %6287 = vmatpush1.msra.mxu0 %v6244
      %6288 = vmatprep.subr.mxu0 %v6243
      %6289 = vmatpush1.msra.mxu0 %v6242
      %6290 = vmatprep.subr.mxu0 0.0
      %6291 = vmatpush2.msra.mxu0 0.0
      %6292 = vmatprep.subr.mxu0 0.0
      %6293 = vmatpush2.msra.mxu0 0.0
      %6294 = vmatprep.subr.mxu0 0.0
      %6295 = vmatpush2.msra.mxu0 0.0
      %6296 = vmatprep.subr.mxu0 0.0
      %6297 = vmatpush2.msra.mxu0 0.0
      %6298 = vmatprep.subr.mxu0 0.0
      %6299 = vmatpush2.msra.mxu0 0.0
      %6300 = vmatprep.subr.mxu0 0.0
      %6301 = vmatpush2.msra.mxu0 0.0
      %6302 = vmatprep.subr.mxu0 0.0
      %6303 = vmatpush2.msra.mxu0 0.0
      %6304 = vmatprep.subr.mxu0 0.0
      %6305 = vmatpush2.msra.mxu0 0.0
      %6306 = vmatprep.subr.mxu0 0.0
      %6307 = vmatpush2.msra.mxu0 0.0
      %6308 = vmatprep.subr.mxu0 0.0
      %6309 = vmatpush2.msra.mxu0 0.0
      %6310 = vmatprep.subr.mxu0 0.0
      %6311 = vmatpush2.msra.mxu0 0.0
      %6312 = vmatprep.subr.mxu0 0.0
      %6313 = vmatpush2.msra.mxu0 0.0
      %6314 = vmatprep.subr.mxu0 0.0
      %6315 = vmatpush2.msra.mxu0 0.0
      %6316 = vmatprep.subr.mxu0 0.0
      %6317 = vmatpush2.msra.mxu0 0.0
      %6318 = vmatprep.subr.mxu0 0.0
      %6319 = vmatpush2.msra.mxu0 0.0
      %6320 = vmatprep.subr.mxu0 0.0
      %6321 = vmatpush2.msra.mxu0 0.0
      %6322 = vmatprep.mubr.f32.mxu0 0.0
      %6323 = vmatmul.mubr.f32.gmra.mxu0 %v6106
      %v6324 = vpop.f32.mrf.mxu0
      %v6325 = vadd.f32 0.0, %v6324
      %v6326 = vpop.f32.mrf.mxu0
      %v6327 = vadd.f32 0.0, %v6326
      %6328 = vmatprep.mubr.f32.mxu0 0.0
      %6329 = vmatmul.mubr.f32.gmra.mxu0 %v6109
      %v6330 = vpop.f32.mrf.mxu0
      %v6331 = vadd.f32 0.0, %v6330
      %v6332 = vpop.f32.mrf.mxu0
      %v6333 = vadd.f32 0.0, %v6332
      %6334 = vmatprep.mubr.f32.mxu0 0.0
      %6335 = vmatmul.mubr.f32.gmra.mxu0 %v6112
      %v6336 = vpop.f32.mrf.mxu0
      %v6337 = vadd.f32 0.0, %v6336
      %v6338 = vpop.f32.mrf.mxu0
      %v6339 = vadd.f32 0.0, %v6338
      %6340 = vmatprep.mubr.f32.mxu0 0.0
      %6341 = vmatmul.mubr.f32.gmra.mxu0 %v6115
      %v6342 = vpop.f32.mrf.mxu0
      %v6343 = vadd.f32 0.0, %v6342
      %v6344 = vpop.f32.mrf.mxu0
      %v6345 = vadd.f32 0.0, %v6344
      %6346 = vmatprep.mubr.f32.mxu0 0.0
      %6347 = vmatmul.mubr.f32.gmra.mxu0 %v6118
      %v6348 = vpop.f32.mrf.mxu0
      %v6349 = vadd.f32 0.0, %v6348
      %v6350 = vpop.f32.mrf.mxu0
      %v6351 = vadd.f32 0.0, %v6350
      %6352 = vmatprep.mubr.f32.mxu0 0.0
      %6353 = vmatmul.mubr.f32.gmra.mxu0 %v6121
      %v6354 = vpop.f32.mrf.mxu0
      %v6355 = vadd.f32 0.0, %v6354
      %v6356 = vpop.f32.mrf.mxu0
      %v6357 = vadd.f32 0.0, %v6356
      %6358 = vmatprep.mubr.f32.mxu0 0.0
      %6359 = vmatmul.mubr.f32.gmra.mxu0 %v6124
      %v6360 = vpop.f32.mrf.mxu0
      %v6361 = vadd.f32 0.0, %v6360
      %v6362 = vpop.f32.mrf.mxu0
      %v6363 = vadd.f32 0.0, %v6362
      %6364 = vmatprep.mubr.f32.mxu0 0.0
      %6365 = vmatmul.mubr.f32.gmra.mxu0 %v6127
      %v6366 = vpop.f32.mrf.mxu0
      %v6367 = vadd.f32 0.0, %v6366
      %v6368 = vpop.f32.mrf.mxu0
      %v6369 = vadd.f32 0.0, %v6368
      %6370 = vdwg.mxu0
      %v6371 = vadd.f32 %v6196, %v6198
      %6372 = vadd.xlane.f32.xlu0 %v6371
      %v6373 = vpop.xlane.xlu0 %6372
      %v6374 = vadd.f32 %v6202, %v6204
      %6375 = vadd.xlane.f32.xlu0 %v6374
      %v6376 = vpop.xlane.xlu0 %6375
      %v6377 = vadd.f32 %v6208, %v6210
      %6378 = vadd.xlane.f32.xlu0 %v6377
      %v6379 = vpop.xlane.xlu0 %6378
      %v6380 = vadd.f32 %v6214, %v6216
      %6381 = vadd.xlane.f32.xlu0 %v6380
      %v6382 = vpop.xlane.xlu0 %6381
      %v6383 = vadd.f32 %v6220, %v6222
      %6384 = vadd.xlane.f32.xlu0 %v6383
      %v6385 = vpop.xlane.xlu0 %6384
      %v6386 = vadd.f32 %v6226, %v6228
      %6387 = vadd.xlane.f32.xlu0 %v6386
      %v6388 = vpop.xlane.xlu0 %6387
      %v6389 = vadd.f32 %v6232, %v6234
      %6390 = vadd.xlane.f32.xlu0 %v6389
      %v6391 = vpop.xlane.xlu0 %6390
      %v6392 = vadd.f32 %v6238, %v6240
      %6393 = vadd.xlane.f32.xlu0 %v6392
      %v6394 = vpop.xlane.xlu0 %6393
      %v6395 = vadd.f32 %v6325, %v6327
      %6396 = vadd.xlane.f32.xlu0 %v6395
      %v6397 = vpop.xlane.xlu0 %6396
      %v6398 = vadd.f32 %v6331, %v6333
      %6399 = vadd.xlane.f32.xlu0 %v6398
      %v6400 = vpop.xlane.xlu0 %6399
      %v6401 = vadd.f32 %v6337, %v6339
      %6402 = vadd.xlane.f32.xlu0 %v6401
      %v6403 = vpop.xlane.xlu0 %6402
      %v6404 = vadd.f32 %v6343, %v6345
      %6405 = vadd.xlane.f32.xlu0 %v6404
      %v6406 = vpop.xlane.xlu0 %6405
      %v6407 = vadd.f32 %v6349, %v6351
      %6408 = vadd.xlane.f32.xlu0 %v6407
      %v6409 = vpop.xlane.xlu0 %6408
      %v6410 = vadd.f32 %v6355, %v6357
      %6411 = vadd.xlane.f32.xlu0 %v6410
      %v6412 = vpop.xlane.xlu0 %6411
      %v6413 = vadd.f32 %v6361, %v6363
      %6414 = vadd.xlane.f32.xlu0 %v6413
      %v6415 = vpop.xlane.xlu0 %6414
      %v6416 = vadd.f32 %v6367, %v6369
      %6417 = vadd.xlane.f32.xlu0 %v6416
      %v6418 = vpop.xlane.xlu0 %6417
      %v6419 = vmul.f32 %v6373, %v6373
      %v6420 = vmul.f32 %v6376, %v6376
      %v6421 = vmul.f32 %v6379, %v6379
      %v6422 = vmul.f32 %v6382, %v6382
      %v6423 = vmul.f32 %v6385, %v6385
      %v6424 = vmul.f32 %v6388, %v6388
      %v6425 = vmul.f32 %v6391, %v6391
      %v6426 = vmul.f32 %v6394, %v6394
      %v6427 = vsub.f32 %v6397, %v6419
      %v6428 = vsub.f32 %v6400, %v6420
      %v6429 = vsub.f32 %v6403, %v6421
      %v6430 = vsub.f32 %v6406, %v6422
      %v6431 = vsub.f32 %v6409, %v6423
      %v6432 = vsub.f32 %v6412, %v6424
      %v6433 = vsub.f32 %v6415, %v6425
      %v6434 = vsub.f32 %v6418, %v6426
      %v6435 = vadd.f32 %v6427, 1e-05
      %v6436 = vadd.f32 %v6428, 1e-05
      %v6437 = vadd.f32 %v6429, 1e-05
      %v6438 = vadd.f32 %v6430, 1e-05
      %v6439 = vadd.f32 %v6431, 1e-05
      %v6440 = vadd.f32 %v6432, 1e-05
      %v6441 = vadd.f32 %v6433, 1e-05
      %v6442 = vadd.f32 %v6434, 1e-05
      %v6443 = vrsqrt.pop %v6435
      %v6444 = vrsqrt.pop %v6436
      %v6445 = vrsqrt.pop %v6437
      %v6446 = vrsqrt.pop %v6438
      %v6447 = vrsqrt.pop %v6439
      %v6448 = vrsqrt.pop %v6440
      %v6449 = vrsqrt.pop %v6441
      %v6450 = vrsqrt.pop %v6442
      %v6451 = vsub.f32 %v6081, %v6373
      %v6452 = vsub.f32 %v6082, %v6373
      %v6453 = vsub.f32 %v6083, %v6376
      %v6454 = vsub.f32 %v6084, %v6376
      %v6455 = vsub.f32 %v6085, %v6379
      %v6456 = vsub.f32 %v6086, %v6379
      %v6457 = vsub.f32 %v6087, %v6382
      %v6458 = vsub.f32 %v6088, %v6382
      %v6459 = vsub.f32 %v6089, %v6385
      %v6460 = vsub.f32 %v6090, %v6385
      %v6461 = vsub.f32 %v6091, %v6388
      %v6462 = vsub.f32 %v6092, %v6388
      %v6463 = vsub.f32 %v6093, %v6391
      %v6464 = vsub.f32 %v6094, %v6391
      %v6465 = vsub.f32 %v6095, %v6394
      %v6466 = vsub.f32 %v6096, %v6394
      %v6467 = vld [vmem:[%s9] sm:$0xff]
      %v6468 = vld [vmem:[%s9 + $0x8] sm:$0xff]
      %v6469 = vld [vmem:[%s9 + $0x10] sm:$0xff]
      %v6470 = vld [vmem:[%s9 + $0x18] sm:$0xff]
      %v6471 = vld [vmem:[%s9 + $0x20] sm:$0xff]
      %v6472 = vld [vmem:[%s9 + $0x28] sm:$0xff]
      %v6473 = vld [vmem:[%s9 + $0x30] sm:$0xff]
      %v6474 = vld [vmem:[%s9 + $0x38] sm:$0xff]
      %v6475 = vmul.f32 %v6443, %v6467
      %v6476 = vmul.f32 %v6444, %v6468
      %v6477 = vmul.f32 %v6445, %v6469
      %v6478 = vmul.f32 %v6446, %v6470
      %v6479 = vmul.f32 %v6447, %v6471
      %v6480 = vmul.f32 %v6448, %v6472
      %v6481 = vmul.f32 %v6449, %v6473
      %v6482 = vmul.f32 %v6450, %v6474
      %6484 = vset.pattern.permute.xlu0 0
      %6485 = vperm.xlu0 %6484, %v6475
      %v6486 = vpop.permute.xlu0 %6485
      %6489 = vset.pattern.permute.xlu0 0
      %6490 = vperm.xlu0 %6489, %v6476
      %v6491 = vpop.permute.xlu0 %6490
      %6494 = vset.pattern.permute.xlu0 0
      %6495 = vperm.xlu0 %6494, %v6477
      %v6496 = vpop.permute.xlu0 %6495
      %6499 = vset.pattern.permute.xlu0 0
      %6500 = vperm.xlu0 %6499, %v6478
      %v6501 = vpop.permute.xlu0 %6500
      %6504 = vset.pattern.permute.xlu0 0
      %6505 = vperm.xlu0 %6504, %v6479
      %v6506 = vpop.permute.xlu0 %6505
      %6509 = vset.pattern.permute.xlu0 0
      %6510 = vperm.xlu0 %6509, %v6480
      %v6511 = vpop.permute.xlu0 %6510
      %6514 = vset.pattern.permute.xlu0 0
      %6515 = vperm.xlu0 %6514, %v6481
      %v6516 = vpop.permute.xlu0 %6515
      %6519 = vset.pattern.permute.xlu0 0
      %6520 = vperm.xlu0 %6519, %v6482
      %v6521 = vpop.permute.xlu0 %6520
      %v6523 = vmul.f32 %v6451, %v6486
      %v6524 = vmul.f32 %v6452, %v6486
      %v6525 = vmul.f32 %v6453, %v6491
      %v6526 = vmul.f32 %v6454, %v6491
      %v6527 = vmul.f32 %v6455, %v6496
      %v6528 = vmul.f32 %v6456, %v6496
      %v6529 = vmul.f32 %v6457, %v6501
      %v6530 = vmul.f32 %v6458, %v6501
      %v6531 = vmul.f32 %v6459, %v6506
      %v6532 = vmul.f32 %v6460, %v6506
      %v6533 = vmul.f32 %v6461, %v6511
      %v6534 = vmul.f32 %v6462, %v6511
      %v6535 = vmul.f32 %v6463, %v6516
      %v6536 = vmul.f32 %v6464, %v6516
      %v6537 = vmul.f32 %v6465, %v6521
      %v6538 = vmul.f32 %v6466, %v6521
      %v6539 = vld [vmem:[%s10] sm:$0xff]
      %v6540 = vld [vmem:[%s10 + $0x8] sm:$0xff]
      %v6541 = vld [vmem:[%s10 + $0x10] sm:$0xff]
      %v6542 = vld [vmem:[%s10 + $0x18] sm:$0xff]
      %v6543 = vld [vmem:[%s10 + $0x20] sm:$0xff]
      %v6544 = vld [vmem:[%s10 + $0x28] sm:$0xff]
      %v6545 = vld [vmem:[%s10 + $0x30] sm:$0xff]
      %v6546 = vld [vmem:[%s10 + $0x38] sm:$0xff]
      %6548 = vset.pattern.permute.xlu0 0
      %6549 = vperm.xlu0 %6548, %v6539
      %v6550 = vpop.permute.xlu0 %6549
      %6553 = vset.pattern.permute.xlu0 0
      %6554 = vperm.xlu0 %6553, %v6540
      %v6555 = vpop.permute.xlu0 %6554
      %6558 = vset.pattern.permute.xlu0 0
      %6559 = vperm.xlu0 %6558, %v6541
      %v6560 = vpop.permute.xlu0 %6559
      %6563 = vset.pattern.permute.xlu0 0
      %6564 = vperm.xlu0 %6563, %v6542
      %v6565 = vpop.permute.xlu0 %6564
      %6568 = vset.pattern.permute.xlu0 0
      %6569 = vperm.xlu0 %6568, %v6543
      %v6570 = vpop.permute.xlu0 %6569
      %6573 = vset.pattern.permute.xlu0 0
      %6574 = vperm.xlu0 %6573, %v6544
      %v6575 = vpop.permute.xlu0 %6574
      %6578 = vset.pattern.permute.xlu0 0
      %6579 = vperm.xlu0 %6578, %v6545
      %v6580 = vpop.permute.xlu0 %6579
      %6583 = vset.pattern.permute.xlu0 0
      %6584 = vperm.xlu0 %6583, %v6546
      %v6585 = vpop.permute.xlu0 %6584
      %v6587 = vadd.f32 %v6523, %v6550
      %v6588 = vadd.f32 %v6524, %v6550
      %v6589 = vadd.f32 %v6525, %v6555
      %v6590 = vadd.f32 %v6526, %v6555
      %v6591 = vadd.f32 %v6527, %v6560
      %v6592 = vadd.f32 %v6528, %v6560
      %v6593 = vadd.f32 %v6529, %v6565
      %v6594 = vadd.f32 %v6530, %v6565
      %v6595 = vadd.f32 %v6531, %v6570
      %v6596 = vadd.f32 %v6532, %v6570
      %v6597 = vadd.f32 %v6533, %v6575
      %v6598 = vadd.f32 %v6534, %v6575
      %v6599 = vadd.f32 %v6535, %v6580
      %v6600 = vadd.f32 %v6536, %v6580
      %v6601 = vadd.f32 %v6537, %v6585
      %v6602 = vadd.f32 %v6538, %v6585
      %v6603 = vmul.f32 %v6587, 0.5
      %v6604 = vmul.f32 %v6588, 0.5
      %v6605 = vmul.f32 %v6589, 0.5
      %v6606 = vmul.f32 %v6590, 0.5
      %v6607 = vmul.f32 %v6591, 0.5
      %v6608 = vmul.f32 %v6592, 0.5
      %v6609 = vmul.f32 %v6593, 0.5
      %v6610 = vmul.f32 %v6594, 0.5
      %v6611 = vmul.f32 %v6595, 0.5
      %v6612 = vmul.f32 %v6596, 0.5
      %v6613 = vmul.f32 %v6597, 0.5
      %v6614 = vmul.f32 %v6598, 0.5
      %v6615 = vmul.f32 %v6599, 0.5
      %v6616 = vmul.f32 %v6600, 0.5
      %v6617 = vmul.f32 %v6601, 0.5
      %v6618 = vmul.f32 %v6602, 0.5
      %v6619 = vmul.f32 %v6587, 0.70710677
      %v6620 = vmul.f32 %v6588, 0.70710677
      %v6621 = vmul.f32 %v6589, 0.70710677
      %v6622 = vmul.f32 %v6590, 0.70710677
      %v6623 = vmul.f32 %v6591, 0.70710677
      %v6624 = vmul.f32 %v6592, 0.70710677
      %v6625 = vmul.f32 %v6593, 0.70710677
      %v6626 = vmul.f32 %v6594, 0.70710677
      %v6627 = vmul.f32 %v6595, 0.70710677
      %v6628 = vmul.f32 %v6596, 0.70710677
      %v6629 = vmul.f32 %v6597, 0.70710677
      %v6630 = vmul.f32 %v6598, 0.70710677
      %v6631 = vmul.f32 %v6599, 0.70710677
      %v6632 = vmul.f32 %v6600, 0.70710677
      %v6633 = vmul.f32 %v6601, 0.70710677
      %v6634 = vmul.f32 %v6602, 0.70710677
      %vm6635 = vcmp.ge.f32.partialorder %v6619, 0.0
      %vm6636 = vcmp.ge.f32.partialorder %v6620, 0.0
      %vm6637 = vcmp.ge.f32.partialorder %v6621, 0.0
      %vm6638 = vcmp.ge.f32.partialorder %v6622, 0.0
      %vm6639 = vcmp.ge.f32.partialorder %v6623, 0.0
      %vm6640 = vcmp.ge.f32.partialorder %v6624, 0.0
      %vm6641 = vcmp.ge.f32.partialorder %v6625, 0.0
      %vm6642 = vcmp.ge.f32.partialorder %v6626, 0.0
      %vm6643 = vcmp.ge.f32.partialorder %v6627, 0.0
      %vm6644 = vcmp.ge.f32.partialorder %v6628, 0.0
      %vm6645 = vcmp.ge.f32.partialorder %v6629, 0.0
      %vm6646 = vcmp.ge.f32.partialorder %v6630, 0.0
      %vm6647 = vcmp.ge.f32.partialorder %v6631, 0.0
      %vm6648 = vcmp.ge.f32.partialorder %v6632, 0.0
      %vm6649 = vcmp.ge.f32.partialorder %v6633, 0.0
      %vm6650 = vcmp.ge.f32.partialorder %v6634, 0.0
      %v6651 = vsel %vm6635, 1.0, -1.0
      %v6652 = vsel %vm6636, 1.0, -1.0
      %v6653 = vsel %vm6637, 1.0, -1.0
      %v6654 = vsel %vm6638, 1.0, -1.0
      %v6655 = vsel %vm6639, 1.0, -1.0
      %v6656 = vsel %vm6640, 1.0, -1.0
      %v6657 = vsel %vm6641, 1.0, -1.0
      %v6658 = vsel %vm6642, 1.0, -1.0
      %v6659 = vsel %vm6643, 1.0, -1.0
      %v6660 = vsel %vm6644, 1.0, -1.0
      %v6661 = vsel %vm6645, 1.0, -1.0
      %v6662 = vsel %vm6646, 1.0, -1.0
      %v6663 = vsel %vm6647, 1.0, -1.0
      %v6664 = vsel %vm6648, 1.0, -1.0
      %v6665 = vsel %vm6649, 1.0, -1.0
      %v6666 = vsel %vm6650, 1.0, -1.0
      %v6667 = vand.u32 2147483647, %v6619
      %v6668 = vand.u32 2147483647, %v6620
      %v6669 = vand.u32 2147483647, %v6621
      %v6670 = vand.u32 2147483647, %v6622
      %v6671 = vand.u32 2147483647, %v6623
      %v6672 = vand.u32 2147483647, %v6624
      %v6673 = vand.u32 2147483647, %v6625
      %v6674 = vand.u32 2147483647, %v6626
      %v6675 = vand.u32 2147483647, %v6627
      %v6676 = vand.u32 2147483647, %v6628
      %v6677 = vand.u32 2147483647, %v6629
      %v6678 = vand.u32 2147483647, %v6630
      %v6679 = vand.u32 2147483647, %v6631
      %v6680 = vand.u32 2147483647, %v6632
      %v6681 = vand.u32 2147483647, %v6633
      %v6682 = vand.u32 2147483647, %v6634
      %v6683 = vmul.f32 %v6667, 0.3275911
      %v6684 = vmul.f32 %v6668, 0.3275911
      %v6685 = vmul.f32 %v6669, 0.3275911
      %v6686 = vmul.f32 %v6670, 0.3275911
      %v6687 = vmul.f32 %v6671, 0.3275911
      %v6688 = vmul.f32 %v6672, 0.3275911
      %v6689 = vmul.f32 %v6673, 0.3275911
      %v6690 = vmul.f32 %v6674, 0.3275911
      %v6691 = vmul.f32 %v6675, 0.3275911
      %v6692 = vmul.f32 %v6676, 0.3275911
      %v6693 = vmul.f32 %v6677, 0.3275911
      %v6694 = vmul.f32 %v6678, 0.3275911
      %v6695 = vmul.f32 %v6679, 0.3275911
      %v6696 = vmul.f32 %v6680, 0.3275911
      %v6697 = vmul.f32 %v6681, 0.3275911
      %v6698 = vmul.f32 %v6682, 0.3275911
      %v6699 = vadd.f32 %v6683, 1.0
      %v6700 = vadd.f32 %v6684, 1.0
      %v6701 = vadd.f32 %v6685, 1.0
      %v6702 = vadd.f32 %v6686, 1.0
      %v6703 = vadd.f32 %v6687, 1.0
      %v6704 = vadd.f32 %v6688, 1.0
      %v6705 = vadd.f32 %v6689, 1.0
      %v6706 = vadd.f32 %v6690, 1.0
      %v6707 = vadd.f32 %v6691, 1.0
      %v6708 = vadd.f32 %v6692, 1.0
      %v6709 = vadd.f32 %v6693, 1.0
      %v6710 = vadd.f32 %v6694, 1.0
      %v6711 = vadd.f32 %v6695, 1.0
      %v6712 = vadd.f32 %v6696, 1.0
      %v6713 = vadd.f32 %v6697, 1.0
      %v6714 = vadd.f32 %v6698, 1.0
      %v6715 = vrcp.pop %v6699
      %v6716 = vmul.f32 1.0, %v6715
      %v6717 = vrcp.pop %v6700
      %v6718 = vmul.f32 1.0, %v6717
      %v6719 = vrcp.pop %v6701
      %v6720 = vmul.f32 1.0, %v6719
      %v6721 = vrcp.pop %v6702
      %v6722 = vmul.f32 1.0, %v6721
      %v6723 = vrcp.pop %v6703
      %v6724 = vmul.f32 1.0, %v6723
      %v6725 = vrcp.pop %v6704
      %v6726 = vmul.f32 1.0, %v6725
      %v6727 = vrcp.pop %v6705
      %v6728 = vmul.f32 1.0, %v6727
      %v6729 = vrcp.pop %v6706
      %v6730 = vmul.f32 1.0, %v6729
      %v6731 = vrcp.pop %v6707
      %v6732 = vmul.f32 1.0, %v6731
      %v6733 = vrcp.pop %v6708
      %v6734 = vmul.f32 1.0, %v6733
      %v6735 = vrcp.pop %v6709
      %v6736 = vmul.f32 1.0, %v6735
      %v6737 = vrcp.pop %v6710
      %v6738 = vmul.f32 1.0, %v6737
      %v6739 = vrcp.pop %v6711
      %v6740 = vmul.f32 1.0, %v6739
      %v6741 = vrcp.pop %v6712
      %v6742 = vmul.f32 1.0, %v6741
      %v6743 = vrcp.pop %v6713
      %v6744 = vmul.f32 1.0, %v6743
      %v6745 = vrcp.pop %v6714
      %v6746 = vmul.f32 1.0, %v6745
      %v6747 = vmul.f32 %v6716, 1.0614054
      %v6748 = vmul.f32 %v6718, 1.0614054
      %v6749 = vmul.f32 %v6720, 1.0614054
      %v6750 = vmul.f32 %v6722, 1.0614054
      %v6751 = vmul.f32 %v6724, 1.0614054
      %v6752 = vmul.f32 %v6726, 1.0614054
      %v6753 = vmul.f32 %v6728, 1.0614054
      %v6754 = vmul.f32 %v6730, 1.0614054
      %v6755 = vmul.f32 %v6732, 1.0614054
      %v6756 = vmul.f32 %v6734, 1.0614054
      %v6757 = vmul.f32 %v6736, 1.0614054
      %v6758 = vmul.f32 %v6738, 1.0614054
      %v6759 = vmul.f32 %v6740, 1.0614054
      %v6760 = vmul.f32 %v6742, 1.0614054
      %v6761 = vmul.f32 %v6744, 1.0614054
      %v6762 = vmul.f32 %v6746, 1.0614054
      %v6763 = vadd.f32 %v6747, -1.4531521
      %v6764 = vadd.f32 %v6748, -1.4531521
      %v6765 = vadd.f32 %v6749, -1.4531521
      %v6766 = vadd.f32 %v6750, -1.4531521
      %v6767 = vadd.f32 %v6751, -1.4531521
      %v6768 = vadd.f32 %v6752, -1.4531521
      %v6769 = vadd.f32 %v6753, -1.4531521
      %v6770 = vadd.f32 %v6754, -1.4531521
      %v6771 = vadd.f32 %v6755, -1.4531521
      %v6772 = vadd.f32 %v6756, -1.4531521
      %v6773 = vadd.f32 %v6757, -1.4531521
      %v6774 = vadd.f32 %v6758, -1.4531521
      %v6775 = vadd.f32 %v6759, -1.4531521
      %v6776 = vadd.f32 %v6760, -1.4531521
      %v6777 = vadd.f32 %v6761, -1.4531521
      %v6778 = vadd.f32 %v6762, -1.4531521
      %v6779 = vmul.f32 %v6763, %v6716
      %v6780 = vmul.f32 %v6764, %v6718
      %v6781 = vmul.f32 %v6765, %v6720
      %v6782 = vmul.f32 %v6766, %v6722
      %v6783 = vmul.f32 %v6767, %v6724
      %v6784 = vmul.f32 %v6768, %v6726
      %v6785 = vmul.f32 %v6769, %v6728
      %v6786 = vmul.f32 %v6770, %v6730
      %v6787 = vmul.f32 %v6771, %v6732
      %v6788 = vmul.f32 %v6772, %v6734
      %v6789 = vmul.f32 %v6773, %v6736
      %v6790 = vmul.f32 %v6774, %v6738
      %v6791 = vmul.f32 %v6775, %v6740
      %v6792 = vmul.f32 %v6776, %v6742
      %v6793 = vmul.f32 %v6777, %v6744
      %v6794 = vmul.f32 %v6778, %v6746
      %v6795 = vadd.f32 %v6779, 1.4214138
      %v6796 = vadd.f32 %v6780, 1.4214138
      %v6797 = vadd.f32 %v6781, 1.4214138
      %v6798 = vadd.f32 %v6782, 1.4214138
      %v6799 = vadd.f32 %v6783, 1.4214138
      %v6800 = vadd.f32 %v6784, 1.4214138
      %v6801 = vadd.f32 %v6785, 1.4214138
      %v6802 = vadd.f32 %v6786, 1.4214138
      %v6803 = vadd.f32 %v6787, 1.4214138
      %v6804 = vadd.f32 %v6788, 1.4214138
      %v6805 = vadd.f32 %v6789, 1.4214138
      %v6806 = vadd.f32 %v6790, 1.4214138
      %v6807 = vadd.f32 %v6791, 1.4214138
      %v6808 = vadd.f32 %v6792, 1.4214138
      %v6809 = vadd.f32 %v6793, 1.4214138
      %v6810 = vadd.f32 %v6794, 1.4214138
      %v6811 = vmul.f32 %v6795, %v6716
      %v6812 = vmul.f32 %v6796, %v6718
      %v6813 = vmul.f32 %v6797, %v6720
      %v6814 = vmul.f32 %v6798, %v6722
      %v6815 = vmul.f32 %v6799, %v6724
      %v6816 = vmul.f32 %v6800, %v6726
      %v6817 = vmul.f32 %v6801, %v6728
      %v6818 = vmul.f32 %v6802, %v6730
      %v6819 = vmul.f32 %v6803, %v6732
      %v6820 = vmul.f32 %v6804, %v6734
      %v6821 = vmul.f32 %v6805, %v6736
      %v6822 = vmul.f32 %v6806, %v6738
      %v6823 = vmul.f32 %v6807, %v6740
      %v6824 = vmul.f32 %v6808, %v6742
      %v6825 = vmul.f32 %v6809, %v6744
      %v6826 = vmul.f32 %v6810, %v6746
      %v6827 = vadd.f32 %v6811, -0.28449672
      %v6828 = vadd.f32 %v6812, -0.28449672
      %v6829 = vadd.f32 %v6813, -0.28449672
      %v6830 = vadd.f32 %v6814, -0.28449672
      %v6831 = vadd.f32 %v6815, -0.28449672
      %v6832 = vadd.f32 %v6816, -0.28449672
      %v6833 = vadd.f32 %v6817, -0.28449672
      %v6834 = vadd.f32 %v6818, -0.28449672
      %v6835 = vadd.f32 %v6819, -0.28449672
      %v6836 = vadd.f32 %v6820, -0.28449672
      %v6837 = vadd.f32 %v6821, -0.28449672
      %v6838 = vadd.f32 %v6822, -0.28449672
      %v6839 = vadd.f32 %v6823, -0.28449672
      %v6840 = vadd.f32 %v6824, -0.28449672
      %v6841 = vadd.f32 %v6825, -0.28449672
      %v6842 = vadd.f32 %v6826, -0.28449672
      %v6843 = vmul.f32 %v6827, %v6716
      %v6844 = vmul.f32 %v6828, %v6718
      %v6845 = vmul.f32 %v6829, %v6720
      %v6846 = vmul.f32 %v6830, %v6722
      %v6847 = vmul.f32 %v6831, %v6724
      %v6848 = vmul.f32 %v6832, %v6726
      %v6849 = vmul.f32 %v6833, %v6728
      %v6850 = vmul.f32 %v6834, %v6730
      %v6851 = vmul.f32 %v6835, %v6732
      %v6852 = vmul.f32 %v6836, %v6734
      %v6853 = vmul.f32 %v6837, %v6736
      %v6854 = vmul.f32 %v6838, %v6738
      %v6855 = vmul.f32 %v6839, %v6740
      %v6856 = vmul.f32 %v6840, %v6742
      %v6857 = vmul.f32 %v6841, %v6744
      %v6858 = vmul.f32 %v6842, %v6746
      %v6859 = vadd.f32 %v6843, 0.2548296
      %v6860 = vadd.f32 %v6844, 0.2548296
      %v6861 = vadd.f32 %v6845, 0.2548296
      %v6862 = vadd.f32 %v6846, 0.2548296
      %v6863 = vadd.f32 %v6847, 0.2548296
      %v6864 = vadd.f32 %v6848, 0.2548296
      %v6865 = vadd.f32 %v6849, 0.2548296
      %v6866 = vadd.f32 %v6850, 0.2548296
      %v6867 = vadd.f32 %v6851, 0.2548296
      %v6868 = vadd.f32 %v6852, 0.2548296
      %v6869 = vadd.f32 %v6853, 0.2548296
      %v6870 = vadd.f32 %v6854, 0.2548296
      %v6871 = vadd.f32 %v6855, 0.2548296
      %v6872 = vadd.f32 %v6856, 0.2548296
      %v6873 = vadd.f32 %v6857, 0.2548296
      %v6874 = vadd.f32 %v6858, 0.2548296
      %v6875 = vmul.f32 %v6859, %v6716
      %v6876 = vmul.f32 %v6860, %v6718
      %v6877 = vmul.f32 %v6861, %v6720
      %v6878 = vmul.f32 %v6862, %v6722
      %v6879 = vmul.f32 %v6863, %v6724
      %v6880 = vmul.f32 %v6864, %v6726
      %v6881 = vmul.f32 %v6865, %v6728
      %v6882 = vmul.f32 %v6866, %v6730
      %v6883 = vmul.f32 %v6867, %v6732
      %v6884 = vmul.f32 %v6868, %v6734
      %v6885 = vmul.f32 %v6869, %v6736
      %v6886 = vmul.f32 %v6870, %v6738
      %v6887 = vmul.f32 %v6871, %v6740
      %v6888 = vmul.f32 %v6872, %v6742
      %v6889 = vmul.f32 %v6873, %v6744
      %v6890 = vmul.f32 %v6874, %v6746
      %v6891 = vsub.f32 0.0, %v6667
      %v6892 = vsub.f32 0.0, %v6668
      %v6893 = vsub.f32 0.0, %v6669
      %v6894 = vsub.f32 0.0, %v6670
      %v6895 = vsub.f32 0.0, %v6671
      %v6896 = vsub.f32 0.0, %v6672
      %v6897 = vsub.f32 0.0, %v6673
      %v6898 = vsub.f32 0.0, %v6674
      %v6899 = vsub.f32 0.0, %v6675
      %v6900 = vsub.f32 0.0, %v6676
      %v6901 = vsub.f32 0.0, %v6677
      %v6902 = vsub.f32 0.0, %v6678
      %v6903 = vsub.f32 0.0, %v6679
      %v6904 = vsub.f32 0.0, %v6680
      %v6905 = vsub.f32 0.0, %v6681
      %v6906 = vsub.f32 0.0, %v6682
      %v6907 = vmul.f32 %v6891, %v6667
      %v6908 = vmul.f32 %v6892, %v6668
      %v6909 = vmul.f32 %v6893, %v6669
      %v6910 = vmul.f32 %v6894, %v6670
      %v6911 = vmul.f32 %v6895, %v6671
      %v6912 = vmul.f32 %v6896, %v6672
      %v6913 = vmul.f32 %v6897, %v6673
      %v6914 = vmul.f32 %v6898, %v6674
      %v6915 = vmul.f32 %v6899, %v6675
      %v6916 = vmul.f32 %v6900, %v6676
      %v6917 = vmul.f32 %v6901, %v6677
      %v6918 = vmul.f32 %v6902, %v6678
      %v6919 = vmul.f32 %v6903, %v6679
      %v6920 = vmul.f32 %v6904, %v6680
      %v6921 = vmul.f32 %v6905, %v6681
      %v6922 = vmul.f32 %v6906, %v6682
      %v6923 = vmul.f32 %v6907, 1.442695
      %v6924 = vpow.pop %v6923
      %v6925 = vmul.f32 %v6908, 1.442695
      %v6926 = vpow.pop %v6925
      %v6927 = vmul.f32 %v6909, 1.442695
      %v6928 = vpow.pop %v6927
      %v6929 = vmul.f32 %v6910, 1.442695
      %v6930 = vpow.pop %v6929
      %v6931 = vmul.f32 %v6911, 1.442695
      %v6932 = vpow.pop %v6931
      %v6933 = vmul.f32 %v6912, 1.442695
      %v6934 = vpow.pop %v6933
      %v6935 = vmul.f32 %v6913, 1.442695
      %v6936 = vpow.pop %v6935
      %v6937 = vmul.f32 %v6914, 1.442695
      %v6938 = vpow.pop %v6937
      %v6939 = vmul.f32 %v6915, 1.442695
      %v6940 = vpow.pop %v6939
      %v6941 = vmul.f32 %v6916, 1.442695
      %v6942 = vpow.pop %v6941
      %v6943 = vmul.f32 %v6917, 1.442695
      %v6944 = vpow.pop %v6943
      %v6945 = vmul.f32 %v6918, 1.442695
      %v6946 = vpow.pop %v6945
      %v6947 = vmul.f32 %v6919, 1.442695
      %v6948 = vpow.pop %v6947
      %v6949 = vmul.f32 %v6920, 1.442695
      %v6950 = vpow.pop %v6949
      %v6951 = vmul.f32 %v6921, 1.442695
      %v6952 = vpow.pop %v6951
      %v6953 = vmul.f32 %v6922, 1.442695
      %v6954 = vpow.pop %v6953
      %v6955 = vmul.f32 %v6875, %v6924
      %v6956 = vmul.f32 %v6876, %v6926
      %v6957 = vmul.f32 %v6877, %v6928
      %v6958 = vmul.f32 %v6878, %v6930
      %v6959 = vmul.f32 %v6879, %v6932
      %v6960 = vmul.f32 %v6880, %v6934
      %v6961 = vmul.f32 %v6881, %v6936
      %v6962 = vmul.f32 %v6882, %v6938
      %v6963 = vmul.f32 %v6883, %v6940
      %v6964 = vmul.f32 %v6884, %v6942
      %v6965 = vmul.f32 %v6885, %v6944
      %v6966 = vmul.f32 %v6886, %v6946
      %v6967 = vmul.f32 %v6887, %v6948
      %v6968 = vmul.f32 %v6888, %v6950
      %v6969 = vmul.f32 %v6889, %v6952
      %v6970 = vmul.f32 %v6890, %v6954
      %v6971 = vsub.f32 1.0, %v6955
      %v6972 = vsub.f32 1.0, %v6956
      %v6973 = vsub.f32 1.0, %v6957
      %v6974 = vsub.f32 1.0, %v6958
      %v6975 = vsub.f32 1.0, %v6959
      %v6976 = vsub.f32 1.0, %v6960
      %v6977 = vsub.f32 1.0, %v6961
      %v6978 = vsub.f32 1.0, %v6962
      %v6979 = vsub.f32 1.0, %v6963
      %v6980 = vsub.f32 1.0, %v6964
      %v6981 = vsub.f32 1.0, %v6965
      %v6982 = vsub.f32 1.0, %v6966
      %v6983 = vsub.f32 1.0, %v6967
      %v6984 = vsub.f32 1.0, %v6968
      %v6985 = vsub.f32 1.0, %v6969
      %v6986 = vsub.f32 1.0, %v6970
      %v6987 = vmul.f32 %v6651, %v6971
      %v6988 = vmul.f32 %v6652, %v6972
      %v6989 = vmul.f32 %v6653, %v6973
      %v6990 = vmul.f32 %v6654, %v6974
      %v6991 = vmul.f32 %v6655, %v6975
      %v6992 = vmul.f32 %v6656, %v6976
      %v6993 = vmul.f32 %v6657, %v6977
      %v6994 = vmul.f32 %v6658, %v6978
      %v6995 = vmul.f32 %v6659, %v6979
      %v6996 = vmul.f32 %v6660, %v6980
      %v6997 = vmul.f32 %v6661, %v6981
      %v6998 = vmul.f32 %v6662, %v6982
      %v6999 = vmul.f32 %v6663, %v6983
      %v7000 = vmul.f32 %v6664, %v6984
      %v7001 = vmul.f32 %v6665, %v6985
      %v7002 = vmul.f32 %v6666, %v6986
      %v7003 = vadd.f32 %v6987, 1.0
      %v7004 = vadd.f32 %v6988, 1.0
      %v7005 = vadd.f32 %v6989, 1.0
      %v7006 = vadd.f32 %v6990, 1.0
      %v7007 = vadd.f32 %v6991, 1.0
      %v7008 = vadd.f32 %v6992, 1.0
      %v7009 = vadd.f32 %v6993, 1.0
      %v7010 = vadd.f32 %v6994, 1.0
      %v7011 = vadd.f32 %v6995, 1.0
      %v7012 = vadd.f32 %v6996, 1.0
      %v7013 = vadd.f32 %v6997, 1.0
      %v7014 = vadd.f32 %v6998, 1.0
      %v7015 = vadd.f32 %v6999, 1.0
      %v7016 = vadd.f32 %v7000, 1.0
      %v7017 = vadd.f32 %v7001, 1.0
      %v7018 = vadd.f32 %v7002, 1.0
      %v7019 = vmul.f32 %v6603, %v7003
      %v7020 = vmul.f32 %v6604, %v7004
      %v7021 = vmul.f32 %v6605, %v7005
      %v7022 = vmul.f32 %v6606, %v7006
      %v7023 = vmul.f32 %v6607, %v7007
      %v7024 = vmul.f32 %v6608, %v7008
      %v7025 = vmul.f32 %v6609, %v7009
      %v7026 = vmul.f32 %v6610, %v7010
      %v7027 = vmul.f32 %v6611, %v7011
      %v7028 = vmul.f32 %v6612, %v7012
      %v7029 = vmul.f32 %v6613, %v7013
      %v7030 = vmul.f32 %v6614, %v7014
      %v7031 = vmul.f32 %v6615, %v7015
      %v7032 = vmul.f32 %v6616, %v7016
      %v7033 = vmul.f32 %v6617, %v7017
      %v7034 = vmul.f32 %v6618, %v7018
      %7035 = vst [vmem:[%s386] sm:$0xff] %v7019
      %7036 = vst [vmem:[%s386 + $0x8] sm:$0xff] %v7020
      %7037 = vst [vmem:[%s386 + $0x10] sm:$0xff] %v7021
      %7038 = vst [vmem:[%s386 + $0x18] sm:$0xff] %v7022
      %7039 = vst [vmem:[%s386 + $0x20] sm:$0xff] %v7023
      %7040 = vst [vmem:[%s386 + $0x28] sm:$0xff] %v7024
      %7041 = vst [vmem:[%s386 + $0x30] sm:$0xff] %v7025
      %7042 = vst [vmem:[%s386 + $0x38] sm:$0xff] %v7026
      %7043 = vst [vmem:[%s386 + $0x40] sm:$0xff] %v7027
      %7044 = vst [vmem:[%s386 + $0x48] sm:$0xff] %v7028
      %7045 = vst [vmem:[%s386 + $0x50] sm:$0xff] %v7029
      %7046 = vst [vmem:[%s386 + $0x58] sm:$0xff] %v7030
      %7047 = vst [vmem:[%s386 + $0x60] sm:$0xff] %v7031
      %7048 = vst [vmem:[%s386 + $0x68] sm:$0xff] %v7032
      %7049 = vst [vmem:[%s386 + $0x70] sm:$0xff] %v7033
      %7050 = vst [vmem:[%s386 + $0x78] sm:$0xff] %v7034
      %p7051 = scmp.lt.s32.totalorder %s22, 1
      %s7052 = scalar_select %p7051, %s22, 1
      %s7053 = smul.addr %s7052, 16
      %s7054 = smul.addr %s7053, 8
      %s7055 = scalar_lea.vmem %s11, %s7054
      // Predicated region
      $region65: #{decoder_block.1} parent=63 // pred_check
        %p7056 = pneg %p276
      $region66: #{decoder_block.1} parent=63 // pred_check_branch
        %7058 = sbr.rel (%p7056) target = $region68
      $region67: #{decoder_block.1} parent=63 // pred_region
        _
      $region68: #{decoder_block.1} parent=63 // pred_fallthru
        _
    $region64: #{decoder_block.1} parent=5 // pred_fallthru
      _
    %p7059 = scmp.le.s32.totalorder 2, %s17
    // Predicated region
    $region69: #{decoder_block.1} parent=5 // pred_check
      %p7060 = pneg %p7059
    $region70: #{decoder_block.1} parent=5 // pred_check_branch
      %7062 = sbr.rel (%p7060) target = $region72
    $region71: #{decoder_block.1} parent=5 // pred_region
      %s7063 = ssub.s32 %s17, 2
      // Predicated region
      $region73: #{decoder_block.1} parent=71 // pred_check
        %p7064 = pneg %p282
      $region74: #{decoder_block.1} parent=71 // pred_check_branch
        %7066 = sbr.rel (%p7064) target = $region76
      $region75: #{decoder_block.1} parent=71 // pred_region
        %p7067 = scmp.lt.s32.totalorder %s23, 1
        %s7068 = scalar_select %p7067, %s23, 1
        %s7069 = smul.addr %s7068, 16
        %s7070 = smul.addr %s7069, 8
        %s7071 = scalar_lea.vmem %s11, %s7070
      $region76: #{decoder_block.1} parent=71 // pred_fallthru
        _
    $region72: #{decoder_block.1} parent=5 // pred_fallthru
      _
  $region6: #{decoder_block.1} parent=0 // loop_footer
    %s21 = sadd.s32 1, %s17
  $region7: #{decoder_block.1} parent=0 // loop_footer_branch
    %16 = sbr.rel target = $region3
  $region8: #{decoder_block.1} parent=0 // loop_exit
    _

</llo_original>
